<compile_context>
chip_gen: v7x
topology: tpu7x:2x2x1
jax: 0.10.0
libtpu: 0.0.40
codegen_flags: <defaults>
</compile_context>

<pallas_src>
import functools
import numpy as np

import jax
import jax.numpy as jnp
from jax.experimental import pallas as pl
from jax.experimental.pallas import tpu as pltpu


# ----------------------------------------------------------------------------
# In-kernel helpers
# ----------------------------------------------------------------------------
def _elu(y):
    # ELU (alpha=1).  min() keeps the discarded positive branch finite.
    return jnp.where(y > 0.0, y, jnp.exp(jnp.minimum(y, 0.0)) - 1.0)


def _bdot(x, w):
    # bf16 MXU operands, f32 accumulation; surrounding math stays f32.
    return jnp.dot(x.astype(jnp.bfloat16), w, preferred_element_type=jnp.float32)


def _fdot(a, b):
    # exact f32 matmul (used for the one-hot selection matrices).
    return jnp.dot(a, b, preferred_element_type=jnp.float32)


# ----------------------------------------------------------------------------
# Fused MLPEncoder kernel: whole encoder in one pallas_call
# ----------------------------------------------------------------------------
def _encoder_kernel(*refs, inv_n):
    (x_ref, ss_ref, sr_ref, srt_ref,
     m1w1, m1b1, m1w2, m1b2, m1sc, m1sh,
     m2w1s, m2w1r, m2b1, m2w2, m2b2, m2sc, m2sh,
     m3w1, m3b1, m3w2, m3b2, m3sc, m3sh,
     m4w1s, m4w1r, m4w1k, m4b1, m4w2, m4b2, m4sc, m4sh,
     fow, fob, o_ref) = refs

    def mlp(parts, b1, w2, b2, sc, sh):
        # two-layer ELU MLP + (eval-mode) BatchNorm affine.
        # `parts` = [(activation, weight_ref)] for the (possibly split) fc1,
        # i.e. dot(concat(a_i), W) == sum_i dot(a_i, W_i)  -> no in-kernel concat.
        acc = None
        for a, w in parts:
            d = _bdot(a, w[...])
            acc = d if acc is None else acc + d
        h = _elu(acc + b1[...])
        h = _elu(_bdot(h, w2[...]) + b2[...])
        return h * sc[...] + sh[...]

    ss = ss_ref[...]            # (Re, Rn) block-diag rel_send
    sr = sr_ref[...]            # (Re, Rn) block-diag rel_rec
    srt = srt_ref[...]          # (Rn, Re) block-diag rel_rec^T

    h_node = mlp([(x_ref[...], m1w1)], m1b1, m1w2, m1b2, m1sc, m1sh)        # (Rn,H)
    send = _fdot(ss, h_node)                                                 # node2edge
    recv = _fdot(sr, h_node)
    h_edge = mlp([(send, m2w1s), (recv, m2w1r)], m2b1, m2w2, m2b2, m2sc, m2sh)  # (Re,H)
    x_skip = h_edge
    h_n = _fdot(srt, h_edge) * inv_n                                         # edge2node / N
    h_n = mlp([(h_n, m3w1)], m3b1, m3w2, m3b2, m3sc, m3sh)                   # (Rn,H)
    send2 = _fdot(ss, h_n)
    recv2 = _fdot(sr, h_n)
    h_e2 = mlp([(send2, m4w1s), (recv2, m4w1r), (x_skip, m4w1k)],
               m4b1, m4w2, m4b2, m4sc, m4sh)                                 # (Re,H)
    o_ref[...] = _bdot(h_e2, fow[...]) + fob[...]                            # (Re,2)


# ----------------------------------------------------------------------------
# Fused MLPDecoder kernel: all T rollout steps in one pallas_call,
# recurrent state resident in VMEM across steps.
# ----------------------------------------------------------------------------
def _decoder_kernel(*refs, num_steps, msg_out):
    (x0_ref, relm_ref, ss_ref, sr_ref, srt_ref,
     m1ws, m1wr, m1b, m2w, m2b,
     o1wx, o1wa, o1b, o2w, o2b, o3w, o3b, o_ref) = refs

    ss = ss_ref[...]; sr = sr_ref[...]; srt = srt_ref[...]
    relm = relm_ref[...]                       # (Re, 2) hard-gumbel edge one-hots
    mask0 = relm[:, 0:1]
    mask1 = relm[:, 1:2]

    w1s = m1ws[...]; w1r = m1wr[...]; b1 = m1b[...]
    w2 = m2w[...];   b2 = m2b[...]
    wo1x = o1wx[...]; wo1a = o1wa[...]; bo1 = o1b[...]
    wo2 = o2w[...];  bo2 = o2b[...]
    wo3 = o3w[...];  bo3 = o3b[...]

    state = x0_ref[...]                        # (Rn, D) f32 recurrent state
    for t in range(num_steps):                 # static unroll (T small)
        send = _fdot(ss, state)                # (Re, D)
        recv = _fdot(sr, state)
        # both edge-type message MLPs fused into one lane-dense head
        h = jnp.maximum(_bdot(send, w1s) + _bdot(recv, w1r) + b1, 0.0)   # (Re, 2*msg_hid)
        m = jnp.maximum(_bdot(h, w2) + b2, 0.0)                          # (Re, 2*msg_out)
        msgs = m[:, :msg_out] * mask0 + m[:, msg_out:] * mask1           # (Re, msg_out)
        agg = _fdot(srt, msgs)                                           # (Rn, msg_out)
        h1 = jnp.maximum(_bdot(state, wo1x) + _bdot(agg, wo1a) + bo1, 0.0)
        h2 = jnp.maximum(_bdot(h1, wo2) + bo2, 0.0)
        pred = _bdot(h2, wo3) + bo3
        state = state + pred                                             # residual
        o_ref[t] = state


# ----------------------------------------------------------------------------
# pallas_call wrappers (single grid step, full-array VMEM blocks)
# ----------------------------------------------------------------------------
def _vspec(a):
    nd = a.ndim
    return pl.BlockSpec(a.shape, lambda i, _n=nd: (0,) * _n)


def _run_encoder(x_flat, sels, enc, num_heteros):
    Re = sels[0].shape[0]
    ins = [x_flat, sels[0], sels[1], sels[2],
           enc["m1w1"], enc["m1b1"], enc["m1w2"], enc["m1b2"], enc["m1sc"], enc["m1sh"],
           enc["m2w1s"], enc["m2w1r"], enc["m2b1"], enc["m2w2"], enc["m2b2"], enc["m2sc"], enc["m2sh"],
           enc["m3w1"], enc["m3b1"], enc["m3w2"], enc["m3b2"], enc["m3sc"], enc["m3sh"],
           enc["m4w1s"], enc["m4w1r"], enc["m4w1k"], enc["m4b1"], enc["m4w2"], enc["m4b2"], enc["m4sc"], enc["m4sh"],
           enc["fow"], enc["fob"]]
    return pl.pallas_call(
        functools.partial(_encoder_kernel, inv_n=1.0 / num_heteros),
        out_shape=jax.ShapeDtypeStruct((Re, 2), jnp.float32),
        grid=(1,),
        in_specs=[_vspec(a) for a in ins],
        out_specs=pl.BlockSpec((Re, 2), lambda i: (0, 0)),
        compiler_params=pltpu.CompilerParams(dimension_semantics=("arbitrary",)),
    )(*ins)


def _run_decoder(x0, rel_mask, sels, dec, num_steps, msg_out):
    Rn, D = x0.shape
    ins = [x0, rel_mask, sels[0], sels[1], sels[2],
           dec["m1ws"], dec["m1wr"], dec["m1b"], dec["m2w"], dec["m2b"],
           dec["o1wx"], dec["o1wa"], dec["o1b"], dec["o2w"], dec["o2b"],
           dec["o3w"], dec["o3b"]]
    return pl.pallas_call(
        functools.partial(_decoder_kernel, num_steps=num_steps, msg_out=msg_out),
        out_shape=jax.ShapeDtypeStruct((num_steps, Rn, D), jnp.float32),
        grid=(1,),
        in_specs=[_vspec(a) for a in ins],
        out_specs=pl.BlockSpec((num_steps, Rn, D), lambda i: (0, 0, 0)),
        compiler_params=pltpu.CompilerParams(dimension_semantics=("arbitrary",)),
    )(*ins)


# ----------------------------------------------------------------------------
# Deterministic parameter init (PyTorch layout) + one-time kernel packing
# ----------------------------------------------------------------------------
def _linear_init(key, fan_in, fan_out):
    k1, k2 = jax.random.split(key)
    bound = 1.0 / np.sqrt(fan_in)
    w = jax.random.uniform(k1, (fan_in, fan_out), jnp.float32, -bound, bound)
    b = jax.random.uniform(k2, (fan_out,), jnp.float32, -bound, bound)
    return w, b


def _mlp_init(key, n_in, n_hid, n_out):
    k1, k2 = jax.random.split(key)
    fc1_w, fc1_b = _linear_init(k1, n_in, n_hid)
    fc2_w, fc2_b = _linear_init(k2, n_hid, n_out)
    return dict(fc1_w=fc1_w, fc1_b=fc1_b, fc2_w=fc2_w, fc2_b=fc2_b,
                bn_gamma=jnp.ones((n_out,), jnp.float32),
                bn_beta=jnp.zeros((n_out,), jnp.float32),
                bn_mean=jnp.zeros((n_out,), jnp.float32),
                bn_var=jnp.ones((n_out,), jnp.float32))


def init_params(key, num_heteros, num_time_series, time_lags, n_hid_encoder,
                msg_hid, msg_out, n_hid_decoder):
    keys = jax.random.split(key, 12)
    n_in = time_lags * num_time_series
    H, D = n_hid_encoder, num_time_series
    p = {}
    # MLPEncoder(time_lags * num_time_series, n_hid_encoder, 2), factor=True
    p["mlp1"] = _mlp_init(keys[0], n_in, H, H)
    p["mlp2"] = _mlp_init(keys[1], 2 * H, H, H)
    p["mlp3"] = _mlp_init(keys[2], H, H, H)
    p["mlp4"] = _mlp_init(keys[3], 3 * H, H, H)
    p["fc_out_w"], p["fc_out_b"] = _linear_init(keys[4], H, 2)
    # MLPDecoder(n_in_node=D, edge_types=2, msg_hid, msg_out, n_hid_decoder)
    p["msg_fc1"] = []
    p["msg_fc2"] = []
    for i in range(2):
        p["msg_fc1"].append(_linear_init(keys[5 + i], 2 * D, msg_hid))
        p["msg_fc2"].append(_linear_init(keys[7 + i], msg_hid, msg_out))
    p["out_fc1_w"], p["out_fc1_b"] = _linear_init(keys[9], D + msg_out, n_hid_decoder)
    p["out_fc2_w"], p["out_fc2_b"] = _linear_init(keys[10], n_hid_decoder, n_hid_decoder)
    p["out_fc3_w"], p["out_fc3_b"] = _linear_init(keys[11], n_hid_decoder, D)
    return p


def pack_params(p):
    """One-time conversion to kernel-ready slabs: bf16 weights, f32 (1,N) biases,
    BatchNorm folded into an affine, fc1 weights split per concatenated input
    chunk, and the two edge-type message MLPs fused into one head."""
    bf = jnp.bfloat16

    def bn_affine(m, eps=1e-5):
        sc = m["bn_gamma"] * jax.lax.rsqrt(m["bn_var"] + eps)
        sh = m["bn_beta"] - m["bn_mean"] * sc
        return sc.reshape(1, -1).astype(jnp.float32), sh.reshape(1, -1).astype(jnp.float32)

    H = p["mlp1"]["fc2_w"].shape[1]
    enc = {}
    enc["m1w1"] = p["mlp1"]["fc1_w"].astype(bf)
    enc["m1b1"] = p["mlp1"]["fc1_b"].reshape(1, -1)
    enc["m1w2"] = p["mlp1"]["fc2_w"].astype(bf)
    enc["m1b2"] = p["mlp1"]["fc2_b"].reshape(1, -1)
    enc["m1sc"], enc["m1sh"] = bn_affine(p["mlp1"])
    w = p["mlp2"]["fc1_w"]                       # input = cat([senders, receivers])
    enc["m2w1s"], enc["m2w1r"] = w[:H].astype(bf), w[H:].astype(bf)
    enc["m2b1"] = p["mlp2"]["fc1_b"].reshape(1, -1)
    enc["m2w2"] = p["mlp2"]["fc2_w"].astype(bf)
    enc["m2b2"] = p["mlp2"]["fc2_b"].reshape(1, -1)
    enc["m2sc"], enc["m2sh"] = bn_affine(p["mlp2"])
    enc["m3w1"] = p["mlp3"]["fc1_w"].astype(bf)
    enc["m3b1"] = p["mlp3"]["fc1_b"].reshape(1, -1)
    enc["m3w2"] = p["mlp3"]["fc2_w"].astype(bf)
    enc["m3b2"] = p["mlp3"]["fc2_b"].reshape(1, -1)
    enc["m3sc"], enc["m3sh"] = bn_affine(p["mlp3"])
    w = p["mlp4"]["fc1_w"]                       # input = cat([senders, receivers, x_skip])
    enc["m4w1s"] = w[:H].astype(bf)
    enc["m4w1r"] = w[H:2 * H].astype(bf)
    enc["m4w1k"] = w[2 * H:].astype(bf)
    enc["m4b1"] = p["mlp4"]["fc1_b"].reshape(1, -1)
    enc["m4w2"] = p["mlp4"]["fc2_w"].astype(bf)
    enc["m4b2"] = p["mlp4"]["fc2_b"].reshape(1, -1)
    enc["m4sc"], enc["m4sh"] = bn_affine(p["mlp4"])
    enc["fow"] = p["fc_out_w"].astype(bf)
    enc["fob"] = p["fc_out_b"].reshape(1, -1)

    D = p["out_fc3_w"].shape[1]
    mh = p["msg_fc1"][0][0].shape[1]
    mo = p["msg_fc2"][0][0].shape[1]
    w10, b10 = p["msg_fc1"][0]
    w11, b11 = p["msg_fc1"][1]
    dec = {}
    # fc1 of both edge types concatenated along the output (lane) dim, split by
    # input chunk (senders rows 0:D, receivers rows D:2D).
    dec["m1ws"] = jnp.concatenate([w10[:D], w11[:D]], axis=1).astype(bf)
    dec["m1wr"] = jnp.concatenate([w10[D:], w11[D:]], axis=1).astype(bf)
    dec["m1b"] = jnp.concatenate([b10, b11]).reshape(1, -1)
    w20, b20 = p["msg_fc2"][0]
    w21, b21 = p["msg_fc2"][1]
    blk = jnp.zeros((2 * mh, 2 * mo), jnp.float32)
    blk = blk.at[:mh, :mo].set(w20).at[mh:, mo:].set(w21)   # block-diag fc2
    dec["m2w"] = blk.astype(bf)
    dec["m2b"] = jnp.concatenate([b20, b21]).reshape(1, -1)
    w = p["out_fc1_w"]                            # input = cat([inputs, agg_msgs])
    dec["o1wx"], dec["o1wa"] = w[:D].astype(bf), w[D:].astype(bf)
    dec["o1b"] = p["out_fc1_b"].reshape(1, -1)
    dec["o2w"] = p["out_fc2_w"].astype(bf)
    dec["o2b"] = p["out_fc2_b"].reshape(1, -1)
    dec["o3w"] = p["out_fc3_w"].astype(bf)
    dec["o3b"] = p["out_fc3_b"].reshape(1, -1)
    return enc, dec, int(mo)


def build_selection(batch, n):
    """Block-diagonal (over batch) one-hot rel_send / rel_rec / rel_rec^T matrices."""
    off_diag = np.ones((n, n)) - np.eye(n)
    rows, cols = np.where(off_diag)               # row-major off-diag ordering
    eye = np.eye(n, dtype=np.float32)
    rel_rec = eye[rows]                           # (E, n)  receivers
    rel_send = eye[cols]                          # (E, n)  senders
    e = rel_rec.shape[0]

    def blockdiag(m):
        out = np.zeros((batch * m.shape[0], batch * m.shape[1]), np.float32)
        for b in range(batch):
            out[b * m.shape[0]:(b + 1) * m.shape[0],
                b * m.shape[1]:(b + 1) * m.shape[1]] = m
        return out

    sel_s = jnp.asarray(blockdiag(rel_send))      # (B*E, B*N)
    sel_r = jnp.asarray(blockdiag(rel_rec))       # (B*E, B*N)
    sel_rt = jnp.asarray(blockdiag(rel_rec).T.copy())   # (B*N, B*E)
    del e
    return sel_s, sel_r, sel_rt


# ----------------------------------------------------------------------------
# Forward (eval-mode NRIMulti.forward)
# ----------------------------------------------------------------------------
def nri_multi_forward(enc_p, dec_p, x_batch, sel_s, sel_r, sel_rt, gumbel_key, *,
                      tau, pred_steps, num_heteros, msg_out):
    B, N, T, D = x_batch.shape
    E = N * (N - 1)
    Rn, Re = B * N, B * E
    sels = (sel_s, sel_r, sel_rt)

    # ---------------- MLPEncoder (single fused kernel) ----------------
    x_flat = x_batch.reshape(Rn, T * D)
    logits = _run_encoder(x_flat, sels, enc_p, num_heteros).reshape(B, E, 2)

    # ----- gumbel softmax (eval mode: hard=True, forward value = one-hot) -----
    u = jax.random.uniform(gumbel_key, logits.shape, minval=1e-10, maxval=1.0)
    g = -jnp.log(-jnp.log(u))
    y_soft = jax.nn.softmax((logits + g) / tau, axis=-1)
    edges = jax.nn.one_hot(jnp.argmax(y_soft, axis=-1), 2, dtype=jnp.float32)
    prob = jax.nn.softmax(logits, axis=-1)

    # ------- MLPDecoder (its pred_steps arg == time_lags): T-step rollout -------
    # conditioned only on t=0 (inputs[:, 0::time_lags]) — one fused kernel.
    x0 = x_batch[:, :, 0, :].reshape(Rn, D)
    rel_mask = edges.reshape(Re, 2)
    out_seq = _run_decoder(x0, rel_mask, sels, dec_p, T, msg_out)       # (T, Rn, D)
    out_seq = out_seq.reshape(T, B, N, D)
    # pred_all = first T-1 rollout steps; module returns the last `pred_steps`.
    sel_steps = out_seq[T - 1 - pred_steps:T - 1]                       # (P, B, N, D)
    preds_out = jnp.transpose(sel_steps, (1, 2, 0, 3))                  # (B, N, P, D)

    # ---- kl loss: faithful to kl_categorical_uniform(prob, num_heteros, 2) ----
    # (third positional argument 2 lands on eps in the reference signature)
    kl_div = prob * jnp.log(prob + 2.0)
    kl_loss = -jnp.sum(kl_div) / (num_heteros * B)

    # ---------------- adjacency matrices (coo_to_adj) ----------------
    rel = jnp.argmax(logits, axis=-1).astype(jnp.float32)               # (B, E)
    offdiag_idx = jnp.asarray([i for i in range(N * N) if i % (N + 1) != 0],
                              dtype=jnp.int32)
    adj = jnp.zeros((B, N * N), jnp.float32).at[:, offdiag_idx].set(rel)
    A = adj.reshape(B, N, N)

    return {"preds": preds_out, "outs_label": preds_out, "outs_mask": None,
            "kl_loss": -kl_loss, "adj_mat": A}


# ----------------------------------------------------------------------------
if __name__ == "__main__":
    # Module hyper-params (small, consistent with the forward)
    num_heteros = 4          # graph nodes
    num_time_series = 6      # per-node feature dim
    time_lags = 8            # time steps
    tau = 0.5
    n_hid_encoder = 32
    msg_hid = 32
    msg_out = 16
    n_hid_decoder = 32
    pred_steps = 4           # must be <= time_lags - 1
    B = 2

    key = jax.random.PRNGKey(0)
    kp, kx, kg = jax.random.split(key, 3)

    raw_params = init_params(kp, num_heteros, num_time_series, time_lags,
                             n_hid_encoder, msg_hid, msg_out, n_hid_decoder)
    enc_p, dec_p, msg_out_dim = pack_params(raw_params)       # packed once, outside jit
    sel_s, sel_r, sel_rt = build_selection(B, num_heteros)

    x_input = jax.random.normal(kx, (B, num_heteros, time_lags, num_time_series),
                                jnp.float32)

    fwd = jax.jit(functools.partial(nri_multi_forward, tau=tau,
                                    pred_steps=pred_steps,
                                    num_heteros=num_heteros,
                                    msg_out=msg_out_dim))
    out = fwd(enc_p, dec_p, x_input, sel_s, sel_r, sel_rt, kg)

    jax.block_until_ready(out["preds"])
    jax.block_until_ready(out["adj_mat"])
    jax.block_until_ready(out["kl_loss"])

    assert out["preds"].shape == (B, num_heteros, pred_steps, num_time_series)
    assert out["outs_label"].shape == (B, num_heteros, pred_steps, num_time_series)
    assert out["adj_mat"].shape == (B, num_heteros, num_heteros)
    assert out["outs_mask"] is None
    assert bool(jnp.all(jnp.isfinite(out["preds"])))
    print("KERNEL_OK")
</pallas_src>

<mosaic_0001>
module attributes {stable_mosaic.version = 11 : i64} {
  func.func @_encoder_kernel(%arg0: i32, %arg1: memref<8x48xf32, #tpu.memory_space<vmem>>, %arg2: memref<24x8xf32, #tpu.memory_space<vmem>>, %arg3: memref<24x8xf32, #tpu.memory_space<vmem>>, %arg4: memref<8x24xf32, #tpu.memory_space<vmem>>, %arg5: memref<48x32xbf16, #tpu.memory_space<vmem>>, %arg6: memref<1x32xf32, #tpu.memory_space<vmem>>, %arg7: memref<32x32xbf16, #tpu.memory_space<vmem>>, %arg8: memref<1x32xf32, #tpu.memory_space<vmem>>, %arg9: memref<1x32xf32, #tpu.memory_space<vmem>>, %arg10: memref<1x32xf32, #tpu.memory_space<vmem>>, %arg11: memref<32x32xbf16, #tpu.memory_space<vmem>>, %arg12: memref<32x32xbf16, #tpu.memory_space<vmem>>, %arg13: memref<1x32xf32, #tpu.memory_space<vmem>>, %arg14: memref<32x32xbf16, #tpu.memory_space<vmem>>, %arg15: memref<1x32xf32, #tpu.memory_space<vmem>>, %arg16: memref<1x32xf32, #tpu.memory_space<vmem>>, %arg17: memref<1x32xf32, #tpu.memory_space<vmem>>, %arg18: memref<32x32xbf16, #tpu.memory_space<vmem>>, %arg19: memref<1x32xf32, #tpu.memory_space<vmem>>, %arg20: memref<32x32xbf16, #tpu.memory_space<vmem>>, %arg21: memref<1x32xf32, #tpu.memory_space<vmem>>, %arg22: memref<1x32xf32, #tpu.memory_space<vmem>>, %arg23: memref<1x32xf32, #tpu.memory_space<vmem>>, %arg24: memref<32x32xbf16, #tpu.memory_space<vmem>>, %arg25: memref<32x32xbf16, #tpu.memory_space<vmem>>, %arg26: memref<32x32xbf16, #tpu.memory_space<vmem>>, %arg27: memref<1x32xf32, #tpu.memory_space<vmem>>, %arg28: memref<32x32xbf16, #tpu.memory_space<vmem>>, %arg29: memref<1x32xf32, #tpu.memory_space<vmem>>, %arg30: memref<1x32xf32, #tpu.memory_space<vmem>>, %arg31: memref<1x32xf32, #tpu.memory_space<vmem>>, %arg32: memref<32x2xbf16, #tpu.memory_space<vmem>>, %arg33: memref<1x2xf32, #tpu.memory_space<vmem>>, %arg34: memref<24x2xf32, #tpu.memory_space<vmem>>) attributes {dimension_semantics = [#tpu.dimension_semantics<arbitrary>], iteration_bounds = array<i64: 1>, scalar_prefetch = 0 : i64, scratch_operands = 0 : i64, tpu.core_type = #tpu.core_type<tc>, window_params = [{pipeline_mode = #tpu.pipeline_mode<synchronous>, transform_indices = @transform_0, window_bounds = array<i64: 8, 48>}, {pipeline_mode = #tpu.pipeline_mode<synchronous>, transform_indices = @transform_1, window_bounds = array<i64: 24, 8>}, {pipeline_mode = #tpu.pipeline_mode<synchronous>, transform_indices = @transform_2, window_bounds = array<i64: 24, 8>}, {pipeline_mode = #tpu.pipeline_mode<synchronous>, transform_indices = @transform_3, window_bounds = array<i64: 8, 24>}, {pipeline_mode = #tpu.pipeline_mode<synchronous>, transform_indices = @transform_4, window_bounds = array<i64: 48, 32>}, {pipeline_mode = #tpu.pipeline_mode<synchronous>, transform_indices = @transform_5, window_bounds = array<i64: 1, 32>}, {pipeline_mode = #tpu.pipeline_mode<synchronous>, transform_indices = @transform_6, window_bounds = array<i64: 32, 32>}, {pipeline_mode = #tpu.pipeline_mode<synchronous>, transform_indices = @transform_7, window_bounds = array<i64: 1, 32>}, {pipeline_mode = #tpu.pipeline_mode<synchronous>, transform_indices = @transform_8, window_bounds = array<i64: 1, 32>}, {pipeline_mode = #tpu.pipeline_mode<synchronous>, transform_indices = @transform_9, window_bounds = array<i64: 1, 32>}, {pipeline_mode = #tpu.pipeline_mode<synchronous>, transform_indices = @transform_10, window_bounds = array<i64: 32, 32>}, {pipeline_mode = #tpu.pipeline_mode<synchronous>, transform_indices = @transform_11, window_bounds = array<i64: 32, 32>}, {pipeline_mode = #tpu.pipeline_mode<synchronous>, transform_indices = @transform_12, window_bounds = array<i64: 1, 32>}, {pipeline_mode = #tpu.pipeline_mode<synchronous>, transform_indices = @transform_13, window_bounds = array<i64: 32, 32>}, {pipeline_mode = #tpu.pipeline_mode<synchronous>, transform_indices = @transform_14, window_bounds = array<i64: 1, 32>}, {pipeline_mode = #tpu.pipeline_mode<synchronous>, transform_indices = @transform_15, window_bounds = array<i64: 1, 32>}, {pipeline_mode = #tpu.pipeline_mode<synchronous>, transform_indices = @transform_16, window_bounds = array<i64: 1, 32>}, {pipeline_mode = #tpu.pipeline_mode<synchronous>, transform_indices = @transform_17, window_bounds = array<i64: 32, 32>}, {pipeline_mode = #tpu.pipeline_mode<synchronous>, transform_indices = @transform_18, window_bounds = array<i64: 1, 32>}, {pipeline_mode = #tpu.pipeline_mode<synchronous>, transform_indices = @transform_19, window_bounds = array<i64: 32, 32>}, {pipeline_mode = #tpu.pipeline_mode<synchronous>, transform_indices = @transform_20, window_bounds = array<i64: 1, 32>}, {pipeline_mode = #tpu.pipeline_mode<synchronous>, transform_indices = @transform_21, window_bounds = array<i64: 1, 32>}, {pipeline_mode = #tpu.pipeline_mode<synchronous>, transform_indices = @transform_22, window_bounds = array<i64: 1, 32>}, {pipeline_mode = #tpu.pipeline_mode<synchronous>, transform_indices = @transform_23, window_bounds = array<i64: 32, 32>}, {pipeline_mode = #tpu.pipeline_mode<synchronous>, transform_indices = @transform_24, window_bounds = array<i64: 32, 32>}, {pipeline_mode = #tpu.pipeline_mode<synchronous>, transform_indices = @transform_25, window_bounds = array<i64: 32, 32>}, {pipeline_mode = #tpu.pipeline_mode<synchronous>, transform_indices = @transform_26, window_bounds = array<i64: 1, 32>}, {pipeline_mode = #tpu.pipeline_mode<synchronous>, transform_indices = @transform_27, window_bounds = array<i64: 32, 32>}, {pipeline_mode = #tpu.pipeline_mode<synchronous>, transform_indices = @transform_28, window_bounds = array<i64: 1, 32>}, {pipeline_mode = #tpu.pipeline_mode<synchronous>, transform_indices = @transform_29, window_bounds = array<i64: 1, 32>}, {pipeline_mode = #tpu.pipeline_mode<synchronous>, transform_indices = @transform_30, window_bounds = array<i64: 1, 32>}, {pipeline_mode = #tpu.pipeline_mode<synchronous>, transform_indices = @transform_31, window_bounds = array<i64: 32, 2>}, {pipeline_mode = #tpu.pipeline_mode<synchronous>, transform_indices = @transform_32, window_bounds = array<i64: 1, 2>}, {pipeline_mode = #tpu.pipeline_mode<synchronous>, transform_indices = @transform_33, window_bounds = array<i64: 24, 2>}]} {
    %c0 = arith.constant 0 : index
    %c0_0 = arith.constant 0 : index
    %0 = vector.load %arg2[%c0, %c0_0] : memref<24x8xf32, #tpu.memory_space<vmem>>, vector<24x8xf32>
    %c0_1 = arith.constant 0 : index
    %c0_2 = arith.constant 0 : index
    %1 = vector.load %arg3[%c0_1, %c0_2] : memref<24x8xf32, #tpu.memory_space<vmem>>, vector<24x8xf32>
    %c0_3 = arith.constant 0 : index
    %c0_4 = arith.constant 0 : index
    %2 = vector.load %arg4[%c0_3, %c0_4] : memref<8x24xf32, #tpu.memory_space<vmem>>, vector<8x24xf32>
    %c0_5 = arith.constant 0 : index
    %c0_6 = arith.constant 0 : index
    %3 = vector.load %arg1[%c0_5, %c0_6] : memref<8x48xf32, #tpu.memory_space<vmem>>, vector<8x48xf32>
    %c0_7 = arith.constant 0 : index
    %c0_8 = arith.constant 0 : index
    %4 = vector.load %arg5[%c0_7, %c0_8] : memref<48x32xbf16, #tpu.memory_space<vmem>>, vector<48x32xbf16>
    %5 = arith.truncf %3 : vector<8x48xf32> to vector<8x48xbf16>
    %cst = arith.constant dense<0.000000e+00> : vector<8x32xf32>
    %6 = tpu.matmul %5, %4, %cst {dimension_numbers = #tpu.dot_dimension_numbers<[1], [0], [0], [1], [0, 0, 1, 1], [], []>} : vector<8x48xbf16>, vector<48x32xbf16>, vector<8x32xf32> -> vector<8x32xf32>
    %c0_9 = arith.constant 0 : index
    %c0_10 = arith.constant 0 : index
    %7 = vector.load %arg6[%c0_9, %c0_10] : memref<1x32xf32, #tpu.memory_space<vmem>>, vector<1x32xf32>
    %8 = vector.broadcast %7 : vector<1x32xf32> to vector<8x32xf32>
    %9 = arith.addf %6, %8 : vector<8x32xf32>
    %cst_11 = arith.constant 0.000000e+00 : f32
    %10 = vector.broadcast %cst_11 : f32 to vector<8x32xf32>
    %11 = arith.cmpf ogt, %9, %10 : vector<8x32xf32>
    %cst_12 = arith.constant 0.000000e+00 : f32
    %12 = vector.broadcast %cst_12 : f32 to vector<8x32xf32>
    %13 = arith.minimumf %9, %12 : vector<8x32xf32>
    %14 = math.exp %13 : vector<8x32xf32>
    %cst_13 = arith.constant 1.000000e+00 : f32
    %15 = vector.broadcast %cst_13 : f32 to vector<8x32xf32>
    %16 = arith.subf %14, %15 : vector<8x32xf32>
    %17 = arith.select %11, %9, %16 : vector<8x32xi1>, vector<8x32xf32>
    %c0_14 = arith.constant 0 : index
    %c0_15 = arith.constant 0 : index
    %18 = vector.load %arg7[%c0_14, %c0_15] : memref<32x32xbf16, #tpu.memory_space<vmem>>, vector<32x32xbf16>
    %19 = arith.truncf %17 : vector<8x32xf32> to vector<8x32xbf16>
    %cst_16 = arith.constant dense<0.000000e+00> : vector<8x32xf32>
    %20 = tpu.matmul %19, %18, %cst_16 {dimension_numbers = #tpu.dot_dimension_numbers<[1], [0], [0], [1], [0, 0, 1, 1], [], []>} : vector<8x32xbf16>, vector<32x32xbf16>, vector<8x32xf32> -> vector<8x32xf32>
    %c0_17 = arith.constant 0 : index
    %c0_18 = arith.constant 0 : index
    %21 = vector.load %arg8[%c0_17, %c0_18] : memref<1x32xf32, #tpu.memory_space<vmem>>, vector<1x32xf32>
    %22 = vector.broadcast %21 : vector<1x32xf32> to vector<8x32xf32>
    %23 = arith.addf %20, %22 : vector<8x32xf32>
    %cst_19 = arith.constant 0.000000e+00 : f32
    %24 = vector.broadcast %cst_19 : f32 to vector<8x32xf32>
    %25 = arith.cmpf ogt, %23, %24 : vector<8x32xf32>
    %cst_20 = arith.constant 0.000000e+00 : f32
    %26 = vector.broadcast %cst_20 : f32 to vector<8x32xf32>
    %27 = arith.minimumf %23, %26 : vector<8x32xf32>
    %28 = math.exp %27 : vector<8x32xf32>
    %cst_21 = arith.constant 1.000000e+00 : f32
    %29 = vector.broadcast %cst_21 : f32 to vector<8x32xf32>
    %30 = arith.subf %28, %29 : vector<8x32xf32>
    %31 = arith.select %25, %23, %30 : vector<8x32xi1>, vector<8x32xf32>
    %c0_22 = arith.constant 0 : index
    %c0_23 = arith.constant 0 : index
    %32 = vector.load %arg9[%c0_22, %c0_23] : memref<1x32xf32, #tpu.memory_space<vmem>>, vector<1x32xf32>
    %33 = vector.broadcast %32 : vector<1x32xf32> to vector<8x32xf32>
    %34 = arith.mulf %31, %33 : vector<8x32xf32>
    %c0_24 = arith.constant 0 : index
    %c0_25 = arith.constant 0 : index
    %35 = vector.load %arg10[%c0_24, %c0_25] : memref<1x32xf32, #tpu.memory_space<vmem>>, vector<1x32xf32>
    %36 = vector.broadcast %35 : vector<1x32xf32> to vector<8x32xf32>
    %37 = arith.addf %34, %36 : vector<8x32xf32>
    %cst_26 = arith.constant dense<0.000000e+00> : vector<24x32xf32>
    %38 = tpu.matmul %0, %37, %cst_26 {dimension_numbers = #tpu.dot_dimension_numbers<[1], [0], [0], [1], [0, 0, 1, 1], [], []>} : vector<24x8xf32>, vector<8x32xf32>, vector<24x32xf32> -> vector<24x32xf32>
    %cst_27 = arith.constant dense<0.000000e+00> : vector<24x32xf32>
    %39 = tpu.matmul %1, %37, %cst_27 {dimension_numbers = #tpu.dot_dimension_numbers<[1], [0], [0], [1], [0, 0, 1, 1], [], []>} : vector<24x8xf32>, vector<8x32xf32>, vector<24x32xf32> -> vector<24x32xf32>
    %c0_28 = arith.constant 0 : index
    %c0_29 = arith.constant 0 : index
    %40 = vector.load %arg11[%c0_28, %c0_29] : memref<32x32xbf16, #tpu.memory_space<vmem>>, vector<32x32xbf16>
    %41 = arith.truncf %38 : vector<24x32xf32> to vector<24x32xbf16>
    %cst_30 = arith.constant dense<0.000000e+00> : vector<24x32xf32>
    %42 = tpu.matmul %41, %40, %cst_30 {dimension_numbers = #tpu.dot_dimension_numbers<[1], [0], [0], [1], [0, 0, 1, 1], [], []>} : vector<24x32xbf16>, vector<32x32xbf16>, vector<24x32xf32> -> vector<24x32xf32>
    %c0_31 = arith.constant 0 : index
    %c0_32 = arith.constant 0 : index
    %43 = vector.load %arg12[%c0_31, %c0_32] : memref<32x32xbf16, #tpu.memory_space<vmem>>, vector<32x32xbf16>
    %44 = arith.truncf %39 : vector<24x32xf32> to vector<24x32xbf16>
    %cst_33 = arith.constant dense<0.000000e+00> : vector<24x32xf32>
    %45 = tpu.matmul %44, %43, %cst_33 {dimension_numbers = #tpu.dot_dimension_numbers<[1], [0], [0], [1], [0, 0, 1, 1], [], []>} : vector<24x32xbf16>, vector<32x32xbf16>, vector<24x32xf32> -> vector<24x32xf32>
    %46 = arith.addf %42, %45 : vector<24x32xf32>
    %c0_34 = arith.constant 0 : index
    %c0_35 = arith.constant 0 : index
    %47 = vector.load %arg13[%c0_34, %c0_35] : memref<1x32xf32, #tpu.memory_space<vmem>>, vector<1x32xf32>
    %48 = vector.broadcast %47 : vector<1x32xf32> to vector<24x32xf32>
    %49 = arith.addf %46, %48 : vector<24x32xf32>
    %cst_36 = arith.constant 0.000000e+00 : f32
    %50 = vector.broadcast %cst_36 : f32 to vector<24x32xf32>
    %51 = arith.cmpf ogt, %49, %50 : vector<24x32xf32>
    %cst_37 = arith.constant 0.000000e+00 : f32
    %52 = vector.broadcast %cst_37 : f32 to vector<24x32xf32>
    %53 = arith.minimumf %49, %52 : vector<24x32xf32>
    %54 = math.exp %53 : vector<24x32xf32>
    %cst_38 = arith.constant 1.000000e+00 : f32
    %55 = vector.broadcast %cst_38 : f32 to vector<24x32xf32>
    %56 = arith.subf %54, %55 : vector<24x32xf32>
    %57 = arith.select %51, %49, %56 : vector<24x32xi1>, vector<24x32xf32>
    %c0_39 = arith.constant 0 : index
    %c0_40 = arith.constant 0 : index
    %58 = vector.load %arg14[%c0_39, %c0_40] : memref<32x32xbf16, #tpu.memory_space<vmem>>, vector<32x32xbf16>
    %59 = arith.truncf %57 : vector<24x32xf32> to vector<24x32xbf16>
    %cst_41 = arith.constant dense<0.000000e+00> : vector<24x32xf32>
    %60 = tpu.matmul %59, %58, %cst_41 {dimension_numbers = #tpu.dot_dimension_numbers<[1], [0], [0], [1], [0, 0, 1, 1], [], []>} : vector<24x32xbf16>, vector<32x32xbf16>, vector<24x32xf32> -> vector<24x32xf32>
    %c0_42 = arith.constant 0 : index
    %c0_43 = arith.constant 0 : index
    %61 = vector.load %arg15[%c0_42, %c0_43] : memref<1x32xf32, #tpu.memory_space<vmem>>, vector<1x32xf32>
    %62 = vector.broadcast %61 : vector<1x32xf32> to vector<24x32xf32>
    %63 = arith.addf %60, %62 : vector<24x32xf32>
    %cst_44 = arith.constant 0.000000e+00 : f32
    %64 = vector.broadcast %cst_44 : f32 to vector<24x32xf32>
    %65 = arith.cmpf ogt, %63, %64 : vector<24x32xf32>
    %cst_45 = arith.constant 0.000000e+00 : f32
    %66 = vector.broadcast %cst_45 : f32 to vector<24x32xf32>
    %67 = arith.minimumf %63, %66 : vector<24x32xf32>
    %68 = math.exp %67 : vector<24x32xf32>
    %cst_46 = arith.constant 1.000000e+00 : f32
    %69 = vector.broadcast %cst_46 : f32 to vector<24x32xf32>
    %70 = arith.subf %68, %69 : vector<24x32xf32>
    %71 = arith.select %65, %63, %70 : vector<24x32xi1>, vector<24x32xf32>
    %c0_47 = arith.constant 0 : index
    %c0_48 = arith.constant 0 : index
    %72 = vector.load %arg16[%c0_47, %c0_48] : memref<1x32xf32, #tpu.memory_space<vmem>>, vector<1x32xf32>
    %73 = vector.broadcast %72 : vector<1x32xf32> to vector<24x32xf32>
    %74 = arith.mulf %71, %73 : vector<24x32xf32>
    %c0_49 = arith.constant 0 : index
    %c0_50 = arith.constant 0 : index
    %75 = vector.load %arg17[%c0_49, %c0_50] : memref<1x32xf32, #tpu.memory_space<vmem>>, vector<1x32xf32>
    %76 = vector.broadcast %75 : vector<1x32xf32> to vector<24x32xf32>
    %77 = arith.addf %74, %76 : vector<24x32xf32>
    %cst_51 = arith.constant dense<0.000000e+00> : vector<8x32xf32>
    %78 = tpu.matmul %2, %77, %cst_51 {dimension_numbers = #tpu.dot_dimension_numbers<[1], [0], [0], [1], [0, 0, 1, 1], [], []>} : vector<8x24xf32>, vector<24x32xf32>, vector<8x32xf32> -> vector<8x32xf32>
    %cst_52 = arith.constant 2.500000e-01 : f32
    %79 = vector.broadcast %cst_52 : f32 to vector<8x32xf32>
    %80 = arith.mulf %78, %79 : vector<8x32xf32>
    %c0_53 = arith.constant 0 : index
    %c0_54 = arith.constant 0 : index
    %81 = vector.load %arg18[%c0_53, %c0_54] : memref<32x32xbf16, #tpu.memory_space<vmem>>, vector<32x32xbf16>
    %82 = arith.truncf %80 : vector<8x32xf32> to vector<8x32xbf16>
    %cst_55 = arith.constant dense<0.000000e+00> : vector<8x32xf32>
    %83 = tpu.matmul %82, %81, %cst_55 {dimension_numbers = #tpu.dot_dimension_numbers<[1], [0], [0], [1], [0, 0, 1, 1], [], []>} : vector<8x32xbf16>, vector<32x32xbf16>, vector<8x32xf32> -> vector<8x32xf32>
    %c0_56 = arith.constant 0 : index
    %c0_57 = arith.constant 0 : index
    %84 = vector.load %arg19[%c0_56, %c0_57] : memref<1x32xf32, #tpu.memory_space<vmem>>, vector<1x32xf32>
    %85 = vector.broadcast %84 : vector<1x32xf32> to vector<8x32xf32>
    %86 = arith.addf %83, %85 : vector<8x32xf32>
    %cst_58 = arith.constant 0.000000e+00 : f32
    %87 = vector.broadcast %cst_58 : f32 to vector<8x32xf32>
    %88 = arith.cmpf ogt, %86, %87 : vector<8x32xf32>
    %cst_59 = arith.constant 0.000000e+00 : f32
    %89 = vector.broadcast %cst_59 : f32 to vector<8x32xf32>
    %90 = arith.minimumf %86, %89 : vector<8x32xf32>
    %91 = math.exp %90 : vector<8x32xf32>
    %cst_60 = arith.constant 1.000000e+00 : f32
    %92 = vector.broadcast %cst_60 : f32 to vector<8x32xf32>
    %93 = arith.subf %91, %92 : vector<8x32xf32>
    %94 = arith.select %88, %86, %93 : vector<8x32xi1>, vector<8x32xf32>
    %c0_61 = arith.constant 0 : index
    %c0_62 = arith.constant 0 : index
    %95 = vector.load %arg20[%c0_61, %c0_62] : memref<32x32xbf16, #tpu.memory_space<vmem>>, vector<32x32xbf16>
    %96 = arith.truncf %94 : vector<8x32xf32> to vector<8x32xbf16>
    %cst_63 = arith.constant dense<0.000000e+00> : vector<8x32xf32>
    %97 = tpu.matmul %96, %95, %cst_63 {dimension_numbers = #tpu.dot_dimension_numbers<[1], [0], [0], [1], [0, 0, 1, 1], [], []>} : vector<8x32xbf16>, vector<32x32xbf16>, vector<8x32xf32> -> vector<8x32xf32>
    %c0_64 = arith.constant 0 : index
    %c0_65 = arith.constant 0 : index
    %98 = vector.load %arg21[%c0_64, %c0_65] : memref<1x32xf32, #tpu.memory_space<vmem>>, vector<1x32xf32>
    %99 = vector.broadcast %98 : vector<1x32xf32> to vector<8x32xf32>
    %100 = arith.addf %97, %99 : vector<8x32xf32>
    %cst_66 = arith.constant 0.000000e+00 : f32
    %101 = vector.broadcast %cst_66 : f32 to vector<8x32xf32>
    %102 = arith.cmpf ogt, %100, %101 : vector<8x32xf32>
    %cst_67 = arith.constant 0.000000e+00 : f32
    %103 = vector.broadcast %cst_67 : f32 to vector<8x32xf32>
    %104 = arith.minimumf %100, %103 : vector<8x32xf32>
    %105 = math.exp %104 : vector<8x32xf32>
    %cst_68 = arith.constant 1.000000e+00 : f32
    %106 = vector.broadcast %cst_68 : f32 to vector<8x32xf32>
    %107 = arith.subf %105, %106 : vector<8x32xf32>
    %108 = arith.select %102, %100, %107 : vector<8x32xi1>, vector<8x32xf32>
    %c0_69 = arith.constant 0 : index
    %c0_70 = arith.constant 0 : index
    %109 = vector.load %arg22[%c0_69, %c0_70] : memref<1x32xf32, #tpu.memory_space<vmem>>, vector<1x32xf32>
    %110 = vector.broadcast %109 : vector<1x32xf32> to vector<8x32xf32>
    %111 = arith.mulf %108, %110 : vector<8x32xf32>
    %c0_71 = arith.constant 0 : index
    %c0_72 = arith.constant 0 : index
    %112 = vector.load %arg23[%c0_71, %c0_72] : memref<1x32xf32, #tpu.memory_space<vmem>>, vector<1x32xf32>
    %113 = vector.broadcast %112 : vector<1x32xf32> to vector<8x32xf32>
    %114 = arith.addf %111, %113 : vector<8x32xf32>
    %cst_73 = arith.constant dense<0.000000e+00> : vector<24x32xf32>
    %115 = tpu.matmul %0, %114, %cst_73 {dimension_numbers = #tpu.dot_dimension_numbers<[1], [0], [0], [1], [0, 0, 1, 1], [], []>} : vector<24x8xf32>, vector<8x32xf32>, vector<24x32xf32> -> vector<24x32xf32>
    %cst_74 = arith.constant dense<0.000000e+00> : vector<24x32xf32>
    %116 = tpu.matmul %1, %114, %cst_74 {dimension_numbers = #tpu.dot_dimension_numbers<[1], [0], [0], [1], [0, 0, 1, 1], [], []>} : vector<24x8xf32>, vector<8x32xf32>, vector<24x32xf32> -> vector<24x32xf32>
    %c0_75 = arith.constant 0 : index
    %c0_76 = arith.constant 0 : index
    %117 = vector.load %arg24[%c0_75, %c0_76] : memref<32x32xbf16, #tpu.memory_space<vmem>>, vector<32x32xbf16>
    %118 = arith.truncf %115 : vector<24x32xf32> to vector<24x32xbf16>
    %cst_77 = arith.constant dense<0.000000e+00> : vector<24x32xf32>
    %119 = tpu.matmul %118, %117, %cst_77 {dimension_numbers = #tpu.dot_dimension_numbers<[1], [0], [0], [1], [0, 0, 1, 1], [], []>} : vector<24x32xbf16>, vector<32x32xbf16>, vector<24x32xf32> -> vector<24x32xf32>
    %c0_78 = arith.constant 0 : index
    %c0_79 = arith.constant 0 : index
    %120 = vector.load %arg25[%c0_78, %c0_79] : memref<32x32xbf16, #tpu.memory_space<vmem>>, vector<32x32xbf16>
    %121 = arith.truncf %116 : vector<24x32xf32> to vector<24x32xbf16>
    %cst_80 = arith.constant dense<0.000000e+00> : vector<24x32xf32>
    %122 = tpu.matmul %121, %120, %cst_80 {dimension_numbers = #tpu.dot_dimension_numbers<[1], [0], [0], [1], [0, 0, 1, 1], [], []>} : vector<24x32xbf16>, vector<32x32xbf16>, vector<24x32xf32> -> vector<24x32xf32>
    %123 = arith.addf %119, %122 : vector<24x32xf32>
    %c0_81 = arith.constant 0 : index
    %c0_82 = arith.constant 0 : index
    %124 = vector.load %arg26[%c0_81, %c0_82] : memref<32x32xbf16, #tpu.memory_space<vmem>>, vector<32x32xbf16>
    %125 = arith.truncf %77 : vector<24x32xf32> to vector<24x32xbf16>
    %cst_83 = arith.constant dense<0.000000e+00> : vector<24x32xf32>
    %126 = tpu.matmul %125, %124, %cst_83 {dimension_numbers = #tpu.dot_dimension_numbers<[1], [0], [0], [1], [0, 0, 1, 1], [], []>} : vector<24x32xbf16>, vector<32x32xbf16>, vector<24x32xf32> -> vector<24x32xf32>
    %127 = arith.addf %123, %126 : vector<24x32xf32>
    %c0_84 = arith.constant 0 : index
    %c0_85 = arith.constant 0 : index
    %128 = vector.load %arg27[%c0_84, %c0_85] : memref<1x32xf32, #tpu.memory_space<vmem>>, vector<1x32xf32>
    %129 = vector.broadcast %128 : vector<1x32xf32> to vector<24x32xf32>
    %130 = arith.addf %127, %129 : vector<24x32xf32>
    %cst_86 = arith.constant 0.000000e+00 : f32
    %131 = vector.broadcast %cst_86 : f32 to vector<24x32xf32>
    %132 = arith.cmpf ogt, %130, %131 : vector<24x32xf32>
    %cst_87 = arith.constant 0.000000e+00 : f32
    %133 = vector.broadcast %cst_87 : f32 to vector<24x32xf32>
    %134 = arith.minimumf %130, %133 : vector<24x32xf32>
    %135 = math.exp %134 : vector<24x32xf32>
    %cst_88 = arith.constant 1.000000e+00 : f32
    %136 = vector.broadcast %cst_88 : f32 to vector<24x32xf32>
    %137 = arith.subf %135, %136 : vector<24x32xf32>
    %138 = arith.select %132, %130, %137 : vector<24x32xi1>, vector<24x32xf32>
    %c0_89 = arith.constant 0 : index
    %c0_90 = arith.constant 0 : index
    %139 = vector.load %arg28[%c0_89, %c0_90] : memref<32x32xbf16, #tpu.memory_space<vmem>>, vector<32x32xbf16>
    %140 = arith.truncf %138 : vector<24x32xf32> to vector<24x32xbf16>
    %cst_91 = arith.constant dense<0.000000e+00> : vector<24x32xf32>
    %141 = tpu.matmul %140, %139, %cst_91 {dimension_numbers = #tpu.dot_dimension_numbers<[1], [0], [0], [1], [0, 0, 1, 1], [], []>} : vector<24x32xbf16>, vector<32x32xbf16>, vector<24x32xf32> -> vector<24x32xf32>
    %c0_92 = arith.constant 0 : index
    %c0_93 = arith.constant 0 : index
    %142 = vector.load %arg29[%c0_92, %c0_93] : memref<1x32xf32, #tpu.memory_space<vmem>>, vector<1x32xf32>
    %143 = vector.broadcast %142 : vector<1x32xf32> to vector<24x32xf32>
    %144 = arith.addf %141, %143 : vector<24x32xf32>
    %cst_94 = arith.constant 0.000000e+00 : f32
    %145 = vector.broadcast %cst_94 : f32 to vector<24x32xf32>
    %146 = arith.cmpf ogt, %144, %145 : vector<24x32xf32>
    %cst_95 = arith.constant 0.000000e+00 : f32
    %147 = vector.broadcast %cst_95 : f32 to vector<24x32xf32>
    %148 = arith.minimumf %144, %147 : vector<24x32xf32>
    %149 = math.exp %148 : vector<24x32xf32>
    %cst_96 = arith.constant 1.000000e+00 : f32
    %150 = vector.broadcast %cst_96 : f32 to vector<24x32xf32>
    %151 = arith.subf %149, %150 : vector<24x32xf32>
    %152 = arith.select %146, %144, %151 : vector<24x32xi1>, vector<24x32xf32>
    %c0_97 = arith.constant 0 : index
    %c0_98 = arith.constant 0 : index
    %153 = vector.load %arg30[%c0_97, %c0_98] : memref<1x32xf32, #tpu.memory_space<vmem>>, vector<1x32xf32>
    %154 = vector.broadcast %153 : vector<1x32xf32> to vector<24x32xf32>
    %155 = arith.mulf %152, %154 : vector<24x32xf32>
    %c0_99 = arith.constant 0 : index
    %c0_100 = arith.constant 0 : index
    %156 = vector.load %arg31[%c0_99, %c0_100] : memref<1x32xf32, #tpu.memory_space<vmem>>, vector<1x32xf32>
    %157 = vector.broadcast %156 : vector<1x32xf32> to vector<24x32xf32>
    %158 = arith.addf %155, %157 : vector<24x32xf32>
    %c0_101 = arith.constant 0 : index
    %c0_102 = arith.constant 0 : index
    %159 = vector.load %arg32[%c0_101, %c0_102] : memref<32x2xbf16, #tpu.memory_space<vmem>>, vector<32x2xbf16>
    %160 = arith.truncf %158 : vector<24x32xf32> to vector<24x32xbf16>
    %cst_103 = arith.constant dense<0.000000e+00> : vector<24x2xf32>
    %161 = tpu.matmul %160, %159, %cst_103 {dimension_numbers = #tpu.dot_dimension_numbers<[1], [0], [0], [1], [0, 0, 1, 1], [], []>} : vector<24x32xbf16>, vector<32x2xbf16>, vector<24x2xf32> -> vector<24x2xf32>
    %c0_104 = arith.constant 0 : index
    %c0_105 = arith.constant 0 : index
    %162 = vector.load %arg33[%c0_104, %c0_105] : memref<1x2xf32, #tpu.memory_space<vmem>>, vector<1x2xf32>
    %163 = vector.broadcast %162 : vector<1x2xf32> to vector<24x2xf32>
    %164 = arith.addf %161, %163 : vector<24x2xf32>
    %c0_106 = arith.constant 0 : index
    %c0_107 = arith.constant 0 : index
    %165 = vector.load %arg34[%c0_106, %c0_107] : memref<24x2xf32, #tpu.memory_space<vmem>>, vector<24x2xf32>
    tpu.vector_store %arg34[%c0_106, %c0_107], %164 {strides = array<i32>} : memref<24x2xf32, #tpu.memory_space<vmem>>, vector<24x2xf32>,
    return
  }
  func.func @transform_0(%arg0: i32) -> (i32, i32) {
    %c0_i32 = arith.constant 0 : i32
    %c0_i32_0 = arith.constant 0 : i32
    %c0_i32_1 = arith.constant 0 : i32
    return %c0_i32, %c0_i32_0 : i32, i32
  }
  func.func @transform_1(%arg0: i32) -> (i32, i32) {
    %c0_i32 = arith.constant 0 : i32
    %c0_i32_0 = arith.constant 0 : i32
    %c0_i32_1 = arith.constant 0 : i32
    return %c0_i32, %c0_i32_0 : i32, i32
  }
  func.func @transform_2(%arg0: i32) -> (i32, i32) {
    %c0_i32 = arith.constant 0 : i32
    %c0_i32_0 = arith.constant 0 : i32
    %c0_i32_1 = arith.constant 0 : i32
    return %c0_i32, %c0_i32_0 : i32, i32
  }
  func.func @transform_3(%arg0: i32) -> (i32, i32) {
    %c0_i32 = arith.constant 0 : i32
    %c0_i32_0 = arith.constant 0 : i32
    %c0_i32_1 = arith.constant 0 : i32
    return %c0_i32, %c0_i32_0 : i32, i32
  }
  func.func @transform_4(%arg0: i32) -> (i32, i32) {
    %c0_i32 = arith.constant 0 : i32
    %c0_i32_0 = arith.constant 0 : i32
    %c0_i32_1 = arith.constant 0 : i32
    return %c0_i32, %c0_i32_0 : i32, i32
  }
  func.func @transform_5(%arg0: i32) -> (i32, i32) {
    %c0_i32 = arith.constant 0 : i32
    %c0_i32_0 = arith.constant 0 : i32
    %c0_i32_1 = arith.constant 0 : i32
    return %c0_i32, %c0_i32_0 : i32, i32
  }
  func.func @transform_6(%arg0: i32) -> (i32, i32) {
    %c0_i32 = arith.constant 0 : i32
    %c0_i32_0 = arith.constant 0 : i32
    %c0_i32_1 = arith.constant 0 : i32
    return %c0_i32, %c0_i32_0 : i32, i32
  }
  func.func @transform_7(%arg0: i32) -> (i32, i32) {
    %c0_i32 = arith.constant 0 : i32
    %c0_i32_0 = arith.constant 0 : i32
    %c0_i32_1 = arith.constant 0 : i32
    return %c0_i32, %c0_i32_0 : i32, i32
  }
  func.func @transform_8(%arg0: i32) -> (i32, i32) {
    %c0_i32 = arith.constant 0 : i32
    %c0_i32_0 = arith.constant 0 : i32
    %c0_i32_1 = arith.constant 0 : i32
    return %c0_i32, %c0_i32_0 : i32, i32
  }
  func.func @transform_9(%arg0: i32) -> (i32, i32) {
    %c0_i32 = arith.constant 0 : i32
    %c0_i32_0 = arith.constant 0 : i32
    %c0_i32_1 = arith.constant 0 : i32
    return %c0_i32, %c0_i32_0 : i32, i32
  }
  func.func @transform_10(%arg0: i32) -> (i32, i32) {
    %c0_i32 = arith.constant 0 : i32
    %c0_i32_0 = arith.constant 0 : i32
    %c0_i32_1 = arith.constant 0 : i32
    return %c0_i32, %c0_i32_0 : i32, i32
  }
  func.func @transform_11(%arg0: i32) -> (i32, i32) {
    %c0_i32 = arith.constant 0 : i32
    %c0_i32_0 = arith.constant 0 : i32
    %c0_i32_1 = arith.constant 0 : i32
    return %c0_i32, %c0_i32_0 : i32, i32
  }
  func.func @transform_12(%arg0: i32) -> (i32, i32) {
    %c0_i32 = arith.constant 0 : i32
    %c0_i32_0 = arith.constant 0 : i32
    %c0_i32_1 = arith.constant 0 : i32
    return %c0_i32, %c0_i32_0 : i32, i32
  }
  func.func @transform_13(%arg0: i32) -> (i32, i32) {
    %c0_i32 = arith.constant 0 : i32
    %c0_i32_0 = arith.constant 0 : i32
    %c0_i32_1 = arith.constant 0 : i32
    return %c0_i32, %c0_i32_0 : i32, i32
  }
  func.func @transform_14(%arg0: i32) -> (i32, i32) {
    %c0_i32 = arith.constant 0 : i32
    %c0_i32_0 = arith.constant 0 : i32
    %c0_i32_1 = arith.constant 0 : i32
    return %c0_i32, %c0_i32_0 : i32, i32
  }
  func.func @transform_15(%arg0: i32) -> (i32, i32) {
    %c0_i32 = arith.constant 0 : i32
    %c0_i32_0 = arith.constant 0 : i32
    %c0_i32_1 = arith.constant 0 : i32
    return %c0_i32, %c0_i32_0 : i32, i32
  }
  func.func @transform_16(%arg0: i32) -> (i32, i32) {
    %c0_i32 = arith.constant 0 : i32
    %c0_i32_0 = arith.constant 0 : i32
    %c0_i32_1 = arith.constant 0 : i32
    return %c0_i32, %c0_i32_0 : i32, i32
  }
  func.func @transform_17(%arg0: i32) -> (i32, i32) {
    %c0_i32 = arith.constant 0 : i32
    %c0_i32_0 = arith.constant 0 : i32
    %c0_i32_1 = arith.constant 0 : i32
    return %c0_i32, %c0_i32_0 : i32, i32
  }
  func.func @transform_18(%arg0: i32) -> (i32, i32) {
    %c0_i32 = arith.constant 0 : i32
    %c0_i32_0 = arith.constant 0 : i32
    %c0_i32_1 = arith.constant 0 : i32
    return %c0_i32, %c0_i32_0 : i32, i32
  }
  func.func @transform_19(%arg0: i32) -> (i32, i32) {
    %c0_i32 = arith.constant 0 : i32
    %c0_i32_0 = arith.constant 0 : i32
    %c0_i32_1 = arith.constant 0 : i32
    return %c0_i32, %c0_i32_0 : i32, i32
  }
  func.func @transform_20(%arg0: i32) -> (i32, i32) {
    %c0_i32 = arith.constant 0 : i32
    %c0_i32_0 = arith.constant 0 : i32
    %c0_i32_1 = arith.constant 0 : i32
    return %c0_i32, %c0_i32_0 : i32, i32
  }
  func.func @transform_21(%arg0: i32) -> (i32, i32) {
    %c0_i32 = arith.constant 0 : i32
    %c0_i32_0 = arith.constant 0 : i32
    %c0_i32_1 = arith.constant 0 : i32
    return %c0_i32, %c0_i32_0 : i32, i32
  }
  func.func @transform_22(%arg0: i32) -> (i32, i32) {
    %c0_i32 = arith.constant 0 : i32
    %c0_i32_0 = arith.constant 0 : i32
    %c0_i32_1 = arith.constant 0 : i32
    return %c0_i32, %c0_i32_0 : i32, i32
  }
  func.func @transform_23(%arg0: i32) -> (i32, i32) {
    %c0_i32 = arith.constant 0 : i32
    %c0_i32_0 = arith.constant 0 : i32
    %c0_i32_1 = arith.constant 0 : i32
    return %c0_i32, %c0_i32_0 : i32, i32
  }
  func.func @transform_24(%arg0: i32) -> (i32, i32) {
    %c0_i32 = arith.constant 0 : i32
    %c0_i32_0 = arith.constant 0 : i32
    %c0_i32_1 = arith.constant 0 : i32
    return %c0_i32, %c0_i32_0 : i32, i32
  }
  func.func @transform_25(%arg0: i32) -> (i32, i32) {
    %c0_i32 = arith.constant 0 : i32
    %c0_i32_0 = arith.constant 0 : i32
    %c0_i32_1 = arith.constant 0 : i32
    return %c0_i32, %c0_i32_0 : i32, i32
  }
  func.func @transform_26(%arg0: i32) -> (i32, i32) {
    %c0_i32 = arith.constant 0 : i32
    %c0_i32_0 = arith.constant 0 : i32
    %c0_i32_1 = arith.constant 0 : i32
    return %c0_i32, %c0_i32_0 : i32, i32
  }
  func.func @transform_27(%arg0: i32) -> (i32, i32) {
    %c0_i32 = arith.constant 0 : i32
    %c0_i32_0 = arith.constant 0 : i32
    %c0_i32_1 = arith.constant 0 : i32
    return %c0_i32, %c0_i32_0 : i32, i32
  }
  func.func @transform_28(%arg0: i32) -> (i32, i32) {
    %c0_i32 = arith.constant 0 : i32
    %c0_i32_0 = arith.constant 0 : i32
    %c0_i32_1 = arith.constant 0 : i32
    return %c0_i32, %c0_i32_0 : i32, i32
  }
  func.func @transform_29(%arg0: i32) -> (i32, i32) {
    %c0_i32 = arith.constant 0 : i32
    %c0_i32_0 = arith.constant 0 : i32
    %c0_i32_1 = arith.constant 0 : i32
    return %c0_i32, %c0_i32_0 : i32, i32
  }
  func.func @transform_30(%arg0: i32) -> (i32, i32) {
    %c0_i32 = arith.constant 0 : i32
    %c0_i32_0 = arith.constant 0 : i32
    %c0_i32_1 = arith.constant 0 : i32
    return %c0_i32, %c0_i32_0 : i32, i32
  }
  func.func @transform_31(%arg0: i32) -> (i32, i32) {
    %c0_i32 = arith.constant 0 : i32
    %c0_i32_0 = arith.constant 0 : i32
    %c0_i32_1 = arith.constant 0 : i32
    return %c0_i32, %c0_i32_0 : i32, i32
  }
  func.func @transform_32(%arg0: i32) -> (i32, i32) {
    %c0_i32 = arith.constant 0 : i32
    %c0_i32_0 = arith.constant 0 : i32
    %c0_i32_1 = arith.constant 0 : i32
    return %c0_i32, %c0_i32_0 : i32, i32
  }
  func.func @transform_33(%arg0: i32) -> (i32, i32) {
    %c0_i32 = arith.constant 0 : i32
    %c0_i32_0 = arith.constant 0 : i32
    %c0_i32_1 = arith.constant 0 : i32
    return %c0_i32, %c0_i32_0 : i32, i32
  }
}

module attributes {stable_mosaic.version = 11 : i64} {
  func.func @_decoder_kernel(%arg0: i32, %arg1: memref<8x6xf32, #tpu.memory_space<vmem>>, %arg2: memref<24x2xf32, #tpu.memory_space<vmem>>, %arg3: memref<24x8xf32, #tpu.memory_space<vmem>>, %arg4: memref<24x8xf32, #tpu.memory_space<vmem>>, %arg5: memref<8x24xf32, #tpu.memory_space<vmem>>, %arg6: memref<6x64xbf16, #tpu.memory_space<vmem>>, %arg7: memref<6x64xbf16, #tpu.memory_space<vmem>>, %arg8: memref<1x64xf32, #tpu.memory_space<vmem>>, %arg9: memref<64x32xbf16, #tpu.memory_space<vmem>>, %arg10: memref<1x32xf32, #tpu.memory_space<vmem>>, %arg11: memref<6x32xbf16, #tpu.memory_space<vmem>>, %arg12: memref<16x32xbf16, #tpu.memory_space<vmem>>, %arg13: memref<1x32xf32, #tpu.memory_space<vmem>>, %arg14: memref<32x32xbf16, #tpu.memory_space<vmem>>, %arg15: memref<1x32xf32, #tpu.memory_space<vmem>>, %arg16: memref<32x6xbf16, #tpu.memory_space<vmem>>, %arg17: memref<1x6xf32, #tpu.memory_space<vmem>>, %arg18: memref<8x8x6xf32, #tpu.memory_space<vmem>>) attributes {dimension_semantics = [#tpu.dimension_semantics<arbitrary>], iteration_bounds = array<i64: 1>, scalar_prefetch = 0 : i64, scratch_operands = 0 : i64, tpu.core_type = #tpu.core_type<tc>, window_params = [{pipeline_mode = #tpu.pipeline_mode<synchronous>, transform_indices = @transform_0, window_bounds = array<i64: 8, 6>}, {pipeline_mode = #tpu.pipeline_mode<synchronous>, transform_indices = @transform_1, window_bounds = array<i64: 24, 2>}, {pipeline_mode = #tpu.pipeline_mode<synchronous>, transform_indices = @transform_2, window_bounds = array<i64: 24, 8>}, {pipeline_mode = #tpu.pipeline_mode<synchronous>, transform_indices = @transform_3, window_bounds = array<i64: 24, 8>}, {pipeline_mode = #tpu.pipeline_mode<synchronous>, transform_indices = @transform_4, window_bounds = array<i64: 8, 24>}, {pipeline_mode = #tpu.pipeline_mode<synchronous>, transform_indices = @transform_5, window_bounds = array<i64: 6, 64>}, {pipeline_mode = #tpu.pipeline_mode<synchronous>, transform_indices = @transform_6, window_bounds = array<i64: 6, 64>}, {pipeline_mode = #tpu.pipeline_mode<synchronous>, transform_indices = @transform_7, window_bounds = array<i64: 1, 64>}, {pipeline_mode = #tpu.pipeline_mode<synchronous>, transform_indices = @transform_8, window_bounds = array<i64: 64, 32>}, {pipeline_mode = #tpu.pipeline_mode<synchronous>, transform_indices = @transform_9, window_bounds = array<i64: 1, 32>}, {pipeline_mode = #tpu.pipeline_mode<synchronous>, transform_indices = @transform_10, window_bounds = array<i64: 6, 32>}, {pipeline_mode = #tpu.pipeline_mode<synchronous>, transform_indices = @transform_11, window_bounds = array<i64: 16, 32>}, {pipeline_mode = #tpu.pipeline_mode<synchronous>, transform_indices = @transform_12, window_bounds = array<i64: 1, 32>}, {pipeline_mode = #tpu.pipeline_mode<synchronous>, transform_indices = @transform_13, window_bounds = array<i64: 32, 32>}, {pipeline_mode = #tpu.pipeline_mode<synchronous>, transform_indices = @transform_14, window_bounds = array<i64: 1, 32>}, {pipeline_mode = #tpu.pipeline_mode<synchronous>, transform_indices = @transform_15, window_bounds = array<i64: 32, 6>}, {pipeline_mode = #tpu.pipeline_mode<synchronous>, transform_indices = @transform_16, window_bounds = array<i64: 1, 6>}, {pipeline_mode = #tpu.pipeline_mode<synchronous>, transform_indices = @transform_17, window_bounds = array<i64: 8, 8, 6>}]} {
    %c0 = arith.constant 0 : index
    %c0_0 = arith.constant 0 : index
    %0 = vector.load %arg3[%c0, %c0_0] : memref<24x8xf32, #tpu.memory_space<vmem>>, vector<24x8xf32>
    %c0_1 = arith.constant 0 : index
    %c0_2 = arith.constant 0 : index
    %1 = vector.load %arg4[%c0_1, %c0_2] : memref<24x8xf32, #tpu.memory_space<vmem>>, vector<24x8xf32>
    %c0_3 = arith.constant 0 : index
    %c0_4 = arith.constant 0 : index
    %2 = vector.load %arg5[%c0_3, %c0_4] : memref<8x24xf32, #tpu.memory_space<vmem>>, vector<8x24xf32>
    %c0_5 = arith.constant 0 : index
    %c0_6 = arith.constant 0 : index
    %3 = vector.load %arg2[%c0_5, %c0_6] : memref<24x2xf32, #tpu.memory_space<vmem>>, vector<24x2xf32>
    %4 = vector.extract_strided_slice %3 {offsets = [0, 0], sizes = [24, 1], strides = [1, 1]} : vector<24x2xf32> to vector<24x1xf32>
    %5 = vector.extract_strided_slice %3 {offsets = [0, 1], sizes = [24, 1], strides = [1, 1]} : vector<24x2xf32> to vector<24x1xf32>
    %c0_7 = arith.constant 0 : index
    %c0_8 = arith.constant 0 : index
    %6 = vector.load %arg6[%c0_7, %c0_8] : memref<6x64xbf16, #tpu.memory_space<vmem>>, vector<6x64xbf16>
    %c0_9 = arith.constant 0 : index
    %c0_10 = arith.constant 0 : index
    %7 = vector.load %arg7[%c0_9, %c0_10] : memref<6x64xbf16, #tpu.memory_space<vmem>>, vector<6x64xbf16>
    %c0_11 = arith.constant 0 : index
    %c0_12 = arith.constant 0 : index
    %8 = vector.load %arg8[%c0_11, %c0_12] : memref<1x64xf32, #tpu.memory_space<vmem>>, vector<1x64xf32>
    %c0_13 = arith.constant 0 : index
    %c0_14 = arith.constant 0 : index
    %9 = vector.load %arg9[%c0_13, %c0_14] : memref<64x32xbf16, #tpu.memory_space<vmem>>, vector<64x32xbf16>
    %c0_15 = arith.constant 0 : index
    %c0_16 = arith.constant 0 : index
    %10 = vector.load %arg10[%c0_15, %c0_16] : memref<1x32xf32, #tpu.memory_space<vmem>>, vector<1x32xf32>
    %c0_17 = arith.constant 0 : index
    %c0_18 = arith.constant 0 : index
    %11 = vector.load %arg11[%c0_17, %c0_18] : memref<6x32xbf16, #tpu.memory_space<vmem>>, vector<6x32xbf16>
    %c0_19 = arith.constant 0 : index
    %c0_20 = arith.constant 0 : index
    %12 = vector.load %arg12[%c0_19, %c0_20] : memref<16x32xbf16, #tpu.memory_space<vmem>>, vector<16x32xbf16>
    %c0_21 = arith.constant 0 : index
    %c0_22 = arith.constant 0 : index
    %13 = vector.load %arg13[%c0_21, %c0_22] : memref<1x32xf32, #tpu.memory_space<vmem>>, vector<1x32xf32>
    %c0_23 = arith.constant 0 : index
    %c0_24 = arith.constant 0 : index
    %14 = vector.load %arg14[%c0_23, %c0_24] : memref<32x32xbf16, #tpu.memory_space<vmem>>, vector<32x32xbf16>
    %c0_25 = arith.constant 0 : index
    %c0_26 = arith.constant 0 : index
    %15 = vector.load %arg15[%c0_25, %c0_26] : memref<1x32xf32, #tpu.memory_space<vmem>>, vector<1x32xf32>
    %c0_27 = arith.constant 0 : index
    %c0_28 = arith.constant 0 : index
    %16 = vector.load %arg16[%c0_27, %c0_28] : memref<32x6xbf16, #tpu.memory_space<vmem>>, vector<32x6xbf16>
    %c0_29 = arith.constant 0 : index
    %c0_30 = arith.constant 0 : index
    %17 = vector.load %arg17[%c0_29, %c0_30] : memref<1x6xf32, #tpu.memory_space<vmem>>, vector<1x6xf32>
    %c0_31 = arith.constant 0 : index
    %c0_32 = arith.constant 0 : index
    %18 = vector.load %arg1[%c0_31, %c0_32] : memref<8x6xf32, #tpu.memory_space<vmem>>, vector<8x6xf32>
    %cst = arith.constant dense<0.000000e+00> : vector<24x6xf32>
    %19 = tpu.matmul %0, %18, %cst {dimension_numbers = #tpu.dot_dimension_numbers<[1], [0], [0], [1], [0, 0, 1, 1], [], []>} : vector<24x8xf32>, vector<8x6xf32>, vector<24x6xf32> -> vector<24x6xf32>
    %cst_33 = arith.constant dense<0.000000e+00> : vector<24x6xf32>
    %20 = tpu.matmul %1, %18, %cst_33 {dimension_numbers = #tpu.dot_dimension_numbers<[1], [0], [0], [1], [0, 0, 1, 1], [], []>} : vector<24x8xf32>, vector<8x6xf32>, vector<24x6xf32> -> vector<24x6xf32>
    %21 = arith.truncf %19 : vector<24x6xf32> to vector<24x6xbf16>
    %cst_34 = arith.constant dense<0.000000e+00> : vector<24x64xf32>
    %22 = tpu.matmul %21, %6, %cst_34 {dimension_numbers = #tpu.dot_dimension_numbers<[1], [0], [0], [1], [0, 0, 1, 1], [], []>} : vector<24x6xbf16>, vector<6x64xbf16>, vector<24x64xf32> -> vector<24x64xf32>
    %23 = arith.truncf %20 : vector<24x6xf32> to vector<24x6xbf16>
    %cst_35 = arith.constant dense<0.000000e+00> : vector<24x64xf32>
    %24 = tpu.matmul %23, %7, %cst_35 {dimension_numbers = #tpu.dot_dimension_numbers<[1], [0], [0], [1], [0, 0, 1, 1], [], []>} : vector<24x6xbf16>, vector<6x64xbf16>, vector<24x64xf32> -> vector<24x64xf32>
    %25 = arith.addf %22, %24 : vector<24x64xf32>
    %26 = vector.broadcast %8 : vector<1x64xf32> to vector<24x64xf32>
    %27 = arith.addf %25, %26 : vector<24x64xf32>
    %cst_36 = arith.constant 0.000000e+00 : f32
    %28 = vector.broadcast %cst_36 : f32 to vector<24x64xf32>
    %29 = arith.maximumf %27, %28 : vector<24x64xf32>
    %30 = arith.truncf %29 : vector<24x64xf32> to vector<24x64xbf16>
    %cst_37 = arith.constant dense<0.000000e+00> : vector<24x32xf32>
    %31 = tpu.matmul %30, %9, %cst_37 {dimension_numbers = #tpu.dot_dimension_numbers<[1], [0], [0], [1], [0, 0, 1, 1], [], []>} : vector<24x64xbf16>, vector<64x32xbf16>, vector<24x32xf32> -> vector<24x32xf32>
    %32 = vector.broadcast %10 : vector<1x32xf32> to vector<24x32xf32>
    %33 = arith.addf %31, %32 : vector<24x32xf32>
    %cst_38 = arith.constant 0.000000e+00 : f32
    %34 = vector.broadcast %cst_38 : f32 to vector<24x32xf32>
    %35 = arith.maximumf %33, %34 : vector<24x32xf32>
    %36 = vector.extract_strided_slice %35 {offsets = [0, 0], sizes = [24, 16], strides = [1, 1]} : vector<24x32xf32> to vector<24x16xf32>
    %37 = vector.broadcast %4 : vector<24x1xf32> to vector<24x16xf32>
    %38 = arith.mulf %36, %37 : vector<24x16xf32>
    %39 = vector.extract_strided_slice %35 {offsets = [0, 16], sizes = [24, 16], strides = [1, 1]} : vector<24x32xf32> to vector<24x16xf32>
    %40 = vector.broadcast %5 : vector<24x1xf32> to vector<24x16xf32>
    %41 = arith.mulf %39, %40 : vector<24x16xf32>
    %42 = arith.addf %38, %41 : vector<24x16xf32>
    %cst_39 = arith.constant dense<0.000000e+00> : vector<8x16xf32>
    %43 = tpu.matmul %2, %42, %cst_39 {dimension_numbers = #tpu.dot_dimension_numbers<[1], [0], [0], [1], [0, 0, 1, 1], [], []>} : vector<8x24xf32>, vector<24x16xf32>, vector<8x16xf32> -> vector<8x16xf32>
    %44 = arith.truncf %18 : vector<8x6xf32> to vector<8x6xbf16>
    %cst_40 = arith.constant dense<0.000000e+00> : vector<8x32xf32>
    %45 = tpu.matmul %44, %11, %cst_40 {dimension_numbers = #tpu.dot_dimension_numbers<[1], [0], [0], [1], [0, 0, 1, 1], [], []>} : vector<8x6xbf16>, vector<6x32xbf16>, vector<8x32xf32> -> vector<8x32xf32>
    %46 = arith.truncf %43 : vector<8x16xf32> to vector<8x16xbf16>
    %cst_41 = arith.constant dense<0.000000e+00> : vector<8x32xf32>
    %47 = tpu.matmul %46, %12, %cst_41 {dimension_numbers = #tpu.dot_dimension_numbers<[1], [0], [0], [1], [0, 0, 1, 1], [], []>} : vector<8x16xbf16>, vector<16x32xbf16>, vector<8x32xf32> -> vector<8x32xf32>
    %48 = arith.addf %45, %47 : vector<8x32xf32>
    %49 = vector.broadcast %13 : vector<1x32xf32> to vector<8x32xf32>
    %50 = arith.addf %48, %49 : vector<8x32xf32>
    %cst_42 = arith.constant 0.000000e+00 : f32
    %51 = vector.broadcast %cst_42 : f32 to vector<8x32xf32>
    %52 = arith.maximumf %50, %51 : vector<8x32xf32>
    %53 = arith.truncf %52 : vector<8x32xf32> to vector<8x32xbf16>
    %cst_43 = arith.constant dense<0.000000e+00> : vector<8x32xf32>
    %54 = tpu.matmul %53, %14, %cst_43 {dimension_numbers = #tpu.dot_dimension_numbers<[1], [0], [0], [1], [0, 0, 1, 1], [], []>} : vector<8x32xbf16>, vector<32x32xbf16>, vector<8x32xf32> -> vector<8x32xf32>
    %55 = vector.broadcast %15 : vector<1x32xf32> to vector<8x32xf32>
    %56 = arith.addf %54, %55 : vector<8x32xf32>
    %cst_44 = arith.constant 0.000000e+00 : f32
    %57 = vector.broadcast %cst_44 : f32 to vector<8x32xf32>
    %58 = arith.maximumf %56, %57 : vector<8x32xf32>
    %59 = arith.truncf %58 : vector<8x32xf32> to vector<8x32xbf16>
    %cst_45 = arith.constant dense<0.000000e+00> : vector<8x6xf32>
    %60 = tpu.matmul %59, %16, %cst_45 {dimension_numbers = #tpu.dot_dimension_numbers<[1], [0], [0], [1], [0, 0, 1, 1], [], []>} : vector<8x32xbf16>, vector<32x6xbf16>, vector<8x6xf32> -> vector<8x6xf32>
    %61 = vector.broadcast %17 : vector<1x6xf32> to vector<8x6xf32>
    %62 = arith.addf %60, %61 : vector<8x6xf32>
    %63 = arith.addf %18, %62 : vector<8x6xf32>
    %c0_46 = arith.constant 0 : index
    %c0_47 = arith.constant 0 : index
    %c0_48 = arith.constant 0 : index
    %64 = vector.load %arg18[%c0_46, %c0_47, %c0_48] : memref<8x8x6xf32, #tpu.memory_space<vmem>>, vector<1x8x6xf32>
    %65 = vector.shape_cast %64 : vector<1x8x6xf32> to vector<8x6xf32>
    %66 = vector.shape_cast %63 : vector<8x6xf32> to vector<1x8x6xf32>
    tpu.vector_store %arg18[%c0_46, %c0_47, %c0_48], %66 {strides = array<i32>} : memref<8x8x6xf32, #tpu.memory_space<vmem>>, vector<1x8x6xf32>,
    %cst_49 = arith.constant dense<0.000000e+00> : vector<24x6xf32>
    %67 = tpu.matmul %0, %63, %cst_49 {dimension_numbers = #tpu.dot_dimension_numbers<[1], [0], [0], [1], [0, 0, 1, 1], [], []>} : vector<24x8xf32>, vector<8x6xf32>, vector<24x6xf32> -> vector<24x6xf32>
    %cst_50 = arith.constant dense<0.000000e+00> : vector<24x6xf32>
    %68 = tpu.matmul %1, %63, %cst_50 {dimension_numbers = #tpu.dot_dimension_numbers<[1], [0], [0], [1], [0, 0, 1, 1], [], []>} : vector<24x8xf32>, vector<8x6xf32>, vector<24x6xf32> -> vector<24x6xf32>
    %69 = arith.truncf %67 : vector<24x6xf32> to vector<24x6xbf16>
    %cst_51 = arith.constant dense<0.000000e+00> : vector<24x64xf32>
    %70 = tpu.matmul %69, %6, %cst_51 {dimension_numbers = #tpu.dot_dimension_numbers<[1], [0], [0], [1], [0, 0, 1, 1], [], []>} : vector<24x6xbf16>, vector<6x64xbf16>, vector<24x64xf32> -> vector<24x64xf32>
    %71 = arith.truncf %68 : vector<24x6xf32> to vector<24x6xbf16>
    %cst_52 = arith.constant dense<0.000000e+00> : vector<24x64xf32>
    %72 = tpu.matmul %71, %7, %cst_52 {dimension_numbers = #tpu.dot_dimension_numbers<[1], [0], [0], [1], [0, 0, 1, 1], [], []>} : vector<24x6xbf16>, vector<6x64xbf16>, vector<24x64xf32> -> vector<24x64xf32>
    %73 = arith.addf %70, %72 : vector<24x64xf32>
    %74 = vector.broadcast %8 : vector<1x64xf32> to vector<24x64xf32>
    %75 = arith.addf %73, %74 : vector<24x64xf32>
    %cst_53 = arith.constant 0.000000e+00 : f32
    %76 = vector.broadcast %cst_53 : f32 to vector<24x64xf32>
    %77 = arith.maximumf %75, %76 : vector<24x64xf32>
    %78 = arith.truncf %77 : vector<24x64xf32> to vector<24x64xbf16>
    %cst_54 = arith.constant dense<0.000000e+00> : vector<24x32xf32>
    %79 = tpu.matmul %78, %9, %cst_54 {dimension_numbers = #tpu.dot_dimension_numbers<[1], [0], [0], [1], [0, 0, 1, 1], [], []>} : vector<24x64xbf16>, vector<64x32xbf16>, vector<24x32xf32> -> vector<24x32xf32>
    %80 = vector.broadcast %10 : vector<1x32xf32> to vector<24x32xf32>
    %81 = arith.addf %79, %80 : vector<24x32xf32>
    %cst_55 = arith.constant 0.000000e+00 : f32
    %82 = vector.broadcast %cst_55 : f32 to vector<24x32xf32>
    %83 = arith.maximumf %81, %82 : vector<24x32xf32>
    %84 = vector.extract_strided_slice %83 {offsets = [0, 0], sizes = [24, 16], strides = [1, 1]} : vector<24x32xf32> to vector<24x16xf32>
    %85 = vector.broadcast %4 : vector<24x1xf32> to vector<24x16xf32>
    %86 = arith.mulf %84, %85 : vector<24x16xf32>
    %87 = vector.extract_strided_slice %83 {offsets = [0, 16], sizes = [24, 16], strides = [1, 1]} : vector<24x32xf32> to vector<24x16xf32>
    %88 = vector.broadcast %5 : vector<24x1xf32> to vector<24x16xf32>
    %89 = arith.mulf %87, %88 : vector<24x16xf32>
    %90 = arith.addf %86, %89 : vector<24x16xf32>
    %cst_56 = arith.constant dense<0.000000e+00> : vector<8x16xf32>
    %91 = tpu.matmul %2, %90, %cst_56 {dimension_numbers = #tpu.dot_dimension_numbers<[1], [0], [0], [1], [0, 0, 1, 1], [], []>} : vector<8x24xf32>, vector<24x16xf32>, vector<8x16xf32> -> vector<8x16xf32>
    %92 = arith.truncf %63 : vector<8x6xf32> to vector<8x6xbf16>
    %cst_57 = arith.constant dense<0.000000e+00> : vector<8x32xf32>
    %93 = tpu.matmul %92, %11, %cst_57 {dimension_numbers = #tpu.dot_dimension_numbers<[1], [0], [0], [1], [0, 0, 1, 1], [], []>} : vector<8x6xbf16>, vector<6x32xbf16>, vector<8x32xf32> -> vector<8x32xf32>
    %94 = arith.truncf %91 : vector<8x16xf32> to vector<8x16xbf16>
    %cst_58 = arith.constant dense<0.000000e+00> : vector<8x32xf32>
    %95 = tpu.matmul %94, %12, %cst_58 {dimension_numbers = #tpu.dot_dimension_numbers<[1], [0], [0], [1], [0, 0, 1, 1], [], []>} : vector<8x16xbf16>, vector<16x32xbf16>, vector<8x32xf32> -> vector<8x32xf32>
    %96 = arith.addf %93, %95 : vector<8x32xf32>
    %97 = vector.broadcast %13 : vector<1x32xf32> to vector<8x32xf32>
    %98 = arith.addf %96, %97 : vector<8x32xf32>
    %cst_59 = arith.constant 0.000000e+00 : f32
    %99 = vector.broadcast %cst_59 : f32 to vector<8x32xf32>
    %100 = arith.maximumf %98, %99 : vector<8x32xf32>
    %101 = arith.truncf %100 : vector<8x32xf32> to vector<8x32xbf16>
    %cst_60 = arith.constant dense<0.000000e+00> : vector<8x32xf32>
    %102 = tpu.matmul %101, %14, %cst_60 {dimension_numbers = #tpu.dot_dimension_numbers<[1], [0], [0], [1], [0, 0, 1, 1], [], []>} : vector<8x32xbf16>, vector<32x32xbf16>, vector<8x32xf32> -> vector<8x32xf32>
    %103 = vector.broadcast %15 : vector<1x32xf32> to vector<8x32xf32>
    %104 = arith.addf %102, %103 : vector<8x32xf32>
    %cst_61 = arith.constant 0.000000e+00 : f32
    %105 = vector.broadcast %cst_61 : f32 to vector<8x32xf32>
    %106 = arith.maximumf %104, %105 : vector<8x32xf32>
    %107 = arith.truncf %106 : vector<8x32xf32> to vector<8x32xbf16>
    %cst_62 = arith.constant dense<0.000000e+00> : vector<8x6xf32>
    %108 = tpu.matmul %107, %16, %cst_62 {dimension_numbers = #tpu.dot_dimension_numbers<[1], [0], [0], [1], [0, 0, 1, 1], [], []>} : vector<8x32xbf16>, vector<32x6xbf16>, vector<8x6xf32> -> vector<8x6xf32>
    %109 = vector.broadcast %17 : vector<1x6xf32> to vector<8x6xf32>
    %110 = arith.addf %108, %109 : vector<8x6xf32>
    %111 = arith.addf %63, %110 : vector<8x6xf32>
    %c1 = arith.constant 1 : index
    %c0_63 = arith.constant 0 : index
    %c0_64 = arith.constant 0 : index
    %112 = vector.load %arg18[%c1, %c0_63, %c0_64] : memref<8x8x6xf32, #tpu.memory_space<vmem>>, vector<1x8x6xf32>
    %113 = vector.shape_cast %112 : vector<1x8x6xf32> to vector<8x6xf32>
    %114 = vector.shape_cast %111 : vector<8x6xf32> to vector<1x8x6xf32>
    tpu.vector_store %arg18[%c1, %c0_63, %c0_64], %114 {strides = array<i32>} : memref<8x8x6xf32, #tpu.memory_space<vmem>>, vector<1x8x6xf32>,
    %cst_65 = arith.constant dense<0.000000e+00> : vector<24x6xf32>
    %115 = tpu.matmul %0, %111, %cst_65 {dimension_numbers = #tpu.dot_dimension_numbers<[1], [0], [0], [1], [0, 0, 1, 1], [], []>} : vector<24x8xf32>, vector<8x6xf32>, vector<24x6xf32> -> vector<24x6xf32>
    %cst_66 = arith.constant dense<0.000000e+00> : vector<24x6xf32>
    %116 = tpu.matmul %1, %111, %cst_66 {dimension_numbers = #tpu.dot_dimension_numbers<[1], [0], [0], [1], [0, 0, 1, 1], [], []>} : vector<24x8xf32>, vector<8x6xf32>, vector<24x6xf32> -> vector<24x6xf32>
    %117 = arith.truncf %115 : vector<24x6xf32> to vector<24x6xbf16>
    %cst_67 = arith.constant dense<0.000000e+00> : vector<24x64xf32>
    %118 = tpu.matmul %117, %6, %cst_67 {dimension_numbers = #tpu.dot_dimension_numbers<[1], [0], [0], [1], [0, 0, 1, 1], [], []>} : vector<24x6xbf16>, vector<6x64xbf16>, vector<24x64xf32> -> vector<24x64xf32>
    %119 = arith.truncf %116 : vector<24x6xf32> to vector<24x6xbf16>
    %cst_68 = arith.constant dense<0.000000e+00> : vector<24x64xf32>
    %120 = tpu.matmul %119, %7, %cst_68 {dimension_numbers = #tpu.dot_dimension_numbers<[1], [0], [0], [1], [0, 0, 1, 1], [], []>} : vector<24x6xbf16>, vector<6x64xbf16>, vector<24x64xf32> -> vector<24x64xf32>
    %121 = arith.addf %118, %120 : vector<24x64xf32>
    %122 = vector.broadcast %8 : vector<1x64xf32> to vector<24x64xf32>
    %123 = arith.addf %121, %122 : vector<24x64xf32>
    %cst_69 = arith.constant 0.000000e+00 : f32
    %124 = vector.broadcast %cst_69 : f32 to vector<24x64xf32>
    %125 = arith.maximumf %123, %124 : vector<24x64xf32>
    %126 = arith.truncf %125 : vector<24x64xf32> to vector<24x64xbf16>
    %cst_70 = arith.constant dense<0.000000e+00> : vector<24x32xf32>
    %127 = tpu.matmul %126, %9, %cst_70 {dimension_numbers = #tpu.dot_dimension_numbers<[1], [0], [0], [1], [0, 0, 1, 1], [], []>} : vector<24x64xbf16>, vector<64x32xbf16>, vector<24x32xf32> -> vector<24x32xf32>
    %128 = vector.broadcast %10 : vector<1x32xf32> to vector<24x32xf32>
    %129 = arith.addf %127, %128 : vector<24x32xf32>
    %cst_71 = arith.constant 0.000000e+00 : f32
    %130 = vector.broadcast %cst_71 : f32 to vector<24x32xf32>
    %131 = arith.maximumf %129, %130 : vector<24x32xf32>
    %132 = vector.extract_strided_slice %131 {offsets = [0, 0], sizes = [24, 16], strides = [1, 1]} : vector<24x32xf32> to vector<24x16xf32>
    %133 = vector.broadcast %4 : vector<24x1xf32> to vector<24x16xf32>
    %134 = arith.mulf %132, %133 : vector<24x16xf32>
    %135 = vector.extract_strided_slice %131 {offsets = [0, 16], sizes = [24, 16], strides = [1, 1]} : vector<24x32xf32> to vector<24x16xf32>
    %136 = vector.broadcast %5 : vector<24x1xf32> to vector<24x16xf32>
    %137 = arith.mulf %135, %136 : vector<24x16xf32>
    %138 = arith.addf %134, %137 : vector<24x16xf32>
    %cst_72 = arith.constant dense<0.000000e+00> : vector<8x16xf32>
    %139 = tpu.matmul %2, %138, %cst_72 {dimension_numbers = #tpu.dot_dimension_numbers<[1], [0], [0], [1], [0, 0, 1, 1], [], []>} : vector<8x24xf32>, vector<24x16xf32>, vector<8x16xf32> -> vector<8x16xf32>
    %140 = arith.truncf %111 : vector<8x6xf32> to vector<8x6xbf16>
    %cst_73 = arith.constant dense<0.000000e+00> : vector<8x32xf32>
    %141 = tpu.matmul %140, %11, %cst_73 {dimension_numbers = #tpu.dot_dimension_numbers<[1], [0], [0], [1], [0, 0, 1, 1], [], []>} : vector<8x6xbf16>, vector<6x32xbf16>, vector<8x32xf32> -> vector<8x32xf32>
    %142 = arith.truncf %139 : vector<8x16xf32> to vector<8x16xbf16>
    %cst_74 = arith.constant dense<0.000000e+00> : vector<8x32xf32>
    %143 = tpu.matmul %142, %12, %cst_74 {dimension_numbers = #tpu.dot_dimension_numbers<[1], [0], [0], [1], [0, 0, 1, 1], [], []>} : vector<8x16xbf16>, vector<16x32xbf16>, vector<8x32xf32> -> vector<8x32xf32>
    %144 = arith.addf %141, %143 : vector<8x32xf32>
    %145 = vector.broadcast %13 : vector<1x32xf32> to vector<8x32xf32>
    %146 = arith.addf %144, %145 : vector<8x32xf32>
    %cst_75 = arith.constant 0.000000e+00 : f32
    %147 = vector.broadcast %cst_75 : f32 to vector<8x32xf32>
    %148 = arith.maximumf %146, %147 : vector<8x32xf32>
    %149 = arith.truncf %148 : vector<8x32xf32> to vector<8x32xbf16>
    %cst_76 = arith.constant dense<0.000000e+00> : vector<8x32xf32>
    %150 = tpu.matmul %149, %14, %cst_76 {dimension_numbers = #tpu.dot_dimension_numbers<[1], [0], [0], [1], [0, 0, 1, 1], [], []>} : vector<8x32xbf16>, vector<32x32xbf16>, vector<8x32xf32> -> vector<8x32xf32>
    %151 = vector.broadcast %15 : vector<1x32xf32> to vector<8x32xf32>
    %152 = arith.addf %150, %151 : vector<8x32xf32>
    %cst_77 = arith.constant 0.000000e+00 : f32
    %153 = vector.broadcast %cst_77 : f32 to vector<8x32xf32>
    %154 = arith.maximumf %152, %153 : vector<8x32xf32>
    %155 = arith.truncf %154 : vector<8x32xf32> to vector<8x32xbf16>
    %cst_78 = arith.constant dense<0.000000e+00> : vector<8x6xf32>
    %156 = tpu.matmul %155, %16, %cst_78 {dimension_numbers = #tpu.dot_dimension_numbers<[1], [0], [0], [1], [0, 0, 1, 1], [], []>} : vector<8x32xbf16>, vector<32x6xbf16>, vector<8x6xf32> -> vector<8x6xf32>
    %157 = vector.broadcast %17 : vector<1x6xf32> to vector<8x6xf32>
    %158 = arith.addf %156, %157 : vector<8x6xf32>
    %159 = arith.addf %111, %158 : vector<8x6xf32>
    %c2 = arith.constant 2 : index
    %c0_79 = arith.constant 0 : index
    %c0_80 = arith.constant 0 : index
    %160 = vector.load %arg18[%c2, %c0_79, %c0_80] : memref<8x8x6xf32, #tpu.memory_space<vmem>>, vector<1x8x6xf32>
    %161 = vector.shape_cast %160 : vector<1x8x6xf32> to vector<8x6xf32>
    %162 = vector.shape_cast %159 : vector<8x6xf32> to vector<1x8x6xf32>
    tpu.vector_store %arg18[%c2, %c0_79, %c0_80], %162 {strides = array<i32>} : memref<8x8x6xf32, #tpu.memory_space<vmem>>, vector<1x8x6xf32>,
    %cst_81 = arith.constant dense<0.000000e+00> : vector<24x6xf32>
    %163 = tpu.matmul %0, %159, %cst_81 {dimension_numbers = #tpu.dot_dimension_numbers<[1], [0], [0], [1], [0, 0, 1, 1], [], []>} : vector<24x8xf32>, vector<8x6xf32>, vector<24x6xf32> -> vector<24x6xf32>
    %cst_82 = arith.constant dense<0.000000e+00> : vector<24x6xf32>
    %164 = tpu.matmul %1, %159, %cst_82 {dimension_numbers = #tpu.dot_dimension_numbers<[1], [0], [0], [1], [0, 0, 1, 1], [], []>} : vector<24x8xf32>, vector<8x6xf32>, vector<24x6xf32> -> vector<24x6xf32>
    %165 = arith.truncf %163 : vector<24x6xf32> to vector<24x6xbf16>
    %cst_83 = arith.constant dense<0.000000e+00> : vector<24x64xf32>
    %166 = tpu.matmul %165, %6, %cst_83 {dimension_numbers = #tpu.dot_dimension_numbers<[1], [0], [0], [1], [0, 0, 1, 1], [], []>} : vector<24x6xbf16>, vector<6x64xbf16>, vector<24x64xf32> -> vector<24x64xf32>
    %167 = arith.truncf %164 : vector<24x6xf32> to vector<24x6xbf16>
    %cst_84 = arith.constant dense<0.000000e+00> : vector<24x64xf32>
    %168 = tpu.matmul %167, %7, %cst_84 {dimension_numbers = #tpu.dot_dimension_numbers<[1], [0], [0], [1], [0, 0, 1, 1], [], []>} : vector<24x6xbf16>, vector<6x64xbf16>, vector<24x64xf32> -> vector<24x64xf32>
    %169 = arith.addf %166, %168 : vector<24x64xf32>
    %170 = vector.broadcast %8 : vector<1x64xf32> to vector<24x64xf32>
    %171 = arith.addf %169, %170 : vector<24x64xf32>
    %cst_85 = arith.constant 0.000000e+00 : f32
    %172 = vector.broadcast %cst_85 : f32 to vector<24x64xf32>
    %173 = arith.maximumf %171, %172 : vector<24x64xf32>
    %174 = arith.truncf %173 : vector<24x64xf32> to vector<24x64xbf16>
    %cst_86 = arith.constant dense<0.000000e+00> : vector<24x32xf32>
    %175 = tpu.matmul %174, %9, %cst_86 {dimension_numbers = #tpu.dot_dimension_numbers<[1], [0], [0], [1], [0, 0, 1, 1], [], []>} : vector<24x64xbf16>, vector<64x32xbf16>, vector<24x32xf32> -> vector<24x32xf32>
    %176 = vector.broadcast %10 : vector<1x32xf32> to vector<24x32xf32>
    %177 = arith.addf %175, %176 : vector<24x32xf32>
    %cst_87 = arith.constant 0.000000e+00 : f32
    %178 = vector.broadcast %cst_87 : f32 to vector<24x32xf32>
    %179 = arith.maximumf %177, %178 : vector<24x32xf32>
    %180 = vector.extract_strided_slice %179 {offsets = [0, 0], sizes = [24, 16], strides = [1, 1]} : vector<24x32xf32> to vector<24x16xf32>
    %181 = vector.broadcast %4 : vector<24x1xf32> to vector<24x16xf32>
    %182 = arith.mulf %180, %181 : vector<24x16xf32>
    %183 = vector.extract_strided_slice %179 {offsets = [0, 16], sizes = [24, 16], strides = [1, 1]} : vector<24x32xf32> to vector<24x16xf32>
    %184 = vector.broadcast %5 : vector<24x1xf32> to vector<24x16xf32>
    %185 = arith.mulf %183, %184 : vector<24x16xf32>
    %186 = arith.addf %182, %185 : vector<24x16xf32>
    %cst_88 = arith.constant dense<0.000000e+00> : vector<8x16xf32>
    %187 = tpu.matmul %2, %186, %cst_88 {dimension_numbers = #tpu.dot_dimension_numbers<[1], [0], [0], [1], [0, 0, 1, 1], [], []>} : vector<8x24xf32>, vector<24x16xf32>, vector<8x16xf32> -> vector<8x16xf32>
    %188 = arith.truncf %159 : vector<8x6xf32> to vector<8x6xbf16>
    %cst_89 = arith.constant dense<0.000000e+00> : vector<8x32xf32>
    %189 = tpu.matmul %188, %11, %cst_89 {dimension_numbers = #tpu.dot_dimension_numbers<[1], [0], [0], [1], [0, 0, 1, 1], [], []>} : vector<8x6xbf16>, vector<6x32xbf16>, vector<8x32xf32> -> vector<8x32xf32>
    %190 = arith.truncf %187 : vector<8x16xf32> to vector<8x16xbf16>
    %cst_90 = arith.constant dense<0.000000e+00> : vector<8x32xf32>
    %191 = tpu.matmul %190, %12, %cst_90 {dimension_numbers = #tpu.dot_dimension_numbers<[1], [0], [0], [1], [0, 0, 1, 1], [], []>} : vector<8x16xbf16>, vector<16x32xbf16>, vector<8x32xf32> -> vector<8x32xf32>
    %192 = arith.addf %189, %191 : vector<8x32xf32>
    %193 = vector.broadcast %13 : vector<1x32xf32> to vector<8x32xf32>
    %194 = arith.addf %192, %193 : vector<8x32xf32>
    %cst_91 = arith.constant 0.000000e+00 : f32
    %195 = vector.broadcast %cst_91 : f32 to vector<8x32xf32>
    %196 = arith.maximumf %194, %195 : vector<8x32xf32>
    %197 = arith.truncf %196 : vector<8x32xf32> to vector<8x32xbf16>
    %cst_92 = arith.constant dense<0.000000e+00> : vector<8x32xf32>
    %198 = tpu.matmul %197, %14, %cst_92 {dimension_numbers = #tpu.dot_dimension_numbers<[1], [0], [0], [1], [0, 0, 1, 1], [], []>} : vector<8x32xbf16>, vector<32x32xbf16>, vector<8x32xf32> -> vector<8x32xf32>
    %199 = vector.broadcast %15 : vector<1x32xf32> to vector<8x32xf32>
    %200 = arith.addf %198, %199 : vector<8x32xf32>
    %cst_93 = arith.constant 0.000000e+00 : f32
    %201 = vector.broadcast %cst_93 : f32 to vector<8x32xf32>
    %202 = arith.maximumf %200, %201 : vector<8x32xf32>
    %203 = arith.truncf %202 : vector<8x32xf32> to vector<8x32xbf16>
    %cst_94 = arith.constant dense<0.000000e+00> : vector<8x6xf32>
    %204 = tpu.matmul %203, %16, %cst_94 {dimension_numbers = #tpu.dot_dimension_numbers<[1], [0], [0], [1], [0, 0, 1, 1], [], []>} : vector<8x32xbf16>, vector<32x6xbf16>, vector<8x6xf32> -> vector<8x6xf32>
    %205 = vector.broadcast %17 : vector<1x6xf32> to vector<8x6xf32>
    %206 = arith.addf %204, %205 : vector<8x6xf32>
    %207 = arith.addf %159, %206 : vector<8x6xf32>
    %c3 = arith.constant 3 : index
    %c0_95 = arith.constant 0 : index
    %c0_96 = arith.constant 0 : index
    %208 = vector.load %arg18[%c3, %c0_95, %c0_96] : memref<8x8x6xf32, #tpu.memory_space<vmem>>, vector<1x8x6xf32>
    %209 = vector.shape_cast %208 : vector<1x8x6xf32> to vector<8x6xf32>
    %210 = vector.shape_cast %207 : vector<8x6xf32> to vector<1x8x6xf32>
    tpu.vector_store %arg18[%c3, %c0_95, %c0_96], %210 {strides = array<i32>} : memref<8x8x6xf32, #tpu.memory_space<vmem>>, vector<1x8x6xf32>,
    %cst_97 = arith.constant dense<0.000000e+00> : vector<24x6xf32>
    %211 = tpu.matmul %0, %207, %cst_97 {dimension_numbers = #tpu.dot_dimension_numbers<[1], [0], [0], [1], [0, 0, 1, 1], [], []>} : vector<24x8xf32>, vector<8x6xf32>, vector<24x6xf32> -> vector<24x6xf32>
    %cst_98 = arith.constant dense<0.000000e+00> : vector<24x6xf32>
    %212 = tpu.matmul %1, %207, %cst_98 {dimension_numbers = #tpu.dot_dimension_numbers<[1], [0], [0], [1], [0, 0, 1, 1], [], []>} : vector<24x8xf32>, vector<8x6xf32>, vector<24x6xf32> -> vector<24x6xf32>
    %213 = arith.truncf %211 : vector<24x6xf32> to vector<24x6xbf16>
    %cst_99 = arith.constant dense<0.000000e+00> : vector<24x64xf32>
    %214 = tpu.matmul %213, %6, %cst_99 {dimension_numbers = #tpu.dot_dimension_numbers<[1], [0], [0], [1], [0, 0, 1, 1], [], []>} : vector<24x6xbf16>, vector<6x64xbf16>, vector<24x64xf32> -> vector<24x64xf32>
    %215 = arith.truncf %212 : vector<24x6xf32> to vector<24x6xbf16>
    %cst_100 = arith.constant dense<0.000000e+00> : vector<24x64xf32>
    %216 = tpu.matmul %215, %7, %cst_100 {dimension_numbers = #tpu.dot_dimension_numbers<[1], [0], [0], [1], [0, 0, 1, 1], [], []>} : vector<24x6xbf16>, vector<6x64xbf16>, vector<24x64xf32> -> vector<24x64xf32>
    %217 = arith.addf %214, %216 : vector<24x64xf32>
    %218 = vector.broadcast %8 : vector<1x64xf32> to vector<24x64xf32>
    %219 = arith.addf %217, %218 : vector<24x64xf32>
    %cst_101 = arith.constant 0.000000e+00 : f32
    %220 = vector.broadcast %cst_101 : f32 to vector<24x64xf32>
    %221 = arith.maximumf %219, %220 : vector<24x64xf32>
    %222 = arith.truncf %221 : vector<24x64xf32> to vector<24x64xbf16>
    %cst_102 = arith.constant dense<0.000000e+00> : vector<24x32xf32>
    %223 = tpu.matmul %222, %9, %cst_102 {dimension_numbers = #tpu.dot_dimension_numbers<[1], [0], [0], [1], [0, 0, 1, 1], [], []>} : vector<24x64xbf16>, vector<64x32xbf16>, vector<24x32xf32> -> vector<24x32xf32>
    %224 = vector.broadcast %10 : vector<1x32xf32> to vector<24x32xf32>
    %225 = arith.addf %223, %224 : vector<24x32xf32>
    %cst_103 = arith.constant 0.000000e+00 : f32
    %226 = vector.broadcast %cst_103 : f32 to vector<24x32xf32>
    %227 = arith.maximumf %225, %226 : vector<24x32xf32>
    %228 = vector.extract_strided_slice %227 {offsets = [0, 0], sizes = [24, 16], strides = [1, 1]} : vector<24x32xf32> to vector<24x16xf32>
    %229 = vector.broadcast %4 : vector<24x1xf32> to vector<24x16xf32>
    %230 = arith.mulf %228, %229 : vector<24x16xf32>
    %231 = vector.extract_strided_slice %227 {offsets = [0, 16], sizes = [24, 16], strides = [1, 1]} : vector<24x32xf32> to vector<24x16xf32>
    %232 = vector.broadcast %5 : vector<24x1xf32> to vector<24x16xf32>
    %233 = arith.mulf %231, %232 : vector<24x16xf32>
    %234 = arith.addf %230, %233 : vector<24x16xf32>
    %cst_104 = arith.constant dense<0.000000e+00> : vector<8x16xf32>
    %235 = tpu.matmul %2, %234, %cst_104 {dimension_numbers = #tpu.dot_dimension_numbers<[1], [0], [0], [1], [0, 0, 1, 1], [], []>} : vector<8x24xf32>, vector<24x16xf32>, vector<8x16xf32> -> vector<8x16xf32>
    %236 = arith.truncf %207 : vector<8x6xf32> to vector<8x6xbf16>
    %cst_105 = arith.constant dense<0.000000e+00> : vector<8x32xf32>
    %237 = tpu.matmul %236, %11, %cst_105 {dimension_numbers = #tpu.dot_dimension_numbers<[1], [0], [0], [1], [0, 0, 1, 1], [], []>} : vector<8x6xbf16>, vector<6x32xbf16>, vector<8x32xf32> -> vector<8x32xf32>
    %238 = arith.truncf %235 : vector<8x16xf32> to vector<8x16xbf16>
    %cst_106 = arith.constant dense<0.000000e+00> : vector<8x32xf32>
    %239 = tpu.matmul %238, %12, %cst_106 {dimension_numbers = #tpu.dot_dimension_numbers<[1], [0], [0], [1], [0, 0, 1, 1], [], []>} : vector<8x16xbf16>, vector<16x32xbf16>, vector<8x32xf32> -> vector<8x32xf32>
    %240 = arith.addf %237, %239 : vector<8x32xf32>
    %241 = vector.broadcast %13 : vector<1x32xf32> to vector<8x32xf32>
    %242 = arith.addf %240, %241 : vector<8x32xf32>
    %cst_107 = arith.constant 0.000000e+00 : f32
    %243 = vector.broadcast %cst_107 : f32 to vector<8x32xf32>
    %244 = arith.maximumf %242, %243 : vector<8x32xf32>
    %245 = arith.truncf %244 : vector<8x32xf32> to vector<8x32xbf16>
    %cst_108 = arith.constant dense<0.000000e+00> : vector<8x32xf32>
    %246 = tpu.matmul %245, %14, %cst_108 {dimension_numbers = #tpu.dot_dimension_numbers<[1], [0], [0], [1], [0, 0, 1, 1], [], []>} : vector<8x32xbf16>, vector<32x32xbf16>, vector<8x32xf32> -> vector<8x32xf32>
    %247 = vector.broadcast %15 : vector<1x32xf32> to vector<8x32xf32>
    %248 = arith.addf %246, %247 : vector<8x32xf32>
    %cst_109 = arith.constant 0.000000e+00 : f32
    %249 = vector.broadcast %cst_109 : f32 to vector<8x32xf32>
    %250 = arith.maximumf %248, %249 : vector<8x32xf32>
    %251 = arith.truncf %250 : vector<8x32xf32> to vector<8x32xbf16>
    %cst_110 = arith.constant dense<0.000000e+00> : vector<8x6xf32>
    %252 = tpu.matmul %251, %16, %cst_110 {dimension_numbers = #tpu.dot_dimension_numbers<[1], [0], [0], [1], [0, 0, 1, 1], [], []>} : vector<8x32xbf16>, vector<32x6xbf16>, vector<8x6xf32> -> vector<8x6xf32>
    %253 = vector.broadcast %17 : vector<1x6xf32> to vector<8x6xf32>
    %254 = arith.addf %252, %253 : vector<8x6xf32>
    %255 = arith.addf %207, %254 : vector<8x6xf32>
    %c4 = arith.constant 4 : index
    %c0_111 = arith.constant 0 : index
    %c0_112 = arith.constant 0 : index
    %256 = vector.load %arg18[%c4, %c0_111, %c0_112] : memref<8x8x6xf32, #tpu.memory_space<vmem>>, vector<1x8x6xf32>
    %257 = vector.shape_cast %256 : vector<1x8x6xf32> to vector<8x6xf32>
    %258 = vector.shape_cast %255 : vector<8x6xf32> to vector<1x8x6xf32>
    tpu.vector_store %arg18[%c4, %c0_111, %c0_112], %258 {strides = array<i32>} : memref<8x8x6xf32, #tpu.memory_space<vmem>>, vector<1x8x6xf32>,
    %cst_113 = arith.constant dense<0.000000e+00> : vector<24x6xf32>
    %259 = tpu.matmul %0, %255, %cst_113 {dimension_numbers = #tpu.dot_dimension_numbers<[1], [0], [0], [1], [0, 0, 1, 1], [], []>} : vector<24x8xf32>, vector<8x6xf32>, vector<24x6xf32> -> vector<24x6xf32>
    %cst_114 = arith.constant dense<0.000000e+00> : vector<24x6xf32>
    %260 = tpu.matmul %1, %255, %cst_114 {dimension_numbers = #tpu.dot_dimension_numbers<[1], [0], [0], [1], [0, 0, 1, 1], [], []>} : vector<24x8xf32>, vector<8x6xf32>, vector<24x6xf32> -> vector<24x6xf32>
    %261 = arith.truncf %259 : vector<24x6xf32> to vector<24x6xbf16>
    %cst_115 = arith.constant dense<0.000000e+00> : vector<24x64xf32>
    %262 = tpu.matmul %261, %6, %cst_115 {dimension_numbers = #tpu.dot_dimension_numbers<[1], [0], [0], [1], [0, 0, 1, 1], [], []>} : vector<24x6xbf16>, vector<6x64xbf16>, vector<24x64xf32> -> vector<24x64xf32>
    %263 = arith.truncf %260 : vector<24x6xf32> to vector<24x6xbf16>
    %cst_116 = arith.constant dense<0.000000e+00> : vector<24x64xf32>
    %264 = tpu.matmul %263, %7, %cst_116 {dimension_numbers = #tpu.dot_dimension_numbers<[1], [0], [0], [1], [0, 0, 1, 1], [], []>} : vector<24x6xbf16>, vector<6x64xbf16>, vector<24x64xf32> -> vector<24x64xf32>
    %265 = arith.addf %262, %264 : vector<24x64xf32>
    %266 = vector.broadcast %8 : vector<1x64xf32> to vector<24x64xf32>
    %267 = arith.addf %265, %266 : vector<24x64xf32>
    %cst_117 = arith.constant 0.000000e+00 : f32
    %268 = vector.broadcast %cst_117 : f32 to vector<24x64xf32>
    %269 = arith.maximumf %267, %268 : vector<24x64xf32>
    %270 = arith.truncf %269 : vector<24x64xf32> to vector<24x64xbf16>
    %cst_118 = arith.constant dense<0.000000e+00> : vector<24x32xf32>
    %271 = tpu.matmul %270, %9, %cst_118 {dimension_numbers = #tpu.dot_dimension_numbers<[1], [0], [0], [1], [0, 0, 1, 1], [], []>} : vector<24x64xbf16>, vector<64x32xbf16>, vector<24x32xf32> -> vector<24x32xf32>
    %272 = vector.broadcast %10 : vector<1x32xf32> to vector<24x32xf32>
    %273 = arith.addf %271, %272 : vector<24x32xf32>
    %cst_119 = arith.constant 0.000000e+00 : f32
    %274 = vector.broadcast %cst_119 : f32 to vector<24x32xf32>
    %275 = arith.maximumf %273, %274 : vector<24x32xf32>
    %276 = vector.extract_strided_slice %275 {offsets = [0, 0], sizes = [24, 16], strides = [1, 1]} : vector<24x32xf32> to vector<24x16xf32>
    %277 = vector.broadcast %4 : vector<24x1xf32> to vector<24x16xf32>
    %278 = arith.mulf %276, %277 : vector<24x16xf32>
    %279 = vector.extract_strided_slice %275 {offsets = [0, 16], sizes = [24, 16], strides = [1, 1]} : vector<24x32xf32> to vector<24x16xf32>
    %280 = vector.broadcast %5 : vector<24x1xf32> to vector<24x16xf32>
    %281 = arith.mulf %279, %280 : vector<24x16xf32>
    %282 = arith.addf %278, %281 : vector<24x16xf32>
    %cst_120 = arith.constant dense<0.000000e+00> : vector<8x16xf32>
    %283 = tpu.matmul %2, %282, %cst_120 {dimension_numbers = #tpu.dot_dimension_numbers<[1], [0], [0], [1], [0, 0, 1, 1], [], []>} : vector<8x24xf32>, vector<24x16xf32>, vector<8x16xf32> -> vector<8x16xf32>
    %284 = arith.truncf %255 : vector<8x6xf32> to vector<8x6xbf16>
    %cst_121 = arith.constant dense<0.000000e+00> : vector<8x32xf32>
    %285 = tpu.matmul %284, %11, %cst_121 {dimension_numbers = #tpu.dot_dimension_numbers<[1], [0], [0], [1], [0, 0, 1, 1], [], []>} : vector<8x6xbf16>, vector<6x32xbf16>, vector<8x32xf32> -> vector<8x32xf32>
    %286 = arith.truncf %283 : vector<8x16xf32> to vector<8x16xbf16>
    %cst_122 = arith.constant dense<0.000000e+00> : vector<8x32xf32>
    %287 = tpu.matmul %286, %12, %cst_122 {dimension_numbers = #tpu.dot_dimension_numbers<[1], [0], [0], [1], [0, 0, 1, 1], [], []>} : vector<8x16xbf16>, vector<16x32xbf16>, vector<8x32xf32> -> vector<8x32xf32>
    %288 = arith.addf %285, %287 : vector<8x32xf32>
    %289 = vector.broadcast %13 : vector<1x32xf32> to vector<8x32xf32>
    %290 = arith.addf %288, %289 : vector<8x32xf32>
    %cst_123 = arith.constant 0.000000e+00 : f32
    %291 = vector.broadcast %cst_123 : f32 to vector<8x32xf32>
    %292 = arith.maximumf %290, %291 : vector<8x32xf32>
    %293 = arith.truncf %292 : vector<8x32xf32> to vector<8x32xbf16>
    %cst_124 = arith.constant dense<0.000000e+00> : vector<8x32xf32>
    %294 = tpu.matmul %293, %14, %cst_124 {dimension_numbers = #tpu.dot_dimension_numbers<[1], [0], [0], [1], [0, 0, 1, 1], [], []>} : vector<8x32xbf16>, vector<32x32xbf16>, vector<8x32xf32> -> vector<8x32xf32>
    %295 = vector.broadcast %15 : vector<1x32xf32> to vector<8x32xf32>
    %296 = arith.addf %294, %295 : vector<8x32xf32>
    %cst_125 = arith.constant 0.000000e+00 : f32
    %297 = vector.broadcast %cst_125 : f32 to vector<8x32xf32>
    %298 = arith.maximumf %296, %297 : vector<8x32xf32>
    %299 = arith.truncf %298 : vector<8x32xf32> to vector<8x32xbf16>
    %cst_126 = arith.constant dense<0.000000e+00> : vector<8x6xf32>
    %300 = tpu.matmul %299, %16, %cst_126 {dimension_numbers = #tpu.dot_dimension_numbers<[1], [0], [0], [1], [0, 0, 1, 1], [], []>} : vector<8x32xbf16>, vector<32x6xbf16>, vector<8x6xf32> -> vector<8x6xf32>
    %301 = vector.broadcast %17 : vector<1x6xf32> to vector<8x6xf32>
    %302 = arith.addf %300, %301 : vector<8x6xf32>
    %303 = arith.addf %255, %302 : vector<8x6xf32>
    %c5 = arith.constant 5 : index
    %c0_127 = arith.constant 0 : index
    %c0_128 = arith.constant 0 : index
    %304 = vector.load %arg18[%c5, %c0_127, %c0_128] : memref<8x8x6xf32, #tpu.memory_space<vmem>>, vector<1x8x6xf32>
    %305 = vector.shape_cast %304 : vector<1x8x6xf32> to vector<8x6xf32>
    %306 = vector.shape_cast %303 : vector<8x6xf32> to vector<1x8x6xf32>
    tpu.vector_store %arg18[%c5, %c0_127, %c0_128], %306 {strides = array<i32>} : memref<8x8x6xf32, #tpu.memory_space<vmem>>, vector<1x8x6xf32>,
    %cst_129 = arith.constant dense<0.000000e+00> : vector<24x6xf32>
    %307 = tpu.matmul %0, %303, %cst_129 {dimension_numbers = #tpu.dot_dimension_numbers<[1], [0], [0], [1], [0, 0, 1, 1], [], []>} : vector<24x8xf32>, vector<8x6xf32>, vector<24x6xf32> -> vector<24x6xf32>
    %cst_130 = arith.constant dense<0.000000e+00> : vector<24x6xf32>
    %308 = tpu.matmul %1, %303, %cst_130 {dimension_numbers = #tpu.dot_dimension_numbers<[1], [0], [0], [1], [0, 0, 1, 1], [], []>} : vector<24x8xf32>, vector<8x6xf32>, vector<24x6xf32> -> vector<24x6xf32>
    %309 = arith.truncf %307 : vector<24x6xf32> to vector<24x6xbf16>
    %cst_131 = arith.constant dense<0.000000e+00> : vector<24x64xf32>
    %310 = tpu.matmul %309, %6, %cst_131 {dimension_numbers = #tpu.dot_dimension_numbers<[1], [0], [0], [1], [0, 0, 1, 1], [], []>} : vector<24x6xbf16>, vector<6x64xbf16>, vector<24x64xf32> -> vector<24x64xf32>
    %311 = arith.truncf %308 : vector<24x6xf32> to vector<24x6xbf16>
    %cst_132 = arith.constant dense<0.000000e+00> : vector<24x64xf32>
    %312 = tpu.matmul %311, %7, %cst_132 {dimension_numbers = #tpu.dot_dimension_numbers<[1], [0], [0], [1], [0, 0, 1, 1], [], []>} : vector<24x6xbf16>, vector<6x64xbf16>, vector<24x64xf32> -> vector<24x64xf32>
    %313 = arith.addf %310, %312 : vector<24x64xf32>
    %314 = vector.broadcast %8 : vector<1x64xf32> to vector<24x64xf32>
    %315 = arith.addf %313, %314 : vector<24x64xf32>
    %cst_133 = arith.constant 0.000000e+00 : f32
    %316 = vector.broadcast %cst_133 : f32 to vector<24x64xf32>
    %317 = arith.maximumf %315, %316 : vector<24x64xf32>
    %318 = arith.truncf %317 : vector<24x64xf32> to vector<24x64xbf16>
    %cst_134 = arith.constant dense<0.000000e+00> : vector<24x32xf32>
    %319 = tpu.matmul %318, %9, %cst_134 {dimension_numbers = #tpu.dot_dimension_numbers<[1], [0], [0], [1], [0, 0, 1, 1], [], []>} : vector<24x64xbf16>, vector<64x32xbf16>, vector<24x32xf32> -> vector<24x32xf32>
    %320 = vector.broadcast %10 : vector<1x32xf32> to vector<24x32xf32>
    %321 = arith.addf %319, %320 : vector<24x32xf32>
    %cst_135 = arith.constant 0.000000e+00 : f32
    %322 = vector.broadcast %cst_135 : f32 to vector<24x32xf32>
    %323 = arith.maximumf %321, %322 : vector<24x32xf32>
    %324 = vector.extract_strided_slice %323 {offsets = [0, 0], sizes = [24, 16], strides = [1, 1]} : vector<24x32xf32> to vector<24x16xf32>
    %325 = vector.broadcast %4 : vector<24x1xf32> to vector<24x16xf32>
    %326 = arith.mulf %324, %325 : vector<24x16xf32>
    %327 = vector.extract_strided_slice %323 {offsets = [0, 16], sizes = [24, 16], strides = [1, 1]} : vector<24x32xf32> to vector<24x16xf32>
    %328 = vector.broadcast %5 : vector<24x1xf32> to vector<24x16xf32>
    %329 = arith.mulf %327, %328 : vector<24x16xf32>
    %330 = arith.addf %326, %329 : vector<24x16xf32>
    %cst_136 = arith.constant dense<0.000000e+00> : vector<8x16xf32>
    %331 = tpu.matmul %2, %330, %cst_136 {dimension_numbers = #tpu.dot_dimension_numbers<[1], [0], [0], [1], [0, 0, 1, 1], [], []>} : vector<8x24xf32>, vector<24x16xf32>, vector<8x16xf32> -> vector<8x16xf32>
    %332 = arith.truncf %303 : vector<8x6xf32> to vector<8x6xbf16>
    %cst_137 = arith.constant dense<0.000000e+00> : vector<8x32xf32>
    %333 = tpu.matmul %332, %11, %cst_137 {dimension_numbers = #tpu.dot_dimension_numbers<[1], [0], [0], [1], [0, 0, 1, 1], [], []>} : vector<8x6xbf16>, vector<6x32xbf16>, vector<8x32xf32> -> vector<8x32xf32>
    %334 = arith.truncf %331 : vector<8x16xf32> to vector<8x16xbf16>
    %cst_138 = arith.constant dense<0.000000e+00> : vector<8x32xf32>
    %335 = tpu.matmul %334, %12, %cst_138 {dimension_numbers = #tpu.dot_dimension_numbers<[1], [0], [0], [1], [0, 0, 1, 1], [], []>} : vector<8x16xbf16>, vector<16x32xbf16>, vector<8x32xf32> -> vector<8x32xf32>
    %336 = arith.addf %333, %335 : vector<8x32xf32>
    %337 = vector.broadcast %13 : vector<1x32xf32> to vector<8x32xf32>
    %338 = arith.addf %336, %337 : vector<8x32xf32>
    %cst_139 = arith.constant 0.000000e+00 : f32
    %339 = vector.broadcast %cst_139 : f32 to vector<8x32xf32>
    %340 = arith.maximumf %338, %339 : vector<8x32xf32>
    %341 = arith.truncf %340 : vector<8x32xf32> to vector<8x32xbf16>
    %cst_140 = arith.constant dense<0.000000e+00> : vector<8x32xf32>
    %342 = tpu.matmul %341, %14, %cst_140 {dimension_numbers = #tpu.dot_dimension_numbers<[1], [0], [0], [1], [0, 0, 1, 1], [], []>} : vector<8x32xbf16>, vector<32x32xbf16>, vector<8x32xf32> -> vector<8x32xf32>
    %343 = vector.broadcast %15 : vector<1x32xf32> to vector<8x32xf32>
    %344 = arith.addf %342, %343 : vector<8x32xf32>
    %cst_141 = arith.constant 0.000000e+00 : f32
    %345 = vector.broadcast %cst_141 : f32 to vector<8x32xf32>
    %346 = arith.maximumf %344, %345 : vector<8x32xf32>
    %347 = arith.truncf %346 : vector<8x32xf32> to vector<8x32xbf16>
    %cst_142 = arith.constant dense<0.000000e+00> : vector<8x6xf32>
    %348 = tpu.matmul %347, %16, %cst_142 {dimension_numbers = #tpu.dot_dimension_numbers<[1], [0], [0], [1], [0, 0, 1, 1], [], []>} : vector<8x32xbf16>, vector<32x6xbf16>, vector<8x6xf32> -> vector<8x6xf32>
    %349 = vector.broadcast %17 : vector<1x6xf32> to vector<8x6xf32>
    %350 = arith.addf %348, %349 : vector<8x6xf32>
    %351 = arith.addf %303, %350 : vector<8x6xf32>
    %c6 = arith.constant 6 : index
    %c0_143 = arith.constant 0 : index
    %c0_144 = arith.constant 0 : index
    %352 = vector.load %arg18[%c6, %c0_143, %c0_144] : memref<8x8x6xf32, #tpu.memory_space<vmem>>, vector<1x8x6xf32>
    %353 = vector.shape_cast %352 : vector<1x8x6xf32> to vector<8x6xf32>
    %354 = vector.shape_cast %351 : vector<8x6xf32> to vector<1x8x6xf32>
    tpu.vector_store %arg18[%c6, %c0_143, %c0_144], %354 {strides = array<i32>} : memref<8x8x6xf32, #tpu.memory_space<vmem>>, vector<1x8x6xf32>,
    %cst_145 = arith.constant dense<0.000000e+00> : vector<24x6xf32>
    %355 = tpu.matmul %0, %351, %cst_145 {dimension_numbers = #tpu.dot_dimension_numbers<[1], [0], [0], [1], [0, 0, 1, 1], [], []>} : vector<24x8xf32>, vector<8x6xf32>, vector<24x6xf32> -> vector<24x6xf32>
    %cst_146 = arith.constant dense<0.000000e+00> : vector<24x6xf32>
    %356 = tpu.matmul %1, %351, %cst_146 {dimension_numbers = #tpu.dot_dimension_numbers<[1], [0], [0], [1], [0, 0, 1, 1], [], []>} : vector<24x8xf32>, vector<8x6xf32>, vector<24x6xf32> -> vector<24x6xf32>
    %357 = arith.truncf %355 : vector<24x6xf32> to vector<24x6xbf16>
    %cst_147 = arith.constant dense<0.000000e+00> : vector<24x64xf32>
    %358 = tpu.matmul %357, %6, %cst_147 {dimension_numbers = #tpu.dot_dimension_numbers<[1], [0], [0], [1], [0, 0, 1, 1], [], []>} : vector<24x6xbf16>, vector<6x64xbf16>, vector<24x64xf32> -> vector<24x64xf32>
    %359 = arith.truncf %356 : vector<24x6xf32> to vector<24x6xbf16>
    %cst_148 = arith.constant dense<0.000000e+00> : vector<24x64xf32>
    %360 = tpu.matmul %359, %7, %cst_148 {dimension_numbers = #tpu.dot_dimension_numbers<[1], [0], [0], [1], [0, 0, 1, 1], [], []>} : vector<24x6xbf16>, vector<6x64xbf16>, vector<24x64xf32> -> vector<24x64xf32>
    %361 = arith.addf %358, %360 : vector<24x64xf32>
    %362 = vector.broadcast %8 : vector<1x64xf32> to vector<24x64xf32>
    %363 = arith.addf %361, %362 : vector<24x64xf32>
    %cst_149 = arith.constant 0.000000e+00 : f32
    %364 = vector.broadcast %cst_149 : f32 to vector<24x64xf32>
    %365 = arith.maximumf %363, %364 : vector<24x64xf32>
    %366 = arith.truncf %365 : vector<24x64xf32> to vector<24x64xbf16>
    %cst_150 = arith.constant dense<0.000000e+00> : vector<24x32xf32>
    %367 = tpu.matmul %366, %9, %cst_150 {dimension_numbers = #tpu.dot_dimension_numbers<[1], [0], [0], [1], [0, 0, 1, 1], [], []>} : vector<24x64xbf16>, vector<64x32xbf16>, vector<24x32xf32> -> vector<24x32xf32>
    %368 = vector.broadcast %10 : vector<1x32xf32> to vector<24x32xf32>
    %369 = arith.addf %367, %368 : vector<24x32xf32>
    %cst_151 = arith.constant 0.000000e+00 : f32
    %370 = vector.broadcast %cst_151 : f32 to vector<24x32xf32>
    %371 = arith.maximumf %369, %370 : vector<24x32xf32>
    %372 = vector.extract_strided_slice %371 {offsets = [0, 0], sizes = [24, 16], strides = [1, 1]} : vector<24x32xf32> to vector<24x16xf32>
    %373 = vector.broadcast %4 : vector<24x1xf32> to vector<24x16xf32>
    %374 = arith.mulf %372, %373 : vector<24x16xf32>
    %375 = vector.extract_strided_slice %371 {offsets = [0, 16], sizes = [24, 16], strides = [1, 1]} : vector<24x32xf32> to vector<24x16xf32>
    %376 = vector.broadcast %5 : vector<24x1xf32> to vector<24x16xf32>
    %377 = arith.mulf %375, %376 : vector<24x16xf32>
    %378 = arith.addf %374, %377 : vector<24x16xf32>
    %cst_152 = arith.constant dense<0.000000e+00> : vector<8x16xf32>
    %379 = tpu.matmul %2, %378, %cst_152 {dimension_numbers = #tpu.dot_dimension_numbers<[1], [0], [0], [1], [0, 0, 1, 1], [], []>} : vector<8x24xf32>, vector<24x16xf32>, vector<8x16xf32> -> vector<8x16xf32>
    %380 = arith.truncf %351 : vector<8x6xf32> to vector<8x6xbf16>
    %cst_153 = arith.constant dense<0.000000e+00> : vector<8x32xf32>
    %381 = tpu.matmul %380, %11, %cst_153 {dimension_numbers = #tpu.dot_dimension_numbers<[1], [0], [0], [1], [0, 0, 1, 1], [], []>} : vector<8x6xbf16>, vector<6x32xbf16>, vector<8x32xf32> -> vector<8x32xf32>
    %382 = arith.truncf %379 : vector<8x16xf32> to vector<8x16xbf16>
    %cst_154 = arith.constant dense<0.000000e+00> : vector<8x32xf32>
    %383 = tpu.matmul %382, %12, %cst_154 {dimension_numbers = #tpu.dot_dimension_numbers<[1], [0], [0], [1], [0, 0, 1, 1], [], []>} : vector<8x16xbf16>, vector<16x32xbf16>, vector<8x32xf32> -> vector<8x32xf32>
    %384 = arith.addf %381, %383 : vector<8x32xf32>
    %385 = vector.broadcast %13 : vector<1x32xf32> to vector<8x32xf32>
    %386 = arith.addf %384, %385 : vector<8x32xf32>
    %cst_155 = arith.constant 0.000000e+00 : f32
    %387 = vector.broadcast %cst_155 : f32 to vector<8x32xf32>
    %388 = arith.maximumf %386, %387 : vector<8x32xf32>
    %389 = arith.truncf %388 : vector<8x32xf32> to vector<8x32xbf16>
    %cst_156 = arith.constant dense<0.000000e+00> : vector<8x32xf32>
    %390 = tpu.matmul %389, %14, %cst_156 {dimension_numbers = #tpu.dot_dimension_numbers<[1], [0], [0], [1], [0, 0, 1, 1], [], []>} : vector<8x32xbf16>, vector<32x32xbf16>, vector<8x32xf32> -> vector<8x32xf32>
    %391 = vector.broadcast %15 : vector<1x32xf32> to vector<8x32xf32>
    %392 = arith.addf %390, %391 : vector<8x32xf32>
    %cst_157 = arith.constant 0.000000e+00 : f32
    %393 = vector.broadcast %cst_157 : f32 to vector<8x32xf32>
    %394 = arith.maximumf %392, %393 : vector<8x32xf32>
    %395 = arith.truncf %394 : vector<8x32xf32> to vector<8x32xbf16>
    %cst_158 = arith.constant dense<0.000000e+00> : vector<8x6xf32>
    %396 = tpu.matmul %395, %16, %cst_158 {dimension_numbers = #tpu.dot_dimension_numbers<[1], [0], [0], [1], [0, 0, 1, 1], [], []>} : vector<8x32xbf16>, vector<32x6xbf16>, vector<8x6xf32> -> vector<8x6xf32>
    %397 = vector.broadcast %17 : vector<1x6xf32> to vector<8x6xf32>
    %398 = arith.addf %396, %397 : vector<8x6xf32>
    %399 = arith.addf %351, %398 : vector<8x6xf32>
    %c7 = arith.constant 7 : index
    %c0_159 = arith.constant 0 : index
    %c0_160 = arith.constant 0 : index
    %400 = vector.load %arg18[%c7, %c0_159, %c0_160] : memref<8x8x6xf32, #tpu.memory_space<vmem>>, vector<1x8x6xf32>
    %401 = vector.shape_cast %400 : vector<1x8x6xf32> to vector<8x6xf32>
    %402 = vector.shape_cast %399 : vector<8x6xf32> to vector<1x8x6xf32>
    tpu.vector_store %arg18[%c7, %c0_159, %c0_160], %402 {strides = array<i32>} : memref<8x8x6xf32, #tpu.memory_space<vmem>>, vector<1x8x6xf32>,
    return
  }
  func.func @transform_0(%arg0: i32) -> (i32, i32) {
    %c0_i32 = arith.constant 0 : i32
    %c0_i32_0 = arith.constant 0 : i32
    %c0_i32_1 = arith.constant 0 : i32
    return %c0_i32, %c0_i32_0 : i32, i32
  }
  func.func @transform_1(%arg0: i32) -> (i32, i32) {
    %c0_i32 = arith.constant 0 : i32
    %c0_i32_0 = arith.constant 0 : i32
    %c0_i32_1 = arith.constant 0 : i32
    return %c0_i32, %c0_i32_0 : i32, i32
  }
  func.func @transform_2(%arg0: i32) -> (i32, i32) {
    %c0_i32 = arith.constant 0 : i32
    %c0_i32_0 = arith.constant 0 : i32
    %c0_i32_1 = arith.constant 0 : i32
    return %c0_i32, %c0_i32_0 : i32, i32
  }
  func.func @transform_3(%arg0: i32) -> (i32, i32) {
    %c0_i32 = arith.constant 0 : i32
    %c0_i32_0 = arith.constant 0 : i32
    %c0_i32_1 = arith.constant 0 : i32
    return %c0_i32, %c0_i32_0 : i32, i32
  }
  func.func @transform_4(%arg0: i32) -> (i32, i32) {
    %c0_i32 = arith.constant 0 : i32
    %c0_i32_0 = arith.constant 0 : i32
    %c0_i32_1 = arith.constant 0 : i32
    return %c0_i32, %c0_i32_0 : i32, i32
  }
  func.func @transform_5(%arg0: i32) -> (i32, i32) {
    %c0_i32 = arith.constant 0 : i32
    %c0_i32_0 = arith.constant 0 : i32
    %c0_i32_1 = arith.constant 0 : i32
    return %c0_i32, %c0_i32_0 : i32, i32
  }
  func.func @transform_6(%arg0: i32) -> (i32, i32) {
    %c0_i32 = arith.constant 0 : i32
    %c0_i32_0 = arith.constant 0 : i32
    %c0_i32_1 = arith.constant 0 : i32
    return %c0_i32, %c0_i32_0 : i32, i32
  }
  func.func @transform_7(%arg0: i32) -> (i32, i32) {
    %c0_i32 = arith.constant 0 : i32
    %c0_i32_0 = arith.constant 0 : i32
    %c0_i32_1 = arith.constant 0 : i32
    return %c0_i32, %c0_i32_0 : i32, i32
  }
  func.func @transform_8(%arg0: i32) -> (i32, i32) {
    %c0_i32 = arith.constant 0 : i32
    %c0_i32_0 = arith.constant 0 : i32
    %c0_i32_1 = arith.constant 0 : i32
    return %c0_i32, %c0_i32_0 : i32, i32
  }
  func.func @transform_9(%arg0: i32) -> (i32, i32) {
    %c0_i32 = arith.constant 0 : i32
    %c0_i32_0 = arith.constant 0 : i32
    %c0_i32_1 = arith.constant 0 : i32
    return %c0_i32, %c0_i32_0 : i32, i32
  }
  func.func @transform_10(%arg0: i32) -> (i32, i32) {
    %c0_i32 = arith.constant 0 : i32
    %c0_i32_0 = arith.constant 0 : i32
    %c0_i32_1 = arith.constant 0 : i32
    return %c0_i32, %c0_i32_0 : i32, i32
  }
  func.func @transform_11(%arg0: i32) -> (i32, i32) {
    %c0_i32 = arith.constant 0 : i32
    %c0_i32_0 = arith.constant 0 : i32
    %c0_i32_1 = arith.constant 0 : i32
    return %c0_i32, %c0_i32_0 : i32, i32
  }
  func.func @transform_12(%arg0: i32) -> (i32, i32) {
    %c0_i32 = arith.constant 0 : i32
    %c0_i32_0 = arith.constant 0 : i32
    %c0_i32_1 = arith.constant 0 : i32
    return %c0_i32, %c0_i32_0 : i32, i32
  }
  func.func @transform_13(%arg0: i32) -> (i32, i32) {
    %c0_i32 = arith.constant 0 : i32
    %c0_i32_0 = arith.constant 0 : i32
    %c0_i32_1 = arith.constant 0 : i32
    return %c0_i32, %c0_i32_0 : i32, i32
  }
  func.func @transform_14(%arg0: i32) -> (i32, i32) {
    %c0_i32 = arith.constant 0 : i32
    %c0_i32_0 = arith.constant 0 : i32
    %c0_i32_1 = arith.constant 0 : i32
    return %c0_i32, %c0_i32_0 : i32, i32
  }
  func.func @transform_15(%arg0: i32) -> (i32, i32) {
    %c0_i32 = arith.constant 0 : i32
    %c0_i32_0 = arith.constant 0 : i32
    %c0_i32_1 = arith.constant 0 : i32
    return %c0_i32, %c0_i32_0 : i32, i32
  }
  func.func @transform_16(%arg0: i32) -> (i32, i32) {
    %c0_i32 = arith.constant 0 : i32
    %c0_i32_0 = arith.constant 0 : i32
    %c0_i32_1 = arith.constant 0 : i32
    return %c0_i32, %c0_i32_0 : i32, i32
  }
  func.func @transform_17(%arg0: i32) -> (i32, i32, i32) {
    %c0_i32 = arith.constant 0 : i32
    %c0_i32_0 = arith.constant 0 : i32
    %c0_i32_1 = arith.constant 0 : i32
    %c0_i32_2 = arith.constant 0 : i32
    return %c0_i32, %c0_i32_0, %c0_i32_1 : i32, i32, i32
  }
}

</mosaic_0001>

<llo_original>
// kernel: div.14
$region0: #{div.14}
  %s0 = inlined_call_operand.vmem [shape: f32[24], index: 0, kind: input, shape index: {}]
  %s1 = inlined_call_operand.vmem [shape: f32[2,12], index: 1, kind: output, shape index: {}]
  $region1: #{div.14} parent=0
    #allocation0 [shape = 'u8[4096]{0}', space=vmem, size = 0x1000, scoped, tag = 'scoped mem for output reshape']
    #allocation1 [shape = 'u8[4096]{0}', space=vmem, size = 0x1000, scoped, tag = 'scoped mem for input reshape']
    %s3 = sshllo.u32 0, 1
    %v4 = vld [vmem:[%s0] sm:%s3]
    %5 = vst [vmem:[#allocation1] sm:%s3] %v4
    %v6 = vld [vmem:[#allocation1] sm:$0x1]
    %vm7 = vcmask 97280
    %8 = vst.msk [vmem:[#allocation0] sm:$0x1] %vm7, %v6
    %v9 = vld [vmem:[#allocation1] sm:$0x1]
    %10 = vrot.lane.b32.xlu0 %v9, 116
    %v11 = vpop.permute.xlu0 %10
    %vm12 = vcmask 97280
    %s13 = scalar_lea.vmem [#allocation0], 1
    %14 = vst.msk [vmem:[%s13] sm:$0x1] %vm12, %v11
    %s16 = sshllo.u32 0, 2
    %v18 = vld [vmem:[#allocation0] sm:%s16]
    %s19 = sshllo.u32 0, 2
    %20 = vst [vmem:[%s1] sm:%s19] %v18

// kernel: nri_multi_forward.2
$region0: #{nri_multi_forward.2}
  #allocation0 [shape = 'u32[]', space=smem, size = 0x4, offset = 0x4, fixed_abs, tag = 'smem constant byte address 0x4 - core index']
  #allocation1 [shape = 'u32[144,128]{1,0:T(1,128)}', space=vmem, size = 0x12000, scoped, tag = 'internal scratch']
  %s0 = inlined_call_operand.smem [shape: u32[34], index: -1, kind: input, shape index: {}]
  %s1 = sld [smem:[%s0]]
  %s2 = scalar_lea.smem %s0, 1
  %s3 = sld [smem:[%s2]]
  %s4 = scalar_lea.smem %s0, 2
  %s5 = sld [smem:[%s4]]
  %s6 = scalar_lea.smem %s0, 3
  %s7 = sld [smem:[%s6]]
  %s8 = scalar_lea.smem %s0, 4
  %s9 = sld [smem:[%s8]]
  %s10 = scalar_lea.smem %s0, 5
  %s11 = sld [smem:[%s10]]
  %s12 = scalar_lea.smem %s0, 6
  %s13 = sld [smem:[%s12]]
  %s14 = scalar_lea.smem %s0, 7
  %s15 = sld [smem:[%s14]]
  %s16 = scalar_lea.smem %s0, 8
  %s17 = sld [smem:[%s16]]
  %s18 = scalar_lea.smem %s0, 9
  %s19 = sld [smem:[%s18]]
  %s20 = scalar_lea.smem %s0, 10
  %s21 = sld [smem:[%s20]]
  %s22 = scalar_lea.smem %s0, 11
  %s23 = sld [smem:[%s22]]
  %s24 = scalar_lea.smem %s0, 12
  %s25 = sld [smem:[%s24]]
  %s26 = scalar_lea.smem %s0, 13
  %s27 = sld [smem:[%s26]]
  %s28 = scalar_lea.smem %s0, 14
  %s29 = sld [smem:[%s28]]
  %s30 = scalar_lea.smem %s0, 15
  %s31 = sld [smem:[%s30]]
  %s32 = scalar_lea.smem %s0, 16
  %s33 = sld [smem:[%s32]]
  %s34 = scalar_lea.smem %s0, 17
  %s35 = sld [smem:[%s34]]
  %s36 = scalar_lea.smem %s0, 18
  %s37 = sld [smem:[%s36]]
  %s38 = scalar_lea.smem %s0, 19
  %s39 = sld [smem:[%s38]]
  %s40 = scalar_lea.smem %s0, 20
  %s41 = sld [smem:[%s40]]
  %s42 = scalar_lea.smem %s0, 21
  %s43 = sld [smem:[%s42]]
  %s44 = scalar_lea.smem %s0, 22
  %s45 = sld [smem:[%s44]]
  %s46 = scalar_lea.smem %s0, 23
  %s47 = sld [smem:[%s46]]
  %s48 = scalar_lea.smem %s0, 24
  %s49 = sld [smem:[%s48]]
  %s50 = scalar_lea.smem %s0, 25
  %s51 = sld [smem:[%s50]]
  %s52 = scalar_lea.smem %s0, 26
  %s53 = sld [smem:[%s52]]
  %s54 = scalar_lea.smem %s0, 27
  %s55 = sld [smem:[%s54]]
  %s56 = scalar_lea.smem %s0, 28
  %s57 = sld [smem:[%s56]]
  %s58 = scalar_lea.smem %s0, 29
  %s59 = sld [smem:[%s58]]
  %s60 = scalar_lea.smem %s0, 30
  %s61 = sld [smem:[%s60]]
  %s62 = scalar_lea.smem %s0, 31
  %s63 = sld [smem:[%s62]]
  %s64 = scalar_lea.smem %s0, 32
  %s65 = sld [smem:[%s64]]
  %s66 = scalar_lea.smem %s0, 33
  %s67 = sld [smem:[%s66]]
  %s68 = sld [smem:[#allocation0]]
  $region142: #{nri_multi_forward.2} parent=0
    _
  %s70 = ssub.s32 1, %s68
  %s71 = scalar_select 0, %s70, %s68
  // Predicated region
  $region2: #{nri_multi_forward.2} parent=0 // pred_check
    _
  $region3: #{nri_multi_forward.2} parent=0 // pred_check_branch
    %73 = sbr.rel (0) target = $region5
  $region4: #{nri_multi_forward.2} parent=0 // pred_region
    _
  $region5: #{nri_multi_forward.2} parent=0 // pred_fallthru
    _
  // Predicated region
  $region6: #{nri_multi_forward.2} parent=0 // pred_check
    _
  $region7: #{nri_multi_forward.2} parent=0 // pred_check_branch
    %75 = sbr.rel (0) target = $region9
  $region8: #{nri_multi_forward.2} parent=0 // pred_region
    _
  $region9: #{nri_multi_forward.2} parent=0 // pred_fallthru
    _
  // Predicated region
  $region10: #{nri_multi_forward.2} parent=0 // pred_check
    _
  $region11: #{nri_multi_forward.2} parent=0 // pred_check_branch
    %77 = sbr.rel (0) target = $region13
  $region12: #{nri_multi_forward.2} parent=0 // pred_region
    _
  $region13: #{nri_multi_forward.2} parent=0 // pred_fallthru
    _
  // Predicated region
  $region14: #{nri_multi_forward.2} parent=0 // pred_check
    _
  $region15: #{nri_multi_forward.2} parent=0 // pred_check_branch
    %79 = sbr.rel (0) target = $region17
  $region16: #{nri_multi_forward.2} parent=0 // pred_region
    _
  $region17: #{nri_multi_forward.2} parent=0 // pred_fallthru
    _
  // Predicated region
  $region18: #{nri_multi_forward.2} parent=0 // pred_check
    _
  $region19: #{nri_multi_forward.2} parent=0 // pred_check_branch
    %81 = sbr.rel (0) target = $region21
  $region20: #{nri_multi_forward.2} parent=0 // pred_region
    _
  $region21: #{nri_multi_forward.2} parent=0 // pred_fallthru
    _
  // Predicated region
  $region22: #{nri_multi_forward.2} parent=0 // pred_check
    _
  $region23: #{nri_multi_forward.2} parent=0 // pred_check_branch
    %83 = sbr.rel (0) target = $region25
  $region24: #{nri_multi_forward.2} parent=0 // pred_region
    _
  $region25: #{nri_multi_forward.2} parent=0 // pred_fallthru
    _
  // Predicated region
  $region26: #{nri_multi_forward.2} parent=0 // pred_check
    _
  $region27: #{nri_multi_forward.2} parent=0 // pred_check_branch
    %85 = sbr.rel (0) target = $region29
  $region28: #{nri_multi_forward.2} parent=0 // pred_region
    _
  $region29: #{nri_multi_forward.2} parent=0 // pred_fallthru
    _
  // Predicated region
  $region30: #{nri_multi_forward.2} parent=0 // pred_check
    _
  $region31: #{nri_multi_forward.2} parent=0 // pred_check_branch
    %87 = sbr.rel (0) target = $region33
  $region32: #{nri_multi_forward.2} parent=0 // pred_region
    _
  $region33: #{nri_multi_forward.2} parent=0 // pred_fallthru
    _
  // Predicated region
  $region34: #{nri_multi_forward.2} parent=0 // pred_check
    _
  $region35: #{nri_multi_forward.2} parent=0 // pred_check_branch
    %89 = sbr.rel (0) target = $region37
  $region36: #{nri_multi_forward.2} parent=0 // pred_region
    _
  $region37: #{nri_multi_forward.2} parent=0 // pred_fallthru
    _
  // Predicated region
  $region38: #{nri_multi_forward.2} parent=0 // pred_check
    _
  $region39: #{nri_multi_forward.2} parent=0 // pred_check_branch
    %91 = sbr.rel (0) target = $region41
  $region40: #{nri_multi_forward.2} parent=0 // pred_region
    _
  $region41: #{nri_multi_forward.2} parent=0 // pred_fallthru
    _
  // Predicated region
  $region42: #{nri_multi_forward.2} parent=0 // pred_check
    _
  $region43: #{nri_multi_forward.2} parent=0 // pred_check_branch
    %93 = sbr.rel (0) target = $region45
  $region44: #{nri_multi_forward.2} parent=0 // pred_region
    _
  $region45: #{nri_multi_forward.2} parent=0 // pred_fallthru
    _
  // Predicated region
  $region46: #{nri_multi_forward.2} parent=0 // pred_check
    _
  $region47: #{nri_multi_forward.2} parent=0 // pred_check_branch
    %95 = sbr.rel (0) target = $region49
  $region48: #{nri_multi_forward.2} parent=0 // pred_region
    _
  $region49: #{nri_multi_forward.2} parent=0 // pred_fallthru
    _
  // Predicated region
  $region50: #{nri_multi_forward.2} parent=0 // pred_check
    _
  $region51: #{nri_multi_forward.2} parent=0 // pred_check_branch
    %97 = sbr.rel (0) target = $region53
  $region52: #{nri_multi_forward.2} parent=0 // pred_region
    _
  $region53: #{nri_multi_forward.2} parent=0 // pred_fallthru
    _
  // Predicated region
  $region54: #{nri_multi_forward.2} parent=0 // pred_check
    _
  $region55: #{nri_multi_forward.2} parent=0 // pred_check_branch
    %99 = sbr.rel (0) target = $region57
  $region56: #{nri_multi_forward.2} parent=0 // pred_region
    _
  $region57: #{nri_multi_forward.2} parent=0 // pred_fallthru
    _
  // Predicated region
  $region58: #{nri_multi_forward.2} parent=0 // pred_check
    _
  $region59: #{nri_multi_forward.2} parent=0 // pred_check_branch
    %101 = sbr.rel (0) target = $region61
  $region60: #{nri_multi_forward.2} parent=0 // pred_region
    _
  $region61: #{nri_multi_forward.2} parent=0 // pred_fallthru
    _
  // Predicated region
  $region62: #{nri_multi_forward.2} parent=0 // pred_check
    _
  $region63: #{nri_multi_forward.2} parent=0 // pred_check_branch
    %103 = sbr.rel (0) target = $region65
  $region64: #{nri_multi_forward.2} parent=0 // pred_region
    _
  $region65: #{nri_multi_forward.2} parent=0 // pred_fallthru
    _
  // Predicated region
  $region66: #{nri_multi_forward.2} parent=0 // pred_check
    _
  $region67: #{nri_multi_forward.2} parent=0 // pred_check_branch
    %105 = sbr.rel (0) target = $region69
  $region68: #{nri_multi_forward.2} parent=0 // pred_region
    _
  $region69: #{nri_multi_forward.2} parent=0 // pred_fallthru
    _
  // Predicated region
  $region70: #{nri_multi_forward.2} parent=0 // pred_check
    _
  $region71: #{nri_multi_forward.2} parent=0 // pred_check_branch
    %107 = sbr.rel (0) target = $region73
  $region72: #{nri_multi_forward.2} parent=0 // pred_region
    _
  $region73: #{nri_multi_forward.2} parent=0 // pred_fallthru
    _
  // Predicated region
  $region74: #{nri_multi_forward.2} parent=0 // pred_check
    _
  $region75: #{nri_multi_forward.2} parent=0 // pred_check_branch
    %109 = sbr.rel (0) target = $region77
  $region76: #{nri_multi_forward.2} parent=0 // pred_region
    _
  $region77: #{nri_multi_forward.2} parent=0 // pred_fallthru
    _
  // Predicated region
  $region78: #{nri_multi_forward.2} parent=0 // pred_check
    _
  $region79: #{nri_multi_forward.2} parent=0 // pred_check_branch
    %111 = sbr.rel (0) target = $region81
  $region80: #{nri_multi_forward.2} parent=0 // pred_region
    _
  $region81: #{nri_multi_forward.2} parent=0 // pred_fallthru
    _
  // Predicated region
  $region82: #{nri_multi_forward.2} parent=0 // pred_check
    _
  $region83: #{nri_multi_forward.2} parent=0 // pred_check_branch
    %113 = sbr.rel (0) target = $region85
  $region84: #{nri_multi_forward.2} parent=0 // pred_region
    _
  $region85: #{nri_multi_forward.2} parent=0 // pred_fallthru
    _
  // Predicated region
  $region86: #{nri_multi_forward.2} parent=0 // pred_check
    _
  $region87: #{nri_multi_forward.2} parent=0 // pred_check_branch
    %115 = sbr.rel (0) target = $region89
  $region88: #{nri_multi_forward.2} parent=0 // pred_region
    _
  $region89: #{nri_multi_forward.2} parent=0 // pred_fallthru
    _
  // Predicated region
  $region90: #{nri_multi_forward.2} parent=0 // pred_check
    _
  $region91: #{nri_multi_forward.2} parent=0 // pred_check_branch
    %117 = sbr.rel (0) target = $region93
  $region92: #{nri_multi_forward.2} parent=0 // pred_region
    _
  $region93: #{nri_multi_forward.2} parent=0 // pred_fallthru
    _
  // Predicated region
  $region94: #{nri_multi_forward.2} parent=0 // pred_check
    _
  $region95: #{nri_multi_forward.2} parent=0 // pred_check_branch
    %119 = sbr.rel (0) target = $region97
  $region96: #{nri_multi_forward.2} parent=0 // pred_region
    _
  $region97: #{nri_multi_forward.2} parent=0 // pred_fallthru
    _
  // Predicated region
  $region98: #{nri_multi_forward.2} parent=0 // pred_check
    _
  $region99: #{nri_multi_forward.2} parent=0 // pred_check_branch
    %121 = sbr.rel (0) target = $region101
  $region100: #{nri_multi_forward.2} parent=0 // pred_region
    _
  $region101: #{nri_multi_forward.2} parent=0 // pred_fallthru
    _
  // Predicated region
  $region102: #{nri_multi_forward.2} parent=0 // pred_check
    _
  $region103: #{nri_multi_forward.2} parent=0 // pred_check_branch
    %123 = sbr.rel (0) target = $region105
  $region104: #{nri_multi_forward.2} parent=0 // pred_region
    _
  $region105: #{nri_multi_forward.2} parent=0 // pred_fallthru
    _
  // Predicated region
  $region106: #{nri_multi_forward.2} parent=0 // pred_check
    _
  $region107: #{nri_multi_forward.2} parent=0 // pred_check_branch
    %125 = sbr.rel (0) target = $region109
  $region108: #{nri_multi_forward.2} parent=0 // pred_region
    _
  $region109: #{nri_multi_forward.2} parent=0 // pred_fallthru
    _
  // Predicated region
  $region110: #{nri_multi_forward.2} parent=0 // pred_check
    _
  $region111: #{nri_multi_forward.2} parent=0 // pred_check_branch
    %127 = sbr.rel (0) target = $region113
  $region112: #{nri_multi_forward.2} parent=0 // pred_region
    _
  $region113: #{nri_multi_forward.2} parent=0 // pred_fallthru
    _
  // Predicated region
  $region114: #{nri_multi_forward.2} parent=0 // pred_check
    _
  $region115: #{nri_multi_forward.2} parent=0 // pred_check_branch
    %129 = sbr.rel (0) target = $region117
  $region116: #{nri_multi_forward.2} parent=0 // pred_region
    _
  $region117: #{nri_multi_forward.2} parent=0 // pred_fallthru
    _
  // Predicated region
  $region118: #{nri_multi_forward.2} parent=0 // pred_check
    _
  $region119: #{nri_multi_forward.2} parent=0 // pred_check_branch
    %131 = sbr.rel (0) target = $region121
  $region120: #{nri_multi_forward.2} parent=0 // pred_region
    _
  $region121: #{nri_multi_forward.2} parent=0 // pred_fallthru
    _
  // Predicated region
  $region122: #{nri_multi_forward.2} parent=0 // pred_check
    _
  $region123: #{nri_multi_forward.2} parent=0 // pred_check_branch
    %133 = sbr.rel (0) target = $region125
  $region124: #{nri_multi_forward.2} parent=0 // pred_region
    _
  $region125: #{nri_multi_forward.2} parent=0 // pred_fallthru
    _
  // Predicated region
  $region126: #{nri_multi_forward.2} parent=0 // pred_check
    _
  $region127: #{nri_multi_forward.2} parent=0 // pred_check_branch
    %135 = sbr.rel (0) target = $region129
  $region128: #{nri_multi_forward.2} parent=0 // pred_region
    _
  $region129: #{nri_multi_forward.2} parent=0 // pred_fallthru
    _
  // Predicated region
  $region130: #{nri_multi_forward.2} parent=0 // pred_check
    _
  $region131: #{nri_multi_forward.2} parent=0 // pred_check_branch
    %137 = sbr.rel (0) target = $region133
  $region132: #{nri_multi_forward.2} parent=0 // pred_region
    _
  $region133: #{nri_multi_forward.2} parent=0 // pred_fallthru
    _
  %v139 = vld [vmem:[%s3] sm:$0xff]
  %v140 = vld [vmem:[%s3 + $0x8] sm:$0xff]
  %v141 = vld [vmem:[%s3 + $0x10] sm:$0xff]
  %v142 = vld [vmem:[%s5] sm:$0xff]
  %v143 = vld [vmem:[%s5 + $0x8] sm:$0xff]
  %v144 = vld [vmem:[%s5 + $0x10] sm:$0xff]
  %v145 = vld [vmem:[%s7] sm:$0xff]
  %v146 = vld [vmem:[%s1] sm:$0xff]
  %v147 = vld [vmem:[%s9] sm:$0xf]
  %v148 = vld [vmem:[%s9 + $0x4] sm:$0xf]
  %v149 = vld [vmem:[%s9 + $0x8] sm:$0xf]
  %v150 = vld [vmem:[%s9 + $0xc] sm:$0xf]
  %v151 = vld [vmem:[%s9 + $0x10] sm:$0xf]
  %v152 = vld [vmem:[%s9 + $0x14] sm:$0xf]
  %v153 = vpack.c.bf16 %v146, %v146
  %v154 = vld [vmem:[%s11] sm:$0x1]
  %v156 = vlaneseq
  %v157 = vshrl.u32 %v156, 7
  %v158 = vsub.s32 0, %v157
  %v159 = vrot.slane %v154, %v158
  %v167 = vunpack.c.l.b16 %v147
  %v168 = vunpack.c.l.b16 %v148
  %v169 = vunpack.c.l.b16 %v149
  %v170 = vunpack.c.l.b16 %v150
  %v171 = vunpack.c.l.b16 %v151
  %v172 = vunpack.c.l.b16 %v152
  %v173 = vpack.c.b16 %v168, %v167
  %v174 = vpack.c.b16 %v170, %v169
  %v175 = vpack.c.b16 %v172, %v171
  %vm179 = vcmask 392192
  %v181 = vsel %vm179, %v153, 0
  %183 = vmatprep.subr.bf16.mxu0 0
  %184 = vmatpush1.bf16.msra.mxu0 %v173
  %185 = vmatprep.subr.bf16.mxu0 0
  %186 = vmatpush1.bf16.msra.mxu0 %v174
  %187 = vmatprep.subr.bf16.mxu0 0
  %188 = vmatpush1.bf16.msra.mxu0 %v175
  %189 = vmatprep.subr.bf16.mxu0 0
  %190 = vmatpush1.bf16.msra.mxu0 0
  %191 = vmatprep.subr.bf16.mxu0 0
  %192 = vmatpush1.bf16.msra.mxu0 0
  %193 = vmatprep.subr.bf16.mxu0 0
  %194 = vmatpush1.bf16.msra.mxu0 0
  %195 = vmatprep.subr.bf16.mxu0 0
  %196 = vmatpush1.bf16.msra.mxu0 0
  %197 = vmatprep.subr.bf16.mxu0 0
  %198 = vmatpush1.bf16.msra.mxu0 0
  %199 = vmatprep.subr.bf16.mxu0 0
  %200 = vmatpush1.bf16.msra.mxu0 0
  %201 = vmatprep.subr.bf16.mxu0 0
  %202 = vmatpush1.bf16.msra.mxu0 0
  %203 = vmatprep.subr.bf16.mxu0 0
  %204 = vmatpush1.bf16.msra.mxu0 0
  %205 = vmatprep.subr.bf16.mxu0 0
  %206 = vmatpush1.bf16.msra.mxu0 0
  %207 = vmatprep.subr.bf16.mxu0 0
  %208 = vmatpush1.bf16.msra.mxu0 0
  %209 = vmatprep.subr.bf16.mxu0 0
  %210 = vmatpush1.bf16.msra.mxu0 0
  %211 = vmatprep.subr.bf16.mxu0 0
  %212 = vmatpush1.bf16.msra.mxu0 0
  %213 = vmatprep.subr.bf16.mxu0 0
  %214 = vmatpush1.bf16.msra.mxu0 0
  %215 = vmatprep.mubr.bf16.mxu0 0
  %216 = vmatmul.mubr.bf16.gmra.mrb[0].mxu0 %v181
  %v217 = vpop.f32.mrb[0].mxu0
  %v218 = vadd.f32 %v159, %v217
  %v219 = vpop.f32.mrb[0].mxu0
  %v220 = vpop.f32.mrb[0].mxu0
  %v221 = vpop.f32.mrb[0].mxu0
  %222 = vdwg.mxu0
  %vm223 = vcmp.gt.f32.partialorder %v218, 0.0
  %v224 = vmin.f32 %v218, 0.0
  %v225 = vmul.f32 %v224, 1.442695
  %v226 = vpow.pop %v225
  %v227 = vsub.f32 %v226, 1.0
  %v228 = vsel %vm223, %v218, %v227
  %v229 = vld [vmem:[%s13] sm:$0xf]
  %v230 = vld [vmem:[%s13 + $0x4] sm:$0xf]
  %v231 = vld [vmem:[%s13 + $0x8] sm:$0xf]
  %v232 = vld [vmem:[%s13 + $0xc] sm:$0xf]
  %v233 = vpack.c.bf16 %v228, %v228
  %v234 = vld [vmem:[%s15] sm:$0x1]
  %v236 = vlaneseq
  %v237 = vshrl.u32 %v236, 7
  %v238 = vsub.s32 0, %v237
  %v239 = vrot.slane %v234, %v238
  %v245 = vunpack.c.l.b16 %v229
  %v246 = vunpack.c.l.b16 %v230
  %v247 = vunpack.c.l.b16 %v231
  %v248 = vunpack.c.l.b16 %v232
  %v249 = vpack.c.b16 %v246, %v245
  %v250 = vpack.c.b16 %v248, %v247
  %vm253 = vcmask 261120
  %v255 = vsel %vm253, %v233, 0
  %257 = vmatprep.subr.bf16.mxu0 0
  %258 = vmatpush1.bf16.msra.mxu0 %v249
  %259 = vmatprep.subr.bf16.mxu0 0
  %260 = vmatpush1.bf16.msra.mxu0 %v250
  %261 = vmatprep.subr.bf16.mxu0 0
  %262 = vmatpush1.bf16.msra.mxu0 0
  %263 = vmatprep.subr.bf16.mxu0 0
  %264 = vmatpush1.bf16.msra.mxu0 0
  %265 = vmatprep.subr.bf16.mxu0 0
  %266 = vmatpush1.bf16.msra.mxu0 0
  %267 = vmatprep.subr.bf16.mxu0 0
  %268 = vmatpush1.bf16.msra.mxu0 0
  %269 = vmatprep.subr.bf16.mxu0 0
  %270 = vmatpush1.bf16.msra.mxu0 0
  %271 = vmatprep.subr.bf16.mxu0 0
  %272 = vmatpush1.bf16.msra.mxu0 0
  %273 = vmatprep.subr.bf16.mxu0 0
  %274 = vmatpush1.bf16.msra.mxu0 0
  %275 = vmatprep.subr.bf16.mxu0 0
  %276 = vmatpush1.bf16.msra.mxu0 0
  %277 = vmatprep.subr.bf16.mxu0 0
  %278 = vmatpush1.bf16.msra.mxu0 0
  %279 = vmatprep.subr.bf16.mxu0 0
  %280 = vmatpush1.bf16.msra.mxu0 0
  %281 = vmatprep.subr.bf16.mxu0 0
  %282 = vmatpush1.bf16.msra.mxu0 0
  %283 = vmatprep.subr.bf16.mxu0 0
  %284 = vmatpush1.bf16.msra.mxu0 0
  %285 = vmatprep.subr.bf16.mxu0 0
  %286 = vmatpush1.bf16.msra.mxu0 0
  %287 = vmatprep.subr.bf16.mxu0 0
  %288 = vmatpush1.bf16.msra.mxu0 0
  %289 = vmatprep.mubr.bf16.mxu0 0
  %290 = vmatmul.mubr.bf16.gmra.mrb[0].mxu0 %v255
  %v291 = vpop.f32.mrb[0].mxu0
  %v292 = vadd.f32 %v239, %v291
  %v293 = vpop.f32.mrb[0].mxu0
  %v294 = vpop.f32.mrb[0].mxu0
  %v295 = vpop.f32.mrb[0].mxu0
  %296 = vdwg.mxu0
  %vm297 = vcmp.gt.f32.partialorder %v292, 0.0
  %v298 = vmin.f32 %v292, 0.0
  %v299 = vmul.f32 %v298, 1.442695
  %v300 = vpow.pop %v299
  %v301 = vsub.f32 %v300, 1.0
  %v302 = vsel %vm297, %v292, %v301
  %v303 = vld [vmem:[%s17] sm:$0x1]
  %v305 = vlaneseq
  %v306 = vshrl.u32 %v305, 7
  %v307 = vsub.s32 0, %v306
  %v308 = vrot.slane %v303, %v307
  %v310 = vmul.f32 %v302, %v308
  %v311 = vld [vmem:[%s19] sm:$0x1]
  %v313 = vlaneseq
  %v314 = vshrl.u32 %v313, 7
  %v315 = vsub.s32 0, %v314
  %v316 = vrot.slane %v311, %v315
  %v318 = vadd.f32 %v310, %v316
  %vm319 = vcmask 64512
  %v321 = vsel %vm319, %v139, 0
  %v324 = vsel %vm319, %v140, 0
  %v327 = vsel %vm319, %v141, 0
  %329 = vmatprep.subr.mxu0 0.0
  %330 = vmatpush1.msra.mxu0 %v318
  %331 = vmatprep.subr.mxu0 0.0
  %332 = vmatpush1.msra.mxu0 0.0
  %333 = vmatprep.subr.mxu0 0.0
  %334 = vmatpush1.msra.mxu0 0.0
  %335 = vmatprep.subr.mxu0 0.0
  %336 = vmatpush1.msra.mxu0 0.0
  %337 = vmatprep.subr.mxu0 0.0
  %338 = vmatpush1.msra.mxu0 0.0
  %339 = vmatprep.subr.mxu0 0.0
  %340 = vmatpush1.msra.mxu0 0.0
  %341 = vmatprep.subr.mxu0 0.0
  %342 = vmatpush1.msra.mxu0 0.0
  %343 = vmatprep.subr.mxu0 0.0
  %344 = vmatpush1.msra.mxu0 0.0
  %345 = vmatprep.subr.mxu0 0.0
  %346 = vmatpush1.msra.mxu0 0.0
  %347 = vmatprep.subr.mxu0 0.0
  %348 = vmatpush1.msra.mxu0 0.0
  %349 = vmatprep.subr.mxu0 0.0
  %350 = vmatpush1.msra.mxu0 0.0
  %351 = vmatprep.subr.mxu0 0.0
  %352 = vmatpush1.msra.mxu0 0.0
  %353 = vmatprep.subr.mxu0 0.0
  %354 = vmatpush1.msra.mxu0 0.0
  %355 = vmatprep.subr.mxu0 0.0
  %356 = vmatpush1.msra.mxu0 0.0
  %357 = vmatprep.subr.mxu0 0.0
  %358 = vmatpush1.msra.mxu0 0.0
  %359 = vmatprep.subr.mxu0 0.0
  %360 = vmatpush1.msra.mxu0 0.0
  %361 = vmatprep.subr.mxu0 0.0
  %362 = vmatpush1.msra.mxu0 0.0
  %363 = vmatprep.subr.mxu0 0.0
  %364 = vmatpush1.msra.mxu0 0.0
  %365 = vmatprep.subr.mxu0 0.0
  %366 = vmatpush1.msra.mxu0 0.0
  %367 = vmatprep.subr.mxu0 0.0
  %368 = vmatpush1.msra.mxu0 0.0
  %369 = vmatprep.subr.mxu0 0.0
  %370 = vmatpush1.msra.mxu0 0.0
  %371 = vmatprep.subr.mxu0 0.0
  %372 = vmatpush1.msra.mxu0 0.0
  %373 = vmatprep.subr.mxu0 0.0
  %374 = vmatpush1.msra.mxu0 0.0
  %375 = vmatprep.subr.mxu0 0.0
  %376 = vmatpush1.msra.mxu0 0.0
  %377 = vmatprep.subr.mxu0 0.0
  %378 = vmatpush1.msra.mxu0 0.0
  %379 = vmatprep.subr.mxu0 0.0
  %380 = vmatpush1.msra.mxu0 0.0
  %381 = vmatprep.subr.mxu0 0.0
  %382 = vmatpush1.msra.mxu0 0.0
  %383 = vmatprep.subr.mxu0 0.0
  %384 = vmatpush1.msra.mxu0 0.0
  %385 = vmatprep.subr.mxu0 0.0
  %386 = vmatpush1.msra.mxu0 0.0
  %387 = vmatprep.subr.mxu0 0.0
  %388 = vmatpush1.msra.mxu0 0.0
  %389 = vmatprep.subr.mxu0 0.0
  %390 = vmatpush1.msra.mxu0 0.0
  %391 = vmatprep.subr.mxu0 0.0
  %392 = vmatpush1.msra.mxu0 0.0
  %393 = vmatprep.mubr.f32.mxu0 0.0
  %394 = vmatmul.mubr.f32.gmra.mrb[0].mxu0 %v321
  %v395 = vpop.f32.mrb[0].mxu0
  %v396 = vadd.f32 0.0, %v395
  %v397 = vpop.f32.mrb[0].mxu0
  %398 = vmatprep.mubr.f32.mxu0 0.0
  %399 = vmatmul.mubr.f32.gmra.mrb[0].mxu0 %v324
  %v400 = vpop.f32.mrb[0].mxu0
  %v401 = vadd.f32 0.0, %v400
  %v402 = vpop.f32.mrb[0].mxu0
  %403 = vmatprep.mubr.f32.mxu0 0.0
  %404 = vmatmul.mubr.f32.gmra.mrb[0].mxu0 %v327
  %v405 = vpop.f32.mrb[0].mxu0
  %v406 = vadd.f32 0.0, %v405
  %v407 = vpop.f32.mrb[0].mxu0
  %408 = vdwg.mxu0
  %v410 = vsel %vm319, %v142, 0
  %v413 = vsel %vm319, %v143, 0
  %v416 = vsel %vm319, %v144, 0
  %418 = vmatprep.subr.mxu0 0.0
  %419 = vmatpush1.msra.mxu0 %v318
  %420 = vmatprep.subr.mxu0 0.0
  %421 = vmatpush1.msra.mxu0 0.0
  %422 = vmatprep.subr.mxu0 0.0
  %423 = vmatpush1.msra.mxu0 0.0
  %424 = vmatprep.subr.mxu0 0.0
  %425 = vmatpush1.msra.mxu0 0.0
  %426 = vmatprep.subr.mxu0 0.0
  %427 = vmatpush1.msra.mxu0 0.0
  %428 = vmatprep.subr.mxu0 0.0
  %429 = vmatpush1.msra.mxu0 0.0
  %430 = vmatprep.subr.mxu0 0.0
  %431 = vmatpush1.msra.mxu0 0.0
  %432 = vmatprep.subr.mxu0 0.0
  %433 = vmatpush1.msra.mxu0 0.0
  %434 = vmatprep.subr.mxu0 0.0
  %435 = vmatpush1.msra.mxu0 0.0
  %436 = vmatprep.subr.mxu0 0.0
  %437 = vmatpush1.msra.mxu0 0.0
  %438 = vmatprep.subr.mxu0 0.0
  %439 = vmatpush1.msra.mxu0 0.0
  %440 = vmatprep.subr.mxu0 0.0
  %441 = vmatpush1.msra.mxu0 0.0
  %442 = vmatprep.subr.mxu0 0.0
  %443 = vmatpush1.msra.mxu0 0.0
  %444 = vmatprep.subr.mxu0 0.0
  %445 = vmatpush1.msra.mxu0 0.0
  %446 = vmatprep.subr.mxu0 0.0
  %447 = vmatpush1.msra.mxu0 0.0
  %448 = vmatprep.subr.mxu0 0.0
  %449 = vmatpush1.msra.mxu0 0.0
  %450 = vmatprep.subr.mxu0 0.0
  %451 = vmatpush1.msra.mxu0 0.0
  %452 = vmatprep.subr.mxu0 0.0
  %453 = vmatpush1.msra.mxu0 0.0
  %454 = vmatprep.subr.mxu0 0.0
  %455 = vmatpush1.msra.mxu0 0.0
  %456 = vmatprep.subr.mxu0 0.0
  %457 = vmatpush1.msra.mxu0 0.0
  %458 = vmatprep.subr.mxu0 0.0
  %459 = vmatpush1.msra.mxu0 0.0
  %460 = vmatprep.subr.mxu0 0.0
  %461 = vmatpush1.msra.mxu0 0.0
  %462 = vmatprep.subr.mxu0 0.0
  %463 = vmatpush1.msra.mxu0 0.0
  %464 = vmatprep.subr.mxu0 0.0
  %465 = vmatpush1.msra.mxu0 0.0
  %466 = vmatprep.subr.mxu0 0.0
  %467 = vmatpush1.msra.mxu0 0.0
  %468 = vmatprep.subr.mxu0 0.0
  %469 = vmatpush1.msra.mxu0 0.0
  %470 = vmatprep.subr.mxu0 0.0
  %471 = vmatpush1.msra.mxu0 0.0
  %472 = vmatprep.subr.mxu0 0.0
  %473 = vmatpush1.msra.mxu0 0.0
  %474 = vmatprep.subr.mxu0 0.0
  %475 = vmatpush1.msra.mxu0 0.0
  %476 = vmatprep.subr.mxu0 0.0
  %477 = vmatpush1.msra.mxu0 0.0
  %478 = vmatprep.subr.mxu0 0.0
  %479 = vmatpush1.msra.mxu0 0.0
  %480 = vmatprep.subr.mxu0 0.0
  %481 = vmatpush1.msra.mxu0 0.0
  %482 = vmatprep.mubr.f32.mxu0 0.0
  %483 = vmatmul.mubr.f32.gmra.mrb[0].mxu0 %v410
  %v484 = vpop.f32.mrb[0].mxu0
  %v485 = vadd.f32 0.0, %v484
  %v486 = vpop.f32.mrb[0].mxu0
  %487 = vmatprep.mubr.f32.mxu0 0.0
  %488 = vmatmul.mubr.f32.gmra.mrb[0].mxu0 %v413
  %v489 = vpop.f32.mrb[0].mxu0
  %v490 = vadd.f32 0.0, %v489
  %v491 = vpop.f32.mrb[0].mxu0
  %492 = vmatprep.mubr.f32.mxu0 0.0
  %493 = vmatmul.mubr.f32.gmra.mrb[0].mxu0 %v416
  %v494 = vpop.f32.mrb[0].mxu0
  %v495 = vadd.f32 0.0, %v494
  %v496 = vpop.f32.mrb[0].mxu0
  %497 = vdwg.mxu0
  %v498 = vld [vmem:[%s21] sm:$0xf]
  %v499 = vld [vmem:[%s21 + $0x4] sm:$0xf]
  %v500 = vld [vmem:[%s21 + $0x8] sm:$0xf]
  %v501 = vld [vmem:[%s21 + $0xc] sm:$0xf]
  %v502 = vpack.c.bf16 %v401, %v396
  %v503 = vpack.c.bf16 %v406, %v406
  %v504 = vld [vmem:[%s23] sm:$0xf]
  %v505 = vld [vmem:[%s23 + $0x4] sm:$0xf]
  %v506 = vld [vmem:[%s23 + $0x8] sm:$0xf]
  %v507 = vld [vmem:[%s23 + $0xc] sm:$0xf]
  %v508 = vpack.c.bf16 %v490, %v485
  %v509 = vpack.c.bf16 %v495, %v495
  %v514 = vunpack.c.l.b16 %v504
  %v515 = vunpack.c.l.b16 %v505
  %v516 = vunpack.c.l.b16 %v506
  %v517 = vunpack.c.l.b16 %v507
  %v518 = vpack.c.b16 %v515, %v514
  %v519 = vpack.c.b16 %v517, %v516
  %v523 = vsel %vm253, %v508, 0
  %v526 = vsel %vm253, %v509, 0
  %528 = vmatprep.subr.bf16.mxu0 0
  %529 = vmatpush1.bf16.msra.mxu0 %v518
  %530 = vmatprep.subr.bf16.mxu0 0
  %531 = vmatpush1.bf16.msra.mxu0 %v519
  %532 = vmatprep.subr.bf16.mxu0 0
  %533 = vmatpush1.bf16.msra.mxu0 0
  %534 = vmatprep.subr.bf16.mxu0 0
  %535 = vmatpush1.bf16.msra.mxu0 0
  %536 = vmatprep.subr.bf16.mxu0 0
  %537 = vmatpush1.bf16.msra.mxu0 0
  %538 = vmatprep.subr.bf16.mxu0 0
  %539 = vmatpush1.bf16.msra.mxu0 0
  %540 = vmatprep.subr.bf16.mxu0 0
  %541 = vmatpush1.bf16.msra.mxu0 0
  %542 = vmatprep.subr.bf16.mxu0 0
  %543 = vmatpush1.bf16.msra.mxu0 0
  %544 = vmatprep.subr.bf16.mxu0 0
  %545 = vmatpush1.bf16.msra.mxu0 0
  %546 = vmatprep.subr.bf16.mxu0 0
  %547 = vmatpush1.bf16.msra.mxu0 0
  %548 = vmatprep.subr.bf16.mxu0 0
  %549 = vmatpush1.bf16.msra.mxu0 0
  %550 = vmatprep.subr.bf16.mxu0 0
  %551 = vmatpush1.bf16.msra.mxu0 0
  %552 = vmatprep.subr.bf16.mxu0 0
  %553 = vmatpush1.bf16.msra.mxu0 0
  %554 = vmatprep.subr.bf16.mxu0 0
  %555 = vmatpush1.bf16.msra.mxu0 0
  %556 = vmatprep.subr.bf16.mxu0 0
  %557 = vmatpush1.bf16.msra.mxu0 0
  %558 = vmatprep.subr.bf16.mxu0 0
  %559 = vmatpush1.bf16.msra.mxu0 0
  %560 = vmatprep.mubr.bf16.mxu0 0
  %561 = vmatmul.mubr.bf16.gmra.mrb[0].mxu0 %v523
  %v562 = vpop.f32.mrb[0].mxu0
  %v563 = vadd.f32 0.0, %v562
  %v564 = vpop.f32.mrb[0].mxu0
  %v565 = vpop.f32.mrb[0].mxu0
  %v566 = vadd.f32 0.0, %v565
  %v567 = vpop.f32.mrb[0].mxu0
  %568 = vmatprep.mubr.bf16.mxu0 0
  %569 = vmatmul.mubr.bf16.gmra.mrb[0].mxu0 %v526
  %v570 = vpop.f32.mrb[0].mxu0
  %v571 = vadd.f32 0.0, %v570
  %v572 = vpop.f32.mrb[0].mxu0
  %v573 = vpop.f32.mrb[0].mxu0
  %v574 = vpop.f32.mrb[0].mxu0
  %575 = vdwg.mxu0
  %v580 = vunpack.c.l.b16 %v498
  %v581 = vunpack.c.l.b16 %v499
  %v582 = vunpack.c.l.b16 %v500
  %v583 = vunpack.c.l.b16 %v501
  %v584 = vpack.c.b16 %v581, %v580
  %v585 = vpack.c.b16 %v583, %v582
  %v589 = vsel %vm253, %v502, 0
  %v592 = vsel %vm253, %v503, 0
  %594 = vmatprep.subr.bf16.mxu0 0
  %595 = vmatpush1.bf16.msra.mxu0 %v584
  %596 = vmatprep.subr.bf16.mxu0 0
  %597 = vmatpush1.bf16.msra.mxu0 %v585
  %598 = vmatprep.subr.bf16.mxu0 0
  %599 = vmatpush1.bf16.msra.mxu0 0
  %600 = vmatprep.subr.bf16.mxu0 0
  %601 = vmatpush1.bf16.msra.mxu0 0
  %602 = vmatprep.subr.bf16.mxu0 0
  %603 = vmatpush1.bf16.msra.mxu0 0
  %604 = vmatprep.subr.bf16.mxu0 0
  %605 = vmatpush1.bf16.msra.mxu0 0
  %606 = vmatprep.subr.bf16.mxu0 0
  %607 = vmatpush1.bf16.msra.mxu0 0
  %608 = vmatprep.subr.bf16.mxu0 0
  %609 = vmatpush1.bf16.msra.mxu0 0
  %610 = vmatprep.subr.bf16.mxu0 0
  %611 = vmatpush1.bf16.msra.mxu0 0
  %612 = vmatprep.subr.bf16.mxu0 0
  %613 = vmatpush1.bf16.msra.mxu0 0
  %614 = vmatprep.subr.bf16.mxu0 0
  %615 = vmatpush1.bf16.msra.mxu0 0
  %616 = vmatprep.subr.bf16.mxu0 0
  %617 = vmatpush1.bf16.msra.mxu0 0
  %618 = vmatprep.subr.bf16.mxu0 0
  %619 = vmatpush1.bf16.msra.mxu0 0
  %620 = vmatprep.subr.bf16.mxu0 0
  %621 = vmatpush1.bf16.msra.mxu0 0
  %622 = vmatprep.subr.bf16.mxu0 0
  %623 = vmatpush1.bf16.msra.mxu0 0
  %624 = vmatprep.subr.bf16.mxu0 0
  %625 = vmatpush1.bf16.msra.mxu0 0
  %626 = vmatprep.mubr.bf16.mxu0 0
  %627 = vmatmul.mubr.bf16.gmra.mrb[0].mxu0 %v589
  %v628 = vpop.f32.mrb[0].mxu0
  %v629 = vadd.f32 %v563, %v628
  %v630 = vpop.f32.mrb[0].mxu0
  %v631 = vpop.f32.mrb[0].mxu0
  %v632 = vadd.f32 %v566, %v631
  %v633 = vpop.f32.mrb[0].mxu0
  %634 = vmatprep.mubr.bf16.mxu0 0
  %635 = vmatmul.mubr.bf16.gmra.mrb[0].mxu0 %v592
  %v636 = vpop.f32.mrb[0].mxu0
  %v637 = vadd.f32 %v571, %v636
  %v638 = vpop.f32.mrb[0].mxu0
  %v639 = vpop.f32.mrb[0].mxu0
  %v640 = vpop.f32.mrb[0].mxu0
  %641 = vdwg.mxu0
  %v642 = vld [vmem:[%s25] sm:$0x1]
  %v644 = vlaneseq
  %v645 = vshrl.u32 %v644, 7
  %v646 = vsub.s32 0, %v645
  %v647 = vrot.slane %v642, %v646
  %v649 = vadd.f32 %v629, %v647
  %v650 = vadd.f32 %v632, %v647
  %v651 = vadd.f32 %v637, %v647
  %vm652 = vcmp.gt.f32.partialorder %v649, 0.0
  %vm653 = vcmp.gt.f32.partialorder %v650, 0.0
  %vm654 = vcmp.gt.f32.partialorder %v651, 0.0
  %v655 = vmin.f32 %v649, 0.0
  %v656 = vmin.f32 %v650, 0.0
  %v657 = vmin.f32 %v651, 0.0
  %v658 = vmul.f32 %v655, 1.442695
  %v659 = vpow.pop %v658
  %v660 = vmul.f32 %v656, 1.442695
  %v661 = vpow.pop %v660
  %v662 = vmul.f32 %v657, 1.442695
  %v663 = vpow.pop %v662
  %v664 = vsub.f32 %v659, 1.0
  %v665 = vsub.f32 %v661, 1.0
  %v666 = vsub.f32 %v663, 1.0
  %v667 = vsel %vm652, %v649, %v664
  %v668 = vsel %vm653, %v650, %v665
  %v669 = vsel %vm654, %v651, %v666
  %v670 = vld [vmem:[%s27] sm:$0xf]
  %v671 = vld [vmem:[%s27 + $0x4] sm:$0xf]
  %v672 = vld [vmem:[%s27 + $0x8] sm:$0xf]
  %v673 = vld [vmem:[%s27 + $0xc] sm:$0xf]
  %v674 = vpack.c.bf16 %v668, %v667
  %v675 = vpack.c.bf16 %v669, %v669
  %v676 = vld [vmem:[%s29] sm:$0x1]
  %v678 = vlaneseq
  %v679 = vshrl.u32 %v678, 7
  %v680 = vsub.s32 0, %v679
  %v681 = vrot.slane %v676, %v680
  %v687 = vunpack.c.l.b16 %v670
  %v688 = vunpack.c.l.b16 %v671
  %v689 = vunpack.c.l.b16 %v672
  %v690 = vunpack.c.l.b16 %v673
  %v691 = vpack.c.b16 %v688, %v687
  %v692 = vpack.c.b16 %v690, %v689
  %v696 = vsel %vm253, %v674, 0
  %v699 = vsel %vm253, %v675, 0
  %701 = vmatprep.subr.bf16.mxu0 0
  %702 = vmatpush1.bf16.msra.mxu0 %v691
  %703 = vmatprep.subr.bf16.mxu0 0
  %704 = vmatpush1.bf16.msra.mxu0 %v692
  %705 = vmatprep.subr.bf16.mxu0 0
  %706 = vmatpush1.bf16.msra.mxu0 0
  %707 = vmatprep.subr.bf16.mxu0 0
  %708 = vmatpush1.bf16.msra.mxu0 0
  %709 = vmatprep.subr.bf16.mxu0 0
  %710 = vmatpush1.bf16.msra.mxu0 0
  %711 = vmatprep.subr.bf16.mxu0 0
  %712 = vmatpush1.bf16.msra.mxu0 0
  %713 = vmatprep.subr.bf16.mxu0 0
  %714 = vmatpush1.bf16.msra.mxu0 0
  %715 = vmatprep.subr.bf16.mxu0 0
  %716 = vmatpush1.bf16.msra.mxu0 0
  %717 = vmatprep.subr.bf16.mxu0 0
  %718 = vmatpush1.bf16.msra.mxu0 0
  %719 = vmatprep.subr.bf16.mxu0 0
  %720 = vmatpush1.bf16.msra.mxu0 0
  %721 = vmatprep.subr.bf16.mxu0 0
  %722 = vmatpush1.bf16.msra.mxu0 0
  %723 = vmatprep.subr.bf16.mxu0 0
  %724 = vmatpush1.bf16.msra.mxu0 0
  %725 = vmatprep.subr.bf16.mxu0 0
  %726 = vmatpush1.bf16.msra.mxu0 0
  %727 = vmatprep.subr.bf16.mxu0 0
  %728 = vmatpush1.bf16.msra.mxu0 0
  %729 = vmatprep.subr.bf16.mxu0 0
  %730 = vmatpush1.bf16.msra.mxu0 0
  %731 = vmatprep.subr.bf16.mxu0 0
  %732 = vmatpush1.bf16.msra.mxu0 0
  %733 = vmatprep.mubr.bf16.mxu0 0
  %734 = vmatmul.mubr.bf16.gmra.mrb[0].mxu0 %v696
  %v735 = vpop.f32.mrb[0].mxu0
  %v736 = vadd.f32 %v681, %v735
  %v737 = vpop.f32.mrb[0].mxu0
  %v738 = vpop.f32.mrb[0].mxu0
  %v739 = vadd.f32 %v681, %v738
  %v740 = vpop.f32.mrb[0].mxu0
  %741 = vmatprep.mubr.bf16.mxu0 0
  %742 = vmatmul.mubr.bf16.gmra.mrb[0].mxu0 %v699
  %v743 = vpop.f32.mrb[0].mxu0
  %v744 = vadd.f32 %v681, %v743
  %v745 = vpop.f32.mrb[0].mxu0
  %v746 = vpop.f32.mrb[0].mxu0
  %v747 = vpop.f32.mrb[0].mxu0
  %748 = vdwg.mxu0
  %vm749 = vcmp.gt.f32.partialorder %v736, 0.0
  %vm750 = vcmp.gt.f32.partialorder %v739, 0.0
  %vm751 = vcmp.gt.f32.partialorder %v744, 0.0
  %v752 = vmin.f32 %v736, 0.0
  %v753 = vmin.f32 %v739, 0.0
  %v754 = vmin.f32 %v744, 0.0
  %v755 = vmul.f32 %v752, 1.442695
  %v756 = vpow.pop %v755
  %v757 = vmul.f32 %v753, 1.442695
  %v758 = vpow.pop %v757
  %v759 = vmul.f32 %v754, 1.442695
  %v760 = vpow.pop %v759
  %v761 = vsub.f32 %v756, 1.0
  %v762 = vsub.f32 %v758, 1.0
  %v763 = vsub.f32 %v760, 1.0
  %v764 = vsel %vm749, %v736, %v761
  %v765 = vsel %vm750, %v739, %v762
  %v766 = vsel %vm751, %v744, %v763
  %v767 = vld [vmem:[%s31] sm:$0x1]
  %v769 = vlaneseq
  %v770 = vshrl.u32 %v769, 7
  %v771 = vsub.s32 0, %v770
  %v772 = vrot.slane %v767, %v771
  %v774 = vmul.f32 %v764, %v772
  %v775 = vmul.f32 %v765, %v772
  %v776 = vmul.f32 %v766, %v772
  %v777 = vld [vmem:[%s33] sm:$0x1]
  %v779 = vlaneseq
  %v780 = vshrl.u32 %v779, 7
  %v781 = vsub.s32 0, %v780
  %v782 = vrot.slane %v777, %v781
  %v784 = vadd.f32 %v774, %v782
  %v785 = vadd.f32 %v775, %v782
  %v786 = vadd.f32 %v776, %v782
  %vm787 = vcmask 195584
  %v789 = vsel %vm787, %v145, 0
  %791 = vmatprep.subr.mxu0 0.0
  %792 = vmatpush1.msra.mxu0 %v784
  %793 = vmatprep.subr.mxu0 0.0
  %794 = vmatpush1.msra.mxu0 %v785
  %795 = vmatprep.subr.mxu0 0.0
  %796 = vmatpush1.msra.mxu0 %v786
  %797 = vmatprep.subr.mxu0 0.0
  %798 = vmatpush1.msra.mxu0 0.0
  %799 = vmatprep.subr.mxu0 0.0
  %800 = vmatpush1.msra.mxu0 0.0
  %801 = vmatprep.subr.mxu0 0.0
  %802 = vmatpush1.msra.mxu0 0.0
  %803 = vmatprep.subr.mxu0 0.0
  %804 = vmatpush1.msra.mxu0 0.0
  %805 = vmatprep.subr.mxu0 0.0
  %806 = vmatpush1.msra.mxu0 0.0
  %807 = vmatprep.subr.mxu0 0.0
  %808 = vmatpush1.msra.mxu0 0.0
  %809 = vmatprep.subr.mxu0 0.0
  %810 = vmatpush1.msra.mxu0 0.0
  %811 = vmatprep.subr.mxu0 0.0
  %812 = vmatpush1.msra.mxu0 0.0
  %813 = vmatprep.subr.mxu0 0.0
  %814 = vmatpush1.msra.mxu0 0.0
  %815 = vmatprep.subr.mxu0 0.0
  %816 = vmatpush1.msra.mxu0 0.0
  %817 = vmatprep.subr.mxu0 0.0
  %818 = vmatpush1.msra.mxu0 0.0
  %819 = vmatprep.subr.mxu0 0.0
  %820 = vmatpush1.msra.mxu0 0.0
  %821 = vmatprep.subr.mxu0 0.0
  %822 = vmatpush1.msra.mxu0 0.0
  %823 = vmatprep.subr.mxu0 0.0
  %824 = vmatpush1.msra.mxu0 0.0
  %825 = vmatprep.subr.mxu0 0.0
  %826 = vmatpush1.msra.mxu0 0.0
  %827 = vmatprep.subr.mxu0 0.0
  %828 = vmatpush1.msra.mxu0 0.0
  %829 = vmatprep.subr.mxu0 0.0
  %830 = vmatpush1.msra.mxu0 0.0
  %831 = vmatprep.subr.mxu0 0.0
  %832 = vmatpush1.msra.mxu0 0.0
  %833 = vmatprep.subr.mxu0 0.0
  %834 = vmatpush1.msra.mxu0 0.0
  %835 = vmatprep.subr.mxu0 0.0
  %836 = vmatpush1.msra.mxu0 0.0
  %837 = vmatprep.subr.mxu0 0.0
  %838 = vmatpush1.msra.mxu0 0.0
  %839 = vmatprep.subr.mxu0 0.0
  %840 = vmatpush1.msra.mxu0 0.0
  %841 = vmatprep.subr.mxu0 0.0
  %842 = vmatpush1.msra.mxu0 0.0
  %843 = vmatprep.subr.mxu0 0.0
  %844 = vmatpush1.msra.mxu0 0.0
  %845 = vmatprep.subr.mxu0 0.0
  %846 = vmatpush1.msra.mxu0 0.0
  %847 = vmatprep.subr.mxu0 0.0
  %848 = vmatpush1.msra.mxu0 0.0
  %849 = vmatprep.subr.mxu0 0.0
  %850 = vmatpush1.msra.mxu0 0.0
  %851 = vmatprep.subr.mxu0 0.0
  %852 = vmatpush1.msra.mxu0 0.0
  %853 = vmatprep.subr.mxu0 0.0
  %854 = vmatpush1.msra.mxu0 0.0
  %855 = vmatprep.mubr.f32.mxu0 0.0
  %856 = vmatmul.mubr.f32.gmra.mrb[0].mxu0 %v789
  %v857 = vpop.f32.mrb[0].mxu0
  %v858 = vadd.f32 0.0, %v857
  %v859 = vpop.f32.mrb[0].mxu0
  %860 = vdwg.mxu0
  %v861 = vmul.f32 %v858, 0.25
  %v862 = vld [vmem:[%s35] sm:$0xf]
  %v863 = vld [vmem:[%s35 + $0x4] sm:$0xf]
  %v864 = vld [vmem:[%s35 + $0x8] sm:$0xf]
  %v865 = vld [vmem:[%s35 + $0xc] sm:$0xf]
  %v866 = vpack.c.bf16 %v861, %v861
  %v867 = vld [vmem:[%s37] sm:$0x1]
  %v869 = vlaneseq
  %v870 = vshrl.u32 %v869, 7
  %v871 = vsub.s32 0, %v870
  %v872 = vrot.slane %v867, %v871
  %v878 = vunpack.c.l.b16 %v862
  %v879 = vunpack.c.l.b16 %v863
  %v880 = vunpack.c.l.b16 %v864
  %v881 = vunpack.c.l.b16 %v865
  %v882 = vpack.c.b16 %v879, %v878
  %v883 = vpack.c.b16 %v881, %v880
  %v887 = vsel %vm253, %v866, 0
  %889 = vmatprep.subr.bf16.mxu0 0
  %890 = vmatpush1.bf16.msra.mxu0 %v882
  %891 = vmatprep.subr.bf16.mxu0 0
  %892 = vmatpush1.bf16.msra.mxu0 %v883
  %893 = vmatprep.subr.bf16.mxu0 0
  %894 = vmatpush1.bf16.msra.mxu0 0
  %895 = vmatprep.subr.bf16.mxu0 0
  %896 = vmatpush1.bf16.msra.mxu0 0
  %897 = vmatprep.subr.bf16.mxu0 0
  %898 = vmatpush1.bf16.msra.mxu0 0
  %899 = vmatprep.subr.bf16.mxu0 0
  %900 = vmatpush1.bf16.msra.mxu0 0
  %901 = vmatprep.subr.bf16.mxu0 0
  %902 = vmatpush1.bf16.msra.mxu0 0
  %903 = vmatprep.subr.bf16.mxu0 0
  %904 = vmatpush1.bf16.msra.mxu0 0
  %905 = vmatprep.subr.bf16.mxu0 0
  %906 = vmatpush1.bf16.msra.mxu0 0
  %907 = vmatprep.subr.bf16.mxu0 0
  %908 = vmatpush1.bf16.msra.mxu0 0
  %909 = vmatprep.subr.bf16.mxu0 0
  %910 = vmatpush1.bf16.msra.mxu0 0
  %911 = vmatprep.subr.bf16.mxu0 0
  %912 = vmatpush1.bf16.msra.mxu0 0
  %913 = vmatprep.subr.bf16.mxu0 0
  %914 = vmatpush1.bf16.msra.mxu0 0
  %915 = vmatprep.subr.bf16.mxu0 0
  %916 = vmatpush1.bf16.msra.mxu0 0
  %917 = vmatprep.subr.bf16.mxu0 0
  %918 = vmatpush1.bf16.msra.mxu0 0
  %919 = vmatprep.subr.bf16.mxu0 0
  %920 = vmatpush1.bf16.msra.mxu0 0
  %921 = vmatprep.mubr.bf16.mxu0 0
  %922 = vmatmul.mubr.bf16.gmra.mrb[0].mxu0 %v887
  %v923 = vpop.f32.mrb[0].mxu0
  %v924 = vadd.f32 %v872, %v923
  %v925 = vpop.f32.mrb[0].mxu0
  %v926 = vpop.f32.mrb[0].mxu0
  %v927 = vpop.f32.mrb[0].mxu0
  %928 = vdwg.mxu0
  %vm929 = vcmp.gt.f32.partialorder %v924, 0.0
  %v930 = vmin.f32 %v924, 0.0
  %v931 = vmul.f32 %v930, 1.442695
  %v932 = vpow.pop %v931
  %v933 = vsub.f32 %v932, 1.0
  %v934 = vsel %vm929, %v924, %v933
  %v935 = vld [vmem:[%s39] sm:$0xf]
  %v936 = vld [vmem:[%s39 + $0x4] sm:$0xf]
  %v937 = vld [vmem:[%s39 + $0x8] sm:$0xf]
  %v938 = vld [vmem:[%s39 + $0xc] sm:$0xf]
  %v939 = vpack.c.bf16 %v934, %v934
  %v940 = vld [vmem:[%s41] sm:$0x1]
  %v942 = vlaneseq
  %v943 = vshrl.u32 %v942, 7
  %v944 = vsub.s32 0, %v943
  %v945 = vrot.slane %v940, %v944
  %v951 = vunpack.c.l.b16 %v935
  %v952 = vunpack.c.l.b16 %v936
  %v953 = vunpack.c.l.b16 %v937
  %v954 = vunpack.c.l.b16 %v938
  %v955 = vpack.c.b16 %v952, %v951
  %v956 = vpack.c.b16 %v954, %v953
  %v960 = vsel %vm253, %v939, 0
  %962 = vmatprep.subr.bf16.mxu0 0
  %963 = vmatpush1.bf16.msra.mxu0 %v955
  %964 = vmatprep.subr.bf16.mxu0 0
  %965 = vmatpush1.bf16.msra.mxu0 %v956
  %966 = vmatprep.subr.bf16.mxu0 0
  %967 = vmatpush1.bf16.msra.mxu0 0
  %968 = vmatprep.subr.bf16.mxu0 0
  %969 = vmatpush1.bf16.msra.mxu0 0
  %970 = vmatprep.subr.bf16.mxu0 0
  %971 = vmatpush1.bf16.msra.mxu0 0
  %972 = vmatprep.subr.bf16.mxu0 0
  %973 = vmatpush1.bf16.msra.mxu0 0
  %974 = vmatprep.subr.bf16.mxu0 0
  %975 = vmatpush1.bf16.msra.mxu0 0
  %976 = vmatprep.subr.bf16.mxu0 0
  %977 = vmatpush1.bf16.msra.mxu0 0
  %978 = vmatprep.subr.bf16.mxu0 0
  %979 = vmatpush1.bf16.msra.mxu0 0
  %980 = vmatprep.subr.bf16.mxu0 0
  %981 = vmatpush1.bf16.msra.mxu0 0
  %982 = vmatprep.subr.bf16.mxu0 0
  %983 = vmatpush1.bf16.msra.mxu0 0
  %984 = vmatprep.subr.bf16.mxu0 0
  %985 = vmatpush1.bf16.msra.mxu0 0
  %986 = vmatprep.subr.bf16.mxu0 0
  %987 = vmatpush1.bf16.msra.mxu0 0
  %988 = vmatprep.subr.bf16.mxu0 0
  %989 = vmatpush1.bf16.msra.mxu0 0
  %990 = vmatprep.subr.bf16.mxu0 0
  %991 = vmatpush1.bf16.msra.mxu0 0
  %992 = vmatprep.subr.bf16.mxu0 0
  %993 = vmatpush1.bf16.msra.mxu0 0
  %994 = vmatprep.mubr.bf16.mxu0 0
  %995 = vmatmul.mubr.bf16.gmra.mrb[0].mxu0 %v960
  %v996 = vpop.f32.mrb[0].mxu0
  %v997 = vadd.f32 %v945, %v996
  %v998 = vpop.f32.mrb[0].mxu0
  %v999 = vpop.f32.mrb[0].mxu0
  %v1000 = vpop.f32.mrb[0].mxu0
  %1001 = vdwg.mxu0
  %vm1002 = vcmp.gt.f32.partialorder %v997, 0.0
  %v1003 = vmin.f32 %v997, 0.0
  %v1004 = vmul.f32 %v1003, 1.442695
  %v1005 = vpow.pop %v1004
  %v1006 = vsub.f32 %v1005, 1.0
  %v1007 = vsel %vm1002, %v997, %v1006
  %v1008 = vld [vmem:[%s43] sm:$0x1]
  %v1010 = vlaneseq
  %v1011 = vshrl.u32 %v1010, 7
  %v1012 = vsub.s32 0, %v1011
  %v1013 = vrot.slane %v1008, %v1012
  %v1015 = vmul.f32 %v1007, %v1013
  %v1016 = vld [vmem:[%s45] sm:$0x1]
  %v1018 = vlaneseq
  %v1019 = vshrl.u32 %v1018, 7
  %v1020 = vsub.s32 0, %v1019
  %v1021 = vrot.slane %v1016, %v1020
  %v1023 = vadd.f32 %v1015, %v1021
  %1024 = vmatprep.subr.mxu0 0.0
  %1025 = vmatpush1.msra.mxu0 %v1023
  %1026 = vmatprep.subr.mxu0 0.0
  %1027 = vmatpush1.msra.mxu0 0.0
  %1028 = vmatprep.subr.mxu0 0.0
  %1029 = vmatpush1.msra.mxu0 0.0
  %1030 = vmatprep.subr.mxu0 0.0
  %1031 = vmatpush1.msra.mxu0 0.0
  %1032 = vmatprep.subr.mxu0 0.0
  %1033 = vmatpush1.msra.mxu0 0.0
  %1034 = vmatprep.subr.mxu0 0.0
  %1035 = vmatpush1.msra.mxu0 0.0
  %1036 = vmatprep.subr.mxu0 0.0
  %1037 = vmatpush1.msra.mxu0 0.0
  %1038 = vmatprep.subr.mxu0 0.0
  %1039 = vmatpush1.msra.mxu0 0.0
  %1040 = vmatprep.subr.mxu0 0.0
  %1041 = vmatpush1.msra.mxu0 0.0
  %1042 = vmatprep.subr.mxu0 0.0
  %1043 = vmatpush1.msra.mxu0 0.0
  %1044 = vmatprep.subr.mxu0 0.0
  %1045 = vmatpush1.msra.mxu0 0.0
  %1046 = vmatprep.subr.mxu0 0.0
  %1047 = vmatpush1.msra.mxu0 0.0
  %1048 = vmatprep.subr.mxu0 0.0
  %1049 = vmatpush1.msra.mxu0 0.0
  %1050 = vmatprep.subr.mxu0 0.0
  %1051 = vmatpush1.msra.mxu0 0.0
  %1052 = vmatprep.subr.mxu0 0.0
  %1053 = vmatpush1.msra.mxu0 0.0
  %1054 = vmatprep.subr.mxu0 0.0
  %1055 = vmatpush1.msra.mxu0 0.0
  %1056 = vmatprep.subr.mxu0 0.0
  %1057 = vmatpush1.msra.mxu0 0.0
  %1058 = vmatprep.subr.mxu0 0.0
  %1059 = vmatpush1.msra.mxu0 0.0
  %1060 = vmatprep.subr.mxu0 0.0
  %1061 = vmatpush1.msra.mxu0 0.0
  %1062 = vmatprep.subr.mxu0 0.0
  %1063 = vmatpush1.msra.mxu0 0.0
  %1064 = vmatprep.subr.mxu0 0.0
  %1065 = vmatpush1.msra.mxu0 0.0
  %1066 = vmatprep.subr.mxu0 0.0
  %1067 = vmatpush1.msra.mxu0 0.0
  %1068 = vmatprep.subr.mxu0 0.0
  %1069 = vmatpush1.msra.mxu0 0.0
  %1070 = vmatprep.subr.mxu0 0.0
  %1071 = vmatpush1.msra.mxu0 0.0
  %1072 = vmatprep.subr.mxu0 0.0
  %1073 = vmatpush1.msra.mxu0 0.0
  %1074 = vmatprep.subr.mxu0 0.0
  %1075 = vmatpush1.msra.mxu0 0.0
  %1076 = vmatprep.subr.mxu0 0.0
  %1077 = vmatpush1.msra.mxu0 0.0
  %1078 = vmatprep.subr.mxu0 0.0
  %1079 = vmatpush1.msra.mxu0 0.0
  %1080 = vmatprep.subr.mxu0 0.0
  %1081 = vmatpush1.msra.mxu0 0.0
  %1082 = vmatprep.subr.mxu0 0.0
  %1083 = vmatpush1.msra.mxu0 0.0
  %1084 = vmatprep.subr.mxu0 0.0
  %1085 = vmatpush1.msra.mxu0 0.0
  %1086 = vmatprep.subr.mxu0 0.0
  %1087 = vmatpush1.msra.mxu0 0.0
  %1088 = vmatprep.mubr.f32.mxu0 0.0
  %1089 = vmatmul.mubr.f32.gmra.mrb[0].mxu0 %v321
  %v1090 = vpop.f32.mrb[0].mxu0
  %v1091 = vadd.f32 0.0, %v1090
  %v1092 = vpop.f32.mrb[0].mxu0
  %1093 = vmatprep.mubr.f32.mxu0 0.0
  %1094 = vmatmul.mubr.f32.gmra.mrb[0].mxu0 %v324
  %v1095 = vpop.f32.mrb[0].mxu0
  %v1096 = vadd.f32 0.0, %v1095
  %v1097 = vpop.f32.mrb[0].mxu0
  %1098 = vmatprep.mubr.f32.mxu0 0.0
  %1099 = vmatmul.mubr.f32.gmra.mrb[0].mxu0 %v327
  %v1100 = vpop.f32.mrb[0].mxu0
  %v1101 = vadd.f32 0.0, %v1100
  %v1102 = vpop.f32.mrb[0].mxu0
  %1103 = vdwg.mxu0
  %1104 = vmatprep.subr.mxu0 0.0
  %1105 = vmatpush1.msra.mxu0 %v1023
  %1106 = vmatprep.subr.mxu0 0.0
  %1107 = vmatpush1.msra.mxu0 0.0
  %1108 = vmatprep.subr.mxu0 0.0
  %1109 = vmatpush1.msra.mxu0 0.0
  %1110 = vmatprep.subr.mxu0 0.0
  %1111 = vmatpush1.msra.mxu0 0.0
  %1112 = vmatprep.subr.mxu0 0.0
  %1113 = vmatpush1.msra.mxu0 0.0
  %1114 = vmatprep.subr.mxu0 0.0
  %1115 = vmatpush1.msra.mxu0 0.0
  %1116 = vmatprep.subr.mxu0 0.0
  %1117 = vmatpush1.msra.mxu0 0.0
  %1118 = vmatprep.subr.mxu0 0.0
  %1119 = vmatpush1.msra.mxu0 0.0
  %1120 = vmatprep.subr.mxu0 0.0
  %1121 = vmatpush1.msra.mxu0 0.0
  %1122 = vmatprep.subr.mxu0 0.0
  %1123 = vmatpush1.msra.mxu0 0.0
  %1124 = vmatprep.subr.mxu0 0.0
  %1125 = vmatpush1.msra.mxu0 0.0
  %1126 = vmatprep.subr.mxu0 0.0
  %1127 = vmatpush1.msra.mxu0 0.0
  %1128 = vmatprep.subr.mxu0 0.0
  %1129 = vmatpush1.msra.mxu0 0.0
  %1130 = vmatprep.subr.mxu0 0.0
  %1131 = vmatpush1.msra.mxu0 0.0
  %1132 = vmatprep.subr.mxu0 0.0
  %1133 = vmatpush1.msra.mxu0 0.0
  %1134 = vmatprep.subr.mxu0 0.0
  %1135 = vmatpush1.msra.mxu0 0.0
  %1136 = vmatprep.subr.mxu0 0.0
  %1137 = vmatpush1.msra.mxu0 0.0
  %1138 = vmatprep.subr.mxu0 0.0
  %1139 = vmatpush1.msra.mxu0 0.0
  %1140 = vmatprep.subr.mxu0 0.0
  %1141 = vmatpush1.msra.mxu0 0.0
  %1142 = vmatprep.subr.mxu0 0.0
  %1143 = vmatpush1.msra.mxu0 0.0
  %1144 = vmatprep.subr.mxu0 0.0
  %1145 = vmatpush1.msra.mxu0 0.0
  %1146 = vmatprep.subr.mxu0 0.0
  %1147 = vmatpush1.msra.mxu0 0.0
  %1148 = vmatprep.subr.mxu0 0.0
  %1149 = vmatpush1.msra.mxu0 0.0
  %1150 = vmatprep.subr.mxu0 0.0
  %1151 = vmatpush1.msra.mxu0 0.0
  %1152 = vmatprep.subr.mxu0 0.0
  %1153 = vmatpush1.msra.mxu0 0.0
  %1154 = vmatprep.subr.mxu0 0.0
  %1155 = vmatpush1.msra.mxu0 0.0
  %1156 = vmatprep.subr.mxu0 0.0
  %1157 = vmatpush1.msra.mxu0 0.0
  %1158 = vmatprep.subr.mxu0 0.0
  %1159 = vmatpush1.msra.mxu0 0.0
  %1160 = vmatprep.subr.mxu0 0.0
  %1161 = vmatpush1.msra.mxu0 0.0
  %1162 = vmatprep.subr.mxu0 0.0
  %1163 = vmatpush1.msra.mxu0 0.0
  %1164 = vmatprep.subr.mxu0 0.0
  %1165 = vmatpush1.msra.mxu0 0.0
  %1166 = vmatprep.subr.mxu0 0.0
  %1167 = vmatpush1.msra.mxu0 0.0
  %1168 = vmatprep.mubr.f32.mxu0 0.0
  %1169 = vmatmul.mubr.f32.gmra.mrb[0].mxu0 %v410
  %v1170 = vpop.f32.mrb[0].mxu0
  %v1171 = vadd.f32 0.0, %v1170
  %v1172 = vpop.f32.mrb[0].mxu0
  %1173 = vmatprep.mubr.f32.mxu0 0.0
  %1174 = vmatmul.mubr.f32.gmra.mrb[0].mxu0 %v413
  %v1175 = vpop.f32.mrb[0].mxu0
  %v1176 = vadd.f32 0.0, %v1175
  %v1177 = vpop.f32.mrb[0].mxu0
  %1178 = vmatprep.mubr.f32.mxu0 0.0
  %1179 = vmatmul.mubr.f32.gmra.mrb[0].mxu0 %v416
  %v1180 = vpop.f32.mrb[0].mxu0
  %v1181 = vadd.f32 0.0, %v1180
  %v1182 = vpop.f32.mrb[0].mxu0
  %1183 = vdwg.mxu0
  %v1184 = vld [vmem:[%s47] sm:$0xf]
  %v1185 = vld [vmem:[%s47 + $0x4] sm:$0xf]
  %v1186 = vld [vmem:[%s47 + $0x8] sm:$0xf]
  %v1187 = vld [vmem:[%s47 + $0xc] sm:$0xf]
  %v1188 = vpack.c.bf16 %v1096, %v1091
  %v1189 = vpack.c.bf16 %v1101, %v1101
  %v1190 = vld [vmem:[%s49] sm:$0xf]
  %v1191 = vld [vmem:[%s49 + $0x4] sm:$0xf]
  %v1192 = vld [vmem:[%s49 + $0x8] sm:$0xf]
  %v1193 = vld [vmem:[%s49 + $0xc] sm:$0xf]
  %v1194 = vpack.c.bf16 %v1176, %v1171
  %v1195 = vpack.c.bf16 %v1181, %v1181
  %v1200 = vunpack.c.l.b16 %v1190
  %v1201 = vunpack.c.l.b16 %v1191
  %v1202 = vunpack.c.l.b16 %v1192
  %v1203 = vunpack.c.l.b16 %v1193
  %v1204 = vpack.c.b16 %v1201, %v1200
  %v1205 = vpack.c.b16 %v1203, %v1202
  %v1209 = vsel %vm253, %v1194, 0
  %v1212 = vsel %vm253, %v1195, 0
  %1214 = vmatprep.subr.bf16.mxu0 0
  %1215 = vmatpush1.bf16.msra.mxu0 %v1204
  %1216 = vmatprep.subr.bf16.mxu0 0
  %1217 = vmatpush1.bf16.msra.mxu0 %v1205
  %1218 = vmatprep.subr.bf16.mxu0 0
  %1219 = vmatpush1.bf16.msra.mxu0 0
  %1220 = vmatprep.subr.bf16.mxu0 0
  %1221 = vmatpush1.bf16.msra.mxu0 0
  %1222 = vmatprep.subr.bf16.mxu0 0
  %1223 = vmatpush1.bf16.msra.mxu0 0
  %1224 = vmatprep.subr.bf16.mxu0 0
  %1225 = vmatpush1.bf16.msra.mxu0 0
  %1226 = vmatprep.subr.bf16.mxu0 0
  %1227 = vmatpush1.bf16.msra.mxu0 0
  %1228 = vmatprep.subr.bf16.mxu0 0
  %1229 = vmatpush1.bf16.msra.mxu0 0
  %1230 = vmatprep.subr.bf16.mxu0 0
  %1231 = vmatpush1.bf16.msra.mxu0 0
  %1232 = vmatprep.subr.bf16.mxu0 0
  %1233 = vmatpush1.bf16.msra.mxu0 0
  %1234 = vmatprep.subr.bf16.mxu0 0
  %1235 = vmatpush1.bf16.msra.mxu0 0
  %1236 = vmatprep.subr.bf16.mxu0 0
  %1237 = vmatpush1.bf16.msra.mxu0 0
  %1238 = vmatprep.subr.bf16.mxu0 0
  %1239 = vmatpush1.bf16.msra.mxu0 0
  %1240 = vmatprep.subr.bf16.mxu0 0
  %1241 = vmatpush1.bf16.msra.mxu0 0
  %1242 = vmatprep.subr.bf16.mxu0 0
  %1243 = vmatpush1.bf16.msra.mxu0 0
  %1244 = vmatprep.subr.bf16.mxu0 0
  %1245 = vmatpush1.bf16.msra.mxu0 0
  %1246 = vmatprep.mubr.bf16.mxu0 0
  %1247 = vmatmul.mubr.bf16.gmra.mrb[0].mxu0 %v1209
  %v1248 = vpop.f32.mrb[0].mxu0
  %v1249 = vadd.f32 0.0, %v1248
  %v1250 = vpop.f32.mrb[0].mxu0
  %v1251 = vpop.f32.mrb[0].mxu0
  %v1252 = vadd.f32 0.0, %v1251
  %v1253 = vpop.f32.mrb[0].mxu0
  %1254 = vmatprep.mubr.bf16.mxu0 0
  %1255 = vmatmul.mubr.bf16.gmra.mrb[0].mxu0 %v1212
  %v1256 = vpop.f32.mrb[0].mxu0
  %v1257 = vadd.f32 0.0, %v1256
  %v1258 = vpop.f32.mrb[0].mxu0
  %v1259 = vpop.f32.mrb[0].mxu0
  %v1260 = vpop.f32.mrb[0].mxu0
  %1261 = vdwg.mxu0
  %v1266 = vunpack.c.l.b16 %v1184
  %v1267 = vunpack.c.l.b16 %v1185
  %v1268 = vunpack.c.l.b16 %v1186
  %v1269 = vunpack.c.l.b16 %v1187
  %v1270 = vpack.c.b16 %v1267, %v1266
  %v1271 = vpack.c.b16 %v1269, %v1268
  %v1275 = vsel %vm253, %v1188, 0
  %v1278 = vsel %vm253, %v1189, 0
  %1280 = vmatprep.subr.bf16.mxu0 0
  %1281 = vmatpush1.bf16.msra.mxu0 %v1270
  %1282 = vmatprep.subr.bf16.mxu0 0
  %1283 = vmatpush1.bf16.msra.mxu0 %v1271
  %1284 = vmatprep.subr.bf16.mxu0 0
  %1285 = vmatpush1.bf16.msra.mxu0 0
  %1286 = vmatprep.subr.bf16.mxu0 0
  %1287 = vmatpush1.bf16.msra.mxu0 0
  %1288 = vmatprep.subr.bf16.mxu0 0
  %1289 = vmatpush1.bf16.msra.mxu0 0
  %1290 = vmatprep.subr.bf16.mxu0 0
  %1291 = vmatpush1.bf16.msra.mxu0 0
  %1292 = vmatprep.subr.bf16.mxu0 0
  %1293 = vmatpush1.bf16.msra.mxu0 0
  %1294 = vmatprep.subr.bf16.mxu0 0
  %1295 = vmatpush1.bf16.msra.mxu0 0
  %1296 = vmatprep.subr.bf16.mxu0 0
  %1297 = vmatpush1.bf16.msra.mxu0 0
  %1298 = vmatprep.subr.bf16.mxu0 0
  %1299 = vmatpush1.bf16.msra.mxu0 0
  %1300 = vmatprep.subr.bf16.mxu0 0
  %1301 = vmatpush1.bf16.msra.mxu0 0
  %1302 = vmatprep.subr.bf16.mxu0 0
  %1303 = vmatpush1.bf16.msra.mxu0 0
  %1304 = vmatprep.subr.bf16.mxu0 0
  %1305 = vmatpush1.bf16.msra.mxu0 0
  %1306 = vmatprep.subr.bf16.mxu0 0
  %1307 = vmatpush1.bf16.msra.mxu0 0
  %1308 = vmatprep.subr.bf16.mxu0 0
  %1309 = vmatpush1.bf16.msra.mxu0 0
  %1310 = vmatprep.subr.bf16.mxu0 0
  %1311 = vmatpush1.bf16.msra.mxu0 0
  %1312 = vmatprep.mubr.bf16.mxu0 0
  %1313 = vmatmul.mubr.bf16.gmra.mrb[0].mxu0 %v1275
  %v1314 = vpop.f32.mrb[0].mxu0
  %v1315 = vadd.f32 %v1249, %v1314
  %v1316 = vpop.f32.mrb[0].mxu0
  %v1317 = vpop.f32.mrb[0].mxu0
  %v1318 = vadd.f32 %v1252, %v1317
  %v1319 = vpop.f32.mrb[0].mxu0
  %1320 = vmatprep.mubr.bf16.mxu0 0
  %1321 = vmatmul.mubr.bf16.gmra.mrb[0].mxu0 %v1278
  %v1322 = vpop.f32.mrb[0].mxu0
  %v1323 = vadd.f32 %v1257, %v1322
  %v1324 = vpop.f32.mrb[0].mxu0
  %v1325 = vpop.f32.mrb[0].mxu0
  %v1326 = vpop.f32.mrb[0].mxu0
  %1327 = vdwg.mxu0
  %v1328 = vld [vmem:[%s51] sm:$0xf]
  %v1329 = vld [vmem:[%s51 + $0x4] sm:$0xf]
  %v1330 = vld [vmem:[%s51 + $0x8] sm:$0xf]
  %v1331 = vld [vmem:[%s51 + $0xc] sm:$0xf]
  %v1332 = vpack.c.bf16 %v785, %v784
  %v1333 = vpack.c.bf16 %v786, %v786
  %v1338 = vunpack.c.l.b16 %v1328
  %v1339 = vunpack.c.l.b16 %v1329
  %v1340 = vunpack.c.l.b16 %v1330
  %v1341 = vunpack.c.l.b16 %v1331
  %v1342 = vpack.c.b16 %v1339, %v1338
  %v1343 = vpack.c.b16 %v1341, %v1340
  %v1347 = vsel %vm253, %v1332, 0
  %v1350 = vsel %vm253, %v1333, 0
  %1352 = vmatprep.subr.bf16.mxu0 0
  %1353 = vmatpush1.bf16.msra.mxu0 %v1342
  %1354 = vmatprep.subr.bf16.mxu0 0
  %1355 = vmatpush1.bf16.msra.mxu0 %v1343
  %1356 = vmatprep.subr.bf16.mxu0 0
  %1357 = vmatpush1.bf16.msra.mxu0 0
  %1358 = vmatprep.subr.bf16.mxu0 0
  %1359 = vmatpush1.bf16.msra.mxu0 0
  %1360 = vmatprep.subr.bf16.mxu0 0
  %1361 = vmatpush1.bf16.msra.mxu0 0
  %1362 = vmatprep.subr.bf16.mxu0 0
  %1363 = vmatpush1.bf16.msra.mxu0 0
  %1364 = vmatprep.subr.bf16.mxu0 0
  %1365 = vmatpush1.bf16.msra.mxu0 0
  %1366 = vmatprep.subr.bf16.mxu0 0
  %1367 = vmatpush1.bf16.msra.mxu0 0
  %1368 = vmatprep.subr.bf16.mxu0 0
  %1369 = vmatpush1.bf16.msra.mxu0 0
  %1370 = vmatprep.subr.bf16.mxu0 0
  %1371 = vmatpush1.bf16.msra.mxu0 0
  %1372 = vmatprep.subr.bf16.mxu0 0
  %1373 = vmatpush1.bf16.msra.mxu0 0
  %1374 = vmatprep.subr.bf16.mxu0 0
  %1375 = vmatpush1.bf16.msra.mxu0 0
  %1376 = vmatprep.subr.bf16.mxu0 0
  %1377 = vmatpush1.bf16.msra.mxu0 0
  %1378 = vmatprep.subr.bf16.mxu0 0
  %1379 = vmatpush1.bf16.msra.mxu0 0
  %1380 = vmatprep.subr.bf16.mxu0 0
  %1381 = vmatpush1.bf16.msra.mxu0 0
  %1382 = vmatprep.subr.bf16.mxu0 0
  %1383 = vmatpush1.bf16.msra.mxu0 0
  %1384 = vmatprep.mubr.bf16.mxu0 0
  %1385 = vmatmul.mubr.bf16.gmra.mrb[0].mxu0 %v1347
  %v1386 = vpop.f32.mrb[0].mxu0
  %v1387 = vadd.f32 0.0, %v1386
  %v1388 = vpop.f32.mrb[0].mxu0
  %v1389 = vpop.f32.mrb[0].mxu0
  %v1390 = vadd.f32 0.0, %v1389
  %v1391 = vpop.f32.mrb[0].mxu0
  %1392 = vmatprep.mubr.bf16.mxu0 0
  %1393 = vmatmul.mubr.bf16.gmra.mrb[0].mxu0 %v1350
  %v1394 = vpop.f32.mrb[0].mxu0
  %v1395 = vadd.f32 0.0, %v1394
  %v1396 = vpop.f32.mrb[0].mxu0
  %v1397 = vpop.f32.mrb[0].mxu0
  %v1398 = vpop.f32.mrb[0].mxu0
  %1399 = vdwg.mxu0
  %v1400 = vadd.f32 %v1315, %v1387
  %v1401 = vadd.f32 %v1318, %v1390
  %v1402 = vadd.f32 %v1323, %v1395
  %v1403 = vld [vmem:[%s53] sm:$0x1]
  %v1405 = vlaneseq
  %v1406 = vshrl.u32 %v1405, 7
  %v1407 = vsub.s32 0, %v1406
  %v1408 = vrot.slane %v1403, %v1407
  %v1410 = vadd.f32 %v1400, %v1408
  %v1411 = vadd.f32 %v1401, %v1408
  %v1412 = vadd.f32 %v1402, %v1408
  %vm1413 = vcmp.gt.f32.partialorder %v1410, 0.0
  %vm1414 = vcmp.gt.f32.partialorder %v1411, 0.0
  %vm1415 = vcmp.gt.f32.partialorder %v1412, 0.0
  %v1416 = vmin.f32 %v1410, 0.0
  %v1417 = vmin.f32 %v1411, 0.0
  %v1418 = vmin.f32 %v1412, 0.0
  %v1419 = vmul.f32 %v1416, 1.442695
  %v1420 = vpow.pop %v1419
  %v1421 = vmul.f32 %v1417, 1.442695
  %v1422 = vpow.pop %v1421
  %v1423 = vmul.f32 %v1418, 1.442695
  %v1424 = vpow.pop %v1423
  %v1425 = vsub.f32 %v1420, 1.0
  %v1426 = vsub.f32 %v1422, 1.0
  %v1427 = vsub.f32 %v1424, 1.0
  %v1428 = vsel %vm1413, %v1410, %v1425
  %v1429 = vsel %vm1414, %v1411, %v1426
  %v1430 = vsel %vm1415, %v1412, %v1427
  %v1431 = vld [vmem:[%s55] sm:$0xf]
  %v1432 = vld [vmem:[%s55 + $0x4] sm:$0xf]
  %v1433 = vld [vmem:[%s55 + $0x8] sm:$0xf]
  %v1434 = vld [vmem:[%s55 + $0xc] sm:$0xf]
  %v1435 = vpack.c.bf16 %v1429, %v1428
  %v1436 = vpack.c.bf16 %v1430, %v1430
  %v1437 = vld [vmem:[%s57] sm:$0x1]
  %v1439 = vlaneseq
  %v1440 = vshrl.u32 %v1439, 7
  %v1441 = vsub.s32 0, %v1440
  %v1442 = vrot.slane %v1437, %v1441
  %v1448 = vunpack.c.l.b16 %v1431
  %v1449 = vunpack.c.l.b16 %v1432
  %v1450 = vunpack.c.l.b16 %v1433
  %v1451 = vunpack.c.l.b16 %v1434
  %v1452 = vpack.c.b16 %v1449, %v1448
  %v1453 = vpack.c.b16 %v1451, %v1450
  %v1457 = vsel %vm253, %v1435, 0
  %v1460 = vsel %vm253, %v1436, 0
  %1462 = vmatprep.subr.bf16.mxu0 0
  %1463 = vmatpush1.bf16.msra.mxu0 %v1452
  %1464 = vmatprep.subr.bf16.mxu0 0
  %1465 = vmatpush1.bf16.msra.mxu0 %v1453
  %1466 = vmatprep.subr.bf16.mxu0 0
  %1467 = vmatpush1.bf16.msra.mxu0 0
  %1468 = vmatprep.subr.bf16.mxu0 0
  %1469 = vmatpush1.bf16.msra.mxu0 0
  %1470 = vmatprep.subr.bf16.mxu0 0
  %1471 = vmatpush1.bf16.msra.mxu0 0
  %1472 = vmatprep.subr.bf16.mxu0 0
  %1473 = vmatpush1.bf16.msra.mxu0 0
  %1474 = vmatprep.subr.bf16.mxu0 0
  %1475 = vmatpush1.bf16.msra.mxu0 0
  %1476 = vmatprep.subr.bf16.mxu0 0
  %1477 = vmatpush1.bf16.msra.mxu0 0
  %1478 = vmatprep.subr.bf16.mxu0 0
  %1479 = vmatpush1.bf16.msra.mxu0 0
  %1480 = vmatprep.subr.bf16.mxu0 0
  %1481 = vmatpush1.bf16.msra.mxu0 0
  %1482 = vmatprep.subr.bf16.mxu0 0
  %1483 = vmatpush1.bf16.msra.mxu0 0
  %1484 = vmatprep.subr.bf16.mxu0 0
  %1485 = vmatpush1.bf16.msra.mxu0 0
  %1486 = vmatprep.subr.bf16.mxu0 0
  %1487 = vmatpush1.bf16.msra.mxu0 0
  %1488 = vmatprep.subr.bf16.mxu0 0
  %1489 = vmatpush1.bf16.msra.mxu0 0
  %1490 = vmatprep.subr.bf16.mxu0 0
  %1491 = vmatpush1.bf16.msra.mxu0 0
  %1492 = vmatprep.subr.bf16.mxu0 0
  %1493 = vmatpush1.bf16.msra.mxu0 0
  %1494 = vmatprep.mubr.bf16.mxu0 0
  %1495 = vmatmul.mubr.bf16.gmra.mrb[0].mxu0 %v1457
  %v1496 = vpop.f32.mrb[0].mxu0
  %v1497 = vadd.f32 %v1442, %v1496
  %v1498 = vpop.f32.mrb[0].mxu0
  %v1499 = vpop.f32.mrb[0].mxu0
  %v1500 = vadd.f32 %v1442, %v1499
  %v1501 = vpop.f32.mrb[0].mxu0
  %1502 = vmatprep.mubr.bf16.mxu0 0
  %1503 = vmatmul.mubr.bf16.gmra.mrb[0].mxu0 %v1460
  %v1504 = vpop.f32.mrb[0].mxu0
  %v1505 = vadd.f32 %v1442, %v1504
  %v1506 = vpop.f32.mrb[0].mxu0
  %v1507 = vpop.f32.mrb[0].mxu0
  %v1508 = vpop.f32.mrb[0].mxu0
  %1509 = vdwg.mxu0
  %vm1510 = vcmp.gt.f32.partialorder %v1497, 0.0
  %vm1511 = vcmp.gt.f32.partialorder %v1500, 0.0
  %vm1512 = vcmp.gt.f32.partialorder %v1505, 0.0
  %v1513 = vmin.f32 %v1497, 0.0
  %v1514 = vmin.f32 %v1500, 0.0
  %v1515 = vmin.f32 %v1505, 0.0
  %v1516 = vmul.f32 %v1513, 1.442695
  %v1517 = vpow.pop %v1516
  %v1518 = vmul.f32 %v1514, 1.442695
  %v1519 = vpow.pop %v1518
  %v1520 = vmul.f32 %v1515, 1.442695
  %v1521 = vpow.pop %v1520
  %v1522 = vsub.f32 %v1517, 1.0
  %v1523 = vsub.f32 %v1519, 1.0
  %v1524 = vsub.f32 %v1521, 1.0
  %v1525 = vsel %vm1510, %v1497, %v1522
  %v1526 = vsel %vm1511, %v1500, %v1523
  %v1527 = vsel %vm1512, %v1505, %v1524
  %v1528 = vld [vmem:[%s59] sm:$0x1]
  %v1530 = vlaneseq
  %v1531 = vshrl.u32 %v1530, 7
  %v1532 = vsub.s32 0, %v1531
  %v1533 = vrot.slane %v1528, %v1532
  %v1535 = vmul.f32 %v1525, %v1533
  %v1536 = vmul.f32 %v1526, %v1533
  %v1537 = vmul.f32 %v1527, %v1533
  %v1538 = vld [vmem:[%s61] sm:$0x1]
  %v1540 = vlaneseq
  %v1541 = vshrl.u32 %v1540, 7
  %v1542 = vsub.s32 0, %v1541
  %v1543 = vrot.slane %v1538, %v1542
  %v1545 = vadd.f32 %v1535, %v1543
  %v1546 = vadd.f32 %v1536, %v1543
  %v1547 = vadd.f32 %v1537, %v1543
  %v1548 = vld [vmem:[%s63] sm:$0xf]
  %v1549 = vld [vmem:[%s63 + $0x4] sm:$0xf]
  %v1550 = vld [vmem:[%s63 + $0x8] sm:$0xf]
  %v1551 = vld [vmem:[%s63 + $0xc] sm:$0xf]
  %v1552 = vpack.c.bf16 %v1546, %v1545
  %v1553 = vpack.c.bf16 %v1547, %v1547
  %v1554 = vld [vmem:[%s65] sm:$0x1]
  %v1556 = vlaneseq
  %v1557 = vshrl.u32 %v1556, 7
  %v1558 = vsub.s32 0, %v1557
  %v1559 = vrot.slane %v1554, %v1558
  %v1565 = vunpack.c.l.b16 %v1548
  %v1566 = vunpack.c.l.b16 %v1549
  %v1567 = vunpack.c.l.b16 %v1550
  %v1568 = vunpack.c.l.b16 %v1551
  %v1569 = vpack.c.b16 %v1566, %v1565
  %v1570 = vpack.c.b16 %v1568, %v1567
  %v1574 = vsel %vm253, %v1552, 0
  %v1577 = vsel %vm253, %v1553, 0
  %1579 = vmatprep.subr.bf16.mxu0 0
  %1580 = vmatpush1.bf16.msra.mxu0 %v1569
  %1581 = vmatprep.subr.bf16.mxu0 0
  %1582 = vmatpush1.bf16.msra.mxu0 %v1570
  %1583 = vmatprep.subr.bf16.mxu0 0
  %1584 = vmatpush1.bf16.msra.mxu0 0
  %1585 = vmatprep.subr.bf16.mxu0 0
  %1586 = vmatpush1.bf16.msra.mxu0 0
  %1587 = vmatprep.subr.bf16.mxu0 0
  %1588 = vmatpush1.bf16.msra.mxu0 0
  %1589 = vmatprep.subr.bf16.mxu0 0
  %1590 = vmatpush1.bf16.msra.mxu0 0
  %1591 = vmatprep.subr.bf16.mxu0 0
  %1592 = vmatpush1.bf16.msra.mxu0 0
  %1593 = vmatprep.subr.bf16.mxu0 0
  %1594 = vmatpush1.bf16.msra.mxu0 0
  %1595 = vmatprep.subr.bf16.mxu0 0
  %1596 = vmatpush1.bf16.msra.mxu0 0
  %1597 = vmatprep.subr.bf16.mxu0 0
  %1598 = vmatpush1.bf16.msra.mxu0 0
  %1599 = vmatprep.subr.bf16.mxu0 0
  %1600 = vmatpush1.bf16.msra.mxu0 0
  %1601 = vmatprep.subr.bf16.mxu0 0
  %1602 = vmatpush1.bf16.msra.mxu0 0
  %1603 = vmatprep.subr.bf16.mxu0 0
  %1604 = vmatpush1.bf16.msra.mxu0 0
  %1605 = vmatprep.subr.bf16.mxu0 0
  %1606 = vmatpush1.bf16.msra.mxu0 0
  %1607 = vmatprep.subr.bf16.mxu0 0
  %1608 = vmatpush1.bf16.msra.mxu0 0
  %1609 = vmatprep.subr.bf16.mxu0 0
  %1610 = vmatpush1.bf16.msra.mxu0 0
  %1611 = vmatprep.mubr.bf16.mxu0 0
  %1612 = vmatmul.mubr.bf16.gmra.mrb[0].mxu0 %v1574
  %v1613 = vpop.f32.mrb[0].mxu0
  %v1614 = vadd.f32 %v1559, %v1613
  %v1615 = vpop.f32.mrb[0].mxu0
  %v1616 = vpop.f32.mrb[0].mxu0
  %v1617 = vadd.f32 %v1559, %v1616
  %v1618 = vpop.f32.mrb[0].mxu0
  %1619 = vmatprep.mubr.bf16.mxu0 0
  %1620 = vmatmul.mubr.bf16.gmra.mrb[0].mxu0 %v1577
  %v1621 = vpop.f32.mrb[0].mxu0
  %v1622 = vadd.f32 %v1559, %v1621
  %v1623 = vpop.f32.mrb[0].mxu0
  %v1624 = vpop.f32.mrb[0].mxu0
  %v1625 = vpop.f32.mrb[0].mxu0
  %1626 = vdwg.mxu0
  %vm1627 = vcmask 15360
  %1628 = vst.msk [vmem:[%s67] sm:$0xff] %vm1627, %v1614
  %1629 = vst.msk [vmem:[%s67 + $0x8] sm:$0xff] %vm1627, %v1617
  %1630 = vst.msk [vmem:[%s67 + $0x10] sm:$0xff] %vm1627, %v1622
  // Predicated region
  $region134: #{nri_multi_forward.2} parent=0 // pred_check
    _
  $region135: #{nri_multi_forward.2} parent=0 // pred_check_branch
    %1632 = sbr.rel (0) target = $region137
  $region136: #{nri_multi_forward.2} parent=0 // pred_region
    _
  $region137: #{nri_multi_forward.2} parent=0 // pred_fallthru
    _
  // Predicated region
  $region138: #{nri_multi_forward.2} parent=0 // pred_check
    _
  $region139: #{nri_multi_forward.2} parent=0 // pred_check_branch
    %1634 = sbr.rel (0) target = $region141
  $region140: #{nri_multi_forward.2} parent=0 // pred_region
    _
  $region141: #{nri_multi_forward.2} parent=0 // pred_fallthru
    _

// kernel: nri_multi_forward.3
$region0: #{nri_multi_forward.3}
  #allocation0 [shape = 'u32[]', space=smem, size = 0x4, offset = 0x4, fixed_abs, tag = 'smem constant byte address 0x4 - core index']
  #allocation1 [shape = 'u32[144,128]{1,0:T(1,128)}', space=vmem, size = 0x12000, scoped, tag = 'internal scratch']
  %s0 = inlined_call_operand.vmem [shape: f32[8,6], index: 0, kind: input, shape index: {}]
  %s1 = inlined_call_operand.vmem [shape: f32[24,2], index: 1, kind: input, shape index: {}]
  %s2 = inlined_call_operand.vmem [shape: f32[24,8], index: 2, kind: input, shape index: {}]
  %s3 = inlined_call_operand.vmem [shape: f32[24,8], index: 3, kind: input, shape index: {}]
  %s4 = inlined_call_operand.vmem [shape: f32[8,24], index: 4, kind: input, shape index: {}]
  %s5 = inlined_call_operand.vmem [shape: bf16[6,64], index: 5, kind: input, shape index: {}]
  %s6 = inlined_call_operand.vmem [shape: bf16[6,64], index: 6, kind: input, shape index: {}]
  %s7 = inlined_call_operand.vmem [shape: f32[1,64], index: 7, kind: input, shape index: {}]
  %s8 = inlined_call_operand.vmem [shape: bf16[64,32], index: 8, kind: input, shape index: {}]
  %s9 = inlined_call_operand.vmem [shape: f32[1,32], index: 9, kind: input, shape index: {}]
  %s10 = inlined_call_operand.vmem [shape: bf16[6,32], index: 10, kind: input, shape index: {}]
  %s11 = inlined_call_operand.vmem [shape: bf16[16,32], index: 11, kind: input, shape index: {}]
  %s12 = inlined_call_operand.vmem [shape: f32[1,32], index: 12, kind: input, shape index: {}]
  %s13 = inlined_call_operand.vmem [shape: bf16[32,32], index: 13, kind: input, shape index: {}]
  %s14 = inlined_call_operand.vmem [shape: f32[1,32], index: 14, kind: input, shape index: {}]
  %s15 = inlined_call_operand.vmem [shape: bf16[32,6], index: 15, kind: input, shape index: {}]
  %s16 = inlined_call_operand.vmem [shape: f32[1,6], index: 16, kind: input, shape index: {}]
  %s17 = inlined_call_operand.vmem [shape: f32[8,8,6], index: 17, kind: output, shape index: {}]
  %s18 = sld [smem:[#allocation0]]
  $region78: #{nri_multi_forward.3} parent=0
    _
  %s20 = ssub.s32 1, %s18
  %s21 = scalar_select 0, %s20, %s18
  // Predicated region
  $region2: #{nri_multi_forward.3} parent=0 // pred_check
    _
  $region3: #{nri_multi_forward.3} parent=0 // pred_check_branch
    %23 = sbr.rel (0) target = $region5
  $region4: #{nri_multi_forward.3} parent=0 // pred_region
    _
  $region5: #{nri_multi_forward.3} parent=0 // pred_fallthru
    _
  // Predicated region
  $region6: #{nri_multi_forward.3} parent=0 // pred_check
    _
  $region7: #{nri_multi_forward.3} parent=0 // pred_check_branch
    %25 = sbr.rel (0) target = $region9
  $region8: #{nri_multi_forward.3} parent=0 // pred_region
    _
  $region9: #{nri_multi_forward.3} parent=0 // pred_fallthru
    _
  // Predicated region
  $region10: #{nri_multi_forward.3} parent=0 // pred_check
    _
  $region11: #{nri_multi_forward.3} parent=0 // pred_check_branch
    %27 = sbr.rel (0) target = $region13
  $region12: #{nri_multi_forward.3} parent=0 // pred_region
    _
  $region13: #{nri_multi_forward.3} parent=0 // pred_fallthru
    _
  // Predicated region
  $region14: #{nri_multi_forward.3} parent=0 // pred_check
    _
  $region15: #{nri_multi_forward.3} parent=0 // pred_check_branch
    %29 = sbr.rel (0) target = $region17
  $region16: #{nri_multi_forward.3} parent=0 // pred_region
    _
  $region17: #{nri_multi_forward.3} parent=0 // pred_fallthru
    _
  // Predicated region
  $region18: #{nri_multi_forward.3} parent=0 // pred_check
    _
  $region19: #{nri_multi_forward.3} parent=0 // pred_check_branch
    %31 = sbr.rel (0) target = $region21
  $region20: #{nri_multi_forward.3} parent=0 // pred_region
    _
  $region21: #{nri_multi_forward.3} parent=0 // pred_fallthru
    _
  // Predicated region
  $region22: #{nri_multi_forward.3} parent=0 // pred_check
    _
  $region23: #{nri_multi_forward.3} parent=0 // pred_check_branch
    %33 = sbr.rel (0) target = $region25
  $region24: #{nri_multi_forward.3} parent=0 // pred_region
    _
  $region25: #{nri_multi_forward.3} parent=0 // pred_fallthru
    _
  // Predicated region
  $region26: #{nri_multi_forward.3} parent=0 // pred_check
    _
  $region27: #{nri_multi_forward.3} parent=0 // pred_check_branch
    %35 = sbr.rel (0) target = $region29
  $region28: #{nri_multi_forward.3} parent=0 // pred_region
    _
  $region29: #{nri_multi_forward.3} parent=0 // pred_fallthru
    _
  // Predicated region
  $region30: #{nri_multi_forward.3} parent=0 // pred_check
    _
  $region31: #{nri_multi_forward.3} parent=0 // pred_check_branch
    %37 = sbr.rel (0) target = $region33
  $region32: #{nri_multi_forward.3} parent=0 // pred_region
    _
  $region33: #{nri_multi_forward.3} parent=0 // pred_fallthru
    _
  // Predicated region
  $region34: #{nri_multi_forward.3} parent=0 // pred_check
    _
  $region35: #{nri_multi_forward.3} parent=0 // pred_check_branch
    %39 = sbr.rel (0) target = $region37
  $region36: #{nri_multi_forward.3} parent=0 // pred_region
    _
  $region37: #{nri_multi_forward.3} parent=0 // pred_fallthru
    _
  // Predicated region
  $region38: #{nri_multi_forward.3} parent=0 // pred_check
    _
  $region39: #{nri_multi_forward.3} parent=0 // pred_check_branch
    %41 = sbr.rel (0) target = $region41
  $region40: #{nri_multi_forward.3} parent=0 // pred_region
    _
  $region41: #{nri_multi_forward.3} parent=0 // pred_fallthru
    _
  // Predicated region
  $region42: #{nri_multi_forward.3} parent=0 // pred_check
    _
  $region43: #{nri_multi_forward.3} parent=0 // pred_check_branch
    %43 = sbr.rel (0) target = $region45
  $region44: #{nri_multi_forward.3} parent=0 // pred_region
    _
  $region45: #{nri_multi_forward.3} parent=0 // pred_fallthru
    _
  // Predicated region
  $region46: #{nri_multi_forward.3} parent=0 // pred_check
    _
  $region47: #{nri_multi_forward.3} parent=0 // pred_check_branch
    %45 = sbr.rel (0) target = $region49
  $region48: #{nri_multi_forward.3} parent=0 // pred_region
    _
  $region49: #{nri_multi_forward.3} parent=0 // pred_fallthru
    _
  // Predicated region
  $region50: #{nri_multi_forward.3} parent=0 // pred_check
    _
  $region51: #{nri_multi_forward.3} parent=0 // pred_check_branch
    %47 = sbr.rel (0) target = $region53
  $region52: #{nri_multi_forward.3} parent=0 // pred_region
    _
  $region53: #{nri_multi_forward.3} parent=0 // pred_fallthru
    _
  // Predicated region
  $region54: #{nri_multi_forward.3} parent=0 // pred_check
    _
  $region55: #{nri_multi_forward.3} parent=0 // pred_check_branch
    %49 = sbr.rel (0) target = $region57
  $region56: #{nri_multi_forward.3} parent=0 // pred_region
    _
  $region57: #{nri_multi_forward.3} parent=0 // pred_fallthru
    _
  // Predicated region
  $region58: #{nri_multi_forward.3} parent=0 // pred_check
    _
  $region59: #{nri_multi_forward.3} parent=0 // pred_check_branch
    %51 = sbr.rel (0) target = $region61
  $region60: #{nri_multi_forward.3} parent=0 // pred_region
    _
  $region61: #{nri_multi_forward.3} parent=0 // pred_fallthru
    _
  // Predicated region
  $region62: #{nri_multi_forward.3} parent=0 // pred_check
    _
  $region63: #{nri_multi_forward.3} parent=0 // pred_check_branch
    %53 = sbr.rel (0) target = $region65
  $region64: #{nri_multi_forward.3} parent=0 // pred_region
    _
  $region65: #{nri_multi_forward.3} parent=0 // pred_fallthru
    _
  // Predicated region
  $region66: #{nri_multi_forward.3} parent=0 // pred_check
    _
  $region67: #{nri_multi_forward.3} parent=0 // pred_check_branch
    %55 = sbr.rel (0) target = $region69
  $region68: #{nri_multi_forward.3} parent=0 // pred_region
    _
  $region69: #{nri_multi_forward.3} parent=0 // pred_fallthru
    _
  %v57 = vld [vmem:[%s2] sm:$0xff]
  %v58 = vld [vmem:[%s2 + $0x8] sm:$0xff]
  %v59 = vld [vmem:[%s2 + $0x10] sm:$0xff]
  %v60 = vld [vmem:[%s3] sm:$0xff]
  %v61 = vld [vmem:[%s3 + $0x8] sm:$0xff]
  %v62 = vld [vmem:[%s3 + $0x10] sm:$0xff]
  %v63 = vld [vmem:[%s4] sm:$0xff]
  %v64 = vld [vmem:[%s1] sm:$0xff]
  %v65 = vld [vmem:[%s1 + $0x8] sm:$0xff]
  %v66 = vld [vmem:[%s1 + $0x10] sm:$0xff]
  %v67 = vld [vmem:[%s5] sm:$0x7]
  %v68 = vld [vmem:[%s6] sm:$0x7]
  %v69 = vld [vmem:[%s7] sm:$0x1]
  %v70 = vld [vmem:[%s8] sm:$0xf]
  %v71 = vld [vmem:[%s8 + $0x4] sm:$0xf]
  %v72 = vld [vmem:[%s8 + $0x8] sm:$0xf]
  %v73 = vld [vmem:[%s8 + $0xc] sm:$0xf]
  %v74 = vld [vmem:[%s8 + $0x10] sm:$0xf]
  %v75 = vld [vmem:[%s8 + $0x14] sm:$0xf]
  %v76 = vld [vmem:[%s8 + $0x18] sm:$0xf]
  %v77 = vld [vmem:[%s8 + $0x1c] sm:$0xf]
  %v78 = vld [vmem:[%s9] sm:$0x1]
  %v79 = vld [vmem:[%s10] sm:$0x7]
  %v80 = vld [vmem:[%s11] sm:$0xf]
  %v81 = vld [vmem:[%s11 + $0x4] sm:$0xf]
  %v82 = vld [vmem:[%s12] sm:$0x1]
  %v83 = vld [vmem:[%s13] sm:$0xf]
  %v84 = vld [vmem:[%s13 + $0x4] sm:$0xf]
  %v85 = vld [vmem:[%s13 + $0x8] sm:$0xf]
  %v86 = vld [vmem:[%s13 + $0xc] sm:$0xf]
  %v87 = vld [vmem:[%s14] sm:$0x1]
  %v88 = vld [vmem:[%s15] sm:$0xf]
  %v89 = vld [vmem:[%s15 + $0x4] sm:$0xf]
  %v90 = vld [vmem:[%s15 + $0x8] sm:$0xf]
  %v91 = vld [vmem:[%s15 + $0xc] sm:$0xf]
  %v92 = vld [vmem:[%s16] sm:$0x1]
  %v93 = vld [vmem:[%s0] sm:$0xff]
  %vm94 = vcmask 64512
  %v96 = vsel %vm94, %v57, 0
  %v99 = vsel %vm94, %v58, 0
  %v102 = vsel %vm94, %v59, 0
  %104 = vmatprep.subr.mxu0 0.0
  %105 = vmatpush1.msra.mxu0 %v93
  %106 = vmatprep.subr.mxu0 0.0
  %107 = vmatpush1.msra.mxu0 0.0
  %108 = vmatprep.subr.mxu0 0.0
  %109 = vmatpush1.msra.mxu0 0.0
  %110 = vmatprep.subr.mxu0 0.0
  %111 = vmatpush1.msra.mxu0 0.0
  %112 = vmatprep.subr.mxu0 0.0
  %113 = vmatpush1.msra.mxu0 0.0
  %114 = vmatprep.subr.mxu0 0.0
  %115 = vmatpush1.msra.mxu0 0.0
  %116 = vmatprep.subr.mxu0 0.0
  %117 = vmatpush1.msra.mxu0 0.0
  %118 = vmatprep.subr.mxu0 0.0
  %119 = vmatpush1.msra.mxu0 0.0
  %120 = vmatprep.subr.mxu0 0.0
  %121 = vmatpush1.msra.mxu0 0.0
  %122 = vmatprep.subr.mxu0 0.0
  %123 = vmatpush1.msra.mxu0 0.0
  %124 = vmatprep.subr.mxu0 0.0
  %125 = vmatpush1.msra.mxu0 0.0
  %126 = vmatprep.subr.mxu0 0.0
  %127 = vmatpush1.msra.mxu0 0.0
  %128 = vmatprep.subr.mxu0 0.0
  %129 = vmatpush1.msra.mxu0 0.0
  %130 = vmatprep.subr.mxu0 0.0
  %131 = vmatpush1.msra.mxu0 0.0
  %132 = vmatprep.subr.mxu0 0.0
  %133 = vmatpush1.msra.mxu0 0.0
  %134 = vmatprep.subr.mxu0 0.0
  %135 = vmatpush1.msra.mxu0 0.0
  %136 = vmatprep.subr.mxu0 0.0
  %137 = vmatpush1.msra.mxu0 0.0
  %138 = vmatprep.subr.mxu0 0.0
  %139 = vmatpush1.msra.mxu0 0.0
  %140 = vmatprep.subr.mxu0 0.0
  %141 = vmatpush1.msra.mxu0 0.0
  %142 = vmatprep.subr.mxu0 0.0
  %143 = vmatpush1.msra.mxu0 0.0
  %144 = vmatprep.subr.mxu0 0.0
  %145 = vmatpush1.msra.mxu0 0.0
  %146 = vmatprep.subr.mxu0 0.0
  %147 = vmatpush1.msra.mxu0 0.0
  %148 = vmatprep.subr.mxu0 0.0
  %149 = vmatpush1.msra.mxu0 0.0
  %150 = vmatprep.subr.mxu0 0.0
  %151 = vmatpush1.msra.mxu0 0.0
  %152 = vmatprep.subr.mxu0 0.0
  %153 = vmatpush1.msra.mxu0 0.0
  %154 = vmatprep.subr.mxu0 0.0
  %155 = vmatpush1.msra.mxu0 0.0
  %156 = vmatprep.subr.mxu0 0.0
  %157 = vmatpush1.msra.mxu0 0.0
  %158 = vmatprep.subr.mxu0 0.0
  %159 = vmatpush1.msra.mxu0 0.0
  %160 = vmatprep.subr.mxu0 0.0
  %161 = vmatpush1.msra.mxu0 0.0
  %162 = vmatprep.subr.mxu0 0.0
  %163 = vmatpush1.msra.mxu0 0.0
  %164 = vmatprep.subr.mxu0 0.0
  %165 = vmatpush1.msra.mxu0 0.0
  %166 = vmatprep.subr.mxu0 0.0
  %167 = vmatpush1.msra.mxu0 0.0
  %168 = vmatprep.mubr.f32.mxu0 0.0
  %169 = vmatmul.mubr.f32.gmra.mrb[0].mxu0 %v96
  %v170 = vpop.f32.mrb[0].mxu0
  %v171 = vadd.f32 0.0, %v170
  %v172 = vpop.f32.mrb[0].mxu0
  %173 = vmatprep.mubr.f32.mxu0 0.0
  %174 = vmatmul.mubr.f32.gmra.mrb[0].mxu0 %v99
  %v175 = vpop.f32.mrb[0].mxu0
  %v176 = vadd.f32 0.0, %v175
  %v177 = vpop.f32.mrb[0].mxu0
  %178 = vmatprep.mubr.f32.mxu0 0.0
  %179 = vmatmul.mubr.f32.gmra.mrb[0].mxu0 %v102
  %v180 = vpop.f32.mrb[0].mxu0
  %v181 = vadd.f32 0.0, %v180
  %v182 = vpop.f32.mrb[0].mxu0
  %183 = vdwg.mxu0
  %v185 = vsel %vm94, %v60, 0
  %v188 = vsel %vm94, %v61, 0
  %v191 = vsel %vm94, %v62, 0
  %193 = vmatprep.subr.mxu0 0.0
  %194 = vmatpush1.msra.mxu0 %v93
  %195 = vmatprep.subr.mxu0 0.0
  %196 = vmatpush1.msra.mxu0 0.0
  %197 = vmatprep.subr.mxu0 0.0
  %198 = vmatpush1.msra.mxu0 0.0
  %199 = vmatprep.subr.mxu0 0.0
  %200 = vmatpush1.msra.mxu0 0.0
  %201 = vmatprep.subr.mxu0 0.0
  %202 = vmatpush1.msra.mxu0 0.0
  %203 = vmatprep.subr.mxu0 0.0
  %204 = vmatpush1.msra.mxu0 0.0
  %205 = vmatprep.subr.mxu0 0.0
  %206 = vmatpush1.msra.mxu0 0.0
  %207 = vmatprep.subr.mxu0 0.0
  %208 = vmatpush1.msra.mxu0 0.0
  %209 = vmatprep.subr.mxu0 0.0
  %210 = vmatpush1.msra.mxu0 0.0
  %211 = vmatprep.subr.mxu0 0.0
  %212 = vmatpush1.msra.mxu0 0.0
  %213 = vmatprep.subr.mxu0 0.0
  %214 = vmatpush1.msra.mxu0 0.0
  %215 = vmatprep.subr.mxu0 0.0
  %216 = vmatpush1.msra.mxu0 0.0
  %217 = vmatprep.subr.mxu0 0.0
  %218 = vmatpush1.msra.mxu0 0.0
  %219 = vmatprep.subr.mxu0 0.0
  %220 = vmatpush1.msra.mxu0 0.0
  %221 = vmatprep.subr.mxu0 0.0
  %222 = vmatpush1.msra.mxu0 0.0
  %223 = vmatprep.subr.mxu0 0.0
  %224 = vmatpush1.msra.mxu0 0.0
  %225 = vmatprep.subr.mxu0 0.0
  %226 = vmatpush1.msra.mxu0 0.0
  %227 = vmatprep.subr.mxu0 0.0
  %228 = vmatpush1.msra.mxu0 0.0
  %229 = vmatprep.subr.mxu0 0.0
  %230 = vmatpush1.msra.mxu0 0.0
  %231 = vmatprep.subr.mxu0 0.0
  %232 = vmatpush1.msra.mxu0 0.0
  %233 = vmatprep.subr.mxu0 0.0
  %234 = vmatpush1.msra.mxu0 0.0
  %235 = vmatprep.subr.mxu0 0.0
  %236 = vmatpush1.msra.mxu0 0.0
  %237 = vmatprep.subr.mxu0 0.0
  %238 = vmatpush1.msra.mxu0 0.0
  %239 = vmatprep.subr.mxu0 0.0
  %240 = vmatpush1.msra.mxu0 0.0
  %241 = vmatprep.subr.mxu0 0.0
  %242 = vmatpush1.msra.mxu0 0.0
  %243 = vmatprep.subr.mxu0 0.0
  %244 = vmatpush1.msra.mxu0 0.0
  %245 = vmatprep.subr.mxu0 0.0
  %246 = vmatpush1.msra.mxu0 0.0
  %247 = vmatprep.subr.mxu0 0.0
  %248 = vmatpush1.msra.mxu0 0.0
  %249 = vmatprep.subr.mxu0 0.0
  %250 = vmatpush1.msra.mxu0 0.0
  %251 = vmatprep.subr.mxu0 0.0
  %252 = vmatpush1.msra.mxu0 0.0
  %253 = vmatprep.subr.mxu0 0.0
  %254 = vmatpush1.msra.mxu0 0.0
  %255 = vmatprep.subr.mxu0 0.0
  %256 = vmatpush1.msra.mxu0 0.0
  %257 = vmatprep.mubr.f32.mxu0 0.0
  %258 = vmatmul.mubr.f32.gmra.mrb[0].mxu0 %v185
  %v259 = vpop.f32.mrb[0].mxu0
  %v260 = vadd.f32 0.0, %v259
  %v261 = vpop.f32.mrb[0].mxu0
  %262 = vmatprep.mubr.f32.mxu0 0.0
  %263 = vmatmul.mubr.f32.gmra.mrb[0].mxu0 %v188
  %v264 = vpop.f32.mrb[0].mxu0
  %v265 = vadd.f32 0.0, %v264
  %v266 = vpop.f32.mrb[0].mxu0
  %267 = vmatprep.mubr.f32.mxu0 0.0
  %268 = vmatmul.mubr.f32.gmra.mrb[0].mxu0 %v191
  %v269 = vpop.f32.mrb[0].mxu0
  %v270 = vadd.f32 0.0, %v269
  %v271 = vpop.f32.mrb[0].mxu0
  %272 = vdwg.mxu0
  %v273 = vpack.c.bf16 %v176, %v171
  %v274 = vpack.c.bf16 %v181, %v181
  %v275 = vpack.c.bf16 %v265, %v260
  %v276 = vpack.c.bf16 %v270, %v270
  %vm277 = vcmask 48128
  %v279 = vsel %vm277, %v275, 0
  %v282 = vsel %vm277, %v276, 0
  %vm284 = vcmask 1042432
  %v286 = vsel %vm284, %v68, 0
  %288 = vmatprep.subr.bf16.mxu0 0
  %289 = vmatpush1.bf16.msra.mxu0 %v286
  %290 = vmatprep.subr.bf16.mxu0 0
  %291 = vmatpush1.bf16.msra.mxu0 0
  %292 = vmatprep.subr.bf16.mxu0 0
  %293 = vmatpush1.bf16.msra.mxu0 0
  %294 = vmatprep.subr.bf16.mxu0 0
  %295 = vmatpush1.bf16.msra.mxu0 0
  %296 = vmatprep.subr.bf16.mxu0 0
  %297 = vmatpush1.bf16.msra.mxu0 0
  %298 = vmatprep.subr.bf16.mxu0 0
  %299 = vmatpush1.bf16.msra.mxu0 0
  %300 = vmatprep.subr.bf16.mxu0 0
  %301 = vmatpush1.bf16.msra.mxu0 0
  %302 = vmatprep.subr.bf16.mxu0 0
  %303 = vmatpush1.bf16.msra.mxu0 0
  %304 = vmatprep.subr.bf16.mxu0 0
  %305 = vmatpush1.bf16.msra.mxu0 0
  %306 = vmatprep.subr.bf16.mxu0 0
  %307 = vmatpush1.bf16.msra.mxu0 0
  %308 = vmatprep.subr.bf16.mxu0 0
  %309 = vmatpush1.bf16.msra.mxu0 0
  %310 = vmatprep.subr.bf16.mxu0 0
  %311 = vmatpush1.bf16.msra.mxu0 0
  %312 = vmatprep.subr.bf16.mxu0 0
  %313 = vmatpush1.bf16.msra.mxu0 0
  %314 = vmatprep.subr.bf16.mxu0 0
  %315 = vmatpush1.bf16.msra.mxu0 0
  %316 = vmatprep.subr.bf16.mxu0 0
  %317 = vmatpush1.bf16.msra.mxu0 0
  %318 = vmatprep.subr.bf16.mxu0 0
  %319 = vmatpush1.bf16.msra.mxu0 0
  %320 = vmatprep.mubr.bf16.mxu0 0
  %321 = vmatmul.mubr.bf16.gmra.mrb[0].mxu0 %v279
  %v322 = vpop.f32.mrb[0].mxu0
  %v323 = vadd.f32 0.0, %v322
  %v324 = vpop.f32.mrb[0].mxu0
  %v325 = vpop.f32.mrb[0].mxu0
  %v326 = vadd.f32 0.0, %v325
  %v327 = vpop.f32.mrb[0].mxu0
  %328 = vmatprep.mubr.bf16.mxu0 0
  %329 = vmatmul.mubr.bf16.gmra.mrb[0].mxu0 %v282
  %v330 = vpop.f32.mrb[0].mxu0
  %v331 = vadd.f32 0.0, %v330
  %v332 = vpop.f32.mrb[0].mxu0
  %v333 = vpop.f32.mrb[0].mxu0
  %v334 = vpop.f32.mrb[0].mxu0
  %335 = vdwg.mxu0
  %v337 = vsel %vm277, %v273, 0
  %v340 = vsel %vm277, %v274, 0
  %v343 = vsel %vm284, %v67, 0
  %345 = vmatprep.subr.bf16.mxu0 0
  %346 = vmatpush1.bf16.msra.mxu0 %v343
  %347 = vmatprep.subr.bf16.mxu0 0
  %348 = vmatpush1.bf16.msra.mxu0 0
  %349 = vmatprep.subr.bf16.mxu0 0
  %350 = vmatpush1.bf16.msra.mxu0 0
  %351 = vmatprep.subr.bf16.mxu0 0
  %352 = vmatpush1.bf16.msra.mxu0 0
  %353 = vmatprep.subr.bf16.mxu0 0
  %354 = vmatpush1.bf16.msra.mxu0 0
  %355 = vmatprep.subr.bf16.mxu0 0
  %356 = vmatpush1.bf16.msra.mxu0 0
  %357 = vmatprep.subr.bf16.mxu0 0
  %358 = vmatpush1.bf16.msra.mxu0 0
  %359 = vmatprep.subr.bf16.mxu0 0
  %360 = vmatpush1.bf16.msra.mxu0 0
  %361 = vmatprep.subr.bf16.mxu0 0
  %362 = vmatpush1.bf16.msra.mxu0 0
  %363 = vmatprep.subr.bf16.mxu0 0
  %364 = vmatpush1.bf16.msra.mxu0 0
  %365 = vmatprep.subr.bf16.mxu0 0
  %366 = vmatpush1.bf16.msra.mxu0 0
  %367 = vmatprep.subr.bf16.mxu0 0
  %368 = vmatpush1.bf16.msra.mxu0 0
  %369 = vmatprep.subr.bf16.mxu0 0
  %370 = vmatpush1.bf16.msra.mxu0 0
  %371 = vmatprep.subr.bf16.mxu0 0
  %372 = vmatpush1.bf16.msra.mxu0 0
  %373 = vmatprep.subr.bf16.mxu0 0
  %374 = vmatpush1.bf16.msra.mxu0 0
  %375 = vmatprep.subr.bf16.mxu0 0
  %376 = vmatpush1.bf16.msra.mxu0 0
  %377 = vmatprep.mubr.bf16.mxu0 0
  %378 = vmatmul.mubr.bf16.gmra.mrb[0].mxu0 %v337
  %v379 = vpop.f32.mrb[0].mxu0
  %v380 = vadd.f32 %v323, %v379
  %v381 = vpop.f32.mrb[0].mxu0
  %v382 = vpop.f32.mrb[0].mxu0
  %v383 = vadd.f32 %v326, %v382
  %v384 = vpop.f32.mrb[0].mxu0
  %385 = vmatprep.mubr.bf16.mxu0 0
  %386 = vmatmul.mubr.bf16.gmra.mrb[0].mxu0 %v340
  %v387 = vpop.f32.mrb[0].mxu0
  %v388 = vadd.f32 %v331, %v387
  %v389 = vpop.f32.mrb[0].mxu0
  %v390 = vpop.f32.mrb[0].mxu0
  %v391 = vpop.f32.mrb[0].mxu0
  %392 = vdwg.mxu0
  %v394 = vlaneseq
  %v395 = vshrl.u32 %v394, 7
  %v396 = vsub.s32 0, %v395
  %v397 = vrot.slane %v69, %v396
  %v399 = vadd.f32 %v380, %v397
  %v400 = vadd.f32 %v383, %v397
  %v401 = vadd.f32 %v388, %v397
  %v402 = vmax.f32 %v399, 0.0
  %v403 = vmax.f32 %v400, 0.0
  %v404 = vmax.f32 %v401, 0.0
  %v405 = vpack.c.bf16 %v403, %v402
  %v406 = vpack.c.bf16 %v404, %v404
  %v408 = vlaneseq
  %v409 = vshrl.u32 %v408, 7
  %v410 = vsub.s32 0, %v409
  %v411 = vrot.slane %v78, %v410
  %v421 = vunpack.c.l.b16 %v70
  %v422 = vunpack.c.l.b16 %v71
  %v423 = vunpack.c.l.b16 %v72
  %v424 = vunpack.c.l.b16 %v73
  %v425 = vunpack.c.l.b16 %v74
  %v426 = vunpack.c.l.b16 %v75
  %v427 = vunpack.c.l.b16 %v76
  %v428 = vunpack.c.l.b16 %v77
  %v429 = vpack.c.b16 %v422, %v421
  %v430 = vpack.c.b16 %v424, %v423
  %v431 = vpack.c.b16 %v426, %v425
  %v432 = vpack.c.b16 %v428, %v427
  %vm437 = vcmask 523264
  %v439 = vsel %vm437, %v405, 0
  %v442 = vsel %vm437, %v406, 0
  %444 = vmatprep.subr.bf16.mxu0 0
  %445 = vmatpush1.bf16.msra.mxu0 %v429
  %446 = vmatprep.subr.bf16.mxu0 0
  %447 = vmatpush1.bf16.msra.mxu0 %v430
  %448 = vmatprep.subr.bf16.mxu0 0
  %449 = vmatpush1.bf16.msra.mxu0 %v431
  %450 = vmatprep.subr.bf16.mxu0 0
  %451 = vmatpush1.bf16.msra.mxu0 %v432
  %452 = vmatprep.subr.bf16.mxu0 0
  %453 = vmatpush1.bf16.msra.mxu0 0
  %454 = vmatprep.subr.bf16.mxu0 0
  %455 = vmatpush1.bf16.msra.mxu0 0
  %456 = vmatprep.subr.bf16.mxu0 0
  %457 = vmatpush1.bf16.msra.mxu0 0
  %458 = vmatprep.subr.bf16.mxu0 0
  %459 = vmatpush1.bf16.msra.mxu0 0
  %460 = vmatprep.subr.bf16.mxu0 0
  %461 = vmatpush1.bf16.msra.mxu0 0
  %462 = vmatprep.subr.bf16.mxu0 0
  %463 = vmatpush1.bf16.msra.mxu0 0
  %464 = vmatprep.subr.bf16.mxu0 0
  %465 = vmatpush1.bf16.msra.mxu0 0
  %466 = vmatprep.subr.bf16.mxu0 0
  %467 = vmatpush1.bf16.msra.mxu0 0
  %468 = vmatprep.subr.bf16.mxu0 0
  %469 = vmatpush1.bf16.msra.mxu0 0
  %470 = vmatprep.subr.bf16.mxu0 0
  %471 = vmatpush1.bf16.msra.mxu0 0
  %472 = vmatprep.subr.bf16.mxu0 0
  %473 = vmatpush1.bf16.msra.mxu0 0
  %474 = vmatprep.subr.bf16.mxu0 0
  %475 = vmatpush1.bf16.msra.mxu0 0
  %476 = vmatprep.mubr.bf16.mxu0 0
  %477 = vmatmul.mubr.bf16.gmra.mrb[0].mxu0 %v439
  %v478 = vpop.f32.mrb[0].mxu0
  %v479 = vadd.f32 %v411, %v478
  %v480 = vpop.f32.mrb[0].mxu0
  %v481 = vpop.f32.mrb[0].mxu0
  %v482 = vadd.f32 %v411, %v481
  %v483 = vpop.f32.mrb[0].mxu0
  %484 = vmatprep.mubr.bf16.mxu0 0
  %485 = vmatmul.mubr.bf16.gmra.mrb[0].mxu0 %v442
  %v486 = vpop.f32.mrb[0].mxu0
  %v487 = vadd.f32 %v411, %v486
  %v488 = vpop.f32.mrb[0].mxu0
  %v489 = vpop.f32.mrb[0].mxu0
  %v490 = vpop.f32.mrb[0].mxu0
  %491 = vdwg.mxu0
  %v492 = vmax.f32 %v479, 0.0
  %v493 = vmax.f32 %v482, 0.0
  %v494 = vmax.f32 %v487, 0.0
  %496 = vset.pattern.permute.xlu0 0
  %497 = vperm.xlu0 %496, %v64
  %v498 = vpop.permute.xlu0 %497
  %501 = vset.pattern.permute.xlu0 0
  %502 = vperm.xlu0 %501, %v65
  %v503 = vpop.permute.xlu0 %502
  %506 = vset.pattern.permute.xlu0 0
  %507 = vperm.xlu0 %506, %v66
  %v508 = vpop.permute.xlu0 %507
  %v510 = vmul.f32 %v492, %v498
  %v511 = vmul.f32 %v493, %v503
  %v512 = vmul.f32 %v494, %v508
  %513 = vset.pattern.permute.xlu0 1
  %514 = vperm.xlu0 %513, %v64
  %v515 = vpop.permute.xlu0 %514
  %517 = vset.pattern.permute.xlu0 1
  %518 = vperm.xlu0 %517, %v65
  %v519 = vpop.permute.xlu0 %518
  %521 = vset.pattern.permute.xlu0 1
  %522 = vperm.xlu0 %521, %v66
  %v523 = vpop.permute.xlu0 %522
  %v525 = vmul.f32 %v492, %v515
  %v526 = vmul.f32 %v493, %v519
  %v527 = vmul.f32 %v494, %v523
  %531 = vrot.lane.b32.xlu0 %v525, 112
  %v532 = vpop.permute.xlu0 %531
  %533 = vrot.lane.b32.xlu0 %v526, 112
  %v534 = vpop.permute.xlu0 %533
  %535 = vrot.lane.b32.xlu0 %v527, 112
  %v536 = vpop.permute.xlu0 %535
  %v540 = vadd.f32 %v510, %v532
  %v541 = vadd.f32 %v511, %v534
  %v542 = vadd.f32 %v512, %v536
  %vm543 = vcmask 195584
  %v545 = vsel %vm543, %v63, 0
  %547 = vmatprep.subr.mxu0 0.0
  %548 = vmatpush1.msra.mxu0 %v540
  %549 = vmatprep.subr.mxu0 0.0
  %550 = vmatpush1.msra.mxu0 %v541
  %551 = vmatprep.subr.mxu0 0.0
  %552 = vmatpush1.msra.mxu0 %v542
  %553 = vmatprep.subr.mxu0 0.0
  %554 = vmatpush1.msra.mxu0 0.0
  %555 = vmatprep.subr.mxu0 0.0
  %556 = vmatpush1.msra.mxu0 0.0
  %557 = vmatprep.subr.mxu0 0.0
  %558 = vmatpush1.msra.mxu0 0.0
  %559 = vmatprep.subr.mxu0 0.0
  %560 = vmatpush1.msra.mxu0 0.0
  %561 = vmatprep.subr.mxu0 0.0
  %562 = vmatpush1.msra.mxu0 0.0
  %563 = vmatprep.subr.mxu0 0.0
  %564 = vmatpush1.msra.mxu0 0.0
  %565 = vmatprep.subr.mxu0 0.0
  %566 = vmatpush1.msra.mxu0 0.0
  %567 = vmatprep.subr.mxu0 0.0
  %568 = vmatpush1.msra.mxu0 0.0
  %569 = vmatprep.subr.mxu0 0.0
  %570 = vmatpush1.msra.mxu0 0.0
  %571 = vmatprep.subr.mxu0 0.0
  %572 = vmatpush1.msra.mxu0 0.0
  %573 = vmatprep.subr.mxu0 0.0
  %574 = vmatpush1.msra.mxu0 0.0
  %575 = vmatprep.subr.mxu0 0.0
  %576 = vmatpush1.msra.mxu0 0.0
  %577 = vmatprep.subr.mxu0 0.0
  %578 = vmatpush1.msra.mxu0 0.0
  %579 = vmatprep.subr.mxu0 0.0
  %580 = vmatpush1.msra.mxu0 0.0
  %581 = vmatprep.subr.mxu0 0.0
  %582 = vmatpush1.msra.mxu0 0.0
  %583 = vmatprep.subr.mxu0 0.0
  %584 = vmatpush1.msra.mxu0 0.0
  %585 = vmatprep.subr.mxu0 0.0
  %586 = vmatpush1.msra.mxu0 0.0
  %587 = vmatprep.subr.mxu0 0.0
  %588 = vmatpush1.msra.mxu0 0.0
  %589 = vmatprep.subr.mxu0 0.0
  %590 = vmatpush1.msra.mxu0 0.0
  %591 = vmatprep.subr.mxu0 0.0
  %592 = vmatpush1.msra.mxu0 0.0
  %593 = vmatprep.subr.mxu0 0.0
  %594 = vmatpush1.msra.mxu0 0.0
  %595 = vmatprep.subr.mxu0 0.0
  %596 = vmatpush1.msra.mxu0 0.0
  %597 = vmatprep.subr.mxu0 0.0
  %598 = vmatpush1.msra.mxu0 0.0
  %599 = vmatprep.subr.mxu0 0.0
  %600 = vmatpush1.msra.mxu0 0.0
  %601 = vmatprep.subr.mxu0 0.0
  %602 = vmatpush1.msra.mxu0 0.0
  %603 = vmatprep.subr.mxu0 0.0
  %604 = vmatpush1.msra.mxu0 0.0
  %605 = vmatprep.subr.mxu0 0.0
  %606 = vmatpush1.msra.mxu0 0.0
  %607 = vmatprep.subr.mxu0 0.0
  %608 = vmatpush1.msra.mxu0 0.0
  %609 = vmatprep.subr.mxu0 0.0
  %610 = vmatpush1.msra.mxu0 0.0
  %611 = vmatprep.mubr.f32.mxu0 0.0
  %612 = vmatmul.mubr.f32.gmra.mrb[0].mxu0 %v545
  %v613 = vpop.f32.mrb[0].mxu0
  %v614 = vadd.f32 0.0, %v613
  %v615 = vpop.f32.mrb[0].mxu0
  %616 = vdwg.mxu0
  %v617 = vpack.c.bf16 %v93, %v93
  %v618 = vpack.c.bf16 %v614, %v614
  %v621 = vunpack.c.l.b16 %v80
  %v622 = vunpack.c.l.b16 %v81
  %v623 = vpack.c.b16 %v622, %v621
  %vm625 = vcmask 130048
  %v627 = vsel %vm625, %v618, 0
  %629 = vmatprep.subr.bf16.mxu0 0
  %630 = vmatpush1.bf16.msra.mxu0 %v623
  %631 = vmatprep.subr.bf16.mxu0 0
  %632 = vmatpush1.bf16.msra.mxu0 0
  %633 = vmatprep.subr.bf16.mxu0 0
  %634 = vmatpush1.bf16.msra.mxu0 0
  %635 = vmatprep.subr.bf16.mxu0 0
  %636 = vmatpush1.bf16.msra.mxu0 0
  %637 = vmatprep.subr.bf16.mxu0 0
  %638 = vmatpush1.bf16.msra.mxu0 0
  %639 = vmatprep.subr.bf16.mxu0 0
  %640 = vmatpush1.bf16.msra.mxu0 0
  %641 = vmatprep.subr.bf16.mxu0 0
  %642 = vmatpush1.bf16.msra.mxu0 0
  %643 = vmatprep.subr.bf16.mxu0 0
  %644 = vmatpush1.bf16.msra.mxu0 0
  %645 = vmatprep.subr.bf16.mxu0 0
  %646 = vmatpush1.bf16.msra.mxu0 0
  %647 = vmatprep.subr.bf16.mxu0 0
  %648 = vmatpush1.bf16.msra.mxu0 0
  %649 = vmatprep.subr.bf16.mxu0 0
  %650 = vmatpush1.bf16.msra.mxu0 0
  %651 = vmatprep.subr.bf16.mxu0 0
  %652 = vmatpush1.bf16.msra.mxu0 0
  %653 = vmatprep.subr.bf16.mxu0 0
  %654 = vmatpush1.bf16.msra.mxu0 0
  %655 = vmatprep.subr.bf16.mxu0 0
  %656 = vmatpush1.bf16.msra.mxu0 0
  %657 = vmatprep.subr.bf16.mxu0 0
  %658 = vmatpush1.bf16.msra.mxu0 0
  %659 = vmatprep.subr.bf16.mxu0 0
  %660 = vmatpush1.bf16.msra.mxu0 0
  %661 = vmatprep.mubr.bf16.mxu0 0
  %662 = vmatmul.mubr.bf16.gmra.mrb[0].mxu0 %v627
  %v663 = vpop.f32.mrb[0].mxu0
  %v664 = vadd.f32 0.0, %v663
  %v665 = vpop.f32.mrb[0].mxu0
  %v666 = vpop.f32.mrb[0].mxu0
  %v667 = vpop.f32.mrb[0].mxu0
  %668 = vdwg.mxu0
  %v670 = vsel %vm277, %v617, 0
  %v673 = vsel %vm284, %v79, 0
  %675 = vmatprep.subr.bf16.mxu0 0
  %676 = vmatpush1.bf16.msra.mxu0 %v673
  %677 = vmatprep.subr.bf16.mxu0 0
  %678 = vmatpush1.bf16.msra.mxu0 0
  %679 = vmatprep.subr.bf16.mxu0 0
  %680 = vmatpush1.bf16.msra.mxu0 0
  %681 = vmatprep.subr.bf16.mxu0 0
  %682 = vmatpush1.bf16.msra.mxu0 0
  %683 = vmatprep.subr.bf16.mxu0 0
  %684 = vmatpush1.bf16.msra.mxu0 0
  %685 = vmatprep.subr.bf16.mxu0 0
  %686 = vmatpush1.bf16.msra.mxu0 0
  %687 = vmatprep.subr.bf16.mxu0 0
  %688 = vmatpush1.bf16.msra.mxu0 0
  %689 = vmatprep.subr.bf16.mxu0 0
  %690 = vmatpush1.bf16.msra.mxu0 0
  %691 = vmatprep.subr.bf16.mxu0 0
  %692 = vmatpush1.bf16.msra.mxu0 0
  %693 = vmatprep.subr.bf16.mxu0 0
  %694 = vmatpush1.bf16.msra.mxu0 0
  %695 = vmatprep.subr.bf16.mxu0 0
  %696 = vmatpush1.bf16.msra.mxu0 0
  %697 = vmatprep.subr.bf16.mxu0 0
  %698 = vmatpush1.bf16.msra.mxu0 0
  %699 = vmatprep.subr.bf16.mxu0 0
  %700 = vmatpush1.bf16.msra.mxu0 0
  %701 = vmatprep.subr.bf16.mxu0 0
  %702 = vmatpush1.bf16.msra.mxu0 0
  %703 = vmatprep.subr.bf16.mxu0 0
  %704 = vmatpush1.bf16.msra.mxu0 0
  %705 = vmatprep.subr.bf16.mxu0 0
  %706 = vmatpush1.bf16.msra.mxu0 0
  %707 = vmatprep.mubr.bf16.mxu0 0
  %708 = vmatmul.mubr.bf16.gmra.mrb[0].mxu0 %v670
  %v709 = vpop.f32.mrb[0].mxu0
  %v710 = vadd.f32 %v664, %v709
  %v711 = vpop.f32.mrb[0].mxu0
  %v712 = vpop.f32.mrb[0].mxu0
  %v713 = vpop.f32.mrb[0].mxu0
  %714 = vdwg.mxu0
  %v716 = vlaneseq
  %v717 = vshrl.u32 %v716, 7
  %v718 = vsub.s32 0, %v717
  %v719 = vrot.slane %v82, %v718
  %v721 = vadd.f32 %v710, %v719
  %v722 = vmax.f32 %v721, 0.0
  %v723 = vpack.c.bf16 %v722, %v722
  %v725 = vlaneseq
  %v726 = vshrl.u32 %v725, 7
  %v727 = vsub.s32 0, %v726
  %v728 = vrot.slane %v87, %v727
  %v734 = vunpack.c.l.b16 %v83
  %v735 = vunpack.c.l.b16 %v84
  %v736 = vunpack.c.l.b16 %v85
  %v737 = vunpack.c.l.b16 %v86
  %v738 = vpack.c.b16 %v735, %v734
  %v739 = vpack.c.b16 %v737, %v736
  %vm742 = vcmask 261120
  %v744 = vsel %vm742, %v723, 0
  %746 = vmatprep.subr.bf16.mxu0 0
  %747 = vmatpush1.bf16.msra.mxu0 %v738
  %748 = vmatprep.subr.bf16.mxu0 0
  %749 = vmatpush1.bf16.msra.mxu0 %v739
  %750 = vmatprep.subr.bf16.mxu0 0
  %751 = vmatpush1.bf16.msra.mxu0 0
  %752 = vmatprep.subr.bf16.mxu0 0
  %753 = vmatpush1.bf16.msra.mxu0 0
  %754 = vmatprep.subr.bf16.mxu0 0
  %755 = vmatpush1.bf16.msra.mxu0 0
  %756 = vmatprep.subr.bf16.mxu0 0
  %757 = vmatpush1.bf16.msra.mxu0 0
  %758 = vmatprep.subr.bf16.mxu0 0
  %759 = vmatpush1.bf16.msra.mxu0 0
  %760 = vmatprep.subr.bf16.mxu0 0
  %761 = vmatpush1.bf16.msra.mxu0 0
  %762 = vmatprep.subr.bf16.mxu0 0
  %763 = vmatpush1.bf16.msra.mxu0 0
  %764 = vmatprep.subr.bf16.mxu0 0
  %765 = vmatpush1.bf16.msra.mxu0 0
  %766 = vmatprep.subr.bf16.mxu0 0
  %767 = vmatpush1.bf16.msra.mxu0 0
  %768 = vmatprep.subr.bf16.mxu0 0
  %769 = vmatpush1.bf16.msra.mxu0 0
  %770 = vmatprep.subr.bf16.mxu0 0
  %771 = vmatpush1.bf16.msra.mxu0 0
  %772 = vmatprep.subr.bf16.mxu0 0
  %773 = vmatpush1.bf16.msra.mxu0 0
  %774 = vmatprep.subr.bf16.mxu0 0
  %775 = vmatpush1.bf16.msra.mxu0 0
  %776 = vmatprep.subr.bf16.mxu0 0
  %777 = vmatpush1.bf16.msra.mxu0 0
  %778 = vmatprep.mubr.bf16.mxu0 0
  %779 = vmatmul.mubr.bf16.gmra.mrb[0].mxu0 %v744
  %v780 = vpop.f32.mrb[0].mxu0
  %v781 = vadd.f32 %v728, %v780
  %v782 = vpop.f32.mrb[0].mxu0
  %v783 = vpop.f32.mrb[0].mxu0
  %v784 = vpop.f32.mrb[0].mxu0
  %785 = vdwg.mxu0
  %v786 = vmax.f32 %v781, 0.0
  %v787 = vpack.c.bf16 %v786, %v786
  %v789 = vlaneseq
  %v790 = vshrl.u32 %v789, 7
  %v791 = vsub.s32 0, %v790
  %v792 = vrot.slane %v92, %v791
  %v798 = vunpack.c.l.b16 %v88
  %v799 = vunpack.c.l.b16 %v89
  %v800 = vunpack.c.l.b16 %v90
  %v801 = vunpack.c.l.b16 %v91
  %v802 = vpack.c.b16 %v799, %v798
  %v803 = vpack.c.b16 %v801, %v800
  %v807 = vsel %vm742, %v787, 0
  %809 = vmatprep.subr.bf16.mxu0 0
  %810 = vmatpush1.bf16.msra.mxu0 %v802
  %811 = vmatprep.subr.bf16.mxu0 0
  %812 = vmatpush1.bf16.msra.mxu0 %v803
  %813 = vmatprep.subr.bf16.mxu0 0
  %814 = vmatpush1.bf16.msra.mxu0 0
  %815 = vmatprep.subr.bf16.mxu0 0
  %816 = vmatpush1.bf16.msra.mxu0 0
  %817 = vmatprep.subr.bf16.mxu0 0
  %818 = vmatpush1.bf16.msra.mxu0 0
  %819 = vmatprep.subr.bf16.mxu0 0
  %820 = vmatpush1.bf16.msra.mxu0 0
  %821 = vmatprep.subr.bf16.mxu0 0
  %822 = vmatpush1.bf16.msra.mxu0 0
  %823 = vmatprep.subr.bf16.mxu0 0
  %824 = vmatpush1.bf16.msra.mxu0 0
  %825 = vmatprep.subr.bf16.mxu0 0
  %826 = vmatpush1.bf16.msra.mxu0 0
  %827 = vmatprep.subr.bf16.mxu0 0
  %828 = vmatpush1.bf16.msra.mxu0 0
  %829 = vmatprep.subr.bf16.mxu0 0
  %830 = vmatpush1.bf16.msra.mxu0 0
  %831 = vmatprep.subr.bf16.mxu0 0
  %832 = vmatpush1.bf16.msra.mxu0 0
  %833 = vmatprep.subr.bf16.mxu0 0
  %834 = vmatpush1.bf16.msra.mxu0 0
  %835 = vmatprep.subr.bf16.mxu0 0
  %836 = vmatpush1.bf16.msra.mxu0 0
  %837 = vmatprep.subr.bf16.mxu0 0
  %838 = vmatpush1.bf16.msra.mxu0 0
  %839 = vmatprep.subr.bf16.mxu0 0
  %840 = vmatpush1.bf16.msra.mxu0 0
  %841 = vmatprep.mubr.bf16.mxu0 0
  %842 = vmatmul.mubr.bf16.gmra.mrb[0].mxu0 %v807
  %v843 = vpop.f32.mrb[0].mxu0
  %v844 = vadd.f32 %v792, %v843
  %v845 = vpop.f32.mrb[0].mxu0
  %v846 = vpop.f32.mrb[0].mxu0
  %v847 = vpop.f32.mrb[0].mxu0
  %848 = vdwg.mxu0
  %v849 = vadd.f32 %v93, %v844
  %850 = vst.msk [vmem:[%s17] sm:$0xff] %vm277, %v849
  %851 = vmatprep.subr.mxu0 0.0
  %852 = vmatpush1.msra.mxu0 %v849
  %853 = vmatprep.subr.mxu0 0.0
  %854 = vmatpush1.msra.mxu0 0.0
  %855 = vmatprep.subr.mxu0 0.0
  %856 = vmatpush1.msra.mxu0 0.0
  %857 = vmatprep.subr.mxu0 0.0
  %858 = vmatpush1.msra.mxu0 0.0
  %859 = vmatprep.subr.mxu0 0.0
  %860 = vmatpush1.msra.mxu0 0.0
  %861 = vmatprep.subr.mxu0 0.0
  %862 = vmatpush1.msra.mxu0 0.0
  %863 = vmatprep.subr.mxu0 0.0
  %864 = vmatpush1.msra.mxu0 0.0
  %865 = vmatprep.subr.mxu0 0.0
  %866 = vmatpush1.msra.mxu0 0.0
  %867 = vmatprep.subr.mxu0 0.0
  %868 = vmatpush1.msra.mxu0 0.0
  %869 = vmatprep.subr.mxu0 0.0
  %870 = vmatpush1.msra.mxu0 0.0
  %871 = vmatprep.subr.mxu0 0.0
  %872 = vmatpush1.msra.mxu0 0.0
  %873 = vmatprep.subr.mxu0 0.0
  %874 = vmatpush1.msra.mxu0 0.0
  %875 = vmatprep.subr.mxu0 0.0
  %876 = vmatpush1.msra.mxu0 0.0
  %877 = vmatprep.subr.mxu0 0.0
  %878 = vmatpush1.msra.mxu0 0.0
  %879 = vmatprep.subr.mxu0 0.0
  %880 = vmatpush1.msra.mxu0 0.0
  %881 = vmatprep.subr.mxu0 0.0
  %882 = vmatpush1.msra.mxu0 0.0
  %883 = vmatprep.subr.mxu0 0.0
  %884 = vmatpush1.msra.mxu0 0.0
  %885 = vmatprep.subr.mxu0 0.0
  %886 = vmatpush1.msra.mxu0 0.0
  %887 = vmatprep.subr.mxu0 0.0
  %888 = vmatpush1.msra.mxu0 0.0
  %889 = vmatprep.subr.mxu0 0.0
  %890 = vmatpush1.msra.mxu0 0.0
  %891 = vmatprep.subr.mxu0 0.0
  %892 = vmatpush1.msra.mxu0 0.0
  %893 = vmatprep.subr.mxu0 0.0
  %894 = vmatpush1.msra.mxu0 0.0
  %895 = vmatprep.subr.mxu0 0.0
  %896 = vmatpush1.msra.mxu0 0.0
  %897 = vmatprep.subr.mxu0 0.0
  %898 = vmatpush1.msra.mxu0 0.0
  %899 = vmatprep.subr.mxu0 0.0
  %900 = vmatpush1.msra.mxu0 0.0
  %901 = vmatprep.subr.mxu0 0.0
  %902 = vmatpush1.msra.mxu0 0.0
  %903 = vmatprep.subr.mxu0 0.0
  %904 = vmatpush1.msra.mxu0 0.0
  %905 = vmatprep.subr.mxu0 0.0
  %906 = vmatpush1.msra.mxu0 0.0
  %907 = vmatprep.subr.mxu0 0.0
  %908 = vmatpush1.msra.mxu0 0.0
  %909 = vmatprep.subr.mxu0 0.0
  %910 = vmatpush1.msra.mxu0 0.0
  %911 = vmatprep.subr.mxu0 0.0
  %912 = vmatpush1.msra.mxu0 0.0
  %913 = vmatprep.subr.mxu0 0.0
  %914 = vmatpush1.msra.mxu0 0.0
  %915 = vmatprep.mubr.f32.mxu0 0.0
  %916 = vmatmul.mubr.f32.gmra.mrb[0].mxu0 %v96
  %v917 = vpop.f32.mrb[0].mxu0
  %v918 = vadd.f32 0.0, %v917
  %v919 = vpop.f32.mrb[0].mxu0
  %920 = vmatprep.mubr.f32.mxu0 0.0
  %921 = vmatmul.mubr.f32.gmra.mrb[0].mxu0 %v99
  %v922 = vpop.f32.mrb[0].mxu0
  %v923 = vadd.f32 0.0, %v922
  %v924 = vpop.f32.mrb[0].mxu0
  %925 = vmatprep.mubr.f32.mxu0 0.0
  %926 = vmatmul.mubr.f32.gmra.mrb[0].mxu0 %v102
  %v927 = vpop.f32.mrb[0].mxu0
  %v928 = vadd.f32 0.0, %v927
  %v929 = vpop.f32.mrb[0].mxu0
  %930 = vdwg.mxu0
  %931 = vmatprep.subr.mxu0 0.0
  %932 = vmatpush1.msra.mxu0 %v849
  %933 = vmatprep.subr.mxu0 0.0
  %934 = vmatpush1.msra.mxu0 0.0
  %935 = vmatprep.subr.mxu0 0.0
  %936 = vmatpush1.msra.mxu0 0.0
  %937 = vmatprep.subr.mxu0 0.0
  %938 = vmatpush1.msra.mxu0 0.0
  %939 = vmatprep.subr.mxu0 0.0
  %940 = vmatpush1.msra.mxu0 0.0
  %941 = vmatprep.subr.mxu0 0.0
  %942 = vmatpush1.msra.mxu0 0.0
  %943 = vmatprep.subr.mxu0 0.0
  %944 = vmatpush1.msra.mxu0 0.0
  %945 = vmatprep.subr.mxu0 0.0
  %946 = vmatpush1.msra.mxu0 0.0
  %947 = vmatprep.subr.mxu0 0.0
  %948 = vmatpush1.msra.mxu0 0.0
  %949 = vmatprep.subr.mxu0 0.0
  %950 = vmatpush1.msra.mxu0 0.0
  %951 = vmatprep.subr.mxu0 0.0
  %952 = vmatpush1.msra.mxu0 0.0
  %953 = vmatprep.subr.mxu0 0.0
  %954 = vmatpush1.msra.mxu0 0.0
  %955 = vmatprep.subr.mxu0 0.0
  %956 = vmatpush1.msra.mxu0 0.0
  %957 = vmatprep.subr.mxu0 0.0
  %958 = vmatpush1.msra.mxu0 0.0
  %959 = vmatprep.subr.mxu0 0.0
  %960 = vmatpush1.msra.mxu0 0.0
  %961 = vmatprep.subr.mxu0 0.0
  %962 = vmatpush1.msra.mxu0 0.0
  %963 = vmatprep.subr.mxu0 0.0
  %964 = vmatpush1.msra.mxu0 0.0
  %965 = vmatprep.subr.mxu0 0.0
  %966 = vmatpush1.msra.mxu0 0.0
  %967 = vmatprep.subr.mxu0 0.0
  %968 = vmatpush1.msra.mxu0 0.0
  %969 = vmatprep.subr.mxu0 0.0
  %970 = vmatpush1.msra.mxu0 0.0
  %971 = vmatprep.subr.mxu0 0.0
  %972 = vmatpush1.msra.mxu0 0.0
  %973 = vmatprep.subr.mxu0 0.0
  %974 = vmatpush1.msra.mxu0 0.0
  %975 = vmatprep.subr.mxu0 0.0
  %976 = vmatpush1.msra.mxu0 0.0
  %977 = vmatprep.subr.mxu0 0.0
  %978 = vmatpush1.msra.mxu0 0.0
  %979 = vmatprep.subr.mxu0 0.0
  %980 = vmatpush1.msra.mxu0 0.0
  %981 = vmatprep.subr.mxu0 0.0
  %982 = vmatpush1.msra.mxu0 0.0
  %983 = vmatprep.subr.mxu0 0.0
  %984 = vmatpush1.msra.mxu0 0.0
  %985 = vmatprep.subr.mxu0 0.0
  %986 = vmatpush1.msra.mxu0 0.0
  %987 = vmatprep.subr.mxu0 0.0
  %988 = vmatpush1.msra.mxu0 0.0
  %989 = vmatprep.subr.mxu0 0.0
  %990 = vmatpush1.msra.mxu0 0.0
  %991 = vmatprep.subr.mxu0 0.0
  %992 = vmatpush1.msra.mxu0 0.0
  %993 = vmatprep.subr.mxu0 0.0
  %994 = vmatpush1.msra.mxu0 0.0
  %995 = vmatprep.mubr.f32.mxu0 0.0
  %996 = vmatmul.mubr.f32.gmra.mrb[0].mxu0 %v185
  %v997 = vpop.f32.mrb[0].mxu0
  %v998 = vadd.f32 0.0, %v997
  %v999 = vpop.f32.mrb[0].mxu0
  %1000 = vmatprep.mubr.f32.mxu0 0.0
  %1001 = vmatmul.mubr.f32.gmra.mrb[0].mxu0 %v188
  %v1002 = vpop.f32.mrb[0].mxu0
  %v1003 = vadd.f32 0.0, %v1002
  %v1004 = vpop.f32.mrb[0].mxu0
  %1005 = vmatprep.mubr.f32.mxu0 0.0
  %1006 = vmatmul.mubr.f32.gmra.mrb[0].mxu0 %v191
  %v1007 = vpop.f32.mrb[0].mxu0
  %v1008 = vadd.f32 0.0, %v1007
  %v1009 = vpop.f32.mrb[0].mxu0
  %1010 = vdwg.mxu0
  %v1011 = vpack.c.bf16 %v923, %v918
  %v1012 = vpack.c.bf16 %v928, %v928
  %v1013 = vpack.c.bf16 %v1003, %v998
  %v1014 = vpack.c.bf16 %v1008, %v1008
  %v1016 = vsel %vm277, %v1013, 0
  %v1019 = vsel %vm277, %v1014, 0
  %1021 = vmatprep.subr.bf16.mxu0 0
  %1022 = vmatpush1.bf16.msra.mxu0 %v286
  %1023 = vmatprep.subr.bf16.mxu0 0
  %1024 = vmatpush1.bf16.msra.mxu0 0
  %1025 = vmatprep.subr.bf16.mxu0 0
  %1026 = vmatpush1.bf16.msra.mxu0 0
  %1027 = vmatprep.subr.bf16.mxu0 0
  %1028 = vmatpush1.bf16.msra.mxu0 0
  %1029 = vmatprep.subr.bf16.mxu0 0
  %1030 = vmatpush1.bf16.msra.mxu0 0
  %1031 = vmatprep.subr.bf16.mxu0 0
  %1032 = vmatpush1.bf16.msra.mxu0 0
  %1033 = vmatprep.subr.bf16.mxu0 0
  %1034 = vmatpush1.bf16.msra.mxu0 0
  %1035 = vmatprep.subr.bf16.mxu0 0
  %1036 = vmatpush1.bf16.msra.mxu0 0
  %1037 = vmatprep.subr.bf16.mxu0 0
  %1038 = vmatpush1.bf16.msra.mxu0 0
  %1039 = vmatprep.subr.bf16.mxu0 0
  %1040 = vmatpush1.bf16.msra.mxu0 0
  %1041 = vmatprep.subr.bf16.mxu0 0
  %1042 = vmatpush1.bf16.msra.mxu0 0
  %1043 = vmatprep.subr.bf16.mxu0 0
  %1044 = vmatpush1.bf16.msra.mxu0 0
  %1045 = vmatprep.subr.bf16.mxu0 0
  %1046 = vmatpush1.bf16.msra.mxu0 0
  %1047 = vmatprep.subr.bf16.mxu0 0
  %1048 = vmatpush1.bf16.msra.mxu0 0
  %1049 = vmatprep.subr.bf16.mxu0 0
  %1050 = vmatpush1.bf16.msra.mxu0 0
  %1051 = vmatprep.subr.bf16.mxu0 0
  %1052 = vmatpush1.bf16.msra.mxu0 0
  %1053 = vmatprep.mubr.bf16.mxu0 0
  %1054 = vmatmul.mubr.bf16.gmra.mrb[0].mxu0 %v1016
  %v1055 = vpop.f32.mrb[0].mxu0
  %v1056 = vadd.f32 0.0, %v1055
  %v1057 = vpop.f32.mrb[0].mxu0
  %v1058 = vpop.f32.mrb[0].mxu0
  %v1059 = vadd.f32 0.0, %v1058
  %v1060 = vpop.f32.mrb[0].mxu0
  %1061 = vmatprep.mubr.bf16.mxu0 0
  %1062 = vmatmul.mubr.bf16.gmra.mrb[0].mxu0 %v1019
  %v1063 = vpop.f32.mrb[0].mxu0
  %v1064 = vadd.f32 0.0, %v1063
  %v1065 = vpop.f32.mrb[0].mxu0
  %v1066 = vpop.f32.mrb[0].mxu0
  %v1067 = vpop.f32.mrb[0].mxu0
  %1068 = vdwg.mxu0
  %v1070 = vsel %vm277, %v1011, 0
  %v1073 = vsel %vm277, %v1012, 0
  %1075 = vmatprep.subr.bf16.mxu0 0
  %1076 = vmatpush1.bf16.msra.mxu0 %v343
  %1077 = vmatprep.subr.bf16.mxu0 0
  %1078 = vmatpush1.bf16.msra.mxu0 0
  %1079 = vmatprep.subr.bf16.mxu0 0
  %1080 = vmatpush1.bf16.msra.mxu0 0
  %1081 = vmatprep.subr.bf16.mxu0 0
  %1082 = vmatpush1.bf16.msra.mxu0 0
  %1083 = vmatprep.subr.bf16.mxu0 0
  %1084 = vmatpush1.bf16.msra.mxu0 0
  %1085 = vmatprep.subr.bf16.mxu0 0
  %1086 = vmatpush1.bf16.msra.mxu0 0
  %1087 = vmatprep.subr.bf16.mxu0 0
  %1088 = vmatpush1.bf16.msra.mxu0 0
  %1089 = vmatprep.subr.bf16.mxu0 0
  %1090 = vmatpush1.bf16.msra.mxu0 0
  %1091 = vmatprep.subr.bf16.mxu0 0
  %1092 = vmatpush1.bf16.msra.mxu0 0
  %1093 = vmatprep.subr.bf16.mxu0 0
  %1094 = vmatpush1.bf16.msra.mxu0 0
  %1095 = vmatprep.subr.bf16.mxu0 0
  %1096 = vmatpush1.bf16.msra.mxu0 0
  %1097 = vmatprep.subr.bf16.mxu0 0
  %1098 = vmatpush1.bf16.msra.mxu0 0
  %1099 = vmatprep.subr.bf16.mxu0 0
  %1100 = vmatpush1.bf16.msra.mxu0 0
  %1101 = vmatprep.subr.bf16.mxu0 0
  %1102 = vmatpush1.bf16.msra.mxu0 0
  %1103 = vmatprep.subr.bf16.mxu0 0
  %1104 = vmatpush1.bf16.msra.mxu0 0
  %1105 = vmatprep.subr.bf16.mxu0 0
  %1106 = vmatpush1.bf16.msra.mxu0 0
  %1107 = vmatprep.mubr.bf16.mxu0 0
  %1108 = vmatmul.mubr.bf16.gmra.mrb[0].mxu0 %v1070
  %v1109 = vpop.f32.mrb[0].mxu0
  %v1110 = vadd.f32 %v1056, %v1109
  %v1111 = vpop.f32.mrb[0].mxu0
  %v1112 = vpop.f32.mrb[0].mxu0
  %v1113 = vadd.f32 %v1059, %v1112
  %v1114 = vpop.f32.mrb[0].mxu0
  %1115 = vmatprep.mubr.bf16.mxu0 0
  %1116 = vmatmul.mubr.bf16.gmra.mrb[0].mxu0 %v1073
  %v1117 = vpop.f32.mrb[0].mxu0
  %v1118 = vadd.f32 %v1064, %v1117
  %v1119 = vpop.f32.mrb[0].mxu0
  %v1120 = vpop.f32.mrb[0].mxu0
  %v1121 = vpop.f32.mrb[0].mxu0
  %1122 = vdwg.mxu0
  %v1123 = vadd.f32 %v1110, %v397
  %v1124 = vadd.f32 %v1113, %v397
  %v1125 = vadd.f32 %v1118, %v397
  %v1126 = vmax.f32 %v1123, 0.0
  %v1127 = vmax.f32 %v1124, 0.0
  %v1128 = vmax.f32 %v1125, 0.0
  %v1129 = vpack.c.bf16 %v1127, %v1126
  %v1130 = vpack.c.bf16 %v1128, %v1128
  %v1132 = vsel %vm437, %v1129, 0
  %v1135 = vsel %vm437, %v1130, 0
  %1137 = vmatprep.subr.bf16.mxu0 0
  %1138 = vmatpush1.bf16.msra.mxu0 %v429
  %1139 = vmatprep.subr.bf16.mxu0 0
  %1140 = vmatpush1.bf16.msra.mxu0 %v430
  %1141 = vmatprep.subr.bf16.mxu0 0
  %1142 = vmatpush1.bf16.msra.mxu0 %v431
  %1143 = vmatprep.subr.bf16.mxu0 0
  %1144 = vmatpush1.bf16.msra.mxu0 %v432
  %1145 = vmatprep.subr.bf16.mxu0 0
  %1146 = vmatpush1.bf16.msra.mxu0 0
  %1147 = vmatprep.subr.bf16.mxu0 0
  %1148 = vmatpush1.bf16.msra.mxu0 0
  %1149 = vmatprep.subr.bf16.mxu0 0
  %1150 = vmatpush1.bf16.msra.mxu0 0
  %1151 = vmatprep.subr.bf16.mxu0 0
  %1152 = vmatpush1.bf16.msra.mxu0 0
  %1153 = vmatprep.subr.bf16.mxu0 0
  %1154 = vmatpush1.bf16.msra.mxu0 0
  %1155 = vmatprep.subr.bf16.mxu0 0
  %1156 = vmatpush1.bf16.msra.mxu0 0
  %1157 = vmatprep.subr.bf16.mxu0 0
  %1158 = vmatpush1.bf16.msra.mxu0 0
  %1159 = vmatprep.subr.bf16.mxu0 0
  %1160 = vmatpush1.bf16.msra.mxu0 0
  %1161 = vmatprep.subr.bf16.mxu0 0
  %1162 = vmatpush1.bf16.msra.mxu0 0
  %1163 = vmatprep.subr.bf16.mxu0 0
  %1164 = vmatpush1.bf16.msra.mxu0 0
  %1165 = vmatprep.subr.bf16.mxu0 0
  %1166 = vmatpush1.bf16.msra.mxu0 0
  %1167 = vmatprep.subr.bf16.mxu0 0
  %1168 = vmatpush1.bf16.msra.mxu0 0
  %1169 = vmatprep.mubr.bf16.mxu0 0
  %1170 = vmatmul.mubr.bf16.gmra.mrb[0].mxu0 %v1132
  %v1171 = vpop.f32.mrb[0].mxu0
  %v1172 = vadd.f32 %v411, %v1171
  %v1173 = vpop.f32.mrb[0].mxu0
  %v1174 = vpop.f32.mrb[0].mxu0
  %v1175 = vadd.f32 %v411, %v1174
  %v1176 = vpop.f32.mrb[0].mxu0
  %1177 = vmatprep.mubr.bf16.mxu0 0
  %1178 = vmatmul.mubr.bf16.gmra.mrb[0].mxu0 %v1135
  %v1179 = vpop.f32.mrb[0].mxu0
  %v1180 = vadd.f32 %v411, %v1179
  %v1181 = vpop.f32.mrb[0].mxu0
  %v1182 = vpop.f32.mrb[0].mxu0
  %v1183 = vpop.f32.mrb[0].mxu0
  %1184 = vdwg.mxu0
  %v1185 = vmax.f32 %v1172, 0.0
  %v1186 = vmax.f32 %v1175, 0.0
  %v1187 = vmax.f32 %v1180, 0.0
  %v1188 = vmul.f32 %v1185, %v498
  %v1189 = vmul.f32 %v1186, %v503
  %v1190 = vmul.f32 %v1187, %v508
  %v1191 = vmul.f32 %v1185, %v515
  %v1192 = vmul.f32 %v1186, %v519
  %v1193 = vmul.f32 %v1187, %v523
  %1197 = vrot.lane.b32.xlu0 %v1191, 112
  %v1198 = vpop.permute.xlu0 %1197
  %1199 = vrot.lane.b32.xlu0 %v1192, 112
  %v1200 = vpop.permute.xlu0 %1199
  %1201 = vrot.lane.b32.xlu0 %v1193, 112
  %v1202 = vpop.permute.xlu0 %1201
  %v1206 = vadd.f32 %v1188, %v1198
  %v1207 = vadd.f32 %v1189, %v1200
  %v1208 = vadd.f32 %v1190, %v1202
  %1209 = vmatprep.subr.mxu0 0.0
  %1210 = vmatpush1.msra.mxu0 %v1206
  %1211 = vmatprep.subr.mxu0 0.0
  %1212 = vmatpush1.msra.mxu0 %v1207
  %1213 = vmatprep.subr.mxu0 0.0
  %1214 = vmatpush1.msra.mxu0 %v1208
  %1215 = vmatprep.subr.mxu0 0.0
  %1216 = vmatpush1.msra.mxu0 0.0
  %1217 = vmatprep.subr.mxu0 0.0
  %1218 = vmatpush1.msra.mxu0 0.0
  %1219 = vmatprep.subr.mxu0 0.0
  %1220 = vmatpush1.msra.mxu0 0.0
  %1221 = vmatprep.subr.mxu0 0.0
  %1222 = vmatpush1.msra.mxu0 0.0
  %1223 = vmatprep.subr.mxu0 0.0
  %1224 = vmatpush1.msra.mxu0 0.0
  %1225 = vmatprep.subr.mxu0 0.0
  %1226 = vmatpush1.msra.mxu0 0.0
  %1227 = vmatprep.subr.mxu0 0.0
  %1228 = vmatpush1.msra.mxu0 0.0
  %1229 = vmatprep.subr.mxu0 0.0
  %1230 = vmatpush1.msra.mxu0 0.0
  %1231 = vmatprep.subr.mxu0 0.0
  %1232 = vmatpush1.msra.mxu0 0.0
  %1233 = vmatprep.subr.mxu0 0.0
  %1234 = vmatpush1.msra.mxu0 0.0
  %1235 = vmatprep.subr.mxu0 0.0
  %1236 = vmatpush1.msra.mxu0 0.0
  %1237 = vmatprep.subr.mxu0 0.0
  %1238 = vmatpush1.msra.mxu0 0.0
  %1239 = vmatprep.subr.mxu0 0.0
  %1240 = vmatpush1.msra.mxu0 0.0
  %1241 = vmatprep.subr.mxu0 0.0
  %1242 = vmatpush1.msra.mxu0 0.0
  %1243 = vmatprep.subr.mxu0 0.0
  %1244 = vmatpush1.msra.mxu0 0.0
  %1245 = vmatprep.subr.mxu0 0.0
  %1246 = vmatpush1.msra.mxu0 0.0
  %1247 = vmatprep.subr.mxu0 0.0
  %1248 = vmatpush1.msra.mxu0 0.0
  %1249 = vmatprep.subr.mxu0 0.0
  %1250 = vmatpush1.msra.mxu0 0.0
  %1251 = vmatprep.subr.mxu0 0.0
  %1252 = vmatpush1.msra.mxu0 0.0
  %1253 = vmatprep.subr.mxu0 0.0
  %1254 = vmatpush1.msra.mxu0 0.0
  %1255 = vmatprep.subr.mxu0 0.0
  %1256 = vmatpush1.msra.mxu0 0.0
  %1257 = vmatprep.subr.mxu0 0.0
  %1258 = vmatpush1.msra.mxu0 0.0
  %1259 = vmatprep.subr.mxu0 0.0
  %1260 = vmatpush1.msra.mxu0 0.0
  %1261 = vmatprep.subr.mxu0 0.0
  %1262 = vmatpush1.msra.mxu0 0.0
  %1263 = vmatprep.subr.mxu0 0.0
  %1264 = vmatpush1.msra.mxu0 0.0
  %1265 = vmatprep.subr.mxu0 0.0
  %1266 = vmatpush1.msra.mxu0 0.0
  %1267 = vmatprep.subr.mxu0 0.0
  %1268 = vmatpush1.msra.mxu0 0.0
  %1269 = vmatprep.subr.mxu0 0.0
  %1270 = vmatpush1.msra.mxu0 0.0
  %1271 = vmatprep.subr.mxu0 0.0
  %1272 = vmatpush1.msra.mxu0 0.0
  %1273 = vmatprep.mubr.f32.mxu0 0.0
  %1274 = vmatmul.mubr.f32.gmra.mrb[0].mxu0 %v545
  %v1275 = vpop.f32.mrb[0].mxu0
  %v1276 = vadd.f32 0.0, %v1275
  %v1277 = vpop.f32.mrb[0].mxu0
  %1278 = vdwg.mxu0
  %v1279 = vpack.c.bf16 %v849, %v849
  %v1280 = vpack.c.bf16 %v1276, %v1276
  %v1282 = vsel %vm625, %v1280, 0
  %1284 = vmatprep.subr.bf16.mxu0 0
  %1285 = vmatpush1.bf16.msra.mxu0 %v623
  %1286 = vmatprep.subr.bf16.mxu0 0
  %1287 = vmatpush1.bf16.msra.mxu0 0
  %1288 = vmatprep.subr.bf16.mxu0 0
  %1289 = vmatpush1.bf16.msra.mxu0 0
  %1290 = vmatprep.subr.bf16.mxu0 0
  %1291 = vmatpush1.bf16.msra.mxu0 0
  %1292 = vmatprep.subr.bf16.mxu0 0
  %1293 = vmatpush1.bf16.msra.mxu0 0
  %1294 = vmatprep.subr.bf16.mxu0 0
  %1295 = vmatpush1.bf16.msra.mxu0 0
  %1296 = vmatprep.subr.bf16.mxu0 0
  %1297 = vmatpush1.bf16.msra.mxu0 0
  %1298 = vmatprep.subr.bf16.mxu0 0
  %1299 = vmatpush1.bf16.msra.mxu0 0
  %1300 = vmatprep.subr.bf16.mxu0 0
  %1301 = vmatpush1.bf16.msra.mxu0 0
  %1302 = vmatprep.subr.bf16.mxu0 0
  %1303 = vmatpush1.bf16.msra.mxu0 0
  %1304 = vmatprep.subr.bf16.mxu0 0
  %1305 = vmatpush1.bf16.msra.mxu0 0
  %1306 = vmatprep.subr.bf16.mxu0 0
  %1307 = vmatpush1.bf16.msra.mxu0 0
  %1308 = vmatprep.subr.bf16.mxu0 0
  %1309 = vmatpush1.bf16.msra.mxu0 0
  %1310 = vmatprep.subr.bf16.mxu0 0
  %1311 = vmatpush1.bf16.msra.mxu0 0
  %1312 = vmatprep.subr.bf16.mxu0 0
  %1313 = vmatpush1.bf16.msra.mxu0 0
  %1314 = vmatprep.subr.bf16.mxu0 0
  %1315 = vmatpush1.bf16.msra.mxu0 0
  %1316 = vmatprep.mubr.bf16.mxu0 0
  %1317 = vmatmul.mubr.bf16.gmra.mrb[0].mxu0 %v1282
  %v1318 = vpop.f32.mrb[0].mxu0
  %v1319 = vadd.f32 0.0, %v1318
  %v1320 = vpop.f32.mrb[0].mxu0
  %v1321 = vpop.f32.mrb[0].mxu0
  %v1322 = vpop.f32.mrb[0].mxu0
  %1323 = vdwg.mxu0
  %v1325 = vsel %vm277, %v1279, 0
  %1327 = vmatprep.subr.bf16.mxu0 0
  %1328 = vmatpush1.bf16.msra.mxu0 %v673
  %1329 = vmatprep.subr.bf16.mxu0 0
  %1330 = vmatpush1.bf16.msra.mxu0 0
  %1331 = vmatprep.subr.bf16.mxu0 0
  %1332 = vmatpush1.bf16.msra.mxu0 0
  %1333 = vmatprep.subr.bf16.mxu0 0
  %1334 = vmatpush1.bf16.msra.mxu0 0
  %1335 = vmatprep.subr.bf16.mxu0 0
  %1336 = vmatpush1.bf16.msra.mxu0 0
  %1337 = vmatprep.subr.bf16.mxu0 0
  %1338 = vmatpush1.bf16.msra.mxu0 0
  %1339 = vmatprep.subr.bf16.mxu0 0
  %1340 = vmatpush1.bf16.msra.mxu0 0
  %1341 = vmatprep.subr.bf16.mxu0 0
  %1342 = vmatpush1.bf16.msra.mxu0 0
  %1343 = vmatprep.subr.bf16.mxu0 0
  %1344 = vmatpush1.bf16.msra.mxu0 0
  %1345 = vmatprep.subr.bf16.mxu0 0
  %1346 = vmatpush1.bf16.msra.mxu0 0
  %1347 = vmatprep.subr.bf16.mxu0 0
  %1348 = vmatpush1.bf16.msra.mxu0 0
  %1349 = vmatprep.subr.bf16.mxu0 0
  %1350 = vmatpush1.bf16.msra.mxu0 0
  %1351 = vmatprep.subr.bf16.mxu0 0
  %1352 = vmatpush1.bf16.msra.mxu0 0
  %1353 = vmatprep.subr.bf16.mxu0 0
  %1354 = vmatpush1.bf16.msra.mxu0 0
  %1355 = vmatprep.subr.bf16.mxu0 0
  %1356 = vmatpush1.bf16.msra.mxu0 0
  %1357 = vmatprep.subr.bf16.mxu0 0
  %1358 = vmatpush1.bf16.msra.mxu0 0
  %1359 = vmatprep.mubr.bf16.mxu0 0
  %1360 = vmatmul.mubr.bf16.gmra.mrb[0].mxu0 %v1325
  %v1361 = vpop.f32.mrb[0].mxu0
  %v1362 = vadd.f32 %v1319, %v1361
  %v1363 = vpop.f32.mrb[0].mxu0
  %v1364 = vpop.f32.mrb[0].mxu0
  %v1365 = vpop.f32.mrb[0].mxu0
  %1366 = vdwg.mxu0
  %v1367 = vadd.f32 %v1362, %v719
  %v1368 = vmax.f32 %v1367, 0.0
  %v1369 = vpack.c.bf16 %v1368, %v1368
  %v1371 = vsel %vm742, %v1369, 0
  %1373 = vmatprep.subr.bf16.mxu0 0
  %1374 = vmatpush1.bf16.msra.mxu0 %v738
  %1375 = vmatprep.subr.bf16.mxu0 0
  %1376 = vmatpush1.bf16.msra.mxu0 %v739
  %1377 = vmatprep.subr.bf16.mxu0 0
  %1378 = vmatpush1.bf16.msra.mxu0 0
  %1379 = vmatprep.subr.bf16.mxu0 0
  %1380 = vmatpush1.bf16.msra.mxu0 0
  %1381 = vmatprep.subr.bf16.mxu0 0
  %1382 = vmatpush1.bf16.msra.mxu0 0
  %1383 = vmatprep.subr.bf16.mxu0 0
  %1384 = vmatpush1.bf16.msra.mxu0 0
  %1385 = vmatprep.subr.bf16.mxu0 0
  %1386 = vmatpush1.bf16.msra.mxu0 0
  %1387 = vmatprep.subr.bf16.mxu0 0
  %1388 = vmatpush1.bf16.msra.mxu0 0
  %1389 = vmatprep.subr.bf16.mxu0 0
  %1390 = vmatpush1.bf16.msra.mxu0 0
  %1391 = vmatprep.subr.bf16.mxu0 0
  %1392 = vmatpush1.bf16.msra.mxu0 0
  %1393 = vmatprep.subr.bf16.mxu0 0
  %1394 = vmatpush1.bf16.msra.mxu0 0
  %1395 = vmatprep.subr.bf16.mxu0 0
  %1396 = vmatpush1.bf16.msra.mxu0 0
  %1397 = vmatprep.subr.bf16.mxu0 0
  %1398 = vmatpush1.bf16.msra.mxu0 0
  %1399 = vmatprep.subr.bf16.mxu0 0
  %1400 = vmatpush1.bf16.msra.mxu0 0
  %1401 = vmatprep.subr.bf16.mxu0 0
  %1402 = vmatpush1.bf16.msra.mxu0 0
  %1403 = vmatprep.subr.bf16.mxu0 0
  %1404 = vmatpush1.bf16.msra.mxu0 0
  %1405 = vmatprep.mubr.bf16.mxu0 0
  %1406 = vmatmul.mubr.bf16.gmra.mrb[0].mxu0 %v1371
  %v1407 = vpop.f32.mrb[0].mxu0
  %v1408 = vadd.f32 %v728, %v1407
  %v1409 = vpop.f32.mrb[0].mxu0
  %v1410 = vpop.f32.mrb[0].mxu0
  %v1411 = vpop.f32.mrb[0].mxu0
  %1412 = vdwg.mxu0
  %v1413 = vmax.f32 %v1408, 0.0
  %v1414 = vpack.c.bf16 %v1413, %v1413
  %v1416 = vsel %vm742, %v1414, 0
  %1418 = vmatprep.subr.bf16.mxu0 0
  %1419 = vmatpush1.bf16.msra.mxu0 %v802
  %1420 = vmatprep.subr.bf16.mxu0 0
  %1421 = vmatpush1.bf16.msra.mxu0 %v803
  %1422 = vmatprep.subr.bf16.mxu0 0
  %1423 = vmatpush1.bf16.msra.mxu0 0
  %1424 = vmatprep.subr.bf16.mxu0 0
  %1425 = vmatpush1.bf16.msra.mxu0 0
  %1426 = vmatprep.subr.bf16.mxu0 0
  %1427 = vmatpush1.bf16.msra.mxu0 0
  %1428 = vmatprep.subr.bf16.mxu0 0
  %1429 = vmatpush1.bf16.msra.mxu0 0
  %1430 = vmatprep.subr.bf16.mxu0 0
  %1431 = vmatpush1.bf16.msra.mxu0 0
  %1432 = vmatprep.subr.bf16.mxu0 0
  %1433 = vmatpush1.bf16.msra.mxu0 0
  %1434 = vmatprep.subr.bf16.mxu0 0
  %1435 = vmatpush1.bf16.msra.mxu0 0
  %1436 = vmatprep.subr.bf16.mxu0 0
  %1437 = vmatpush1.bf16.msra.mxu0 0
  %1438 = vmatprep.subr.bf16.mxu0 0
  %1439 = vmatpush1.bf16.msra.mxu0 0
  %1440 = vmatprep.subr.bf16.mxu0 0
  %1441 = vmatpush1.bf16.msra.mxu0 0
  %1442 = vmatprep.subr.bf16.mxu0 0
  %1443 = vmatpush1.bf16.msra.mxu0 0
  %1444 = vmatprep.subr.bf16.mxu0 0
  %1445 = vmatpush1.bf16.msra.mxu0 0
  %1446 = vmatprep.subr.bf16.mxu0 0
  %1447 = vmatpush1.bf16.msra.mxu0 0
  %1448 = vmatprep.subr.bf16.mxu0 0
  %1449 = vmatpush1.bf16.msra.mxu0 0
  %1450 = vmatprep.mubr.bf16.mxu0 0
  %1451 = vmatmul.mubr.bf16.gmra.mrb[0].mxu0 %v1416
  %v1452 = vpop.f32.mrb[0].mxu0
  %v1453 = vadd.f32 %v792, %v1452
  %v1454 = vpop.f32.mrb[0].mxu0
  %v1455 = vpop.f32.mrb[0].mxu0
  %v1456 = vpop.f32.mrb[0].mxu0
  %1457 = vdwg.mxu0
  %v1458 = vadd.f32 %v849, %v1453
  %s1459 = scalar_lea.vmem %s17, 8
  %1460 = vst.msk [vmem:[%s1459] sm:$0xff] %vm277, %v1458
  %1461 = vmatprep.subr.mxu0 0.0
  %1462 = vmatpush1.msra.mxu0 %v1458
  %1463 = vmatprep.subr.mxu0 0.0
  %1464 = vmatpush1.msra.mxu0 0.0
  %1465 = vmatprep.subr.mxu0 0.0
  %1466 = vmatpush1.msra.mxu0 0.0
  %1467 = vmatprep.subr.mxu0 0.0
  %1468 = vmatpush1.msra.mxu0 0.0
  %1469 = vmatprep.subr.mxu0 0.0
  %1470 = vmatpush1.msra.mxu0 0.0
  %1471 = vmatprep.subr.mxu0 0.0
  %1472 = vmatpush1.msra.mxu0 0.0
  %1473 = vmatprep.subr.mxu0 0.0
  %1474 = vmatpush1.msra.mxu0 0.0
  %1475 = vmatprep.subr.mxu0 0.0
  %1476 = vmatpush1.msra.mxu0 0.0
  %1477 = vmatprep.subr.mxu0 0.0
  %1478 = vmatpush1.msra.mxu0 0.0
  %1479 = vmatprep.subr.mxu0 0.0
  %1480 = vmatpush1.msra.mxu0 0.0
  %1481 = vmatprep.subr.mxu0 0.0
  %1482 = vmatpush1.msra.mxu0 0.0
  %1483 = vmatprep.subr.mxu0 0.0
  %1484 = vmatpush1.msra.mxu0 0.0
  %1485 = vmatprep.subr.mxu0 0.0
  %1486 = vmatpush1.msra.mxu0 0.0
  %1487 = vmatprep.subr.mxu0 0.0
  %1488 = vmatpush1.msra.mxu0 0.0
  %1489 = vmatprep.subr.mxu0 0.0
  %1490 = vmatpush1.msra.mxu0 0.0
  %1491 = vmatprep.subr.mxu0 0.0
  %1492 = vmatpush1.msra.mxu0 0.0
  %1493 = vmatprep.subr.mxu0 0.0
  %1494 = vmatpush1.msra.mxu0 0.0
  %1495 = vmatprep.subr.mxu0 0.0
  %1496 = vmatpush1.msra.mxu0 0.0
  %1497 = vmatprep.subr.mxu0 0.0
  %1498 = vmatpush1.msra.mxu0 0.0
  %1499 = vmatprep.subr.mxu0 0.0
  %1500 = vmatpush1.msra.mxu0 0.0
  %1501 = vmatprep.subr.mxu0 0.0
  %1502 = vmatpush1.msra.mxu0 0.0
  %1503 = vmatprep.subr.mxu0 0.0
  %1504 = vmatpush1.msra.mxu0 0.0
  %1505 = vmatprep.subr.mxu0 0.0
  %1506 = vmatpush1.msra.mxu0 0.0
  %1507 = vmatprep.subr.mxu0 0.0
  %1508 = vmatpush1.msra.mxu0 0.0
  %1509 = vmatprep.subr.mxu0 0.0
  %1510 = vmatpush1.msra.mxu0 0.0
  %1511 = vmatprep.subr.mxu0 0.0
  %1512 = vmatpush1.msra.mxu0 0.0
  %1513 = vmatprep.subr.mxu0 0.0
  %1514 = vmatpush1.msra.mxu0 0.0
  %1515 = vmatprep.subr.mxu0 0.0
  %1516 = vmatpush1.msra.mxu0 0.0
  %1517 = vmatprep.subr.mxu0 0.0
  %1518 = vmatpush1.msra.mxu0 0.0
  %1519 = vmatprep.subr.mxu0 0.0
  %1520 = vmatpush1.msra.mxu0 0.0
  %1521 = vmatprep.subr.mxu0 0.0
  %1522 = vmatpush1.msra.mxu0 0.0
  %1523 = vmatprep.subr.mxu0 0.0
  %1524 = vmatpush1.msra.mxu0 0.0
  %1525 = vmatprep.mubr.f32.mxu0 0.0
  %1526 = vmatmul.mubr.f32.gmra.mrb[0].mxu0 %v96
  %v1527 = vpop.f32.mrb[0].mxu0
  %v1528 = vadd.f32 0.0, %v1527
  %v1529 = vpop.f32.mrb[0].mxu0
  %1530 = vmatprep.mubr.f32.mxu0 0.0
  %1531 = vmatmul.mubr.f32.gmra.mrb[0].mxu0 %v99
  %v1532 = vpop.f32.mrb[0].mxu0
  %v1533 = vadd.f32 0.0, %v1532
  %v1534 = vpop.f32.mrb[0].mxu0
  %1535 = vmatprep.mubr.f32.mxu0 0.0
  %1536 = vmatmul.mubr.f32.gmra.mrb[0].mxu0 %v102
  %v1537 = vpop.f32.mrb[0].mxu0
  %v1538 = vadd.f32 0.0, %v1537
  %v1539 = vpop.f32.mrb[0].mxu0
  %1540 = vdwg.mxu0
  %1541 = vmatprep.subr.mxu0 0.0
  %1542 = vmatpush1.msra.mxu0 %v1458
  %1543 = vmatprep.subr.mxu0 0.0
  %1544 = vmatpush1.msra.mxu0 0.0
  %1545 = vmatprep.subr.mxu0 0.0
  %1546 = vmatpush1.msra.mxu0 0.0
  %1547 = vmatprep.subr.mxu0 0.0
  %1548 = vmatpush1.msra.mxu0 0.0
  %1549 = vmatprep.subr.mxu0 0.0
  %1550 = vmatpush1.msra.mxu0 0.0
  %1551 = vmatprep.subr.mxu0 0.0
  %1552 = vmatpush1.msra.mxu0 0.0
  %1553 = vmatprep.subr.mxu0 0.0
  %1554 = vmatpush1.msra.mxu0 0.0
  %1555 = vmatprep.subr.mxu0 0.0
  %1556 = vmatpush1.msra.mxu0 0.0
  %1557 = vmatprep.subr.mxu0 0.0
  %1558 = vmatpush1.msra.mxu0 0.0
  %1559 = vmatprep.subr.mxu0 0.0
  %1560 = vmatpush1.msra.mxu0 0.0
  %1561 = vmatprep.subr.mxu0 0.0
  %1562 = vmatpush1.msra.mxu0 0.0
  %1563 = vmatprep.subr.mxu0 0.0
  %1564 = vmatpush1.msra.mxu0 0.0
  %1565 = vmatprep.subr.mxu0 0.0
  %1566 = vmatpush1.msra.mxu0 0.0
  %1567 = vmatprep.subr.mxu0 0.0
  %1568 = vmatpush1.msra.mxu0 0.0
  %1569 = vmatprep.subr.mxu0 0.0
  %1570 = vmatpush1.msra.mxu0 0.0
  %1571 = vmatprep.subr.mxu0 0.0
  %1572 = vmatpush1.msra.mxu0 0.0
  %1573 = vmatprep.subr.mxu0 0.0
  %1574 = vmatpush1.msra.mxu0 0.0
  %1575 = vmatprep.subr.mxu0 0.0
  %1576 = vmatpush1.msra.mxu0 0.0
  %1577 = vmatprep.subr.mxu0 0.0
  %1578 = vmatpush1.msra.mxu0 0.0
  %1579 = vmatprep.subr.mxu0 0.0
  %1580 = vmatpush1.msra.mxu0 0.0
  %1581 = vmatprep.subr.mxu0 0.0
  %1582 = vmatpush1.msra.mxu0 0.0
  %1583 = vmatprep.subr.mxu0 0.0
  %1584 = vmatpush1.msra.mxu0 0.0
  %1585 = vmatprep.subr.mxu0 0.0
  %1586 = vmatpush1.msra.mxu0 0.0
  %1587 = vmatprep.subr.mxu0 0.0
  %1588 = vmatpush1.msra.mxu0 0.0
  %1589 = vmatprep.subr.mxu0 0.0
  %1590 = vmatpush1.msra.mxu0 0.0
  %1591 = vmatprep.subr.mxu0 0.0
  %1592 = vmatpush1.msra.mxu0 0.0
  %1593 = vmatprep.subr.mxu0 0.0
  %1594 = vmatpush1.msra.mxu0 0.0
  %1595 = vmatprep.subr.mxu0 0.0
  %1596 = vmatpush1.msra.mxu0 0.0
  %1597 = vmatprep.subr.mxu0 0.0
  %1598 = vmatpush1.msra.mxu0 0.0
  %1599 = vmatprep.subr.mxu0 0.0
  %1600 = vmatpush1.msra.mxu0 0.0
  %1601 = vmatprep.subr.mxu0 0.0
  %1602 = vmatpush1.msra.mxu0 0.0
  %1603 = vmatprep.subr.mxu0 0.0
  %1604 = vmatpush1.msra.mxu0 0.0
  %1605 = vmatprep.mubr.f32.mxu0 0.0
  %1606 = vmatmul.mubr.f32.gmra.mrb[0].mxu0 %v185
  %v1607 = vpop.f32.mrb[0].mxu0
  %v1608 = vadd.f32 0.0, %v1607
  %v1609 = vpop.f32.mrb[0].mxu0
  %1610 = vmatprep.mubr.f32.mxu0 0.0
  %1611 = vmatmul.mubr.f32.gmra.mrb[0].mxu0 %v188
  %v1612 = vpop.f32.mrb[0].mxu0
  %v1613 = vadd.f32 0.0, %v1612
  %v1614 = vpop.f32.mrb[0].mxu0
  %1615 = vmatprep.mubr.f32.mxu0 0.0
  %1616 = vmatmul.mubr.f32.gmra.mrb[0].mxu0 %v191
  %v1617 = vpop.f32.mrb[0].mxu0
  %v1618 = vadd.f32 0.0, %v1617
  %v1619 = vpop.f32.mrb[0].mxu0
  %1620 = vdwg.mxu0
  %v1621 = vpack.c.bf16 %v1533, %v1528
  %v1622 = vpack.c.bf16 %v1538, %v1538
  %v1623 = vpack.c.bf16 %v1613, %v1608
  %v1624 = vpack.c.bf16 %v1618, %v1618
  %v1626 = vsel %vm277, %v1623, 0
  %v1629 = vsel %vm277, %v1624, 0
  %1631 = vmatprep.subr.bf16.mxu0 0
  %1632 = vmatpush1.bf16.msra.mxu0 %v286
  %1633 = vmatprep.subr.bf16.mxu0 0
  %1634 = vmatpush1.bf16.msra.mxu0 0
  %1635 = vmatprep.subr.bf16.mxu0 0
  %1636 = vmatpush1.bf16.msra.mxu0 0
  %1637 = vmatprep.subr.bf16.mxu0 0
  %1638 = vmatpush1.bf16.msra.mxu0 0
  %1639 = vmatprep.subr.bf16.mxu0 0
  %1640 = vmatpush1.bf16.msra.mxu0 0
  %1641 = vmatprep.subr.bf16.mxu0 0
  %1642 = vmatpush1.bf16.msra.mxu0 0
  %1643 = vmatprep.subr.bf16.mxu0 0
  %1644 = vmatpush1.bf16.msra.mxu0 0
  %1645 = vmatprep.subr.bf16.mxu0 0
  %1646 = vmatpush1.bf16.msra.mxu0 0
  %1647 = vmatprep.subr.bf16.mxu0 0
  %1648 = vmatpush1.bf16.msra.mxu0 0
  %1649 = vmatprep.subr.bf16.mxu0 0
  %1650 = vmatpush1.bf16.msra.mxu0 0
  %1651 = vmatprep.subr.bf16.mxu0 0
  %1652 = vmatpush1.bf16.msra.mxu0 0
  %1653 = vmatprep.subr.bf16.mxu0 0
  %1654 = vmatpush1.bf16.msra.mxu0 0
  %1655 = vmatprep.subr.bf16.mxu0 0
  %1656 = vmatpush1.bf16.msra.mxu0 0
  %1657 = vmatprep.subr.bf16.mxu0 0
  %1658 = vmatpush1.bf16.msra.mxu0 0
  %1659 = vmatprep.subr.bf16.mxu0 0
  %1660 = vmatpush1.bf16.msra.mxu0 0
  %1661 = vmatprep.subr.bf16.mxu0 0
  %1662 = vmatpush1.bf16.msra.mxu0 0
  %1663 = vmatprep.mubr.bf16.mxu0 0
  %1664 = vmatmul.mubr.bf16.gmra.mrb[0].mxu0 %v1626
  %v1665 = vpop.f32.mrb[0].mxu0
  %v1666 = vadd.f32 0.0, %v1665
  %v1667 = vpop.f32.mrb[0].mxu0
  %v1668 = vpop.f32.mrb[0].mxu0
  %v1669 = vadd.f32 0.0, %v1668
  %v1670 = vpop.f32.mrb[0].mxu0
  %1671 = vmatprep.mubr.bf16.mxu0 0
  %1672 = vmatmul.mubr.bf16.gmra.mrb[0].mxu0 %v1629
  %v1673 = vpop.f32.mrb[0].mxu0
  %v1674 = vadd.f32 0.0, %v1673
  %v1675 = vpop.f32.mrb[0].mxu0
  %v1676 = vpop.f32.mrb[0].mxu0
  %v1677 = vpop.f32.mrb[0].mxu0
  %1678 = vdwg.mxu0
  %v1680 = vsel %vm277, %v1621, 0
  %v1683 = vsel %vm277, %v1622, 0
  %1685 = vmatprep.subr.bf16.mxu0 0
  %1686 = vmatpush1.bf16.msra.mxu0 %v343
  %1687 = vmatprep.subr.bf16.mxu0 0
  %1688 = vmatpush1.bf16.msra.mxu0 0
  %1689 = vmatprep.subr.bf16.mxu0 0
  %1690 = vmatpush1.bf16.msra.mxu0 0
  %1691 = vmatprep.subr.bf16.mxu0 0
  %1692 = vmatpush1.bf16.msra.mxu0 0
  %1693 = vmatprep.subr.bf16.mxu0 0
  %1694 = vmatpush1.bf16.msra.mxu0 0
  %1695 = vmatprep.subr.bf16.mxu0 0
  %1696 = vmatpush1.bf16.msra.mxu0 0
  %1697 = vmatprep.subr.bf16.mxu0 0
  %1698 = vmatpush1.bf16.msra.mxu0 0
  %1699 = vmatprep.subr.bf16.mxu0 0
  %1700 = vmatpush1.bf16.msra.mxu0 0
  %1701 = vmatprep.subr.bf16.mxu0 0
  %1702 = vmatpush1.bf16.msra.mxu0 0
  %1703 = vmatprep.subr.bf16.mxu0 0
  %1704 = vmatpush1.bf16.msra.mxu0 0
  %1705 = vmatprep.subr.bf16.mxu0 0
  %1706 = vmatpush1.bf16.msra.mxu0 0
  %1707 = vmatprep.subr.bf16.mxu0 0
  %1708 = vmatpush1.bf16.msra.mxu0 0
  %1709 = vmatprep.subr.bf16.mxu0 0
  %1710 = vmatpush1.bf16.msra.mxu0 0
  %1711 = vmatprep.subr.bf16.mxu0 0
  %1712 = vmatpush1.bf16.msra.mxu0 0
  %1713 = vmatprep.subr.bf16.mxu0 0
  %1714 = vmatpush1.bf16.msra.mxu0 0
  %1715 = vmatprep.subr.bf16.mxu0 0
  %1716 = vmatpush1.bf16.msra.mxu0 0
  %1717 = vmatprep.mubr.bf16.mxu0 0
  %1718 = vmatmul.mubr.bf16.gmra.mrb[0].mxu0 %v1680
  %v1719 = vpop.f32.mrb[0].mxu0
  %v1720 = vadd.f32 %v1666, %v1719
  %v1721 = vpop.f32.mrb[0].mxu0
  %v1722 = vpop.f32.mrb[0].mxu0
  %v1723 = vadd.f32 %v1669, %v1722
  %v1724 = vpop.f32.mrb[0].mxu0
  %1725 = vmatprep.mubr.bf16.mxu0 0
  %1726 = vmatmul.mubr.bf16.gmra.mrb[0].mxu0 %v1683
  %v1727 = vpop.f32.mrb[0].mxu0
  %v1728 = vadd.f32 %v1674, %v1727
  %v1729 = vpop.f32.mrb[0].mxu0
  %v1730 = vpop.f32.mrb[0].mxu0
  %v1731 = vpop.f32.mrb[0].mxu0
  %1732 = vdwg.mxu0
  %v1733 = vadd.f32 %v1720, %v397
  %v1734 = vadd.f32 %v1723, %v397
  %v1735 = vadd.f32 %v1728, %v397
  %v1736 = vmax.f32 %v1733, 0.0
  %v1737 = vmax.f32 %v1734, 0.0
  %v1738 = vmax.f32 %v1735, 0.0
  %v1739 = vpack.c.bf16 %v1737, %v1736
  %v1740 = vpack.c.bf16 %v1738, %v1738
  %v1742 = vsel %vm437, %v1739, 0
  %v1745 = vsel %vm437, %v1740, 0
  %1747 = vmatprep.subr.bf16.mxu0 0
  %1748 = vmatpush1.bf16.msra.mxu0 %v429
  %1749 = vmatprep.subr.bf16.mxu0 0
  %1750 = vmatpush1.bf16.msra.mxu0 %v430
  %1751 = vmatprep.subr.bf16.mxu0 0
  %1752 = vmatpush1.bf16.msra.mxu0 %v431
  %1753 = vmatprep.subr.bf16.mxu0 0
  %1754 = vmatpush1.bf16.msra.mxu0 %v432
  %1755 = vmatprep.subr.bf16.mxu0 0
  %1756 = vmatpush1.bf16.msra.mxu0 0
  %1757 = vmatprep.subr.bf16.mxu0 0
  %1758 = vmatpush1.bf16.msra.mxu0 0
  %1759 = vmatprep.subr.bf16.mxu0 0
  %1760 = vmatpush1.bf16.msra.mxu0 0
  %1761 = vmatprep.subr.bf16.mxu0 0
  %1762 = vmatpush1.bf16.msra.mxu0 0
  %1763 = vmatprep.subr.bf16.mxu0 0
  %1764 = vmatpush1.bf16.msra.mxu0 0
  %1765 = vmatprep.subr.bf16.mxu0 0
  %1766 = vmatpush1.bf16.msra.mxu0 0
  %1767 = vmatprep.subr.bf16.mxu0 0
  %1768 = vmatpush1.bf16.msra.mxu0 0
  %1769 = vmatprep.subr.bf16.mxu0 0
  %1770 = vmatpush1.bf16.msra.mxu0 0
  %1771 = vmatprep.subr.bf16.mxu0 0
  %1772 = vmatpush1.bf16.msra.mxu0 0
  %1773 = vmatprep.subr.bf16.mxu0 0
  %1774 = vmatpush1.bf16.msra.mxu0 0
  %1775 = vmatprep.subr.bf16.mxu0 0
  %1776 = vmatpush1.bf16.msra.mxu0 0
  %1777 = vmatprep.subr.bf16.mxu0 0
  %1778 = vmatpush1.bf16.msra.mxu0 0
  %1779 = vmatprep.mubr.bf16.mxu0 0
  %1780 = vmatmul.mubr.bf16.gmra.mrb[0].mxu0 %v1742
  %v1781 = vpop.f32.mrb[0].mxu0
  %v1782 = vadd.f32 %v411, %v1781
  %v1783 = vpop.f32.mrb[0].mxu0
  %v1784 = vpop.f32.mrb[0].mxu0
  %v1785 = vadd.f32 %v411, %v1784
  %v1786 = vpop.f32.mrb[0].mxu0
  %1787 = vmatprep.mubr.bf16.mxu0 0
  %1788 = vmatmul.mubr.bf16.gmra.mrb[0].mxu0 %v1745
  %v1789 = vpop.f32.mrb[0].mxu0
  %v1790 = vadd.f32 %v411, %v1789
  %v1791 = vpop.f32.mrb[0].mxu0
  %v1792 = vpop.f32.mrb[0].mxu0
  %v1793 = vpop.f32.mrb[0].mxu0
  %1794 = vdwg.mxu0
  %v1795 = vmax.f32 %v1782, 0.0
  %v1796 = vmax.f32 %v1785, 0.0
  %v1797 = vmax.f32 %v1790, 0.0
  %v1798 = vmul.f32 %v1795, %v498
  %v1799 = vmul.f32 %v1796, %v503
  %v1800 = vmul.f32 %v1797, %v508
  %v1801 = vmul.f32 %v1795, %v515
  %v1802 = vmul.f32 %v1796, %v519
  %v1803 = vmul.f32 %v1797, %v523
  %1807 = vrot.lane.b32.xlu0 %v1801, 112
  %v1808 = vpop.permute.xlu0 %1807
  %1809 = vrot.lane.b32.xlu0 %v1802, 112
  %v1810 = vpop.permute.xlu0 %1809
  %1811 = vrot.lane.b32.xlu0 %v1803, 112
  %v1812 = vpop.permute.xlu0 %1811
  %v1816 = vadd.f32 %v1798, %v1808
  %v1817 = vadd.f32 %v1799, %v1810
  %v1818 = vadd.f32 %v1800, %v1812
  %1819 = vmatprep.subr.mxu0 0.0
  %1820 = vmatpush1.msra.mxu0 %v1816
  %1821 = vmatprep.subr.mxu0 0.0
  %1822 = vmatpush1.msra.mxu0 %v1817
  %1823 = vmatprep.subr.mxu0 0.0
  %1824 = vmatpush1.msra.mxu0 %v1818
  %1825 = vmatprep.subr.mxu0 0.0
  %1826 = vmatpush1.msra.mxu0 0.0
  %1827 = vmatprep.subr.mxu0 0.0
  %1828 = vmatpush1.msra.mxu0 0.0
  %1829 = vmatprep.subr.mxu0 0.0
  %1830 = vmatpush1.msra.mxu0 0.0
  %1831 = vmatprep.subr.mxu0 0.0
  %1832 = vmatpush1.msra.mxu0 0.0
  %1833 = vmatprep.subr.mxu0 0.0
  %1834 = vmatpush1.msra.mxu0 0.0
  %1835 = vmatprep.subr.mxu0 0.0
  %1836 = vmatpush1.msra.mxu0 0.0
  %1837 = vmatprep.subr.mxu0 0.0
  %1838 = vmatpush1.msra.mxu0 0.0
  %1839 = vmatprep.subr.mxu0 0.0
  %1840 = vmatpush1.msra.mxu0 0.0
  %1841 = vmatprep.subr.mxu0 0.0
  %1842 = vmatpush1.msra.mxu0 0.0
  %1843 = vmatprep.subr.mxu0 0.0
  %1844 = vmatpush1.msra.mxu0 0.0
  %1845 = vmatprep.subr.mxu0 0.0
  %1846 = vmatpush1.msra.mxu0 0.0
  %1847 = vmatprep.subr.mxu0 0.0
  %1848 = vmatpush1.msra.mxu0 0.0
  %1849 = vmatprep.subr.mxu0 0.0
  %1850 = vmatpush1.msra.mxu0 0.0
  %1851 = vmatprep.subr.mxu0 0.0
  %1852 = vmatpush1.msra.mxu0 0.0
  %1853 = vmatprep.subr.mxu0 0.0
  %1854 = vmatpush1.msra.mxu0 0.0
  %1855 = vmatprep.subr.mxu0 0.0
  %1856 = vmatpush1.msra.mxu0 0.0
  %1857 = vmatprep.subr.mxu0 0.0
  %1858 = vmatpush1.msra.mxu0 0.0
  %1859 = vmatprep.subr.mxu0 0.0
  %1860 = vmatpush1.msra.mxu0 0.0
  %1861 = vmatprep.subr.mxu0 0.0
  %1862 = vmatpush1.msra.mxu0 0.0
  %1863 = vmatprep.subr.mxu0 0.0
  %1864 = vmatpush1.msra.mxu0 0.0
  %1865 = vmatprep.subr.mxu0 0.0
  %1866 = vmatpush1.msra.mxu0 0.0
  %1867 = vmatprep.subr.mxu0 0.0
  %1868 = vmatpush1.msra.mxu0 0.0
  %1869 = vmatprep.subr.mxu0 0.0
  %1870 = vmatpush1.msra.mxu0 0.0
  %1871 = vmatprep.subr.mxu0 0.0
  %1872 = vmatpush1.msra.mxu0 0.0
  %1873 = vmatprep.subr.mxu0 0.0
  %1874 = vmatpush1.msra.mxu0 0.0
  %1875 = vmatprep.subr.mxu0 0.0
  %1876 = vmatpush1.msra.mxu0 0.0
  %1877 = vmatprep.subr.mxu0 0.0
  %1878 = vmatpush1.msra.mxu0 0.0
  %1879 = vmatprep.subr.mxu0 0.0
  %1880 = vmatpush1.msra.mxu0 0.0
  %1881 = vmatprep.subr.mxu0 0.0
  %1882 = vmatpush1.msra.mxu0 0.0
  %1883 = vmatprep.mubr.f32.mxu0 0.0
  %1884 = vmatmul.mubr.f32.gmra.mrb[0].mxu0 %v545
  %v1885 = vpop.f32.mrb[0].mxu0
  %v1886 = vadd.f32 0.0, %v1885
  %v1887 = vpop.f32.mrb[0].mxu0
  %1888 = vdwg.mxu0
  %v1889 = vpack.c.bf16 %v1458, %v1458
  %v1890 = vpack.c.bf16 %v1886, %v1886
  %v1892 = vsel %vm625, %v1890, 0
  %1894 = vmatprep.subr.bf16.mxu0 0
  %1895 = vmatpush1.bf16.msra.mxu0 %v623
  %1896 = vmatprep.subr.bf16.mxu0 0
  %1897 = vmatpush1.bf16.msra.mxu0 0
  %1898 = vmatprep.subr.bf16.mxu0 0
  %1899 = vmatpush1.bf16.msra.mxu0 0
  %1900 = vmatprep.subr.bf16.mxu0 0
  %1901 = vmatpush1.bf16.msra.mxu0 0
  %1902 = vmatprep.subr.bf16.mxu0 0
  %1903 = vmatpush1.bf16.msra.mxu0 0
  %1904 = vmatprep.subr.bf16.mxu0 0
  %1905 = vmatpush1.bf16.msra.mxu0 0
  %1906 = vmatprep.subr.bf16.mxu0 0
  %1907 = vmatpush1.bf16.msra.mxu0 0
  %1908 = vmatprep.subr.bf16.mxu0 0
  %1909 = vmatpush1.bf16.msra.mxu0 0
  %1910 = vmatprep.subr.bf16.mxu0 0
  %1911 = vmatpush1.bf16.msra.mxu0 0
  %1912 = vmatprep.subr.bf16.mxu0 0
  %1913 = vmatpush1.bf16.msra.mxu0 0
  %1914 = vmatprep.subr.bf16.mxu0 0
  %1915 = vmatpush1.bf16.msra.mxu0 0
  %1916 = vmatprep.subr.bf16.mxu0 0
  %1917 = vmatpush1.bf16.msra.mxu0 0
  %1918 = vmatprep.subr.bf16.mxu0 0
  %1919 = vmatpush1.bf16.msra.mxu0 0
  %1920 = vmatprep.subr.bf16.mxu0 0
  %1921 = vmatpush1.bf16.msra.mxu0 0
  %1922 = vmatprep.subr.bf16.mxu0 0
  %1923 = vmatpush1.bf16.msra.mxu0 0
  %1924 = vmatprep.subr.bf16.mxu0 0
  %1925 = vmatpush1.bf16.msra.mxu0 0
  %1926 = vmatprep.mubr.bf16.mxu0 0
  %1927 = vmatmul.mubr.bf16.gmra.mrb[0].mxu0 %v1892
  %v1928 = vpop.f32.mrb[0].mxu0
  %v1929 = vadd.f32 0.0, %v1928
  %v1930 = vpop.f32.mrb[0].mxu0
  %v1931 = vpop.f32.mrb[0].mxu0
  %v1932 = vpop.f32.mrb[0].mxu0
  %1933 = vdwg.mxu0
  %v1935 = vsel %vm277, %v1889, 0
  %1937 = vmatprep.subr.bf16.mxu0 0
  %1938 = vmatpush1.bf16.msra.mxu0 %v673
  %1939 = vmatprep.subr.bf16.mxu0 0
  %1940 = vmatpush1.bf16.msra.mxu0 0
  %1941 = vmatprep.subr.bf16.mxu0 0
  %1942 = vmatpush1.bf16.msra.mxu0 0
  %1943 = vmatprep.subr.bf16.mxu0 0
  %1944 = vmatpush1.bf16.msra.mxu0 0
  %1945 = vmatprep.subr.bf16.mxu0 0
  %1946 = vmatpush1.bf16.msra.mxu0 0
  %1947 = vmatprep.subr.bf16.mxu0 0
  %1948 = vmatpush1.bf16.msra.mxu0 0
  %1949 = vmatprep.subr.bf16.mxu0 0
  %1950 = vmatpush1.bf16.msra.mxu0 0
  %1951 = vmatprep.subr.bf16.mxu0 0
  %1952 = vmatpush1.bf16.msra.mxu0 0
  %1953 = vmatprep.subr.bf16.mxu0 0
  %1954 = vmatpush1.bf16.msra.mxu0 0
  %1955 = vmatprep.subr.bf16.mxu0 0
  %1956 = vmatpush1.bf16.msra.mxu0 0
  %1957 = vmatprep.subr.bf16.mxu0 0
  %1958 = vmatpush1.bf16.msra.mxu0 0
  %1959 = vmatprep.subr.bf16.mxu0 0
  %1960 = vmatpush1.bf16.msra.mxu0 0
  %1961 = vmatprep.subr.bf16.mxu0 0
  %1962 = vmatpush1.bf16.msra.mxu0 0
  %1963 = vmatprep.subr.bf16.mxu0 0
  %1964 = vmatpush1.bf16.msra.mxu0 0
  %1965 = vmatprep.subr.bf16.mxu0 0
  %1966 = vmatpush1.bf16.msra.mxu0 0
  %1967 = vmatprep.subr.bf16.mxu0 0
  %1968 = vmatpush1.bf16.msra.mxu0 0
  %1969 = vmatprep.mubr.bf16.mxu0 0
  %1970 = vmatmul.mubr.bf16.gmra.mrb[0].mxu0 %v1935
  %v1971 = vpop.f32.mrb[0].mxu0
  %v1972 = vadd.f32 %v1929, %v1971
  %v1973 = vpop.f32.mrb[0].mxu0
  %v1974 = vpop.f32.mrb[0].mxu0
  %v1975 = vpop.f32.mrb[0].mxu0
  %1976 = vdwg.mxu0
  %v1977 = vadd.f32 %v1972, %v719
  %v1978 = vmax.f32 %v1977, 0.0
  %v1979 = vpack.c.bf16 %v1978, %v1978
  %v1981 = vsel %vm742, %v1979, 0
  %1983 = vmatprep.subr.bf16.mxu0 0
  %1984 = vmatpush1.bf16.msra.mxu0 %v738
  %1985 = vmatprep.subr.bf16.mxu0 0
  %1986 = vmatpush1.bf16.msra.mxu0 %v739
  %1987 = vmatprep.subr.bf16.mxu0 0
  %1988 = vmatpush1.bf16.msra.mxu0 0
  %1989 = vmatprep.subr.bf16.mxu0 0
  %1990 = vmatpush1.bf16.msra.mxu0 0
  %1991 = vmatprep.subr.bf16.mxu0 0
  %1992 = vmatpush1.bf16.msra.mxu0 0
  %1993 = vmatprep.subr.bf16.mxu0 0
  %1994 = vmatpush1.bf16.msra.mxu0 0
  %1995 = vmatprep.subr.bf16.mxu0 0
  %1996 = vmatpush1.bf16.msra.mxu0 0
  %1997 = vmatprep.subr.bf16.mxu0 0
  %1998 = vmatpush1.bf16.msra.mxu0 0
  %1999 = vmatprep.subr.bf16.mxu0 0
  %2000 = vmatpush1.bf16.msra.mxu0 0
  %2001 = vmatprep.subr.bf16.mxu0 0
  %2002 = vmatpush1.bf16.msra.mxu0 0
  %2003 = vmatprep.subr.bf16.mxu0 0
  %2004 = vmatpush1.bf16.msra.mxu0 0
  %2005 = vmatprep.subr.bf16.mxu0 0
  %2006 = vmatpush1.bf16.msra.mxu0 0
  %2007 = vmatprep.subr.bf16.mxu0 0
  %2008 = vmatpush1.bf16.msra.mxu0 0
  %2009 = vmatprep.subr.bf16.mxu0 0
  %2010 = vmatpush1.bf16.msra.mxu0 0
  %2011 = vmatprep.subr.bf16.mxu0 0
  %2012 = vmatpush1.bf16.msra.mxu0 0
  %2013 = vmatprep.subr.bf16.mxu0 0
  %2014 = vmatpush1.bf16.msra.mxu0 0
  %2015 = vmatprep.mubr.bf16.mxu0 0
  %2016 = vmatmul.mubr.bf16.gmra.mrb[0].mxu0 %v1981
  %v2017 = vpop.f32.mrb[0].mxu0
  %v2018 = vadd.f32 %v728, %v2017
  %v2019 = vpop.f32.mrb[0].mxu0
  %v2020 = vpop.f32.mrb[0].mxu0
  %v2021 = vpop.f32.mrb[0].mxu0
  %2022 = vdwg.mxu0
  %v2023 = vmax.f32 %v2018, 0.0
  %v2024 = vpack.c.bf16 %v2023, %v2023
  %v2026 = vsel %vm742, %v2024, 0
  %2028 = vmatprep.subr.bf16.mxu0 0
  %2029 = vmatpush1.bf16.msra.mxu0 %v802
  %2030 = vmatprep.subr.bf16.mxu0 0
  %2031 = vmatpush1.bf16.msra.mxu0 %v803
  %2032 = vmatprep.subr.bf16.mxu0 0
  %2033 = vmatpush1.bf16.msra.mxu0 0
  %2034 = vmatprep.subr.bf16.mxu0 0
  %2035 = vmatpush1.bf16.msra.mxu0 0
  %2036 = vmatprep.subr.bf16.mxu0 0
  %2037 = vmatpush1.bf16.msra.mxu0 0
  %2038 = vmatprep.subr.bf16.mxu0 0
  %2039 = vmatpush1.bf16.msra.mxu0 0
  %2040 = vmatprep.subr.bf16.mxu0 0
  %2041 = vmatpush1.bf16.msra.mxu0 0
  %2042 = vmatprep.subr.bf16.mxu0 0
  %2043 = vmatpush1.bf16.msra.mxu0 0
  %2044 = vmatprep.subr.bf16.mxu0 0
  %2045 = vmatpush1.bf16.msra.mxu0 0
  %2046 = vmatprep.subr.bf16.mxu0 0
  %2047 = vmatpush1.bf16.msra.mxu0 0
  %2048 = vmatprep.subr.bf16.mxu0 0
  %2049 = vmatpush1.bf16.msra.mxu0 0
  %2050 = vmatprep.subr.bf16.mxu0 0
  %2051 = vmatpush1.bf16.msra.mxu0 0
  %2052 = vmatprep.subr.bf16.mxu0 0
  %2053 = vmatpush1.bf16.msra.mxu0 0
  %2054 = vmatprep.subr.bf16.mxu0 0
  %2055 = vmatpush1.bf16.msra.mxu0 0
  %2056 = vmatprep.subr.bf16.mxu0 0
  %2057 = vmatpush1.bf16.msra.mxu0 0
  %2058 = vmatprep.subr.bf16.mxu0 0
  %2059 = vmatpush1.bf16.msra.mxu0 0
  %2060 = vmatprep.mubr.bf16.mxu0 0
  %2061 = vmatmul.mubr.bf16.gmra.mrb[0].mxu0 %v2026
  %v2062 = vpop.f32.mrb[0].mxu0
  %v2063 = vadd.f32 %v792, %v2062
  %v2064 = vpop.f32.mrb[0].mxu0
  %v2065 = vpop.f32.mrb[0].mxu0
  %v2066 = vpop.f32.mrb[0].mxu0
  %2067 = vdwg.mxu0
  %v2068 = vadd.f32 %v1458, %v2063
  %s2069 = scalar_lea.vmem %s17, 16
  %2070 = vst.msk [vmem:[%s2069] sm:$0xff] %vm277, %v2068
  %2071 = vmatprep.subr.mxu0 0.0
  %2072 = vmatpush1.msra.mxu0 %v2068
  %2073 = vmatprep.subr.mxu0 0.0
  %2074 = vmatpush1.msra.mxu0 0.0
  %2075 = vmatprep.subr.mxu0 0.0
  %2076 = vmatpush1.msra.mxu0 0.0
  %2077 = vmatprep.subr.mxu0 0.0
  %2078 = vmatpush1.msra.mxu0 0.0
  %2079 = vmatprep.subr.mxu0 0.0
  %2080 = vmatpush1.msra.mxu0 0.0
  %2081 = vmatprep.subr.mxu0 0.0
  %2082 = vmatpush1.msra.mxu0 0.0
  %2083 = vmatprep.subr.mxu0 0.0
  %2084 = vmatpush1.msra.mxu0 0.0
  %2085 = vmatprep.subr.mxu0 0.0
  %2086 = vmatpush1.msra.mxu0 0.0
  %2087 = vmatprep.subr.mxu0 0.0
  %2088 = vmatpush1.msra.mxu0 0.0
  %2089 = vmatprep.subr.mxu0 0.0
  %2090 = vmatpush1.msra.mxu0 0.0
  %2091 = vmatprep.subr.mxu0 0.0
  %2092 = vmatpush1.msra.mxu0 0.0
  %2093 = vmatprep.subr.mxu0 0.0
  %2094 = vmatpush1.msra.mxu0 0.0
  %2095 = vmatprep.subr.mxu0 0.0
  %2096 = vmatpush1.msra.mxu0 0.0
  %2097 = vmatprep.subr.mxu0 0.0
  %2098 = vmatpush1.msra.mxu0 0.0
  %2099 = vmatprep.subr.mxu0 0.0
  %2100 = vmatpush1.msra.mxu0 0.0
  %2101 = vmatprep.subr.mxu0 0.0
  %2102 = vmatpush1.msra.mxu0 0.0
  %2103 = vmatprep.subr.mxu0 0.0
  %2104 = vmatpush1.msra.mxu0 0.0
  %2105 = vmatprep.subr.mxu0 0.0
  %2106 = vmatpush1.msra.mxu0 0.0
  %2107 = vmatprep.subr.mxu0 0.0
  %2108 = vmatpush1.msra.mxu0 0.0
  %2109 = vmatprep.subr.mxu0 0.0
  %2110 = vmatpush1.msra.mxu0 0.0
  %2111 = vmatprep.subr.mxu0 0.0
  %2112 = vmatpush1.msra.mxu0 0.0
  %2113 = vmatprep.subr.mxu0 0.0
  %2114 = vmatpush1.msra.mxu0 0.0
  %2115 = vmatprep.subr.mxu0 0.0
  %2116 = vmatpush1.msra.mxu0 0.0
  %2117 = vmatprep.subr.mxu0 0.0
  %2118 = vmatpush1.msra.mxu0 0.0
  %2119 = vmatprep.subr.mxu0 0.0
  %2120 = vmatpush1.msra.mxu0 0.0
  %2121 = vmatprep.subr.mxu0 0.0
  %2122 = vmatpush1.msra.mxu0 0.0
  %2123 = vmatprep.subr.mxu0 0.0
  %2124 = vmatpush1.msra.mxu0 0.0
  %2125 = vmatprep.subr.mxu0 0.0
  %2126 = vmatpush1.msra.mxu0 0.0
  %2127 = vmatprep.subr.mxu0 0.0
  %2128 = vmatpush1.msra.mxu0 0.0
  %2129 = vmatprep.subr.mxu0 0.0
  %2130 = vmatpush1.msra.mxu0 0.0
  %2131 = vmatprep.subr.mxu0 0.0
  %2132 = vmatpush1.msra.mxu0 0.0
  %2133 = vmatprep.subr.mxu0 0.0
  %2134 = vmatpush1.msra.mxu0 0.0
  %2135 = vmatprep.mubr.f32.mxu0 0.0
  %2136 = vmatmul.mubr.f32.gmra.mrb[0].mxu0 %v96
  %v2137 = vpop.f32.mrb[0].mxu0
  %v2138 = vadd.f32 0.0, %v2137
  %v2139 = vpop.f32.mrb[0].mxu0
  %2140 = vmatprep.mubr.f32.mxu0 0.0
  %2141 = vmatmul.mubr.f32.gmra.mrb[0].mxu0 %v99
  %v2142 = vpop.f32.mrb[0].mxu0
  %v2143 = vadd.f32 0.0, %v2142
  %v2144 = vpop.f32.mrb[0].mxu0
  %2145 = vmatprep.mubr.f32.mxu0 0.0
  %2146 = vmatmul.mubr.f32.gmra.mrb[0].mxu0 %v102
  %v2147 = vpop.f32.mrb[0].mxu0
  %v2148 = vadd.f32 0.0, %v2147
  %v2149 = vpop.f32.mrb[0].mxu0
  %2150 = vdwg.mxu0
  %2151 = vmatprep.subr.mxu0 0.0
  %2152 = vmatpush1.msra.mxu0 %v2068
  %2153 = vmatprep.subr.mxu0 0.0
  %2154 = vmatpush1.msra.mxu0 0.0
  %2155 = vmatprep.subr.mxu0 0.0
  %2156 = vmatpush1.msra.mxu0 0.0
  %2157 = vmatprep.subr.mxu0 0.0
  %2158 = vmatpush1.msra.mxu0 0.0
  %2159 = vmatprep.subr.mxu0 0.0
  %2160 = vmatpush1.msra.mxu0 0.0
  %2161 = vmatprep.subr.mxu0 0.0
  %2162 = vmatpush1.msra.mxu0 0.0
  %2163 = vmatprep.subr.mxu0 0.0
  %2164 = vmatpush1.msra.mxu0 0.0
  %2165 = vmatprep.subr.mxu0 0.0
  %2166 = vmatpush1.msra.mxu0 0.0
  %2167 = vmatprep.subr.mxu0 0.0
  %2168 = vmatpush1.msra.mxu0 0.0
  %2169 = vmatprep.subr.mxu0 0.0
  %2170 = vmatpush1.msra.mxu0 0.0
  %2171 = vmatprep.subr.mxu0 0.0
  %2172 = vmatpush1.msra.mxu0 0.0
  %2173 = vmatprep.subr.mxu0 0.0
  %2174 = vmatpush1.msra.mxu0 0.0
  %2175 = vmatprep.subr.mxu0 0.0
  %2176 = vmatpush1.msra.mxu0 0.0
  %2177 = vmatprep.subr.mxu0 0.0
  %2178 = vmatpush1.msra.mxu0 0.0
  %2179 = vmatprep.subr.mxu0 0.0
  %2180 = vmatpush1.msra.mxu0 0.0
  %2181 = vmatprep.subr.mxu0 0.0
  %2182 = vmatpush1.msra.mxu0 0.0
  %2183 = vmatprep.subr.mxu0 0.0
  %2184 = vmatpush1.msra.mxu0 0.0
  %2185 = vmatprep.subr.mxu0 0.0
  %2186 = vmatpush1.msra.mxu0 0.0
  %2187 = vmatprep.subr.mxu0 0.0
  %2188 = vmatpush1.msra.mxu0 0.0
  %2189 = vmatprep.subr.mxu0 0.0
  %2190 = vmatpush1.msra.mxu0 0.0
  %2191 = vmatprep.subr.mxu0 0.0
  %2192 = vmatpush1.msra.mxu0 0.0
  %2193 = vmatprep.subr.mxu0 0.0
  %2194 = vmatpush1.msra.mxu0 0.0
  %2195 = vmatprep.subr.mxu0 0.0
  %2196 = vmatpush1.msra.mxu0 0.0
  %2197 = vmatprep.subr.mxu0 0.0
  %2198 = vmatpush1.msra.mxu0 0.0
  %2199 = vmatprep.subr.mxu0 0.0
  %2200 = vmatpush1.msra.mxu0 0.0
  %2201 = vmatprep.subr.mxu0 0.0
  %2202 = vmatpush1.msra.mxu0 0.0
  %2203 = vmatprep.subr.mxu0 0.0
  %2204 = vmatpush1.msra.mxu0 0.0
  %2205 = vmatprep.subr.mxu0 0.0
  %2206 = vmatpush1.msra.mxu0 0.0
  %2207 = vmatprep.subr.mxu0 0.0
  %2208 = vmatpush1.msra.mxu0 0.0
  %2209 = vmatprep.subr.mxu0 0.0
  %2210 = vmatpush1.msra.mxu0 0.0
  %2211 = vmatprep.subr.mxu0 0.0
  %2212 = vmatpush1.msra.mxu0 0.0
  %2213 = vmatprep.subr.mxu0 0.0
  %2214 = vmatpush1.msra.mxu0 0.0
  %2215 = vmatprep.mubr.f32.mxu0 0.0
  %2216 = vmatmul.mubr.f32.gmra.mrb[0].mxu0 %v185
  %v2217 = vpop.f32.mrb[0].mxu0
  %v2218 = vadd.f32 0.0, %v2217
  %v2219 = vpop.f32.mrb[0].mxu0
  %2220 = vmatprep.mubr.f32.mxu0 0.0
  %2221 = vmatmul.mubr.f32.gmra.mrb[0].mxu0 %v188
  %v2222 = vpop.f32.mrb[0].mxu0
  %v2223 = vadd.f32 0.0, %v2222
  %v2224 = vpop.f32.mrb[0].mxu0
  %2225 = vmatprep.mubr.f32.mxu0 0.0
  %2226 = vmatmul.mubr.f32.gmra.mrb[0].mxu0 %v191
  %v2227 = vpop.f32.mrb[0].mxu0
  %v2228 = vadd.f32 0.0, %v2227
  %v2229 = vpop.f32.mrb[0].mxu0
  %2230 = vdwg.mxu0
  %v2231 = vpack.c.bf16 %v2143, %v2138
  %v2232 = vpack.c.bf16 %v2148, %v2148
  %v2233 = vpack.c.bf16 %v2223, %v2218
  %v2234 = vpack.c.bf16 %v2228, %v2228
  %v2236 = vsel %vm277, %v2233, 0
  %v2239 = vsel %vm277, %v2234, 0
  %2241 = vmatprep.subr.bf16.mxu0 0
  %2242 = vmatpush1.bf16.msra.mxu0 %v286
  %2243 = vmatprep.subr.bf16.mxu0 0
  %2244 = vmatpush1.bf16.msra.mxu0 0
  %2245 = vmatprep.subr.bf16.mxu0 0
  %2246 = vmatpush1.bf16.msra.mxu0 0
  %2247 = vmatprep.subr.bf16.mxu0 0
  %2248 = vmatpush1.bf16.msra.mxu0 0
  %2249 = vmatprep.subr.bf16.mxu0 0
  %2250 = vmatpush1.bf16.msra.mxu0 0
  %2251 = vmatprep.subr.bf16.mxu0 0
  %2252 = vmatpush1.bf16.msra.mxu0 0
  %2253 = vmatprep.subr.bf16.mxu0 0
  %2254 = vmatpush1.bf16.msra.mxu0 0
  %2255 = vmatprep.subr.bf16.mxu0 0
  %2256 = vmatpush1.bf16.msra.mxu0 0
  %2257 = vmatprep.subr.bf16.mxu0 0
  %2258 = vmatpush1.bf16.msra.mxu0 0
  %2259 = vmatprep.subr.bf16.mxu0 0
  %2260 = vmatpush1.bf16.msra.mxu0 0
  %2261 = vmatprep.subr.bf16.mxu0 0
  %2262 = vmatpush1.bf16.msra.mxu0 0
  %2263 = vmatprep.subr.bf16.mxu0 0
  %2264 = vmatpush1.bf16.msra.mxu0 0
  %2265 = vmatprep.subr.bf16.mxu0 0
  %2266 = vmatpush1.bf16.msra.mxu0 0
  %2267 = vmatprep.subr.bf16.mxu0 0
  %2268 = vmatpush1.bf16.msra.mxu0 0
  %2269 = vmatprep.subr.bf16.mxu0 0
  %2270 = vmatpush1.bf16.msra.mxu0 0
  %2271 = vmatprep.subr.bf16.mxu0 0
  %2272 = vmatpush1.bf16.msra.mxu0 0
  %2273 = vmatprep.mubr.bf16.mxu0 0
  %2274 = vmatmul.mubr.bf16.gmra.mrb[0].mxu0 %v2236
  %v2275 = vpop.f32.mrb[0].mxu0
  %v2276 = vadd.f32 0.0, %v2275
  %v2277 = vpop.f32.mrb[0].mxu0
  %v2278 = vpop.f32.mrb[0].mxu0
  %v2279 = vadd.f32 0.0, %v2278
  %v2280 = vpop.f32.mrb[0].mxu0
  %2281 = vmatprep.mubr.bf16.mxu0 0
  %2282 = vmatmul.mubr.bf16.gmra.mrb[0].mxu0 %v2239
  %v2283 = vpop.f32.mrb[0].mxu0
  %v2284 = vadd.f32 0.0, %v2283
  %v2285 = vpop.f32.mrb[0].mxu0
  %v2286 = vpop.f32.mrb[0].mxu0
  %v2287 = vpop.f32.mrb[0].mxu0
  %2288 = vdwg.mxu0
  %v2290 = vsel %vm277, %v2231, 0
  %v2293 = vsel %vm277, %v2232, 0
  %2295 = vmatprep.subr.bf16.mxu0 0
  %2296 = vmatpush1.bf16.msra.mxu0 %v343
  %2297 = vmatprep.subr.bf16.mxu0 0
  %2298 = vmatpush1.bf16.msra.mxu0 0
  %2299 = vmatprep.subr.bf16.mxu0 0
  %2300 = vmatpush1.bf16.msra.mxu0 0
  %2301 = vmatprep.subr.bf16.mxu0 0
  %2302 = vmatpush1.bf16.msra.mxu0 0
  %2303 = vmatprep.subr.bf16.mxu0 0
  %2304 = vmatpush1.bf16.msra.mxu0 0
  %2305 = vmatprep.subr.bf16.mxu0 0
  %2306 = vmatpush1.bf16.msra.mxu0 0
  %2307 = vmatprep.subr.bf16.mxu0 0
  %2308 = vmatpush1.bf16.msra.mxu0 0
  %2309 = vmatprep.subr.bf16.mxu0 0
  %2310 = vmatpush1.bf16.msra.mxu0 0
  %2311 = vmatprep.subr.bf16.mxu0 0
  %2312 = vmatpush1.bf16.msra.mxu0 0
  %2313 = vmatprep.subr.bf16.mxu0 0
  %2314 = vmatpush1.bf16.msra.mxu0 0
  %2315 = vmatprep.subr.bf16.mxu0 0
  %2316 = vmatpush1.bf16.msra.mxu0 0
  %2317 = vmatprep.subr.bf16.mxu0 0
  %2318 = vmatpush1.bf16.msra.mxu0 0
  %2319 = vmatprep.subr.bf16.mxu0 0
  %2320 = vmatpush1.bf16.msra.mxu0 0
  %2321 = vmatprep.subr.bf16.mxu0 0
  %2322 = vmatpush1.bf16.msra.mxu0 0
  %2323 = vmatprep.subr.bf16.mxu0 0
  %2324 = vmatpush1.bf16.msra.mxu0 0
  %2325 = vmatprep.subr.bf16.mxu0 0
  %2326 = vmatpush1.bf16.msra.mxu0 0
  %2327 = vmatprep.mubr.bf16.mxu0 0
  %2328 = vmatmul.mubr.bf16.gmra.mrb[0].mxu0 %v2290
  %v2329 = vpop.f32.mrb[0].mxu0
  %v2330 = vadd.f32 %v2276, %v2329
  %v2331 = vpop.f32.mrb[0].mxu0
  %v2332 = vpop.f32.mrb[0].mxu0
  %v2333 = vadd.f32 %v2279, %v2332
  %v2334 = vpop.f32.mrb[0].mxu0
  %2335 = vmatprep.mubr.bf16.mxu0 0
  %2336 = vmatmul.mubr.bf16.gmra.mrb[0].mxu0 %v2293
  %v2337 = vpop.f32.mrb[0].mxu0
  %v2338 = vadd.f32 %v2284, %v2337
  %v2339 = vpop.f32.mrb[0].mxu0
  %v2340 = vpop.f32.mrb[0].mxu0
  %v2341 = vpop.f32.mrb[0].mxu0
  %2342 = vdwg.mxu0
  %v2343 = vadd.f32 %v2330, %v397
  %v2344 = vadd.f32 %v2333, %v397
  %v2345 = vadd.f32 %v2338, %v397
  %v2346 = vmax.f32 %v2343, 0.0
  %v2347 = vmax.f32 %v2344, 0.0
  %v2348 = vmax.f32 %v2345, 0.0
  %v2349 = vpack.c.bf16 %v2347, %v2346
  %v2350 = vpack.c.bf16 %v2348, %v2348
  %v2352 = vsel %vm437, %v2349, 0
  %v2355 = vsel %vm437, %v2350, 0
  %2357 = vmatprep.subr.bf16.mxu0 0
  %2358 = vmatpush1.bf16.msra.mxu0 %v429
  %2359 = vmatprep.subr.bf16.mxu0 0
  %2360 = vmatpush1.bf16.msra.mxu0 %v430
  %2361 = vmatprep.subr.bf16.mxu0 0
  %2362 = vmatpush1.bf16.msra.mxu0 %v431
  %2363 = vmatprep.subr.bf16.mxu0 0
  %2364 = vmatpush1.bf16.msra.mxu0 %v432
  %2365 = vmatprep.subr.bf16.mxu0 0
  %2366 = vmatpush1.bf16.msra.mxu0 0
  %2367 = vmatprep.subr.bf16.mxu0 0
  %2368 = vmatpush1.bf16.msra.mxu0 0
  %2369 = vmatprep.subr.bf16.mxu0 0
  %2370 = vmatpush1.bf16.msra.mxu0 0
  %2371 = vmatprep.subr.bf16.mxu0 0
  %2372 = vmatpush1.bf16.msra.mxu0 0
  %2373 = vmatprep.subr.bf16.mxu0 0
  %2374 = vmatpush1.bf16.msra.mxu0 0
  %2375 = vmatprep.subr.bf16.mxu0 0
  %2376 = vmatpush1.bf16.msra.mxu0 0
  %2377 = vmatprep.subr.bf16.mxu0 0
  %2378 = vmatpush1.bf16.msra.mxu0 0
  %2379 = vmatprep.subr.bf16.mxu0 0
  %2380 = vmatpush1.bf16.msra.mxu0 0
  %2381 = vmatprep.subr.bf16.mxu0 0
  %2382 = vmatpush1.bf16.msra.mxu0 0
  %2383 = vmatprep.subr.bf16.mxu0 0
  %2384 = vmatpush1.bf16.msra.mxu0 0
  %2385 = vmatprep.subr.bf16.mxu0 0
  %2386 = vmatpush1.bf16.msra.mxu0 0
  %2387 = vmatprep.subr.bf16.mxu0 0
  %2388 = vmatpush1.bf16.msra.mxu0 0
  %2389 = vmatprep.mubr.bf16.mxu0 0
  %2390 = vmatmul.mubr.bf16.gmra.mrb[0].mxu0 %v2352
  %v2391 = vpop.f32.mrb[0].mxu0
  %v2392 = vadd.f32 %v411, %v2391
  %v2393 = vpop.f32.mrb[0].mxu0
  %v2394 = vpop.f32.mrb[0].mxu0
  %v2395 = vadd.f32 %v411, %v2394
  %v2396 = vpop.f32.mrb[0].mxu0
  %2397 = vmatprep.mubr.bf16.mxu0 0
  %2398 = vmatmul.mubr.bf16.gmra.mrb[0].mxu0 %v2355
  %v2399 = vpop.f32.mrb[0].mxu0
  %v2400 = vadd.f32 %v411, %v2399
  %v2401 = vpop.f32.mrb[0].mxu0
  %v2402 = vpop.f32.mrb[0].mxu0
  %v2403 = vpop.f32.mrb[0].mxu0
  %2404 = vdwg.mxu0
  %v2405 = vmax.f32 %v2392, 0.0
  %v2406 = vmax.f32 %v2395, 0.0
  %v2407 = vmax.f32 %v2400, 0.0
  %v2408 = vmul.f32 %v2405, %v498
  %v2409 = vmul.f32 %v2406, %v503
  %v2410 = vmul.f32 %v2407, %v508
  %v2411 = vmul.f32 %v2405, %v515
  %v2412 = vmul.f32 %v2406, %v519
  %v2413 = vmul.f32 %v2407, %v523
  %2417 = vrot.lane.b32.xlu0 %v2411, 112
  %v2418 = vpop.permute.xlu0 %2417
  %2419 = vrot.lane.b32.xlu0 %v2412, 112
  %v2420 = vpop.permute.xlu0 %2419
  %2421 = vrot.lane.b32.xlu0 %v2413, 112
  %v2422 = vpop.permute.xlu0 %2421
  %v2426 = vadd.f32 %v2408, %v2418
  %v2427 = vadd.f32 %v2409, %v2420
  %v2428 = vadd.f32 %v2410, %v2422
  %2429 = vmatprep.subr.mxu0 0.0
  %2430 = vmatpush1.msra.mxu0 %v2426
  %2431 = vmatprep.subr.mxu0 0.0
  %2432 = vmatpush1.msra.mxu0 %v2427
  %2433 = vmatprep.subr.mxu0 0.0
  %2434 = vmatpush1.msra.mxu0 %v2428
  %2435 = vmatprep.subr.mxu0 0.0
  %2436 = vmatpush1.msra.mxu0 0.0
  %2437 = vmatprep.subr.mxu0 0.0
  %2438 = vmatpush1.msra.mxu0 0.0
  %2439 = vmatprep.subr.mxu0 0.0
  %2440 = vmatpush1.msra.mxu0 0.0
  %2441 = vmatprep.subr.mxu0 0.0
  %2442 = vmatpush1.msra.mxu0 0.0
  %2443 = vmatprep.subr.mxu0 0.0
  %2444 = vmatpush1.msra.mxu0 0.0
  %2445 = vmatprep.subr.mxu0 0.0
  %2446 = vmatpush1.msra.mxu0 0.0
  %2447 = vmatprep.subr.mxu0 0.0
  %2448 = vmatpush1.msra.mxu0 0.0
  %2449 = vmatprep.subr.mxu0 0.0
  %2450 = vmatpush1.msra.mxu0 0.0
  %2451 = vmatprep.subr.mxu0 0.0
  %2452 = vmatpush1.msra.mxu0 0.0
  %2453 = vmatprep.subr.mxu0 0.0
  %2454 = vmatpush1.msra.mxu0 0.0
  %2455 = vmatprep.subr.mxu0 0.0
  %2456 = vmatpush1.msra.mxu0 0.0
  %2457 = vmatprep.subr.mxu0 0.0
  %2458 = vmatpush1.msra.mxu0 0.0
  %2459 = vmatprep.subr.mxu0 0.0
  %2460 = vmatpush1.msra.mxu0 0.0
  %2461 = vmatprep.subr.mxu0 0.0
  %2462 = vmatpush1.msra.mxu0 0.0
  %2463 = vmatprep.subr.mxu0 0.0
  %2464 = vmatpush1.msra.mxu0 0.0
  %2465 = vmatprep.subr.mxu0 0.0
  %2466 = vmatpush1.msra.mxu0 0.0
  %2467 = vmatprep.subr.mxu0 0.0
  %2468 = vmatpush1.msra.mxu0 0.0
  %2469 = vmatprep.subr.mxu0 0.0
  %2470 = vmatpush1.msra.mxu0 0.0
  %2471 = vmatprep.subr.mxu0 0.0
  %2472 = vmatpush1.msra.mxu0 0.0
  %2473 = vmatprep.subr.mxu0 0.0
  %2474 = vmatpush1.msra.mxu0 0.0
  %2475 = vmatprep.subr.mxu0 0.0
  %2476 = vmatpush1.msra.mxu0 0.0
  %2477 = vmatprep.subr.mxu0 0.0
  %2478 = vmatpush1.msra.mxu0 0.0
  %2479 = vmatprep.subr.mxu0 0.0
  %2480 = vmatpush1.msra.mxu0 0.0
  %2481 = vmatprep.subr.mxu0 0.0
  %2482 = vmatpush1.msra.mxu0 0.0
  %2483 = vmatprep.subr.mxu0 0.0
  %2484 = vmatpush1.msra.mxu0 0.0
  %2485 = vmatprep.subr.mxu0 0.0
  %2486 = vmatpush1.msra.mxu0 0.0
  %2487 = vmatprep.subr.mxu0 0.0
  %2488 = vmatpush1.msra.mxu0 0.0
  %2489 = vmatprep.subr.mxu0 0.0
  %2490 = vmatpush1.msra.mxu0 0.0
  %2491 = vmatprep.subr.mxu0 0.0
  %2492 = vmatpush1.msra.mxu0 0.0
  %2493 = vmatprep.mubr.f32.mxu0 0.0
  %2494 = vmatmul.mubr.f32.gmra.mrb[0].mxu0 %v545
  %v2495 = vpop.f32.mrb[0].mxu0
  %v2496 = vadd.f32 0.0, %v2495
  %v2497 = vpop.f32.mrb[0].mxu0
  %2498 = vdwg.mxu0
  %v2499 = vpack.c.bf16 %v2068, %v2068
  %v2500 = vpack.c.bf16 %v2496, %v2496
  %v2502 = vsel %vm625, %v2500, 0
  %2504 = vmatprep.subr.bf16.mxu0 0
  %2505 = vmatpush1.bf16.msra.mxu0 %v623
  %2506 = vmatprep.subr.bf16.mxu0 0
  %2507 = vmatpush1.bf16.msra.mxu0 0
  %2508 = vmatprep.subr.bf16.mxu0 0
  %2509 = vmatpush1.bf16.msra.mxu0 0
  %2510 = vmatprep.subr.bf16.mxu0 0
  %2511 = vmatpush1.bf16.msra.mxu0 0
  %2512 = vmatprep.subr.bf16.mxu0 0
  %2513 = vmatpush1.bf16.msra.mxu0 0
  %2514 = vmatprep.subr.bf16.mxu0 0
  %2515 = vmatpush1.bf16.msra.mxu0 0
  %2516 = vmatprep.subr.bf16.mxu0 0
  %2517 = vmatpush1.bf16.msra.mxu0 0
  %2518 = vmatprep.subr.bf16.mxu0 0
  %2519 = vmatpush1.bf16.msra.mxu0 0
  %2520 = vmatprep.subr.bf16.mxu0 0
  %2521 = vmatpush1.bf16.msra.mxu0 0
  %2522 = vmatprep.subr.bf16.mxu0 0
  %2523 = vmatpush1.bf16.msra.mxu0 0
  %2524 = vmatprep.subr.bf16.mxu0 0
  %2525 = vmatpush1.bf16.msra.mxu0 0
  %2526 = vmatprep.subr.bf16.mxu0 0
  %2527 = vmatpush1.bf16.msra.mxu0 0
  %2528 = vmatprep.subr.bf16.mxu0 0
  %2529 = vmatpush1.bf16.msra.mxu0 0
  %2530 = vmatprep.subr.bf16.mxu0 0
  %2531 = vmatpush1.bf16.msra.mxu0 0
  %2532 = vmatprep.subr.bf16.mxu0 0
  %2533 = vmatpush1.bf16.msra.mxu0 0
  %2534 = vmatprep.subr.bf16.mxu0 0
  %2535 = vmatpush1.bf16.msra.mxu0 0
  %2536 = vmatprep.mubr.bf16.mxu0 0
  %2537 = vmatmul.mubr.bf16.gmra.mrb[0].mxu0 %v2502
  %v2538 = vpop.f32.mrb[0].mxu0
  %v2539 = vadd.f32 0.0, %v2538
  %v2540 = vpop.f32.mrb[0].mxu0
  %v2541 = vpop.f32.mrb[0].mxu0
  %v2542 = vpop.f32.mrb[0].mxu0
  %2543 = vdwg.mxu0
  %v2545 = vsel %vm277, %v2499, 0
  %2547 = vmatprep.subr.bf16.mxu0 0
  %2548 = vmatpush1.bf16.msra.mxu0 %v673
  %2549 = vmatprep.subr.bf16.mxu0 0
  %2550 = vmatpush1.bf16.msra.mxu0 0
  %2551 = vmatprep.subr.bf16.mxu0 0
  %2552 = vmatpush1.bf16.msra.mxu0 0
  %2553 = vmatprep.subr.bf16.mxu0 0
  %2554 = vmatpush1.bf16.msra.mxu0 0
  %2555 = vmatprep.subr.bf16.mxu0 0
  %2556 = vmatpush1.bf16.msra.mxu0 0
  %2557 = vmatprep.subr.bf16.mxu0 0
  %2558 = vmatpush1.bf16.msra.mxu0 0
  %2559 = vmatprep.subr.bf16.mxu0 0
  %2560 = vmatpush1.bf16.msra.mxu0 0
  %2561 = vmatprep.subr.bf16.mxu0 0
  %2562 = vmatpush1.bf16.msra.mxu0 0
  %2563 = vmatprep.subr.bf16.mxu0 0
  %2564 = vmatpush1.bf16.msra.mxu0 0
  %2565 = vmatprep.subr.bf16.mxu0 0
  %2566 = vmatpush1.bf16.msra.mxu0 0
  %2567 = vmatprep.subr.bf16.mxu0 0
  %2568 = vmatpush1.bf16.msra.mxu0 0
  %2569 = vmatprep.subr.bf16.mxu0 0
  %2570 = vmatpush1.bf16.msra.mxu0 0
  %2571 = vmatprep.subr.bf16.mxu0 0
  %2572 = vmatpush1.bf16.msra.mxu0 0
  %2573 = vmatprep.subr.bf16.mxu0 0
  %2574 = vmatpush1.bf16.msra.mxu0 0
  %2575 = vmatprep.subr.bf16.mxu0 0
  %2576 = vmatpush1.bf16.msra.mxu0 0
  %2577 = vmatprep.subr.bf16.mxu0 0
  %2578 = vmatpush1.bf16.msra.mxu0 0
  %2579 = vmatprep.mubr.bf16.mxu0 0
  %2580 = vmatmul.mubr.bf16.gmra.mrb[0].mxu0 %v2545
  %v2581 = vpop.f32.mrb[0].mxu0
  %v2582 = vadd.f32 %v2539, %v2581
  %v2583 = vpop.f32.mrb[0].mxu0
  %v2584 = vpop.f32.mrb[0].mxu0
  %v2585 = vpop.f32.mrb[0].mxu0
  %2586 = vdwg.mxu0
  %v2587 = vadd.f32 %v2582, %v719
  %v2588 = vmax.f32 %v2587, 0.0
  %v2589 = vpack.c.bf16 %v2588, %v2588
  %v2591 = vsel %vm742, %v2589, 0
  %2593 = vmatprep.subr.bf16.mxu0 0
  %2594 = vmatpush1.bf16.msra.mxu0 %v738
  %2595 = vmatprep.subr.bf16.mxu0 0
  %2596 = vmatpush1.bf16.msra.mxu0 %v739
  %2597 = vmatprep.subr.bf16.mxu0 0
  %2598 = vmatpush1.bf16.msra.mxu0 0
  %2599 = vmatprep.subr.bf16.mxu0 0
  %2600 = vmatpush1.bf16.msra.mxu0 0
  %2601 = vmatprep.subr.bf16.mxu0 0
  %2602 = vmatpush1.bf16.msra.mxu0 0
  %2603 = vmatprep.subr.bf16.mxu0 0
  %2604 = vmatpush1.bf16.msra.mxu0 0
  %2605 = vmatprep.subr.bf16.mxu0 0
  %2606 = vmatpush1.bf16.msra.mxu0 0
  %2607 = vmatprep.subr.bf16.mxu0 0
  %2608 = vmatpush1.bf16.msra.mxu0 0
  %2609 = vmatprep.subr.bf16.mxu0 0
  %2610 = vmatpush1.bf16.msra.mxu0 0
  %2611 = vmatprep.subr.bf16.mxu0 0
  %2612 = vmatpush1.bf16.msra.mxu0 0
  %2613 = vmatprep.subr.bf16.mxu0 0
  %2614 = vmatpush1.bf16.msra.mxu0 0
  %2615 = vmatprep.subr.bf16.mxu0 0
  %2616 = vmatpush1.bf16.msra.mxu0 0
  %2617 = vmatprep.subr.bf16.mxu0 0
  %2618 = vmatpush1.bf16.msra.mxu0 0
  %2619 = vmatprep.subr.bf16.mxu0 0
  %2620 = vmatpush1.bf16.msra.mxu0 0
  %2621 = vmatprep.subr.bf16.mxu0 0
  %2622 = vmatpush1.bf16.msra.mxu0 0
  %2623 = vmatprep.subr.bf16.mxu0 0
  %2624 = vmatpush1.bf16.msra.mxu0 0
  %2625 = vmatprep.mubr.bf16.mxu0 0
  %2626 = vmatmul.mubr.bf16.gmra.mrb[0].mxu0 %v2591
  %v2627 = vpop.f32.mrb[0].mxu0
  %v2628 = vadd.f32 %v728, %v2627
  %v2629 = vpop.f32.mrb[0].mxu0
  %v2630 = vpop.f32.mrb[0].mxu0
  %v2631 = vpop.f32.mrb[0].mxu0
  %2632 = vdwg.mxu0
  %v2633 = vmax.f32 %v2628, 0.0
  %v2634 = vpack.c.bf16 %v2633, %v2633
  %v2636 = vsel %vm742, %v2634, 0
  %2638 = vmatprep.subr.bf16.mxu0 0
  %2639 = vmatpush1.bf16.msra.mxu0 %v802
  %2640 = vmatprep.subr.bf16.mxu0 0
  %2641 = vmatpush1.bf16.msra.mxu0 %v803
  %2642 = vmatprep.subr.bf16.mxu0 0
  %2643 = vmatpush1.bf16.msra.mxu0 0
  %2644 = vmatprep.subr.bf16.mxu0 0
  %2645 = vmatpush1.bf16.msra.mxu0 0
  %2646 = vmatprep.subr.bf16.mxu0 0
  %2647 = vmatpush1.bf16.msra.mxu0 0
  %2648 = vmatprep.subr.bf16.mxu0 0
  %2649 = vmatpush1.bf16.msra.mxu0 0
  %2650 = vmatprep.subr.bf16.mxu0 0
  %2651 = vmatpush1.bf16.msra.mxu0 0
  %2652 = vmatprep.subr.bf16.mxu0 0
  %2653 = vmatpush1.bf16.msra.mxu0 0
  %2654 = vmatprep.subr.bf16.mxu0 0
  %2655 = vmatpush1.bf16.msra.mxu0 0
  %2656 = vmatprep.subr.bf16.mxu0 0
  %2657 = vmatpush1.bf16.msra.mxu0 0
  %2658 = vmatprep.subr.bf16.mxu0 0
  %2659 = vmatpush1.bf16.msra.mxu0 0
  %2660 = vmatprep.subr.bf16.mxu0 0
  %2661 = vmatpush1.bf16.msra.mxu0 0
  %2662 = vmatprep.subr.bf16.mxu0 0
  %2663 = vmatpush1.bf16.msra.mxu0 0
  %2664 = vmatprep.subr.bf16.mxu0 0
  %2665 = vmatpush1.bf16.msra.mxu0 0
  %2666 = vmatprep.subr.bf16.mxu0 0
  %2667 = vmatpush1.bf16.msra.mxu0 0
  %2668 = vmatprep.subr.bf16.mxu0 0
  %2669 = vmatpush1.bf16.msra.mxu0 0
  %2670 = vmatprep.mubr.bf16.mxu0 0
  %2671 = vmatmul.mubr.bf16.gmra.mrb[0].mxu0 %v2636
  %v2672 = vpop.f32.mrb[0].mxu0
  %v2673 = vadd.f32 %v792, %v2672
  %v2674 = vpop.f32.mrb[0].mxu0
  %v2675 = vpop.f32.mrb[0].mxu0
  %v2676 = vpop.f32.mrb[0].mxu0
  %2677 = vdwg.mxu0
  %v2678 = vadd.f32 %v2068, %v2673
  %s2679 = scalar_lea.vmem %s17, 24
  %2680 = vst.msk [vmem:[%s2679] sm:$0xff] %vm277, %v2678
  %2681 = vmatprep.subr.mxu0 0.0
  %2682 = vmatpush1.msra.mxu0 %v2678
  %2683 = vmatprep.subr.mxu0 0.0
  %2684 = vmatpush1.msra.mxu0 0.0
  %2685 = vmatprep.subr.mxu0 0.0
  %2686 = vmatpush1.msra.mxu0 0.0
  %2687 = vmatprep.subr.mxu0 0.0
  %2688 = vmatpush1.msra.mxu0 0.0
  %2689 = vmatprep.subr.mxu0 0.0
  %2690 = vmatpush1.msra.mxu0 0.0
  %2691 = vmatprep.subr.mxu0 0.0
  %2692 = vmatpush1.msra.mxu0 0.0
  %2693 = vmatprep.subr.mxu0 0.0
  %2694 = vmatpush1.msra.mxu0 0.0
  %2695 = vmatprep.subr.mxu0 0.0
  %2696 = vmatpush1.msra.mxu0 0.0
  %2697 = vmatprep.subr.mxu0 0.0
  %2698 = vmatpush1.msra.mxu0 0.0
  %2699 = vmatprep.subr.mxu0 0.0
  %2700 = vmatpush1.msra.mxu0 0.0
  %2701 = vmatprep.subr.mxu0 0.0
  %2702 = vmatpush1.msra.mxu0 0.0
  %2703 = vmatprep.subr.mxu0 0.0
  %2704 = vmatpush1.msra.mxu0 0.0
  %2705 = vmatprep.subr.mxu0 0.0
  %2706 = vmatpush1.msra.mxu0 0.0
  %2707 = vmatprep.subr.mxu0 0.0
  %2708 = vmatpush1.msra.mxu0 0.0
  %2709 = vmatprep.subr.mxu0 0.0
  %2710 = vmatpush1.msra.mxu0 0.0
  %2711 = vmatprep.subr.mxu0 0.0
  %2712 = vmatpush1.msra.mxu0 0.0
  %2713 = vmatprep.subr.mxu0 0.0
  %2714 = vmatpush1.msra.mxu0 0.0
  %2715 = vmatprep.subr.mxu0 0.0
  %2716 = vmatpush1.msra.mxu0 0.0
  %2717 = vmatprep.subr.mxu0 0.0
  %2718 = vmatpush1.msra.mxu0 0.0
  %2719 = vmatprep.subr.mxu0 0.0
  %2720 = vmatpush1.msra.mxu0 0.0
  %2721 = vmatprep.subr.mxu0 0.0
  %2722 = vmatpush1.msra.mxu0 0.0
  %2723 = vmatprep.subr.mxu0 0.0
  %2724 = vmatpush1.msra.mxu0 0.0
  %2725 = vmatprep.subr.mxu0 0.0
  %2726 = vmatpush1.msra.mxu0 0.0
  %2727 = vmatprep.subr.mxu0 0.0
  %2728 = vmatpush1.msra.mxu0 0.0
  %2729 = vmatprep.subr.mxu0 0.0
  %2730 = vmatpush1.msra.mxu0 0.0
  %2731 = vmatprep.subr.mxu0 0.0
  %2732 = vmatpush1.msra.mxu0 0.0
  %2733 = vmatprep.subr.mxu0 0.0
  %2734 = vmatpush1.msra.mxu0 0.0
  %2735 = vmatprep.subr.mxu0 0.0
  %2736 = vmatpush1.msra.mxu0 0.0
  %2737 = vmatprep.subr.mxu0 0.0
  %2738 = vmatpush1.msra.mxu0 0.0
  %2739 = vmatprep.subr.mxu0 0.0
  %2740 = vmatpush1.msra.mxu0 0.0
  %2741 = vmatprep.subr.mxu0 0.0
  %2742 = vmatpush1.msra.mxu0 0.0
  %2743 = vmatprep.subr.mxu0 0.0
  %2744 = vmatpush1.msra.mxu0 0.0
  %2745 = vmatprep.mubr.f32.mxu0 0.0
  %2746 = vmatmul.mubr.f32.gmra.mrb[0].mxu0 %v96
  %v2747 = vpop.f32.mrb[0].mxu0
  %v2748 = vadd.f32 0.0, %v2747
  %v2749 = vpop.f32.mrb[0].mxu0
  %2750 = vmatprep.mubr.f32.mxu0 0.0
  %2751 = vmatmul.mubr.f32.gmra.mrb[0].mxu0 %v99
  %v2752 = vpop.f32.mrb[0].mxu0
  %v2753 = vadd.f32 0.0, %v2752
  %v2754 = vpop.f32.mrb[0].mxu0
  %2755 = vmatprep.mubr.f32.mxu0 0.0
  %2756 = vmatmul.mubr.f32.gmra.mrb[0].mxu0 %v102
  %v2757 = vpop.f32.mrb[0].mxu0
  %v2758 = vadd.f32 0.0, %v2757
  %v2759 = vpop.f32.mrb[0].mxu0
  %2760 = vdwg.mxu0
  %2761 = vmatprep.subr.mxu0 0.0
  %2762 = vmatpush1.msra.mxu0 %v2678
  %2763 = vmatprep.subr.mxu0 0.0
  %2764 = vmatpush1.msra.mxu0 0.0
  %2765 = vmatprep.subr.mxu0 0.0
  %2766 = vmatpush1.msra.mxu0 0.0
  %2767 = vmatprep.subr.mxu0 0.0
  %2768 = vmatpush1.msra.mxu0 0.0
  %2769 = vmatprep.subr.mxu0 0.0
  %2770 = vmatpush1.msra.mxu0 0.0
  %2771 = vmatprep.subr.mxu0 0.0
  %2772 = vmatpush1.msra.mxu0 0.0
  %2773 = vmatprep.subr.mxu0 0.0
  %2774 = vmatpush1.msra.mxu0 0.0
  %2775 = vmatprep.subr.mxu0 0.0
  %2776 = vmatpush1.msra.mxu0 0.0
  %2777 = vmatprep.subr.mxu0 0.0
  %2778 = vmatpush1.msra.mxu0 0.0
  %2779 = vmatprep.subr.mxu0 0.0
  %2780 = vmatpush1.msra.mxu0 0.0
  %2781 = vmatprep.subr.mxu0 0.0
  %2782 = vmatpush1.msra.mxu0 0.0
  %2783 = vmatprep.subr.mxu0 0.0
  %2784 = vmatpush1.msra.mxu0 0.0
  %2785 = vmatprep.subr.mxu0 0.0
  %2786 = vmatpush1.msra.mxu0 0.0
  %2787 = vmatprep.subr.mxu0 0.0
  %2788 = vmatpush1.msra.mxu0 0.0
  %2789 = vmatprep.subr.mxu0 0.0
  %2790 = vmatpush1.msra.mxu0 0.0
  %2791 = vmatprep.subr.mxu0 0.0
  %2792 = vmatpush1.msra.mxu0 0.0
  %2793 = vmatprep.subr.mxu0 0.0
  %2794 = vmatpush1.msra.mxu0 0.0
  %2795 = vmatprep.subr.mxu0 0.0
  %2796 = vmatpush1.msra.mxu0 0.0
  %2797 = vmatprep.subr.mxu0 0.0
  %2798 = vmatpush1.msra.mxu0 0.0
  %2799 = vmatprep.subr.mxu0 0.0
  %2800 = vmatpush1.msra.mxu0 0.0
  %2801 = vmatprep.subr.mxu0 0.0
  %2802 = vmatpush1.msra.mxu0 0.0
  %2803 = vmatprep.subr.mxu0 0.0
  %2804 = vmatpush1.msra.mxu0 0.0
  %2805 = vmatprep.subr.mxu0 0.0
  %2806 = vmatpush1.msra.mxu0 0.0
  %2807 = vmatprep.subr.mxu0 0.0
  %2808 = vmatpush1.msra.mxu0 0.0
  %2809 = vmatprep.subr.mxu0 0.0
  %2810 = vmatpush1.msra.mxu0 0.0
  %2811 = vmatprep.subr.mxu0 0.0
  %2812 = vmatpush1.msra.mxu0 0.0
  %2813 = vmatprep.subr.mxu0 0.0
  %2814 = vmatpush1.msra.mxu0 0.0
  %2815 = vmatprep.subr.mxu0 0.0
  %2816 = vmatpush1.msra.mxu0 0.0
  %2817 = vmatprep.subr.mxu0 0.0
  %2818 = vmatpush1.msra.mxu0 0.0
  %2819 = vmatprep.subr.mxu0 0.0
  %2820 = vmatpush1.msra.mxu0 0.0
  %2821 = vmatprep.subr.mxu0 0.0
  %2822 = vmatpush1.msra.mxu0 0.0
  %2823 = vmatprep.subr.mxu0 0.0
  %2824 = vmatpush1.msra.mxu0 0.0
  %2825 = vmatprep.mubr.f32.mxu0 0.0
  %2826 = vmatmul.mubr.f32.gmra.mrb[0].mxu0 %v185
  %v2827 = vpop.f32.mrb[0].mxu0
  %v2828 = vadd.f32 0.0, %v2827
  %v2829 = vpop.f32.mrb[0].mxu0
  %2830 = vmatprep.mubr.f32.mxu0 0.0
  %2831 = vmatmul.mubr.f32.gmra.mrb[0].mxu0 %v188
  %v2832 = vpop.f32.mrb[0].mxu0
  %v2833 = vadd.f32 0.0, %v2832
  %v2834 = vpop.f32.mrb[0].mxu0
  %2835 = vmatprep.mubr.f32.mxu0 0.0
  %2836 = vmatmul.mubr.f32.gmra.mrb[0].mxu0 %v191
  %v2837 = vpop.f32.mrb[0].mxu0
  %v2838 = vadd.f32 0.0, %v2837
  %v2839 = vpop.f32.mrb[0].mxu0
  %2840 = vdwg.mxu0
  %v2841 = vpack.c.bf16 %v2753, %v2748
  %v2842 = vpack.c.bf16 %v2758, %v2758
  %v2843 = vpack.c.bf16 %v2833, %v2828
  %v2844 = vpack.c.bf16 %v2838, %v2838
  %v2846 = vsel %vm277, %v2843, 0
  %v2849 = vsel %vm277, %v2844, 0
  %2851 = vmatprep.subr.bf16.mxu0 0
  %2852 = vmatpush1.bf16.msra.mxu0 %v286
  %2853 = vmatprep.subr.bf16.mxu0 0
  %2854 = vmatpush1.bf16.msra.mxu0 0
  %2855 = vmatprep.subr.bf16.mxu0 0
  %2856 = vmatpush1.bf16.msra.mxu0 0
  %2857 = vmatprep.subr.bf16.mxu0 0
  %2858 = vmatpush1.bf16.msra.mxu0 0
  %2859 = vmatprep.subr.bf16.mxu0 0
  %2860 = vmatpush1.bf16.msra.mxu0 0
  %2861 = vmatprep.subr.bf16.mxu0 0
  %2862 = vmatpush1.bf16.msra.mxu0 0
  %2863 = vmatprep.subr.bf16.mxu0 0
  %2864 = vmatpush1.bf16.msra.mxu0 0
  %2865 = vmatprep.subr.bf16.mxu0 0
  %2866 = vmatpush1.bf16.msra.mxu0 0
  %2867 = vmatprep.subr.bf16.mxu0 0
  %2868 = vmatpush1.bf16.msra.mxu0 0
  %2869 = vmatprep.subr.bf16.mxu0 0
  %2870 = vmatpush1.bf16.msra.mxu0 0
  %2871 = vmatprep.subr.bf16.mxu0 0
  %2872 = vmatpush1.bf16.msra.mxu0 0
  %2873 = vmatprep.subr.bf16.mxu0 0
  %2874 = vmatpush1.bf16.msra.mxu0 0
  %2875 = vmatprep.subr.bf16.mxu0 0
  %2876 = vmatpush1.bf16.msra.mxu0 0
  %2877 = vmatprep.subr.bf16.mxu0 0
  %2878 = vmatpush1.bf16.msra.mxu0 0
  %2879 = vmatprep.subr.bf16.mxu0 0
  %2880 = vmatpush1.bf16.msra.mxu0 0
  %2881 = vmatprep.subr.bf16.mxu0 0
  %2882 = vmatpush1.bf16.msra.mxu0 0
  %2883 = vmatprep.mubr.bf16.mxu0 0
  %2884 = vmatmul.mubr.bf16.gmra.mrb[0].mxu0 %v2846
  %v2885 = vpop.f32.mrb[0].mxu0
  %v2886 = vadd.f32 0.0, %v2885
  %v2887 = vpop.f32.mrb[0].mxu0
  %v2888 = vpop.f32.mrb[0].mxu0
  %v2889 = vadd.f32 0.0, %v2888
  %v2890 = vpop.f32.mrb[0].mxu0
  %2891 = vmatprep.mubr.bf16.mxu0 0
  %2892 = vmatmul.mubr.bf16.gmra.mrb[0].mxu0 %v2849
  %v2893 = vpop.f32.mrb[0].mxu0
  %v2894 = vadd.f32 0.0, %v2893
  %v2895 = vpop.f32.mrb[0].mxu0
  %v2896 = vpop.f32.mrb[0].mxu0
  %v2897 = vpop.f32.mrb[0].mxu0
  %2898 = vdwg.mxu0
  %v2900 = vsel %vm277, %v2841, 0
  %v2903 = vsel %vm277, %v2842, 0
  %2905 = vmatprep.subr.bf16.mxu0 0
  %2906 = vmatpush1.bf16.msra.mxu0 %v343
  %2907 = vmatprep.subr.bf16.mxu0 0
  %2908 = vmatpush1.bf16.msra.mxu0 0
  %2909 = vmatprep.subr.bf16.mxu0 0
  %2910 = vmatpush1.bf16.msra.mxu0 0
  %2911 = vmatprep.subr.bf16.mxu0 0
  %2912 = vmatpush1.bf16.msra.mxu0 0
  %2913 = vmatprep.subr.bf16.mxu0 0
  %2914 = vmatpush1.bf16.msra.mxu0 0
  %2915 = vmatprep.subr.bf16.mxu0 0
  %2916 = vmatpush1.bf16.msra.mxu0 0
  %2917 = vmatprep.subr.bf16.mxu0 0
  %2918 = vmatpush1.bf16.msra.mxu0 0
  %2919 = vmatprep.subr.bf16.mxu0 0
  %2920 = vmatpush1.bf16.msra.mxu0 0
  %2921 = vmatprep.subr.bf16.mxu0 0
  %2922 = vmatpush1.bf16.msra.mxu0 0
  %2923 = vmatprep.subr.bf16.mxu0 0
  %2924 = vmatpush1.bf16.msra.mxu0 0
  %2925 = vmatprep.subr.bf16.mxu0 0
  %2926 = vmatpush1.bf16.msra.mxu0 0
  %2927 = vmatprep.subr.bf16.mxu0 0
  %2928 = vmatpush1.bf16.msra.mxu0 0
  %2929 = vmatprep.subr.bf16.mxu0 0
  %2930 = vmatpush1.bf16.msra.mxu0 0
  %2931 = vmatprep.subr.bf16.mxu0 0
  %2932 = vmatpush1.bf16.msra.mxu0 0
  %2933 = vmatprep.subr.bf16.mxu0 0
  %2934 = vmatpush1.bf16.msra.mxu0 0
  %2935 = vmatprep.subr.bf16.mxu0 0
  %2936 = vmatpush1.bf16.msra.mxu0 0
  %2937 = vmatprep.mubr.bf16.mxu0 0
  %2938 = vmatmul.mubr.bf16.gmra.mrb[0].mxu0 %v2900
  %v2939 = vpop.f32.mrb[0].mxu0
  %v2940 = vadd.f32 %v2886, %v2939
  %v2941 = vpop.f32.mrb[0].mxu0
  %v2942 = vpop.f32.mrb[0].mxu0
  %v2943 = vadd.f32 %v2889, %v2942
  %v2944 = vpop.f32.mrb[0].mxu0
  %2945 = vmatprep.mubr.bf16.mxu0 0
  %2946 = vmatmul.mubr.bf16.gmra.mrb[0].mxu0 %v2903
  %v2947 = vpop.f32.mrb[0].mxu0
  %v2948 = vadd.f32 %v2894, %v2947
  %v2949 = vpop.f32.mrb[0].mxu0
  %v2950 = vpop.f32.mrb[0].mxu0
  %v2951 = vpop.f32.mrb[0].mxu0
  %2952 = vdwg.mxu0
  %v2953 = vadd.f32 %v2940, %v397
  %v2954 = vadd.f32 %v2943, %v397
  %v2955 = vadd.f32 %v2948, %v397
  %v2956 = vmax.f32 %v2953, 0.0
  %v2957 = vmax.f32 %v2954, 0.0
  %v2958 = vmax.f32 %v2955, 0.0
  %v2959 = vpack.c.bf16 %v2957, %v2956
  %v2960 = vpack.c.bf16 %v2958, %v2958
  %v2962 = vsel %vm437, %v2959, 0
  %v2965 = vsel %vm437, %v2960, 0
  %2967 = vmatprep.subr.bf16.mxu0 0
  %2968 = vmatpush1.bf16.msra.mxu0 %v429
  %2969 = vmatprep.subr.bf16.mxu0 0
  %2970 = vmatpush1.bf16.msra.mxu0 %v430
  %2971 = vmatprep.subr.bf16.mxu0 0
  %2972 = vmatpush1.bf16.msra.mxu0 %v431
  %2973 = vmatprep.subr.bf16.mxu0 0
  %2974 = vmatpush1.bf16.msra.mxu0 %v432
  %2975 = vmatprep.subr.bf16.mxu0 0
  %2976 = vmatpush1.bf16.msra.mxu0 0
  %2977 = vmatprep.subr.bf16.mxu0 0
  %2978 = vmatpush1.bf16.msra.mxu0 0
  %2979 = vmatprep.subr.bf16.mxu0 0
  %2980 = vmatpush1.bf16.msra.mxu0 0
  %2981 = vmatprep.subr.bf16.mxu0 0
  %2982 = vmatpush1.bf16.msra.mxu0 0
  %2983 = vmatprep.subr.bf16.mxu0 0
  %2984 = vmatpush1.bf16.msra.mxu0 0
  %2985 = vmatprep.subr.bf16.mxu0 0
  %2986 = vmatpush1.bf16.msra.mxu0 0
  %2987 = vmatprep.subr.bf16.mxu0 0
  %2988 = vmatpush1.bf16.msra.mxu0 0
  %2989 = vmatprep.subr.bf16.mxu0 0
  %2990 = vmatpush1.bf16.msra.mxu0 0
  %2991 = vmatprep.subr.bf16.mxu0 0
  %2992 = vmatpush1.bf16.msra.mxu0 0
  %2993 = vmatprep.subr.bf16.mxu0 0
  %2994 = vmatpush1.bf16.msra.mxu0 0
  %2995 = vmatprep.subr.bf16.mxu0 0
  %2996 = vmatpush1.bf16.msra.mxu0 0
  %2997 = vmatprep.subr.bf16.mxu0 0
  %2998 = vmatpush1.bf16.msra.mxu0 0
  %2999 = vmatprep.mubr.bf16.mxu0 0
  %3000 = vmatmul.mubr.bf16.gmra.mrb[0].mxu0 %v2962
  %v3001 = vpop.f32.mrb[0].mxu0
  %v3002 = vadd.f32 %v411, %v3001
  %v3003 = vpop.f32.mrb[0].mxu0
  %v3004 = vpop.f32.mrb[0].mxu0
  %v3005 = vadd.f32 %v411, %v3004
  %v3006 = vpop.f32.mrb[0].mxu0
  %3007 = vmatprep.mubr.bf16.mxu0 0
  %3008 = vmatmul.mubr.bf16.gmra.mrb[0].mxu0 %v2965
  %v3009 = vpop.f32.mrb[0].mxu0
  %v3010 = vadd.f32 %v411, %v3009
  %v3011 = vpop.f32.mrb[0].mxu0
  %v3012 = vpop.f32.mrb[0].mxu0
  %v3013 = vpop.f32.mrb[0].mxu0
  %3014 = vdwg.mxu0
  %v3015 = vmax.f32 %v3002, 0.0
  %v3016 = vmax.f32 %v3005, 0.0
  %v3017 = vmax.f32 %v3010, 0.0
  %v3018 = vmul.f32 %v3015, %v498
  %v3019 = vmul.f32 %v3016, %v503
  %v3020 = vmul.f32 %v3017, %v508
  %v3021 = vmul.f32 %v3015, %v515
  %v3022 = vmul.f32 %v3016, %v519
  %v3023 = vmul.f32 %v3017, %v523
  %3027 = vrot.lane.b32.xlu0 %v3021, 112
  %v3028 = vpop.permute.xlu0 %3027
  %3029 = vrot.lane.b32.xlu0 %v3022, 112
  %v3030 = vpop.permute.xlu0 %3029
  %3031 = vrot.lane.b32.xlu0 %v3023, 112
  %v3032 = vpop.permute.xlu0 %3031
  %v3036 = vadd.f32 %v3018, %v3028
  %v3037 = vadd.f32 %v3019, %v3030
  %v3038 = vadd.f32 %v3020, %v3032
  %3039 = vmatprep.subr.mxu0 0.0
  %3040 = vmatpush1.msra.mxu0 %v3036
  %3041 = vmatprep.subr.mxu0 0.0
  %3042 = vmatpush1.msra.mxu0 %v3037
  %3043 = vmatprep.subr.mxu0 0.0
  %3044 = vmatpush1.msra.mxu0 %v3038
  %3045 = vmatprep.subr.mxu0 0.0
  %3046 = vmatpush1.msra.mxu0 0.0
  %3047 = vmatprep.subr.mxu0 0.0
  %3048 = vmatpush1.msra.mxu0 0.0
  %3049 = vmatprep.subr.mxu0 0.0
  %3050 = vmatpush1.msra.mxu0 0.0
  %3051 = vmatprep.subr.mxu0 0.0
  %3052 = vmatpush1.msra.mxu0 0.0
  %3053 = vmatprep.subr.mxu0 0.0
  %3054 = vmatpush1.msra.mxu0 0.0
  %3055 = vmatprep.subr.mxu0 0.0
  %3056 = vmatpush1.msra.mxu0 0.0
  %3057 = vmatprep.subr.mxu0 0.0
  %3058 = vmatpush1.msra.mxu0 0.0
  %3059 = vmatprep.subr.mxu0 0.0
  %3060 = vmatpush1.msra.mxu0 0.0
  %3061 = vmatprep.subr.mxu0 0.0
  %3062 = vmatpush1.msra.mxu0 0.0
  %3063 = vmatprep.subr.mxu0 0.0
  %3064 = vmatpush1.msra.mxu0 0.0
  %3065 = vmatprep.subr.mxu0 0.0
  %3066 = vmatpush1.msra.mxu0 0.0
  %3067 = vmatprep.subr.mxu0 0.0
  %3068 = vmatpush1.msra.mxu0 0.0
  %3069 = vmatprep.subr.mxu0 0.0
  %3070 = vmatpush1.msra.mxu0 0.0
  %3071 = vmatprep.subr.mxu0 0.0
  %3072 = vmatpush1.msra.mxu0 0.0
  %3073 = vmatprep.subr.mxu0 0.0
  %3074 = vmatpush1.msra.mxu0 0.0
  %3075 = vmatprep.subr.mxu0 0.0
  %3076 = vmatpush1.msra.mxu0 0.0
  %3077 = vmatprep.subr.mxu0 0.0
  %3078 = vmatpush1.msra.mxu0 0.0
  %3079 = vmatprep.subr.mxu0 0.0
  %3080 = vmatpush1.msra.mxu0 0.0
  %3081 = vmatprep.subr.mxu0 0.0
  %3082 = vmatpush1.msra.mxu0 0.0
  %3083 = vmatprep.subr.mxu0 0.0
  %3084 = vmatpush1.msra.mxu0 0.0
  %3085 = vmatprep.subr.mxu0 0.0
  %3086 = vmatpush1.msra.mxu0 0.0
  %3087 = vmatprep.subr.mxu0 0.0
  %3088 = vmatpush1.msra.mxu0 0.0
  %3089 = vmatprep.subr.mxu0 0.0
  %3090 = vmatpush1.msra.mxu0 0.0
  %3091 = vmatprep.subr.mxu0 0.0
  %3092 = vmatpush1.msra.mxu0 0.0
  %3093 = vmatprep.subr.mxu0 0.0
  %3094 = vmatpush1.msra.mxu0 0.0
  %3095 = vmatprep.subr.mxu0 0.0
  %3096 = vmatpush1.msra.mxu0 0.0
  %3097 = vmatprep.subr.mxu0 0.0
  %3098 = vmatpush1.msra.mxu0 0.0
  %3099 = vmatprep.subr.mxu0 0.0
  %3100 = vmatpush1.msra.mxu0 0.0
  %3101 = vmatprep.subr.mxu0 0.0
  %3102 = vmatpush1.msra.mxu0 0.0
  %3103 = vmatprep.mubr.f32.mxu0 0.0
  %3104 = vmatmul.mubr.f32.gmra.mrb[0].mxu0 %v545
  %v3105 = vpop.f32.mrb[0].mxu0
  %v3106 = vadd.f32 0.0, %v3105
  %v3107 = vpop.f32.mrb[0].mxu0
  %3108 = vdwg.mxu0
  %v3109 = vpack.c.bf16 %v2678, %v2678
  %v3110 = vpack.c.bf16 %v3106, %v3106
  %v3112 = vsel %vm625, %v3110, 0
  %3114 = vmatprep.subr.bf16.mxu0 0
  %3115 = vmatpush1.bf16.msra.mxu0 %v623
  %3116 = vmatprep.subr.bf16.mxu0 0
  %3117 = vmatpush1.bf16.msra.mxu0 0
  %3118 = vmatprep.subr.bf16.mxu0 0
  %3119 = vmatpush1.bf16.msra.mxu0 0
  %3120 = vmatprep.subr.bf16.mxu0 0
  %3121 = vmatpush1.bf16.msra.mxu0 0
  %3122 = vmatprep.subr.bf16.mxu0 0
  %3123 = vmatpush1.bf16.msra.mxu0 0
  %3124 = vmatprep.subr.bf16.mxu0 0
  %3125 = vmatpush1.bf16.msra.mxu0 0
  %3126 = vmatprep.subr.bf16.mxu0 0
  %3127 = vmatpush1.bf16.msra.mxu0 0
  %3128 = vmatprep.subr.bf16.mxu0 0
  %3129 = vmatpush1.bf16.msra.mxu0 0
  %3130 = vmatprep.subr.bf16.mxu0 0
  %3131 = vmatpush1.bf16.msra.mxu0 0
  %3132 = vmatprep.subr.bf16.mxu0 0
  %3133 = vmatpush1.bf16.msra.mxu0 0
  %3134 = vmatprep.subr.bf16.mxu0 0
  %3135 = vmatpush1.bf16.msra.mxu0 0
  %3136 = vmatprep.subr.bf16.mxu0 0
  %3137 = vmatpush1.bf16.msra.mxu0 0
  %3138 = vmatprep.subr.bf16.mxu0 0
  %3139 = vmatpush1.bf16.msra.mxu0 0
  %3140 = vmatprep.subr.bf16.mxu0 0
  %3141 = vmatpush1.bf16.msra.mxu0 0
  %3142 = vmatprep.subr.bf16.mxu0 0
  %3143 = vmatpush1.bf16.msra.mxu0 0
  %3144 = vmatprep.subr.bf16.mxu0 0
  %3145 = vmatpush1.bf16.msra.mxu0 0
  %3146 = vmatprep.mubr.bf16.mxu0 0
  %3147 = vmatmul.mubr.bf16.gmra.mrb[0].mxu0 %v3112
  %v3148 = vpop.f32.mrb[0].mxu0
  %v3149 = vadd.f32 0.0, %v3148
  %v3150 = vpop.f32.mrb[0].mxu0
  %v3151 = vpop.f32.mrb[0].mxu0
  %v3152 = vpop.f32.mrb[0].mxu0
  %3153 = vdwg.mxu0
  %v3155 = vsel %vm277, %v3109, 0
  %3157 = vmatprep.subr.bf16.mxu0 0
  %3158 = vmatpush1.bf16.msra.mxu0 %v673
  %3159 = vmatprep.subr.bf16.mxu0 0
  %3160 = vmatpush1.bf16.msra.mxu0 0
  %3161 = vmatprep.subr.bf16.mxu0 0
  %3162 = vmatpush1.bf16.msra.mxu0 0
  %3163 = vmatprep.subr.bf16.mxu0 0
  %3164 = vmatpush1.bf16.msra.mxu0 0
  %3165 = vmatprep.subr.bf16.mxu0 0
  %3166 = vmatpush1.bf16.msra.mxu0 0
  %3167 = vmatprep.subr.bf16.mxu0 0
  %3168 = vmatpush1.bf16.msra.mxu0 0
  %3169 = vmatprep.subr.bf16.mxu0 0
  %3170 = vmatpush1.bf16.msra.mxu0 0
  %3171 = vmatprep.subr.bf16.mxu0 0
  %3172 = vmatpush1.bf16.msra.mxu0 0
  %3173 = vmatprep.subr.bf16.mxu0 0
  %3174 = vmatpush1.bf16.msra.mxu0 0
  %3175 = vmatprep.subr.bf16.mxu0 0
  %3176 = vmatpush1.bf16.msra.mxu0 0
  %3177 = vmatprep.subr.bf16.mxu0 0
  %3178 = vmatpush1.bf16.msra.mxu0 0
  %3179 = vmatprep.subr.bf16.mxu0 0
  %3180 = vmatpush1.bf16.msra.mxu0 0
  %3181 = vmatprep.subr.bf16.mxu0 0
  %3182 = vmatpush1.bf16.msra.mxu0 0
  %3183 = vmatprep.subr.bf16.mxu0 0
  %3184 = vmatpush1.bf16.msra.mxu0 0
  %3185 = vmatprep.subr.bf16.mxu0 0
  %3186 = vmatpush1.bf16.msra.mxu0 0
  %3187 = vmatprep.subr.bf16.mxu0 0
  %3188 = vmatpush1.bf16.msra.mxu0 0
  %3189 = vmatprep.mubr.bf16.mxu0 0
  %3190 = vmatmul.mubr.bf16.gmra.mrb[0].mxu0 %v3155
  %v3191 = vpop.f32.mrb[0].mxu0
  %v3192 = vadd.f32 %v3149, %v3191
  %v3193 = vpop.f32.mrb[0].mxu0
  %v3194 = vpop.f32.mrb[0].mxu0
  %v3195 = vpop.f32.mrb[0].mxu0
  %3196 = vdwg.mxu0
  %v3197 = vadd.f32 %v3192, %v719
  %v3198 = vmax.f32 %v3197, 0.0
  %v3199 = vpack.c.bf16 %v3198, %v3198
  %v3201 = vsel %vm742, %v3199, 0
  %3203 = vmatprep.subr.bf16.mxu0 0
  %3204 = vmatpush1.bf16.msra.mxu0 %v738
  %3205 = vmatprep.subr.bf16.mxu0 0
  %3206 = vmatpush1.bf16.msra.mxu0 %v739
  %3207 = vmatprep.subr.bf16.mxu0 0
  %3208 = vmatpush1.bf16.msra.mxu0 0
  %3209 = vmatprep.subr.bf16.mxu0 0
  %3210 = vmatpush1.bf16.msra.mxu0 0
  %3211 = vmatprep.subr.bf16.mxu0 0
  %3212 = vmatpush1.bf16.msra.mxu0 0
  %3213 = vmatprep.subr.bf16.mxu0 0
  %3214 = vmatpush1.bf16.msra.mxu0 0
  %3215 = vmatprep.subr.bf16.mxu0 0
  %3216 = vmatpush1.bf16.msra.mxu0 0
  %3217 = vmatprep.subr.bf16.mxu0 0
  %3218 = vmatpush1.bf16.msra.mxu0 0
  %3219 = vmatprep.subr.bf16.mxu0 0
  %3220 = vmatpush1.bf16.msra.mxu0 0
  %3221 = vmatprep.subr.bf16.mxu0 0
  %3222 = vmatpush1.bf16.msra.mxu0 0
  %3223 = vmatprep.subr.bf16.mxu0 0
  %3224 = vmatpush1.bf16.msra.mxu0 0
  %3225 = vmatprep.subr.bf16.mxu0 0
  %3226 = vmatpush1.bf16.msra.mxu0 0
  %3227 = vmatprep.subr.bf16.mxu0 0
  %3228 = vmatpush1.bf16.msra.mxu0 0
  %3229 = vmatprep.subr.bf16.mxu0 0
  %3230 = vmatpush1.bf16.msra.mxu0 0
  %3231 = vmatprep.subr.bf16.mxu0 0
  %3232 = vmatpush1.bf16.msra.mxu0 0
  %3233 = vmatprep.subr.bf16.mxu0 0
  %3234 = vmatpush1.bf16.msra.mxu0 0
  %3235 = vmatprep.mubr.bf16.mxu0 0
  %3236 = vmatmul.mubr.bf16.gmra.mrb[0].mxu0 %v3201
  %v3237 = vpop.f32.mrb[0].mxu0
  %v3238 = vadd.f32 %v728, %v3237
  %v3239 = vpop.f32.mrb[0].mxu0
  %v3240 = vpop.f32.mrb[0].mxu0
  %v3241 = vpop.f32.mrb[0].mxu0
  %3242 = vdwg.mxu0
  %v3243 = vmax.f32 %v3238, 0.0
  %v3244 = vpack.c.bf16 %v3243, %v3243
  %v3246 = vsel %vm742, %v3244, 0
  %3248 = vmatprep.subr.bf16.mxu0 0
  %3249 = vmatpush1.bf16.msra.mxu0 %v802
  %3250 = vmatprep.subr.bf16.mxu0 0
  %3251 = vmatpush1.bf16.msra.mxu0 %v803
  %3252 = vmatprep.subr.bf16.mxu0 0
  %3253 = vmatpush1.bf16.msra.mxu0 0
  %3254 = vmatprep.subr.bf16.mxu0 0
  %3255 = vmatpush1.bf16.msra.mxu0 0
  %3256 = vmatprep.subr.bf16.mxu0 0
  %3257 = vmatpush1.bf16.msra.mxu0 0
  %3258 = vmatprep.subr.bf16.mxu0 0
  %3259 = vmatpush1.bf16.msra.mxu0 0
  %3260 = vmatprep.subr.bf16.mxu0 0
  %3261 = vmatpush1.bf16.msra.mxu0 0
  %3262 = vmatprep.subr.bf16.mxu0 0
  %3263 = vmatpush1.bf16.msra.mxu0 0
  %3264 = vmatprep.subr.bf16.mxu0 0
  %3265 = vmatpush1.bf16.msra.mxu0 0
  %3266 = vmatprep.subr.bf16.mxu0 0
  %3267 = vmatpush1.bf16.msra.mxu0 0
  %3268 = vmatprep.subr.bf16.mxu0 0
  %3269 = vmatpush1.bf16.msra.mxu0 0
  %3270 = vmatprep.subr.bf16.mxu0 0
  %3271 = vmatpush1.bf16.msra.mxu0 0
  %3272 = vmatprep.subr.bf16.mxu0 0
  %3273 = vmatpush1.bf16.msra.mxu0 0
  %3274 = vmatprep.subr.bf16.mxu0 0
  %3275 = vmatpush1.bf16.msra.mxu0 0
  %3276 = vmatprep.subr.bf16.mxu0 0
  %3277 = vmatpush1.bf16.msra.mxu0 0
  %3278 = vmatprep.subr.bf16.mxu0 0
  %3279 = vmatpush1.bf16.msra.mxu0 0
  %3280 = vmatprep.mubr.bf16.mxu0 0
  %3281 = vmatmul.mubr.bf16.gmra.mrb[0].mxu0 %v3246
  %v3282 = vpop.f32.mrb[0].mxu0
  %v3283 = vadd.f32 %v792, %v3282
  %v3284 = vpop.f32.mrb[0].mxu0
  %v3285 = vpop.f32.mrb[0].mxu0
  %v3286 = vpop.f32.mrb[0].mxu0
  %3287 = vdwg.mxu0
  %v3288 = vadd.f32 %v2678, %v3283
  %s3289 = scalar_lea.vmem %s17, 32
  %3290 = vst.msk [vmem:[%s3289] sm:$0xff] %vm277, %v3288
  %3291 = vmatprep.subr.mxu0 0.0
  %3292 = vmatpush1.msra.mxu0 %v3288
  %3293 = vmatprep.subr.mxu0 0.0
  %3294 = vmatpush1.msra.mxu0 0.0
  %3295 = vmatprep.subr.mxu0 0.0
  %3296 = vmatpush1.msra.mxu0 0.0
  %3297 = vmatprep.subr.mxu0 0.0
  %3298 = vmatpush1.msra.mxu0 0.0
  %3299 = vmatprep.subr.mxu0 0.0
  %3300 = vmatpush1.msra.mxu0 0.0
  %3301 = vmatprep.subr.mxu0 0.0
  %3302 = vmatpush1.msra.mxu0 0.0
  %3303 = vmatprep.subr.mxu0 0.0
  %3304 = vmatpush1.msra.mxu0 0.0
  %3305 = vmatprep.subr.mxu0 0.0
  %3306 = vmatpush1.msra.mxu0 0.0
  %3307 = vmatprep.subr.mxu0 0.0
  %3308 = vmatpush1.msra.mxu0 0.0
  %3309 = vmatprep.subr.mxu0 0.0
  %3310 = vmatpush1.msra.mxu0 0.0
  %3311 = vmatprep.subr.mxu0 0.0
  %3312 = vmatpush1.msra.mxu0 0.0
  %3313 = vmatprep.subr.mxu0 0.0
  %3314 = vmatpush1.msra.mxu0 0.0
  %3315 = vmatprep.subr.mxu0 0.0
  %3316 = vmatpush1.msra.mxu0 0.0
  %3317 = vmatprep.subr.mxu0 0.0
  %3318 = vmatpush1.msra.mxu0 0.0
  %3319 = vmatprep.subr.mxu0 0.0
  %3320 = vmatpush1.msra.mxu0 0.0
  %3321 = vmatprep.subr.mxu0 0.0
  %3322 = vmatpush1.msra.mxu0 0.0
  %3323 = vmatprep.subr.mxu0 0.0
  %3324 = vmatpush1.msra.mxu0 0.0
  %3325 = vmatprep.subr.mxu0 0.0
  %3326 = vmatpush1.msra.mxu0 0.0
  %3327 = vmatprep.subr.mxu0 0.0
  %3328 = vmatpush1.msra.mxu0 0.0
  %3329 = vmatprep.subr.mxu0 0.0
  %3330 = vmatpush1.msra.mxu0 0.0
  %3331 = vmatprep.subr.mxu0 0.0
  %3332 = vmatpush1.msra.mxu0 0.0
  %3333 = vmatprep.subr.mxu0 0.0
  %3334 = vmatpush1.msra.mxu0 0.0
  %3335 = vmatprep.subr.mxu0 0.0
  %3336 = vmatpush1.msra.mxu0 0.0
  %3337 = vmatprep.subr.mxu0 0.0
  %3338 = vmatpush1.msra.mxu0 0.0
  %3339 = vmatprep.subr.mxu0 0.0
  %3340 = vmatpush1.msra.mxu0 0.0
  %3341 = vmatprep.subr.mxu0 0.0
  %3342 = vmatpush1.msra.mxu0 0.0
  %3343 = vmatprep.subr.mxu0 0.0
  %3344 = vmatpush1.msra.mxu0 0.0
  %3345 = vmatprep.subr.mxu0 0.0
  %3346 = vmatpush1.msra.mxu0 0.0
  %3347 = vmatprep.subr.mxu0 0.0
  %3348 = vmatpush1.msra.mxu0 0.0
  %3349 = vmatprep.subr.mxu0 0.0
  %3350 = vmatpush1.msra.mxu0 0.0
  %3351 = vmatprep.subr.mxu0 0.0
  %3352 = vmatpush1.msra.mxu0 0.0
  %3353 = vmatprep.subr.mxu0 0.0
  %3354 = vmatpush1.msra.mxu0 0.0
  %3355 = vmatprep.mubr.f32.mxu0 0.0
  %3356 = vmatmul.mubr.f32.gmra.mrb[0].mxu0 %v96
  %v3357 = vpop.f32.mrb[0].mxu0
  %v3358 = vadd.f32 0.0, %v3357
  %v3359 = vpop.f32.mrb[0].mxu0
  %3360 = vmatprep.mubr.f32.mxu0 0.0
  %3361 = vmatmul.mubr.f32.gmra.mrb[0].mxu0 %v99
  %v3362 = vpop.f32.mrb[0].mxu0
  %v3363 = vadd.f32 0.0, %v3362
  %v3364 = vpop.f32.mrb[0].mxu0
  %3365 = vmatprep.mubr.f32.mxu0 0.0
  %3366 = vmatmul.mubr.f32.gmra.mrb[0].mxu0 %v102
  %v3367 = vpop.f32.mrb[0].mxu0
  %v3368 = vadd.f32 0.0, %v3367
  %v3369 = vpop.f32.mrb[0].mxu0
  %3370 = vdwg.mxu0
  %3371 = vmatprep.subr.mxu0 0.0
  %3372 = vmatpush1.msra.mxu0 %v3288
  %3373 = vmatprep.subr.mxu0 0.0
  %3374 = vmatpush1.msra.mxu0 0.0
  %3375 = vmatprep.subr.mxu0 0.0
  %3376 = vmatpush1.msra.mxu0 0.0
  %3377 = vmatprep.subr.mxu0 0.0
  %3378 = vmatpush1.msra.mxu0 0.0
  %3379 = vmatprep.subr.mxu0 0.0
  %3380 = vmatpush1.msra.mxu0 0.0
  %3381 = vmatprep.subr.mxu0 0.0
  %3382 = vmatpush1.msra.mxu0 0.0
  %3383 = vmatprep.subr.mxu0 0.0
  %3384 = vmatpush1.msra.mxu0 0.0
  %3385 = vmatprep.subr.mxu0 0.0
  %3386 = vmatpush1.msra.mxu0 0.0
  %3387 = vmatprep.subr.mxu0 0.0
  %3388 = vmatpush1.msra.mxu0 0.0
  %3389 = vmatprep.subr.mxu0 0.0
  %3390 = vmatpush1.msra.mxu0 0.0
  %3391 = vmatprep.subr.mxu0 0.0
  %3392 = vmatpush1.msra.mxu0 0.0
  %3393 = vmatprep.subr.mxu0 0.0
  %3394 = vmatpush1.msra.mxu0 0.0
  %3395 = vmatprep.subr.mxu0 0.0
  %3396 = vmatpush1.msra.mxu0 0.0
  %3397 = vmatprep.subr.mxu0 0.0
  %3398 = vmatpush1.msra.mxu0 0.0
  %3399 = vmatprep.subr.mxu0 0.0
  %3400 = vmatpush1.msra.mxu0 0.0
  %3401 = vmatprep.subr.mxu0 0.0
  %3402 = vmatpush1.msra.mxu0 0.0
  %3403 = vmatprep.subr.mxu0 0.0
  %3404 = vmatpush1.msra.mxu0 0.0
  %3405 = vmatprep.subr.mxu0 0.0
  %3406 = vmatpush1.msra.mxu0 0.0
  %3407 = vmatprep.subr.mxu0 0.0
  %3408 = vmatpush1.msra.mxu0 0.0
  %3409 = vmatprep.subr.mxu0 0.0
  %3410 = vmatpush1.msra.mxu0 0.0
  %3411 = vmatprep.subr.mxu0 0.0
  %3412 = vmatpush1.msra.mxu0 0.0
  %3413 = vmatprep.subr.mxu0 0.0
  %3414 = vmatpush1.msra.mxu0 0.0
  %3415 = vmatprep.subr.mxu0 0.0
  %3416 = vmatpush1.msra.mxu0 0.0
  %3417 = vmatprep.subr.mxu0 0.0
  %3418 = vmatpush1.msra.mxu0 0.0
  %3419 = vmatprep.subr.mxu0 0.0
  %3420 = vmatpush1.msra.mxu0 0.0
  %3421 = vmatprep.subr.mxu0 0.0
  %3422 = vmatpush1.msra.mxu0 0.0
  %3423 = vmatprep.subr.mxu0 0.0
  %3424 = vmatpush1.msra.mxu0 0.0
  %3425 = vmatprep.subr.mxu0 0.0
  %3426 = vmatpush1.msra.mxu0 0.0
  %3427 = vmatprep.subr.mxu0 0.0
  %3428 = vmatpush1.msra.mxu0 0.0
  %3429 = vmatprep.subr.mxu0 0.0
  %3430 = vmatpush1.msra.mxu0 0.0
  %3431 = vmatprep.subr.mxu0 0.0
  %3432 = vmatpush1.msra.mxu0 0.0
  %3433 = vmatprep.subr.mxu0 0.0
  %3434 = vmatpush1.msra.mxu0 0.0
  %3435 = vmatprep.mubr.f32.mxu0 0.0
  %3436 = vmatmul.mubr.f32.gmra.mrb[0].mxu0 %v185
  %v3437 = vpop.f32.mrb[0].mxu0
  %v3438 = vadd.f32 0.0, %v3437
  %v3439 = vpop.f32.mrb[0].mxu0
  %3440 = vmatprep.mubr.f32.mxu0 0.0
  %3441 = vmatmul.mubr.f32.gmra.mrb[0].mxu0 %v188
  %v3442 = vpop.f32.mrb[0].mxu0
  %v3443 = vadd.f32 0.0, %v3442
  %v3444 = vpop.f32.mrb[0].mxu0
  %3445 = vmatprep.mubr.f32.mxu0 0.0
  %3446 = vmatmul.mubr.f32.gmra.mrb[0].mxu0 %v191
  %v3447 = vpop.f32.mrb[0].mxu0
  %v3448 = vadd.f32 0.0, %v3447
  %v3449 = vpop.f32.mrb[0].mxu0
  %3450 = vdwg.mxu0
  %v3451 = vpack.c.bf16 %v3363, %v3358
  %v3452 = vpack.c.bf16 %v3368, %v3368
  %v3453 = vpack.c.bf16 %v3443, %v3438
  %v3454 = vpack.c.bf16 %v3448, %v3448
  %v3456 = vsel %vm277, %v3453, 0
  %v3459 = vsel %vm277, %v3454, 0
  %3461 = vmatprep.subr.bf16.mxu0 0
  %3462 = vmatpush1.bf16.msra.mxu0 %v286
  %3463 = vmatprep.subr.bf16.mxu0 0
  %3464 = vmatpush1.bf16.msra.mxu0 0
  %3465 = vmatprep.subr.bf16.mxu0 0
  %3466 = vmatpush1.bf16.msra.mxu0 0
  %3467 = vmatprep.subr.bf16.mxu0 0
  %3468 = vmatpush1.bf16.msra.mxu0 0
  %3469 = vmatprep.subr.bf16.mxu0 0
  %3470 = vmatpush1.bf16.msra.mxu0 0
  %3471 = vmatprep.subr.bf16.mxu0 0
  %3472 = vmatpush1.bf16.msra.mxu0 0
  %3473 = vmatprep.subr.bf16.mxu0 0
  %3474 = vmatpush1.bf16.msra.mxu0 0
  %3475 = vmatprep.subr.bf16.mxu0 0
  %3476 = vmatpush1.bf16.msra.mxu0 0
  %3477 = vmatprep.subr.bf16.mxu0 0
  %3478 = vmatpush1.bf16.msra.mxu0 0
  %3479 = vmatprep.subr.bf16.mxu0 0
  %3480 = vmatpush1.bf16.msra.mxu0 0
  %3481 = vmatprep.subr.bf16.mxu0 0
  %3482 = vmatpush1.bf16.msra.mxu0 0
  %3483 = vmatprep.subr.bf16.mxu0 0
  %3484 = vmatpush1.bf16.msra.mxu0 0
  %3485 = vmatprep.subr.bf16.mxu0 0
  %3486 = vmatpush1.bf16.msra.mxu0 0
  %3487 = vmatprep.subr.bf16.mxu0 0
  %3488 = vmatpush1.bf16.msra.mxu0 0
  %3489 = vmatprep.subr.bf16.mxu0 0
  %3490 = vmatpush1.bf16.msra.mxu0 0
  %3491 = vmatprep.subr.bf16.mxu0 0
  %3492 = vmatpush1.bf16.msra.mxu0 0
  %3493 = vmatprep.mubr.bf16.mxu0 0
  %3494 = vmatmul.mubr.bf16.gmra.mrb[0].mxu0 %v3456
  %v3495 = vpop.f32.mrb[0].mxu0
  %v3496 = vadd.f32 0.0, %v3495
  %v3497 = vpop.f32.mrb[0].mxu0
  %v3498 = vpop.f32.mrb[0].mxu0
  %v3499 = vadd.f32 0.0, %v3498
  %v3500 = vpop.f32.mrb[0].mxu0
  %3501 = vmatprep.mubr.bf16.mxu0 0
  %3502 = vmatmul.mubr.bf16.gmra.mrb[0].mxu0 %v3459
  %v3503 = vpop.f32.mrb[0].mxu0
  %v3504 = vadd.f32 0.0, %v3503
  %v3505 = vpop.f32.mrb[0].mxu0
  %v3506 = vpop.f32.mrb[0].mxu0
  %v3507 = vpop.f32.mrb[0].mxu0
  %3508 = vdwg.mxu0
  %v3510 = vsel %vm277, %v3451, 0
  %v3513 = vsel %vm277, %v3452, 0
  %3515 = vmatprep.subr.bf16.mxu0 0
  %3516 = vmatpush1.bf16.msra.mxu0 %v343
  %3517 = vmatprep.subr.bf16.mxu0 0
  %3518 = vmatpush1.bf16.msra.mxu0 0
  %3519 = vmatprep.subr.bf16.mxu0 0
  %3520 = vmatpush1.bf16.msra.mxu0 0
  %3521 = vmatprep.subr.bf16.mxu0 0
  %3522 = vmatpush1.bf16.msra.mxu0 0
  %3523 = vmatprep.subr.bf16.mxu0 0
  %3524 = vmatpush1.bf16.msra.mxu0 0
  %3525 = vmatprep.subr.bf16.mxu0 0
  %3526 = vmatpush1.bf16.msra.mxu0 0
  %3527 = vmatprep.subr.bf16.mxu0 0
  %3528 = vmatpush1.bf16.msra.mxu0 0
  %3529 = vmatprep.subr.bf16.mxu0 0
  %3530 = vmatpush1.bf16.msra.mxu0 0
  %3531 = vmatprep.subr.bf16.mxu0 0
  %3532 = vmatpush1.bf16.msra.mxu0 0
  %3533 = vmatprep.subr.bf16.mxu0 0
  %3534 = vmatpush1.bf16.msra.mxu0 0
  %3535 = vmatprep.subr.bf16.mxu0 0
  %3536 = vmatpush1.bf16.msra.mxu0 0
  %3537 = vmatprep.subr.bf16.mxu0 0
  %3538 = vmatpush1.bf16.msra.mxu0 0
  %3539 = vmatprep.subr.bf16.mxu0 0
  %3540 = vmatpush1.bf16.msra.mxu0 0
  %3541 = vmatprep.subr.bf16.mxu0 0
  %3542 = vmatpush1.bf16.msra.mxu0 0
  %3543 = vmatprep.subr.bf16.mxu0 0
  %3544 = vmatpush1.bf16.msra.mxu0 0
  %3545 = vmatprep.subr.bf16.mxu0 0
  %3546 = vmatpush1.bf16.msra.mxu0 0
  %3547 = vmatprep.mubr.bf16.mxu0 0
  %3548 = vmatmul.mubr.bf16.gmra.mrb[0].mxu0 %v3510
  %v3549 = vpop.f32.mrb[0].mxu0
  %v3550 = vadd.f32 %v3496, %v3549
  %v3551 = vpop.f32.mrb[0].mxu0
  %v3552 = vpop.f32.mrb[0].mxu0
  %v3553 = vadd.f32 %v3499, %v3552
  %v3554 = vpop.f32.mrb[0].mxu0
  %3555 = vmatprep.mubr.bf16.mxu0 0
  %3556 = vmatmul.mubr.bf16.gmra.mrb[0].mxu0 %v3513
  %v3557 = vpop.f32.mrb[0].mxu0
  %v3558 = vadd.f32 %v3504, %v3557
  %v3559 = vpop.f32.mrb[0].mxu0
  %v3560 = vpop.f32.mrb[0].mxu0
  %v3561 = vpop.f32.mrb[0].mxu0
  %3562 = vdwg.mxu0
  %v3563 = vadd.f32 %v3550, %v397
  %v3564 = vadd.f32 %v3553, %v397
  %v3565 = vadd.f32 %v3558, %v397
  %v3566 = vmax.f32 %v3563, 0.0
  %v3567 = vmax.f32 %v3564, 0.0
  %v3568 = vmax.f32 %v3565, 0.0
  %v3569 = vpack.c.bf16 %v3567, %v3566
  %v3570 = vpack.c.bf16 %v3568, %v3568
  %v3572 = vsel %vm437, %v3569, 0
  %v3575 = vsel %vm437, %v3570, 0
  %3577 = vmatprep.subr.bf16.mxu0 0
  %3578 = vmatpush1.bf16.msra.mxu0 %v429
  %3579 = vmatprep.subr.bf16.mxu0 0
  %3580 = vmatpush1.bf16.msra.mxu0 %v430
  %3581 = vmatprep.subr.bf16.mxu0 0
  %3582 = vmatpush1.bf16.msra.mxu0 %v431
  %3583 = vmatprep.subr.bf16.mxu0 0
  %3584 = vmatpush1.bf16.msra.mxu0 %v432
  %3585 = vmatprep.subr.bf16.mxu0 0
  %3586 = vmatpush1.bf16.msra.mxu0 0
  %3587 = vmatprep.subr.bf16.mxu0 0
  %3588 = vmatpush1.bf16.msra.mxu0 0
  %3589 = vmatprep.subr.bf16.mxu0 0
  %3590 = vmatpush1.bf16.msra.mxu0 0
  %3591 = vmatprep.subr.bf16.mxu0 0
  %3592 = vmatpush1.bf16.msra.mxu0 0
  %3593 = vmatprep.subr.bf16.mxu0 0
  %3594 = vmatpush1.bf16.msra.mxu0 0
  %3595 = vmatprep.subr.bf16.mxu0 0
  %3596 = vmatpush1.bf16.msra.mxu0 0
  %3597 = vmatprep.subr.bf16.mxu0 0
  %3598 = vmatpush1.bf16.msra.mxu0 0
  %3599 = vmatprep.subr.bf16.mxu0 0
  %3600 = vmatpush1.bf16.msra.mxu0 0
  %3601 = vmatprep.subr.bf16.mxu0 0
  %3602 = vmatpush1.bf16.msra.mxu0 0
  %3603 = vmatprep.subr.bf16.mxu0 0
  %3604 = vmatpush1.bf16.msra.mxu0 0
  %3605 = vmatprep.subr.bf16.mxu0 0
  %3606 = vmatpush1.bf16.msra.mxu0 0
  %3607 = vmatprep.subr.bf16.mxu0 0
  %3608 = vmatpush1.bf16.msra.mxu0 0
  %3609 = vmatprep.mubr.bf16.mxu0 0
  %3610 = vmatmul.mubr.bf16.gmra.mrb[0].mxu0 %v3572
  %v3611 = vpop.f32.mrb[0].mxu0
  %v3612 = vadd.f32 %v411, %v3611
  %v3613 = vpop.f32.mrb[0].mxu0
  %v3614 = vpop.f32.mrb[0].mxu0
  %v3615 = vadd.f32 %v411, %v3614
  %v3616 = vpop.f32.mrb[0].mxu0
  %3617 = vmatprep.mubr.bf16.mxu0 0
  %3618 = vmatmul.mubr.bf16.gmra.mrb[0].mxu0 %v3575
  %v3619 = vpop.f32.mrb[0].mxu0
  %v3620 = vadd.f32 %v411, %v3619
  %v3621 = vpop.f32.mrb[0].mxu0
  %v3622 = vpop.f32.mrb[0].mxu0
  %v3623 = vpop.f32.mrb[0].mxu0
  %3624 = vdwg.mxu0
  %v3625 = vmax.f32 %v3612, 0.0
  %v3626 = vmax.f32 %v3615, 0.0
  %v3627 = vmax.f32 %v3620, 0.0
  %v3628 = vmul.f32 %v3625, %v498
  %v3629 = vmul.f32 %v3626, %v503
  %v3630 = vmul.f32 %v3627, %v508
  %v3631 = vmul.f32 %v3625, %v515
  %v3632 = vmul.f32 %v3626, %v519
  %v3633 = vmul.f32 %v3627, %v523
  %3637 = vrot.lane.b32.xlu0 %v3631, 112
  %v3638 = vpop.permute.xlu0 %3637
  %3639 = vrot.lane.b32.xlu0 %v3632, 112
  %v3640 = vpop.permute.xlu0 %3639
  %3641 = vrot.lane.b32.xlu0 %v3633, 112
  %v3642 = vpop.permute.xlu0 %3641
  %v3646 = vadd.f32 %v3628, %v3638
  %v3647 = vadd.f32 %v3629, %v3640
  %v3648 = vadd.f32 %v3630, %v3642
  %3649 = vmatprep.subr.mxu0 0.0
  %3650 = vmatpush1.msra.mxu0 %v3646
  %3651 = vmatprep.subr.mxu0 0.0
  %3652 = vmatpush1.msra.mxu0 %v3647
  %3653 = vmatprep.subr.mxu0 0.0
  %3654 = vmatpush1.msra.mxu0 %v3648
  %3655 = vmatprep.subr.mxu0 0.0
  %3656 = vmatpush1.msra.mxu0 0.0
  %3657 = vmatprep.subr.mxu0 0.0
  %3658 = vmatpush1.msra.mxu0 0.0
  %3659 = vmatprep.subr.mxu0 0.0
  %3660 = vmatpush1.msra.mxu0 0.0
  %3661 = vmatprep.subr.mxu0 0.0
  %3662 = vmatpush1.msra.mxu0 0.0
  %3663 = vmatprep.subr.mxu0 0.0
  %3664 = vmatpush1.msra.mxu0 0.0
  %3665 = vmatprep.subr.mxu0 0.0
  %3666 = vmatpush1.msra.mxu0 0.0
  %3667 = vmatprep.subr.mxu0 0.0
  %3668 = vmatpush1.msra.mxu0 0.0
  %3669 = vmatprep.subr.mxu0 0.0
  %3670 = vmatpush1.msra.mxu0 0.0
  %3671 = vmatprep.subr.mxu0 0.0
  %3672 = vmatpush1.msra.mxu0 0.0
  %3673 = vmatprep.subr.mxu0 0.0
  %3674 = vmatpush1.msra.mxu0 0.0
  %3675 = vmatprep.subr.mxu0 0.0
  %3676 = vmatpush1.msra.mxu0 0.0
  %3677 = vmatprep.subr.mxu0 0.0
  %3678 = vmatpush1.msra.mxu0 0.0
  %3679 = vmatprep.subr.mxu0 0.0
  %3680 = vmatpush1.msra.mxu0 0.0
  %3681 = vmatprep.subr.mxu0 0.0
  %3682 = vmatpush1.msra.mxu0 0.0
  %3683 = vmatprep.subr.mxu0 0.0
  %3684 = vmatpush1.msra.mxu0 0.0
  %3685 = vmatprep.subr.mxu0 0.0
  %3686 = vmatpush1.msra.mxu0 0.0
  %3687 = vmatprep.subr.mxu0 0.0
  %3688 = vmatpush1.msra.mxu0 0.0
  %3689 = vmatprep.subr.mxu0 0.0
  %3690 = vmatpush1.msra.mxu0 0.0
  %3691 = vmatprep.subr.mxu0 0.0
  %3692 = vmatpush1.msra.mxu0 0.0
  %3693 = vmatprep.subr.mxu0 0.0
  %3694 = vmatpush1.msra.mxu0 0.0
  %3695 = vmatprep.subr.mxu0 0.0
  %3696 = vmatpush1.msra.mxu0 0.0
  %3697 = vmatprep.subr.mxu0 0.0
  %3698 = vmatpush1.msra.mxu0 0.0
  %3699 = vmatprep.subr.mxu0 0.0
  %3700 = vmatpush1.msra.mxu0 0.0
  %3701 = vmatprep.subr.mxu0 0.0
  %3702 = vmatpush1.msra.mxu0 0.0
  %3703 = vmatprep.subr.mxu0 0.0
  %3704 = vmatpush1.msra.mxu0 0.0
  %3705 = vmatprep.subr.mxu0 0.0
  %3706 = vmatpush1.msra.mxu0 0.0
  %3707 = vmatprep.subr.mxu0 0.0
  %3708 = vmatpush1.msra.mxu0 0.0
  %3709 = vmatprep.subr.mxu0 0.0
  %3710 = vmatpush1.msra.mxu0 0.0
  %3711 = vmatprep.subr.mxu0 0.0
  %3712 = vmatpush1.msra.mxu0 0.0
  %3713 = vmatprep.mubr.f32.mxu0 0.0
  %3714 = vmatmul.mubr.f32.gmra.mrb[0].mxu0 %v545
  %v3715 = vpop.f32.mrb[0].mxu0
  %v3716 = vadd.f32 0.0, %v3715
  %v3717 = vpop.f32.mrb[0].mxu0
  %3718 = vdwg.mxu0
  %v3719 = vpack.c.bf16 %v3288, %v3288
  %v3720 = vpack.c.bf16 %v3716, %v3716
  %v3722 = vsel %vm625, %v3720, 0
  %3724 = vmatprep.subr.bf16.mxu0 0
  %3725 = vmatpush1.bf16.msra.mxu0 %v623
  %3726 = vmatprep.subr.bf16.mxu0 0
  %3727 = vmatpush1.bf16.msra.mxu0 0
  %3728 = vmatprep.subr.bf16.mxu0 0
  %3729 = vmatpush1.bf16.msra.mxu0 0
  %3730 = vmatprep.subr.bf16.mxu0 0
  %3731 = vmatpush1.bf16.msra.mxu0 0
  %3732 = vmatprep.subr.bf16.mxu0 0
  %3733 = vmatpush1.bf16.msra.mxu0 0
  %3734 = vmatprep.subr.bf16.mxu0 0
  %3735 = vmatpush1.bf16.msra.mxu0 0
  %3736 = vmatprep.subr.bf16.mxu0 0
  %3737 = vmatpush1.bf16.msra.mxu0 0
  %3738 = vmatprep.subr.bf16.mxu0 0
  %3739 = vmatpush1.bf16.msra.mxu0 0
  %3740 = vmatprep.subr.bf16.mxu0 0
  %3741 = vmatpush1.bf16.msra.mxu0 0
  %3742 = vmatprep.subr.bf16.mxu0 0
  %3743 = vmatpush1.bf16.msra.mxu0 0
  %3744 = vmatprep.subr.bf16.mxu0 0
  %3745 = vmatpush1.bf16.msra.mxu0 0
  %3746 = vmatprep.subr.bf16.mxu0 0
  %3747 = vmatpush1.bf16.msra.mxu0 0
  %3748 = vmatprep.subr.bf16.mxu0 0
  %3749 = vmatpush1.bf16.msra.mxu0 0
  %3750 = vmatprep.subr.bf16.mxu0 0
  %3751 = vmatpush1.bf16.msra.mxu0 0
  %3752 = vmatprep.subr.bf16.mxu0 0
  %3753 = vmatpush1.bf16.msra.mxu0 0
  %3754 = vmatprep.subr.bf16.mxu0 0
  %3755 = vmatpush1.bf16.msra.mxu0 0
  %3756 = vmatprep.mubr.bf16.mxu0 0
  %3757 = vmatmul.mubr.bf16.gmra.mrb[0].mxu0 %v3722
  %v3758 = vpop.f32.mrb[0].mxu0
  %v3759 = vadd.f32 0.0, %v3758
  %v3760 = vpop.f32.mrb[0].mxu0
  %v3761 = vpop.f32.mrb[0].mxu0
  %v3762 = vpop.f32.mrb[0].mxu0
  %3763 = vdwg.mxu0
  %v3765 = vsel %vm277, %v3719, 0
  %3767 = vmatprep.subr.bf16.mxu0 0
  %3768 = vmatpush1.bf16.msra.mxu0 %v673
  %3769 = vmatprep.subr.bf16.mxu0 0
  %3770 = vmatpush1.bf16.msra.mxu0 0
  %3771 = vmatprep.subr.bf16.mxu0 0
  %3772 = vmatpush1.bf16.msra.mxu0 0
  %3773 = vmatprep.subr.bf16.mxu0 0
  %3774 = vmatpush1.bf16.msra.mxu0 0
  %3775 = vmatprep.subr.bf16.mxu0 0
  %3776 = vmatpush1.bf16.msra.mxu0 0
  %3777 = vmatprep.subr.bf16.mxu0 0
  %3778 = vmatpush1.bf16.msra.mxu0 0
  %3779 = vmatprep.subr.bf16.mxu0 0
  %3780 = vmatpush1.bf16.msra.mxu0 0
  %3781 = vmatprep.subr.bf16.mxu0 0
  %3782 = vmatpush1.bf16.msra.mxu0 0
  %3783 = vmatprep.subr.bf16.mxu0 0
  %3784 = vmatpush1.bf16.msra.mxu0 0
  %3785 = vmatprep.subr.bf16.mxu0 0
  %3786 = vmatpush1.bf16.msra.mxu0 0
  %3787 = vmatprep.subr.bf16.mxu0 0
  %3788 = vmatpush1.bf16.msra.mxu0 0
  %3789 = vmatprep.subr.bf16.mxu0 0
  %3790 = vmatpush1.bf16.msra.mxu0 0
  %3791 = vmatprep.subr.bf16.mxu0 0
  %3792 = vmatpush1.bf16.msra.mxu0 0
  %3793 = vmatprep.subr.bf16.mxu0 0
  %3794 = vmatpush1.bf16.msra.mxu0 0
  %3795 = vmatprep.subr.bf16.mxu0 0
  %3796 = vmatpush1.bf16.msra.mxu0 0
  %3797 = vmatprep.subr.bf16.mxu0 0
  %3798 = vmatpush1.bf16.msra.mxu0 0
  %3799 = vmatprep.mubr.bf16.mxu0 0
  %3800 = vmatmul.mubr.bf16.gmra.mrb[0].mxu0 %v3765
  %v3801 = vpop.f32.mrb[0].mxu0
  %v3802 = vadd.f32 %v3759, %v3801
  %v3803 = vpop.f32.mrb[0].mxu0
  %v3804 = vpop.f32.mrb[0].mxu0
  %v3805 = vpop.f32.mrb[0].mxu0
  %3806 = vdwg.mxu0
  %v3807 = vadd.f32 %v3802, %v719
  %v3808 = vmax.f32 %v3807, 0.0
  %v3809 = vpack.c.bf16 %v3808, %v3808
  %v3811 = vsel %vm742, %v3809, 0
  %3813 = vmatprep.subr.bf16.mxu0 0
  %3814 = vmatpush1.bf16.msra.mxu0 %v738
  %3815 = vmatprep.subr.bf16.mxu0 0
  %3816 = vmatpush1.bf16.msra.mxu0 %v739
  %3817 = vmatprep.subr.bf16.mxu0 0
  %3818 = vmatpush1.bf16.msra.mxu0 0
  %3819 = vmatprep.subr.bf16.mxu0 0
  %3820 = vmatpush1.bf16.msra.mxu0 0
  %3821 = vmatprep.subr.bf16.mxu0 0
  %3822 = vmatpush1.bf16.msra.mxu0 0
  %3823 = vmatprep.subr.bf16.mxu0 0
  %3824 = vmatpush1.bf16.msra.mxu0 0
  %3825 = vmatprep.subr.bf16.mxu0 0
  %3826 = vmatpush1.bf16.msra.mxu0 0
  %3827 = vmatprep.subr.bf16.mxu0 0
  %3828 = vmatpush1.bf16.msra.mxu0 0
  %3829 = vmatprep.subr.bf16.mxu0 0
  %3830 = vmatpush1.bf16.msra.mxu0 0
  %3831 = vmatprep.subr.bf16.mxu0 0
  %3832 = vmatpush1.bf16.msra.mxu0 0
  %3833 = vmatprep.subr.bf16.mxu0 0
  %3834 = vmatpush1.bf16.msra.mxu0 0
  %3835 = vmatprep.subr.bf16.mxu0 0
  %3836 = vmatpush1.bf16.msra.mxu0 0
  %3837 = vmatprep.subr.bf16.mxu0 0
  %3838 = vmatpush1.bf16.msra.mxu0 0
  %3839 = vmatprep.subr.bf16.mxu0 0
  %3840 = vmatpush1.bf16.msra.mxu0 0
  %3841 = vmatprep.subr.bf16.mxu0 0
  %3842 = vmatpush1.bf16.msra.mxu0 0
  %3843 = vmatprep.subr.bf16.mxu0 0
  %3844 = vmatpush1.bf16.msra.mxu0 0
  %3845 = vmatprep.mubr.bf16.mxu0 0
  %3846 = vmatmul.mubr.bf16.gmra.mrb[0].mxu0 %v3811
  %v3847 = vpop.f32.mrb[0].mxu0
  %v3848 = vadd.f32 %v728, %v3847
  %v3849 = vpop.f32.mrb[0].mxu0
  %v3850 = vpop.f32.mrb[0].mxu0
  %v3851 = vpop.f32.mrb[0].mxu0
  %3852 = vdwg.mxu0
  %v3853 = vmax.f32 %v3848, 0.0
  %v3854 = vpack.c.bf16 %v3853, %v3853
  %v3856 = vsel %vm742, %v3854, 0
  %3858 = vmatprep.subr.bf16.mxu0 0
  %3859 = vmatpush1.bf16.msra.mxu0 %v802
  %3860 = vmatprep.subr.bf16.mxu0 0
  %3861 = vmatpush1.bf16.msra.mxu0 %v803
  %3862 = vmatprep.subr.bf16.mxu0 0
  %3863 = vmatpush1.bf16.msra.mxu0 0
  %3864 = vmatprep.subr.bf16.mxu0 0
  %3865 = vmatpush1.bf16.msra.mxu0 0
  %3866 = vmatprep.subr.bf16.mxu0 0
  %3867 = vmatpush1.bf16.msra.mxu0 0
  %3868 = vmatprep.subr.bf16.mxu0 0
  %3869 = vmatpush1.bf16.msra.mxu0 0
  %3870 = vmatprep.subr.bf16.mxu0 0
  %3871 = vmatpush1.bf16.msra.mxu0 0
  %3872 = vmatprep.subr.bf16.mxu0 0
  %3873 = vmatpush1.bf16.msra.mxu0 0
  %3874 = vmatprep.subr.bf16.mxu0 0
  %3875 = vmatpush1.bf16.msra.mxu0 0
  %3876 = vmatprep.subr.bf16.mxu0 0
  %3877 = vmatpush1.bf16.msra.mxu0 0
  %3878 = vmatprep.subr.bf16.mxu0 0
  %3879 = vmatpush1.bf16.msra.mxu0 0
  %3880 = vmatprep.subr.bf16.mxu0 0
  %3881 = vmatpush1.bf16.msra.mxu0 0
  %3882 = vmatprep.subr.bf16.mxu0 0
  %3883 = vmatpush1.bf16.msra.mxu0 0
  %3884 = vmatprep.subr.bf16.mxu0 0
  %3885 = vmatpush1.bf16.msra.mxu0 0
  %3886 = vmatprep.subr.bf16.mxu0 0
  %3887 = vmatpush1.bf16.msra.mxu0 0
  %3888 = vmatprep.subr.bf16.mxu0 0
  %3889 = vmatpush1.bf16.msra.mxu0 0
  %3890 = vmatprep.mubr.bf16.mxu0 0
  %3891 = vmatmul.mubr.bf16.gmra.mrb[0].mxu0 %v3856
  %v3892 = vpop.f32.mrb[0].mxu0
  %v3893 = vadd.f32 %v792, %v3892
  %v3894 = vpop.f32.mrb[0].mxu0
  %v3895 = vpop.f32.mrb[0].mxu0
  %v3896 = vpop.f32.mrb[0].mxu0
  %3897 = vdwg.mxu0
  %v3898 = vadd.f32 %v3288, %v3893
  %s3899 = scalar_lea.vmem %s17, 40
  %3900 = vst.msk [vmem:[%s3899] sm:$0xff] %vm277, %v3898
  %3901 = vmatprep.subr.mxu0 0.0
  %3902 = vmatpush1.msra.mxu0 %v3898
  %3903 = vmatprep.subr.mxu0 0.0
  %3904 = vmatpush1.msra.mxu0 0.0
  %3905 = vmatprep.subr.mxu0 0.0
  %3906 = vmatpush1.msra.mxu0 0.0
  %3907 = vmatprep.subr.mxu0 0.0
  %3908 = vmatpush1.msra.mxu0 0.0
  %3909 = vmatprep.subr.mxu0 0.0
  %3910 = vmatpush1.msra.mxu0 0.0
  %3911 = vmatprep.subr.mxu0 0.0
  %3912 = vmatpush1.msra.mxu0 0.0
  %3913 = vmatprep.subr.mxu0 0.0
  %3914 = vmatpush1.msra.mxu0 0.0
  %3915 = vmatprep.subr.mxu0 0.0
  %3916 = vmatpush1.msra.mxu0 0.0
  %3917 = vmatprep.subr.mxu0 0.0
  %3918 = vmatpush1.msra.mxu0 0.0
  %3919 = vmatprep.subr.mxu0 0.0
  %3920 = vmatpush1.msra.mxu0 0.0
  %3921 = vmatprep.subr.mxu0 0.0
  %3922 = vmatpush1.msra.mxu0 0.0
  %3923 = vmatprep.subr.mxu0 0.0
  %3924 = vmatpush1.msra.mxu0 0.0
  %3925 = vmatprep.subr.mxu0 0.0
  %3926 = vmatpush1.msra.mxu0 0.0
  %3927 = vmatprep.subr.mxu0 0.0
  %3928 = vmatpush1.msra.mxu0 0.0
  %3929 = vmatprep.subr.mxu0 0.0
  %3930 = vmatpush1.msra.mxu0 0.0
  %3931 = vmatprep.subr.mxu0 0.0
  %3932 = vmatpush1.msra.mxu0 0.0
  %3933 = vmatprep.subr.mxu0 0.0
  %3934 = vmatpush1.msra.mxu0 0.0
  %3935 = vmatprep.subr.mxu0 0.0
  %3936 = vmatpush1.msra.mxu0 0.0
  %3937 = vmatprep.subr.mxu0 0.0
  %3938 = vmatpush1.msra.mxu0 0.0
  %3939 = vmatprep.subr.mxu0 0.0
  %3940 = vmatpush1.msra.mxu0 0.0
  %3941 = vmatprep.subr.mxu0 0.0
  %3942 = vmatpush1.msra.mxu0 0.0
  %3943 = vmatprep.subr.mxu0 0.0
  %3944 = vmatpush1.msra.mxu0 0.0
  %3945 = vmatprep.subr.mxu0 0.0
  %3946 = vmatpush1.msra.mxu0 0.0
  %3947 = vmatprep.subr.mxu0 0.0
  %3948 = vmatpush1.msra.mxu0 0.0
  %3949 = vmatprep.subr.mxu0 0.0
  %3950 = vmatpush1.msra.mxu0 0.0
  %3951 = vmatprep.subr.mxu0 0.0
  %3952 = vmatpush1.msra.mxu0 0.0
  %3953 = vmatprep.subr.mxu0 0.0
  %3954 = vmatpush1.msra.mxu0 0.0
  %3955 = vmatprep.subr.mxu0 0.0
  %3956 = vmatpush1.msra.mxu0 0.0
  %3957 = vmatprep.subr.mxu0 0.0
  %3958 = vmatpush1.msra.mxu0 0.0
  %3959 = vmatprep.subr.mxu0 0.0
  %3960 = vmatpush1.msra.mxu0 0.0
  %3961 = vmatprep.subr.mxu0 0.0
  %3962 = vmatpush1.msra.mxu0 0.0
  %3963 = vmatprep.subr.mxu0 0.0
  %3964 = vmatpush1.msra.mxu0 0.0
  %3965 = vmatprep.mubr.f32.mxu0 0.0
  %3966 = vmatmul.mubr.f32.gmra.mrb[0].mxu0 %v96
  %v3967 = vpop.f32.mrb[0].mxu0
  %v3968 = vadd.f32 0.0, %v3967
  %v3969 = vpop.f32.mrb[0].mxu0
  %3970 = vmatprep.mubr.f32.mxu0 0.0
  %3971 = vmatmul.mubr.f32.gmra.mrb[0].mxu0 %v99
  %v3972 = vpop.f32.mrb[0].mxu0
  %v3973 = vadd.f32 0.0, %v3972
  %v3974 = vpop.f32.mrb[0].mxu0
  %3975 = vmatprep.mubr.f32.mxu0 0.0
  %3976 = vmatmul.mubr.f32.gmra.mrb[0].mxu0 %v102
  %v3977 = vpop.f32.mrb[0].mxu0
  %v3978 = vadd.f32 0.0, %v3977
  %v3979 = vpop.f32.mrb[0].mxu0
  %3980 = vdwg.mxu0
  %3981 = vmatprep.subr.mxu0 0.0
  %3982 = vmatpush1.msra.mxu0 %v3898
  %3983 = vmatprep.subr.mxu0 0.0
  %3984 = vmatpush1.msra.mxu0 0.0
  %3985 = vmatprep.subr.mxu0 0.0
  %3986 = vmatpush1.msra.mxu0 0.0
  %3987 = vmatprep.subr.mxu0 0.0
  %3988 = vmatpush1.msra.mxu0 0.0
  %3989 = vmatprep.subr.mxu0 0.0
  %3990 = vmatpush1.msra.mxu0 0.0
  %3991 = vmatprep.subr.mxu0 0.0
  %3992 = vmatpush1.msra.mxu0 0.0
  %3993 = vmatprep.subr.mxu0 0.0
  %3994 = vmatpush1.msra.mxu0 0.0
  %3995 = vmatprep.subr.mxu0 0.0
  %3996 = vmatpush1.msra.mxu0 0.0
  %3997 = vmatprep.subr.mxu0 0.0
  %3998 = vmatpush1.msra.mxu0 0.0
  %3999 = vmatprep.subr.mxu0 0.0
  %4000 = vmatpush1.msra.mxu0 0.0
  %4001 = vmatprep.subr.mxu0 0.0
  %4002 = vmatpush1.msra.mxu0 0.0
  %4003 = vmatprep.subr.mxu0 0.0
  %4004 = vmatpush1.msra.mxu0 0.0
  %4005 = vmatprep.subr.mxu0 0.0
  %4006 = vmatpush1.msra.mxu0 0.0
  %4007 = vmatprep.subr.mxu0 0.0
  %4008 = vmatpush1.msra.mxu0 0.0
  %4009 = vmatprep.subr.mxu0 0.0
  %4010 = vmatpush1.msra.mxu0 0.0
  %4011 = vmatprep.subr.mxu0 0.0
  %4012 = vmatpush1.msra.mxu0 0.0
  %4013 = vmatprep.subr.mxu0 0.0
  %4014 = vmatpush1.msra.mxu0 0.0
  %4015 = vmatprep.subr.mxu0 0.0
  %4016 = vmatpush1.msra.mxu0 0.0
  %4017 = vmatprep.subr.mxu0 0.0
  %4018 = vmatpush1.msra.mxu0 0.0
  %4019 = vmatprep.subr.mxu0 0.0
  %4020 = vmatpush1.msra.mxu0 0.0
  %4021 = vmatprep.subr.mxu0 0.0
  %4022 = vmatpush1.msra.mxu0 0.0
  %4023 = vmatprep.subr.mxu0 0.0
  %4024 = vmatpush1.msra.mxu0 0.0
  %4025 = vmatprep.subr.mxu0 0.0
  %4026 = vmatpush1.msra.mxu0 0.0
  %4027 = vmatprep.subr.mxu0 0.0
  %4028 = vmatpush1.msra.mxu0 0.0
  %4029 = vmatprep.subr.mxu0 0.0
  %4030 = vmatpush1.msra.mxu0 0.0
  %4031 = vmatprep.subr.mxu0 0.0
  %4032 = vmatpush1.msra.mxu0 0.0
  %4033 = vmatprep.subr.mxu0 0.0
  %4034 = vmatpush1.msra.mxu0 0.0
  %4035 = vmatprep.subr.mxu0 0.0
  %4036 = vmatpush1.msra.mxu0 0.0
  %4037 = vmatprep.subr.mxu0 0.0
  %4038 = vmatpush1.msra.mxu0 0.0
  %4039 = vmatprep.subr.mxu0 0.0
  %4040 = vmatpush1.msra.mxu0 0.0
  %4041 = vmatprep.subr.mxu0 0.0
  %4042 = vmatpush1.msra.mxu0 0.0
  %4043 = vmatprep.subr.mxu0 0.0
  %4044 = vmatpush1.msra.mxu0 0.0
  %4045 = vmatprep.mubr.f32.mxu0 0.0
  %4046 = vmatmul.mubr.f32.gmra.mrb[0].mxu0 %v185
  %v4047 = vpop.f32.mrb[0].mxu0
  %v4048 = vadd.f32 0.0, %v4047
  %v4049 = vpop.f32.mrb[0].mxu0
  %4050 = vmatprep.mubr.f32.mxu0 0.0
  %4051 = vmatmul.mubr.f32.gmra.mrb[0].mxu0 %v188
  %v4052 = vpop.f32.mrb[0].mxu0
  %v4053 = vadd.f32 0.0, %v4052
  %v4054 = vpop.f32.mrb[0].mxu0
  %4055 = vmatprep.mubr.f32.mxu0 0.0
  %4056 = vmatmul.mubr.f32.gmra.mrb[0].mxu0 %v191
  %v4057 = vpop.f32.mrb[0].mxu0
  %v4058 = vadd.f32 0.0, %v4057
  %v4059 = vpop.f32.mrb[0].mxu0
  %4060 = vdwg.mxu0
  %v4061 = vpack.c.bf16 %v3973, %v3968
  %v4062 = vpack.c.bf16 %v3978, %v3978
  %v4063 = vpack.c.bf16 %v4053, %v4048
  %v4064 = vpack.c.bf16 %v4058, %v4058
  %v4066 = vsel %vm277, %v4063, 0
  %v4069 = vsel %vm277, %v4064, 0
  %4071 = vmatprep.subr.bf16.mxu0 0
  %4072 = vmatpush1.bf16.msra.mxu0 %v286
  %4073 = vmatprep.subr.bf16.mxu0 0
  %4074 = vmatpush1.bf16.msra.mxu0 0
  %4075 = vmatprep.subr.bf16.mxu0 0
  %4076 = vmatpush1.bf16.msra.mxu0 0
  %4077 = vmatprep.subr.bf16.mxu0 0
  %4078 = vmatpush1.bf16.msra.mxu0 0
  %4079 = vmatprep.subr.bf16.mxu0 0
  %4080 = vmatpush1.bf16.msra.mxu0 0
  %4081 = vmatprep.subr.bf16.mxu0 0
  %4082 = vmatpush1.bf16.msra.mxu0 0
  %4083 = vmatprep.subr.bf16.mxu0 0
  %4084 = vmatpush1.bf16.msra.mxu0 0
  %4085 = vmatprep.subr.bf16.mxu0 0
  %4086 = vmatpush1.bf16.msra.mxu0 0
  %4087 = vmatprep.subr.bf16.mxu0 0
  %4088 = vmatpush1.bf16.msra.mxu0 0
  %4089 = vmatprep.subr.bf16.mxu0 0
  %4090 = vmatpush1.bf16.msra.mxu0 0
  %4091 = vmatprep.subr.bf16.mxu0 0
  %4092 = vmatpush1.bf16.msra.mxu0 0
  %4093 = vmatprep.subr.bf16.mxu0 0
  %4094 = vmatpush1.bf16.msra.mxu0 0
  %4095 = vmatprep.subr.bf16.mxu0 0
  %4096 = vmatpush1.bf16.msra.mxu0 0
  %4097 = vmatprep.subr.bf16.mxu0 0
  %4098 = vmatpush1.bf16.msra.mxu0 0
  %4099 = vmatprep.subr.bf16.mxu0 0
  %4100 = vmatpush1.bf16.msra.mxu0 0
  %4101 = vmatprep.subr.bf16.mxu0 0
  %4102 = vmatpush1.bf16.msra.mxu0 0
  %4103 = vmatprep.mubr.bf16.mxu0 0
  %4104 = vmatmul.mubr.bf16.gmra.mrb[0].mxu0 %v4066
  %v4105 = vpop.f32.mrb[0].mxu0
  %v4106 = vadd.f32 0.0, %v4105
  %v4107 = vpop.f32.mrb[0].mxu0
  %v4108 = vpop.f32.mrb[0].mxu0
  %v4109 = vadd.f32 0.0, %v4108
  %v4110 = vpop.f32.mrb[0].mxu0
  %4111 = vmatprep.mubr.bf16.mxu0 0
  %4112 = vmatmul.mubr.bf16.gmra.mrb[0].mxu0 %v4069
  %v4113 = vpop.f32.mrb[0].mxu0
  %v4114 = vadd.f32 0.0, %v4113
  %v4115 = vpop.f32.mrb[0].mxu0
  %v4116 = vpop.f32.mrb[0].mxu0
  %v4117 = vpop.f32.mrb[0].mxu0
  %4118 = vdwg.mxu0
  %v4120 = vsel %vm277, %v4061, 0
  %v4123 = vsel %vm277, %v4062, 0
  %4125 = vmatprep.subr.bf16.mxu0 0
  %4126 = vmatpush1.bf16.msra.mxu0 %v343
  %4127 = vmatprep.subr.bf16.mxu0 0
  %4128 = vmatpush1.bf16.msra.mxu0 0
  %4129 = vmatprep.subr.bf16.mxu0 0
  %4130 = vmatpush1.bf16.msra.mxu0 0
  %4131 = vmatprep.subr.bf16.mxu0 0
  %4132 = vmatpush1.bf16.msra.mxu0 0
  %4133 = vmatprep.subr.bf16.mxu0 0
  %4134 = vmatpush1.bf16.msra.mxu0 0
  %4135 = vmatprep.subr.bf16.mxu0 0
  %4136 = vmatpush1.bf16.msra.mxu0 0
  %4137 = vmatprep.subr.bf16.mxu0 0
  %4138 = vmatpush1.bf16.msra.mxu0 0
  %4139 = vmatprep.subr.bf16.mxu0 0
  %4140 = vmatpush1.bf16.msra.mxu0 0
  %4141 = vmatprep.subr.bf16.mxu0 0
  %4142 = vmatpush1.bf16.msra.mxu0 0
  %4143 = vmatprep.subr.bf16.mxu0 0
  %4144 = vmatpush1.bf16.msra.mxu0 0
  %4145 = vmatprep.subr.bf16.mxu0 0
  %4146 = vmatpush1.bf16.msra.mxu0 0
  %4147 = vmatprep.subr.bf16.mxu0 0
  %4148 = vmatpush1.bf16.msra.mxu0 0
  %4149 = vmatprep.subr.bf16.mxu0 0
  %4150 = vmatpush1.bf16.msra.mxu0 0
  %4151 = vmatprep.subr.bf16.mxu0 0
  %4152 = vmatpush1.bf16.msra.mxu0 0
  %4153 = vmatprep.subr.bf16.mxu0 0
  %4154 = vmatpush1.bf16.msra.mxu0 0
  %4155 = vmatprep.subr.bf16.mxu0 0
  %4156 = vmatpush1.bf16.msra.mxu0 0
  %4157 = vmatprep.mubr.bf16.mxu0 0
  %4158 = vmatmul.mubr.bf16.gmra.mrb[0].mxu0 %v4120
  %v4159 = vpop.f32.mrb[0].mxu0
  %v4160 = vadd.f32 %v4106, %v4159
  %v4161 = vpop.f32.mrb[0].mxu0
  %v4162 = vpop.f32.mrb[0].mxu0
  %v4163 = vadd.f32 %v4109, %v4162
  %v4164 = vpop.f32.mrb[0].mxu0
  %4165 = vmatprep.mubr.bf16.mxu0 0
  %4166 = vmatmul.mubr.bf16.gmra.mrb[0].mxu0 %v4123
  %v4167 = vpop.f32.mrb[0].mxu0
  %v4168 = vadd.f32 %v4114, %v4167
  %v4169 = vpop.f32.mrb[0].mxu0
  %v4170 = vpop.f32.mrb[0].mxu0
  %v4171 = vpop.f32.mrb[0].mxu0
  %4172 = vdwg.mxu0
  %v4173 = vadd.f32 %v4160, %v397
  %v4174 = vadd.f32 %v4163, %v397
  %v4175 = vadd.f32 %v4168, %v397
  %v4176 = vmax.f32 %v4173, 0.0
  %v4177 = vmax.f32 %v4174, 0.0
  %v4178 = vmax.f32 %v4175, 0.0
  %v4179 = vpack.c.bf16 %v4177, %v4176
  %v4180 = vpack.c.bf16 %v4178, %v4178
  %v4182 = vsel %vm437, %v4179, 0
  %v4185 = vsel %vm437, %v4180, 0
  %4187 = vmatprep.subr.bf16.mxu0 0
  %4188 = vmatpush1.bf16.msra.mxu0 %v429
  %4189 = vmatprep.subr.bf16.mxu0 0
  %4190 = vmatpush1.bf16.msra.mxu0 %v430
  %4191 = vmatprep.subr.bf16.mxu0 0
  %4192 = vmatpush1.bf16.msra.mxu0 %v431
  %4193 = vmatprep.subr.bf16.mxu0 0
  %4194 = vmatpush1.bf16.msra.mxu0 %v432
  %4195 = vmatprep.subr.bf16.mxu0 0
  %4196 = vmatpush1.bf16.msra.mxu0 0
  %4197 = vmatprep.subr.bf16.mxu0 0
  %4198 = vmatpush1.bf16.msra.mxu0 0
  %4199 = vmatprep.subr.bf16.mxu0 0
  %4200 = vmatpush1.bf16.msra.mxu0 0
  %4201 = vmatprep.subr.bf16.mxu0 0
  %4202 = vmatpush1.bf16.msra.mxu0 0
  %4203 = vmatprep.subr.bf16.mxu0 0
  %4204 = vmatpush1.bf16.msra.mxu0 0
  %4205 = vmatprep.subr.bf16.mxu0 0
  %4206 = vmatpush1.bf16.msra.mxu0 0
  %4207 = vmatprep.subr.bf16.mxu0 0
  %4208 = vmatpush1.bf16.msra.mxu0 0
  %4209 = vmatprep.subr.bf16.mxu0 0
  %4210 = vmatpush1.bf16.msra.mxu0 0
  %4211 = vmatprep.subr.bf16.mxu0 0
  %4212 = vmatpush1.bf16.msra.mxu0 0
  %4213 = vmatprep.subr.bf16.mxu0 0
  %4214 = vmatpush1.bf16.msra.mxu0 0
  %4215 = vmatprep.subr.bf16.mxu0 0
  %4216 = vmatpush1.bf16.msra.mxu0 0
  %4217 = vmatprep.subr.bf16.mxu0 0
  %4218 = vmatpush1.bf16.msra.mxu0 0
  %4219 = vmatprep.mubr.bf16.mxu0 0
  %4220 = vmatmul.mubr.bf16.gmra.mrb[0].mxu0 %v4182
  %v4221 = vpop.f32.mrb[0].mxu0
  %v4222 = vadd.f32 %v411, %v4221
  %v4223 = vpop.f32.mrb[0].mxu0
  %v4224 = vpop.f32.mrb[0].mxu0
  %v4225 = vadd.f32 %v411, %v4224
  %v4226 = vpop.f32.mrb[0].mxu0
  %4227 = vmatprep.mubr.bf16.mxu0 0
  %4228 = vmatmul.mubr.bf16.gmra.mrb[0].mxu0 %v4185
  %v4229 = vpop.f32.mrb[0].mxu0
  %v4230 = vadd.f32 %v411, %v4229
  %v4231 = vpop.f32.mrb[0].mxu0
  %v4232 = vpop.f32.mrb[0].mxu0
  %v4233 = vpop.f32.mrb[0].mxu0
  %4234 = vdwg.mxu0
  %v4235 = vmax.f32 %v4222, 0.0
  %v4236 = vmax.f32 %v4225, 0.0
  %v4237 = vmax.f32 %v4230, 0.0
  %v4238 = vmul.f32 %v4235, %v498
  %v4239 = vmul.f32 %v4236, %v503
  %v4240 = vmul.f32 %v4237, %v508
  %v4241 = vmul.f32 %v4235, %v515
  %v4242 = vmul.f32 %v4236, %v519
  %v4243 = vmul.f32 %v4237, %v523
  %4247 = vrot.lane.b32.xlu0 %v4241, 112
  %v4248 = vpop.permute.xlu0 %4247
  %4249 = vrot.lane.b32.xlu0 %v4242, 112
  %v4250 = vpop.permute.xlu0 %4249
  %4251 = vrot.lane.b32.xlu0 %v4243, 112
  %v4252 = vpop.permute.xlu0 %4251
  %v4256 = vadd.f32 %v4238, %v4248
  %v4257 = vadd.f32 %v4239, %v4250
  %v4258 = vadd.f32 %v4240, %v4252
  %4259 = vmatprep.subr.mxu0 0.0
  %4260 = vmatpush1.msra.mxu0 %v4256
  %4261 = vmatprep.subr.mxu0 0.0
  %4262 = vmatpush1.msra.mxu0 %v4257
  %4263 = vmatprep.subr.mxu0 0.0
  %4264 = vmatpush1.msra.mxu0 %v4258
  %4265 = vmatprep.subr.mxu0 0.0
  %4266 = vmatpush1.msra.mxu0 0.0
  %4267 = vmatprep.subr.mxu0 0.0
  %4268 = vmatpush1.msra.mxu0 0.0
  %4269 = vmatprep.subr.mxu0 0.0
  %4270 = vmatpush1.msra.mxu0 0.0
  %4271 = vmatprep.subr.mxu0 0.0
  %4272 = vmatpush1.msra.mxu0 0.0
  %4273 = vmatprep.subr.mxu0 0.0
  %4274 = vmatpush1.msra.mxu0 0.0
  %4275 = vmatprep.subr.mxu0 0.0
  %4276 = vmatpush1.msra.mxu0 0.0
  %4277 = vmatprep.subr.mxu0 0.0
  %4278 = vmatpush1.msra.mxu0 0.0
  %4279 = vmatprep.subr.mxu0 0.0
  %4280 = vmatpush1.msra.mxu0 0.0
  %4281 = vmatprep.subr.mxu0 0.0
  %4282 = vmatpush1.msra.mxu0 0.0
  %4283 = vmatprep.subr.mxu0 0.0
  %4284 = vmatpush1.msra.mxu0 0.0
  %4285 = vmatprep.subr.mxu0 0.0
  %4286 = vmatpush1.msra.mxu0 0.0
  %4287 = vmatprep.subr.mxu0 0.0
  %4288 = vmatpush1.msra.mxu0 0.0
  %4289 = vmatprep.subr.mxu0 0.0
  %4290 = vmatpush1.msra.mxu0 0.0
  %4291 = vmatprep.subr.mxu0 0.0
  %4292 = vmatpush1.msra.mxu0 0.0
  %4293 = vmatprep.subr.mxu0 0.0
  %4294 = vmatpush1.msra.mxu0 0.0
  %4295 = vmatprep.subr.mxu0 0.0
  %4296 = vmatpush1.msra.mxu0 0.0
  %4297 = vmatprep.subr.mxu0 0.0
  %4298 = vmatpush1.msra.mxu0 0.0
  %4299 = vmatprep.subr.mxu0 0.0
  %4300 = vmatpush1.msra.mxu0 0.0
  %4301 = vmatprep.subr.mxu0 0.0
  %4302 = vmatpush1.msra.mxu0 0.0
  %4303 = vmatprep.subr.mxu0 0.0
  %4304 = vmatpush1.msra.mxu0 0.0
  %4305 = vmatprep.subr.mxu0 0.0
  %4306 = vmatpush1.msra.mxu0 0.0
  %4307 = vmatprep.subr.mxu0 0.0
  %4308 = vmatpush1.msra.mxu0 0.0
  %4309 = vmatprep.subr.mxu0 0.0
  %4310 = vmatpush1.msra.mxu0 0.0
  %4311 = vmatprep.subr.mxu0 0.0
  %4312 = vmatpush1.msra.mxu0 0.0
  %4313 = vmatprep.subr.mxu0 0.0
  %4314 = vmatpush1.msra.mxu0 0.0
  %4315 = vmatprep.subr.mxu0 0.0
  %4316 = vmatpush1.msra.mxu0 0.0
  %4317 = vmatprep.subr.mxu0 0.0
  %4318 = vmatpush1.msra.mxu0 0.0
  %4319 = vmatprep.subr.mxu0 0.0
  %4320 = vmatpush1.msra.mxu0 0.0
  %4321 = vmatprep.subr.mxu0 0.0
  %4322 = vmatpush1.msra.mxu0 0.0
  %4323 = vmatprep.mubr.f32.mxu0 0.0
  %4324 = vmatmul.mubr.f32.gmra.mrb[0].mxu0 %v545
  %v4325 = vpop.f32.mrb[0].mxu0
  %v4326 = vadd.f32 0.0, %v4325
  %v4327 = vpop.f32.mrb[0].mxu0
  %4328 = vdwg.mxu0
  %v4329 = vpack.c.bf16 %v3898, %v3898
  %v4330 = vpack.c.bf16 %v4326, %v4326
  %v4332 = vsel %vm625, %v4330, 0
  %4334 = vmatprep.subr.bf16.mxu0 0
  %4335 = vmatpush1.bf16.msra.mxu0 %v623
  %4336 = vmatprep.subr.bf16.mxu0 0
  %4337 = vmatpush1.bf16.msra.mxu0 0
  %4338 = vmatprep.subr.bf16.mxu0 0
  %4339 = vmatpush1.bf16.msra.mxu0 0
  %4340 = vmatprep.subr.bf16.mxu0 0
  %4341 = vmatpush1.bf16.msra.mxu0 0
  %4342 = vmatprep.subr.bf16.mxu0 0
  %4343 = vmatpush1.bf16.msra.mxu0 0
  %4344 = vmatprep.subr.bf16.mxu0 0
  %4345 = vmatpush1.bf16.msra.mxu0 0
  %4346 = vmatprep.subr.bf16.mxu0 0
  %4347 = vmatpush1.bf16.msra.mxu0 0
  %4348 = vmatprep.subr.bf16.mxu0 0
  %4349 = vmatpush1.bf16.msra.mxu0 0
  %4350 = vmatprep.subr.bf16.mxu0 0
  %4351 = vmatpush1.bf16.msra.mxu0 0
  %4352 = vmatprep.subr.bf16.mxu0 0
  %4353 = vmatpush1.bf16.msra.mxu0 0
  %4354 = vmatprep.subr.bf16.mxu0 0
  %4355 = vmatpush1.bf16.msra.mxu0 0
  %4356 = vmatprep.subr.bf16.mxu0 0
  %4357 = vmatpush1.bf16.msra.mxu0 0
  %4358 = vmatprep.subr.bf16.mxu0 0
  %4359 = vmatpush1.bf16.msra.mxu0 0
  %4360 = vmatprep.subr.bf16.mxu0 0
  %4361 = vmatpush1.bf16.msra.mxu0 0
  %4362 = vmatprep.subr.bf16.mxu0 0
  %4363 = vmatpush1.bf16.msra.mxu0 0
  %4364 = vmatprep.subr.bf16.mxu0 0
  %4365 = vmatpush1.bf16.msra.mxu0 0
  %4366 = vmatprep.mubr.bf16.mxu0 0
  %4367 = vmatmul.mubr.bf16.gmra.mrb[0].mxu0 %v4332
  %v4368 = vpop.f32.mrb[0].mxu0
  %v4369 = vadd.f32 0.0, %v4368
  %v4370 = vpop.f32.mrb[0].mxu0
  %v4371 = vpop.f32.mrb[0].mxu0
  %v4372 = vpop.f32.mrb[0].mxu0
  %4373 = vdwg.mxu0
  %v4375 = vsel %vm277, %v4329, 0
  %4377 = vmatprep.subr.bf16.mxu0 0
  %4378 = vmatpush1.bf16.msra.mxu0 %v673
  %4379 = vmatprep.subr.bf16.mxu0 0
  %4380 = vmatpush1.bf16.msra.mxu0 0
  %4381 = vmatprep.subr.bf16.mxu0 0
  %4382 = vmatpush1.bf16.msra.mxu0 0
  %4383 = vmatprep.subr.bf16.mxu0 0
  %4384 = vmatpush1.bf16.msra.mxu0 0
  %4385 = vmatprep.subr.bf16.mxu0 0
  %4386 = vmatpush1.bf16.msra.mxu0 0
  %4387 = vmatprep.subr.bf16.mxu0 0
  %4388 = vmatpush1.bf16.msra.mxu0 0
  %4389 = vmatprep.subr.bf16.mxu0 0
  %4390 = vmatpush1.bf16.msra.mxu0 0
  %4391 = vmatprep.subr.bf16.mxu0 0
  %4392 = vmatpush1.bf16.msra.mxu0 0
  %4393 = vmatprep.subr.bf16.mxu0 0
  %4394 = vmatpush1.bf16.msra.mxu0 0
  %4395 = vmatprep.subr.bf16.mxu0 0
  %4396 = vmatpush1.bf16.msra.mxu0 0
  %4397 = vmatprep.subr.bf16.mxu0 0
  %4398 = vmatpush1.bf16.msra.mxu0 0
  %4399 = vmatprep.subr.bf16.mxu0 0
  %4400 = vmatpush1.bf16.msra.mxu0 0
  %4401 = vmatprep.subr.bf16.mxu0 0
  %4402 = vmatpush1.bf16.msra.mxu0 0
  %4403 = vmatprep.subr.bf16.mxu0 0
  %4404 = vmatpush1.bf16.msra.mxu0 0
  %4405 = vmatprep.subr.bf16.mxu0 0
  %4406 = vmatpush1.bf16.msra.mxu0 0
  %4407 = vmatprep.subr.bf16.mxu0 0
  %4408 = vmatpush1.bf16.msra.mxu0 0
  %4409 = vmatprep.mubr.bf16.mxu0 0
  %4410 = vmatmul.mubr.bf16.gmra.mrb[0].mxu0 %v4375
  %v4411 = vpop.f32.mrb[0].mxu0
  %v4412 = vadd.f32 %v4369, %v4411
  %v4413 = vpop.f32.mrb[0].mxu0
  %v4414 = vpop.f32.mrb[0].mxu0
  %v4415 = vpop.f32.mrb[0].mxu0
  %4416 = vdwg.mxu0
  %v4417 = vadd.f32 %v4412, %v719
  %v4418 = vmax.f32 %v4417, 0.0
  %v4419 = vpack.c.bf16 %v4418, %v4418
  %v4421 = vsel %vm742, %v4419, 0
  %4423 = vmatprep.subr.bf16.mxu0 0
  %4424 = vmatpush1.bf16.msra.mxu0 %v738
  %4425 = vmatprep.subr.bf16.mxu0 0
  %4426 = vmatpush1.bf16.msra.mxu0 %v739
  %4427 = vmatprep.subr.bf16.mxu0 0
  %4428 = vmatpush1.bf16.msra.mxu0 0
  %4429 = vmatprep.subr.bf16.mxu0 0
  %4430 = vmatpush1.bf16.msra.mxu0 0
  %4431 = vmatprep.subr.bf16.mxu0 0
  %4432 = vmatpush1.bf16.msra.mxu0 0
  %4433 = vmatprep.subr.bf16.mxu0 0
  %4434 = vmatpush1.bf16.msra.mxu0 0
  %4435 = vmatprep.subr.bf16.mxu0 0
  %4436 = vmatpush1.bf16.msra.mxu0 0
  %4437 = vmatprep.subr.bf16.mxu0 0
  %4438 = vmatpush1.bf16.msra.mxu0 0
  %4439 = vmatprep.subr.bf16.mxu0 0
  %4440 = vmatpush1.bf16.msra.mxu0 0
  %4441 = vmatprep.subr.bf16.mxu0 0
  %4442 = vmatpush1.bf16.msra.mxu0 0
  %4443 = vmatprep.subr.bf16.mxu0 0
  %4444 = vmatpush1.bf16.msra.mxu0 0
  %4445 = vmatprep.subr.bf16.mxu0 0
  %4446 = vmatpush1.bf16.msra.mxu0 0
  %4447 = vmatprep.subr.bf16.mxu0 0
  %4448 = vmatpush1.bf16.msra.mxu0 0
  %4449 = vmatprep.subr.bf16.mxu0 0
  %4450 = vmatpush1.bf16.msra.mxu0 0
  %4451 = vmatprep.subr.bf16.mxu0 0
  %4452 = vmatpush1.bf16.msra.mxu0 0
  %4453 = vmatprep.subr.bf16.mxu0 0
  %4454 = vmatpush1.bf16.msra.mxu0 0
  %4455 = vmatprep.mubr.bf16.mxu0 0
  %4456 = vmatmul.mubr.bf16.gmra.mrb[0].mxu0 %v4421
  %v4457 = vpop.f32.mrb[0].mxu0
  %v4458 = vadd.f32 %v728, %v4457
  %v4459 = vpop.f32.mrb[0].mxu0
  %v4460 = vpop.f32.mrb[0].mxu0
  %v4461 = vpop.f32.mrb[0].mxu0
  %4462 = vdwg.mxu0
  %v4463 = vmax.f32 %v4458, 0.0
  %v4464 = vpack.c.bf16 %v4463, %v4463
  %v4466 = vsel %vm742, %v4464, 0
  %4468 = vmatprep.subr.bf16.mxu0 0
  %4469 = vmatpush1.bf16.msra.mxu0 %v802
  %4470 = vmatprep.subr.bf16.mxu0 0
  %4471 = vmatpush1.bf16.msra.mxu0 %v803
  %4472 = vmatprep.subr.bf16.mxu0 0
  %4473 = vmatpush1.bf16.msra.mxu0 0
  %4474 = vmatprep.subr.bf16.mxu0 0
  %4475 = vmatpush1.bf16.msra.mxu0 0
  %4476 = vmatprep.subr.bf16.mxu0 0
  %4477 = vmatpush1.bf16.msra.mxu0 0
  %4478 = vmatprep.subr.bf16.mxu0 0
  %4479 = vmatpush1.bf16.msra.mxu0 0
  %4480 = vmatprep.subr.bf16.mxu0 0
  %4481 = vmatpush1.bf16.msra.mxu0 0
  %4482 = vmatprep.subr.bf16.mxu0 0
  %4483 = vmatpush1.bf16.msra.mxu0 0
  %4484 = vmatprep.subr.bf16.mxu0 0
  %4485 = vmatpush1.bf16.msra.mxu0 0
  %4486 = vmatprep.subr.bf16.mxu0 0
  %4487 = vmatpush1.bf16.msra.mxu0 0
  %4488 = vmatprep.subr.bf16.mxu0 0
  %4489 = vmatpush1.bf16.msra.mxu0 0
  %4490 = vmatprep.subr.bf16.mxu0 0
  %4491 = vmatpush1.bf16.msra.mxu0 0
  %4492 = vmatprep.subr.bf16.mxu0 0
  %4493 = vmatpush1.bf16.msra.mxu0 0
  %4494 = vmatprep.subr.bf16.mxu0 0
  %4495 = vmatpush1.bf16.msra.mxu0 0
  %4496 = vmatprep.subr.bf16.mxu0 0
  %4497 = vmatpush1.bf16.msra.mxu0 0
  %4498 = vmatprep.subr.bf16.mxu0 0
  %4499 = vmatpush1.bf16.msra.mxu0 0
  %4500 = vmatprep.mubr.bf16.mxu0 0
  %4501 = vmatmul.mubr.bf16.gmra.mrb[0].mxu0 %v4466
  %v4502 = vpop.f32.mrb[0].mxu0
  %v4503 = vadd.f32 %v792, %v4502
  %v4504 = vpop.f32.mrb[0].mxu0
  %v4505 = vpop.f32.mrb[0].mxu0
  %v4506 = vpop.f32.mrb[0].mxu0
  %4507 = vdwg.mxu0
  %v4508 = vadd.f32 %v3898, %v4503
  %s4509 = scalar_lea.vmem %s17, 48
  %4510 = vst.msk [vmem:[%s4509] sm:$0xff] %vm277, %v4508
  %4511 = vmatprep.subr.mxu0 0.0
  %4512 = vmatpush1.msra.mxu0 %v4508
  %4513 = vmatprep.subr.mxu0 0.0
  %4514 = vmatpush1.msra.mxu0 0.0
  %4515 = vmatprep.subr.mxu0 0.0
  %4516 = vmatpush1.msra.mxu0 0.0
  %4517 = vmatprep.subr.mxu0 0.0
  %4518 = vmatpush1.msra.mxu0 0.0
  %4519 = vmatprep.subr.mxu0 0.0
  %4520 = vmatpush1.msra.mxu0 0.0
  %4521 = vmatprep.subr.mxu0 0.0
  %4522 = vmatpush1.msra.mxu0 0.0
  %4523 = vmatprep.subr.mxu0 0.0
  %4524 = vmatpush1.msra.mxu0 0.0
  %4525 = vmatprep.subr.mxu0 0.0
  %4526 = vmatpush1.msra.mxu0 0.0
  %4527 = vmatprep.subr.mxu0 0.0
  %4528 = vmatpush1.msra.mxu0 0.0
  %4529 = vmatprep.subr.mxu0 0.0
  %4530 = vmatpush1.msra.mxu0 0.0
  %4531 = vmatprep.subr.mxu0 0.0
  %4532 = vmatpush1.msra.mxu0 0.0
  %4533 = vmatprep.subr.mxu0 0.0
  %4534 = vmatpush1.msra.mxu0 0.0
  %4535 = vmatprep.subr.mxu0 0.0
  %4536 = vmatpush1.msra.mxu0 0.0
  %4537 = vmatprep.subr.mxu0 0.0
  %4538 = vmatpush1.msra.mxu0 0.0
  %4539 = vmatprep.subr.mxu0 0.0
  %4540 = vmatpush1.msra.mxu0 0.0
  %4541 = vmatprep.subr.mxu0 0.0
  %4542 = vmatpush1.msra.mxu0 0.0
  %4543 = vmatprep.subr.mxu0 0.0
  %4544 = vmatpush1.msra.mxu0 0.0
  %4545 = vmatprep.subr.mxu0 0.0
  %4546 = vmatpush1.msra.mxu0 0.0
  %4547 = vmatprep.subr.mxu0 0.0
  %4548 = vmatpush1.msra.mxu0 0.0
  %4549 = vmatprep.subr.mxu0 0.0
  %4550 = vmatpush1.msra.mxu0 0.0
  %4551 = vmatprep.subr.mxu0 0.0
  %4552 = vmatpush1.msra.mxu0 0.0
  %4553 = vmatprep.subr.mxu0 0.0
  %4554 = vmatpush1.msra.mxu0 0.0
  %4555 = vmatprep.subr.mxu0 0.0
  %4556 = vmatpush1.msra.mxu0 0.0
  %4557 = vmatprep.subr.mxu0 0.0
  %4558 = vmatpush1.msra.mxu0 0.0
  %4559 = vmatprep.subr.mxu0 0.0
  %4560 = vmatpush1.msra.mxu0 0.0
  %4561 = vmatprep.subr.mxu0 0.0
  %4562 = vmatpush1.msra.mxu0 0.0
  %4563 = vmatprep.subr.mxu0 0.0
  %4564 = vmatpush1.msra.mxu0 0.0
  %4565 = vmatprep.subr.mxu0 0.0
  %4566 = vmatpush1.msra.mxu0 0.0
  %4567 = vmatprep.subr.mxu0 0.0
  %4568 = vmatpush1.msra.mxu0 0.0
  %4569 = vmatprep.subr.mxu0 0.0
  %4570 = vmatpush1.msra.mxu0 0.0
  %4571 = vmatprep.subr.mxu0 0.0
  %4572 = vmatpush1.msra.mxu0 0.0
  %4573 = vmatprep.subr.mxu0 0.0
  %4574 = vmatpush1.msra.mxu0 0.0
  %4575 = vmatprep.mubr.f32.mxu0 0.0
  %4576 = vmatmul.mubr.f32.gmra.mrb[0].mxu0 %v96
  %v4577 = vpop.f32.mrb[0].mxu0
  %v4578 = vadd.f32 0.0, %v4577
  %v4579 = vpop.f32.mrb[0].mxu0
  %4580 = vmatprep.mubr.f32.mxu0 0.0
  %4581 = vmatmul.mubr.f32.gmra.mrb[0].mxu0 %v99
  %v4582 = vpop.f32.mrb[0].mxu0
  %v4583 = vadd.f32 0.0, %v4582
  %v4584 = vpop.f32.mrb[0].mxu0
  %4585 = vmatprep.mubr.f32.mxu0 0.0
  %4586 = vmatmul.mubr.f32.gmra.mrb[0].mxu0 %v102
  %v4587 = vpop.f32.mrb[0].mxu0
  %v4588 = vadd.f32 0.0, %v4587
  %v4589 = vpop.f32.mrb[0].mxu0
  %4590 = vdwg.mxu0
  %4591 = vmatprep.subr.mxu0 0.0
  %4592 = vmatpush1.msra.mxu0 %v4508
  %4593 = vmatprep.subr.mxu0 0.0
  %4594 = vmatpush1.msra.mxu0 0.0
  %4595 = vmatprep.subr.mxu0 0.0
  %4596 = vmatpush1.msra.mxu0 0.0
  %4597 = vmatprep.subr.mxu0 0.0
  %4598 = vmatpush1.msra.mxu0 0.0
  %4599 = vmatprep.subr.mxu0 0.0
  %4600 = vmatpush1.msra.mxu0 0.0
  %4601 = vmatprep.subr.mxu0 0.0
  %4602 = vmatpush1.msra.mxu0 0.0
  %4603 = vmatprep.subr.mxu0 0.0
  %4604 = vmatpush1.msra.mxu0 0.0
  %4605 = vmatprep.subr.mxu0 0.0
  %4606 = vmatpush1.msra.mxu0 0.0
  %4607 = vmatprep.subr.mxu0 0.0
  %4608 = vmatpush1.msra.mxu0 0.0
  %4609 = vmatprep.subr.mxu0 0.0
  %4610 = vmatpush1.msra.mxu0 0.0
  %4611 = vmatprep.subr.mxu0 0.0
  %4612 = vmatpush1.msra.mxu0 0.0
  %4613 = vmatprep.subr.mxu0 0.0
  %4614 = vmatpush1.msra.mxu0 0.0
  %4615 = vmatprep.subr.mxu0 0.0
  %4616 = vmatpush1.msra.mxu0 0.0
  %4617 = vmatprep.subr.mxu0 0.0
  %4618 = vmatpush1.msra.mxu0 0.0
  %4619 = vmatprep.subr.mxu0 0.0
  %4620 = vmatpush1.msra.mxu0 0.0
  %4621 = vmatprep.subr.mxu0 0.0
  %4622 = vmatpush1.msra.mxu0 0.0
  %4623 = vmatprep.subr.mxu0 0.0
  %4624 = vmatpush1.msra.mxu0 0.0
  %4625 = vmatprep.subr.mxu0 0.0
  %4626 = vmatpush1.msra.mxu0 0.0
  %4627 = vmatprep.subr.mxu0 0.0
  %4628 = vmatpush1.msra.mxu0 0.0
  %4629 = vmatprep.subr.mxu0 0.0
  %4630 = vmatpush1.msra.mxu0 0.0
  %4631 = vmatprep.subr.mxu0 0.0
  %4632 = vmatpush1.msra.mxu0 0.0
  %4633 = vmatprep.subr.mxu0 0.0
  %4634 = vmatpush1.msra.mxu0 0.0
  %4635 = vmatprep.subr.mxu0 0.0
  %4636 = vmatpush1.msra.mxu0 0.0
  %4637 = vmatprep.subr.mxu0 0.0
  %4638 = vmatpush1.msra.mxu0 0.0
  %4639 = vmatprep.subr.mxu0 0.0
  %4640 = vmatpush1.msra.mxu0 0.0
  %4641 = vmatprep.subr.mxu0 0.0
  %4642 = vmatpush1.msra.mxu0 0.0
  %4643 = vmatprep.subr.mxu0 0.0
  %4644 = vmatpush1.msra.mxu0 0.0
  %4645 = vmatprep.subr.mxu0 0.0
  %4646 = vmatpush1.msra.mxu0 0.0
  %4647 = vmatprep.subr.mxu0 0.0
  %4648 = vmatpush1.msra.mxu0 0.0
  %4649 = vmatprep.subr.mxu0 0.0
  %4650 = vmatpush1.msra.mxu0 0.0
  %4651 = vmatprep.subr.mxu0 0.0
  %4652 = vmatpush1.msra.mxu0 0.0
  %4653 = vmatprep.subr.mxu0 0.0
  %4654 = vmatpush1.msra.mxu0 0.0
  %4655 = vmatprep.mubr.f32.mxu0 0.0
  %4656 = vmatmul.mubr.f32.gmra.mrb[0].mxu0 %v185
  %v4657 = vpop.f32.mrb[0].mxu0
  %v4658 = vadd.f32 0.0, %v4657
  %v4659 = vpop.f32.mrb[0].mxu0
  %4660 = vmatprep.mubr.f32.mxu0 0.0
  %4661 = vmatmul.mubr.f32.gmra.mrb[0].mxu0 %v188
  %v4662 = vpop.f32.mrb[0].mxu0
  %v4663 = vadd.f32 0.0, %v4662
  %v4664 = vpop.f32.mrb[0].mxu0
  %4665 = vmatprep.mubr.f32.mxu0 0.0
  %4666 = vmatmul.mubr.f32.gmra.mrb[0].mxu0 %v191
  %v4667 = vpop.f32.mrb[0].mxu0
  %v4668 = vadd.f32 0.0, %v4667
  %v4669 = vpop.f32.mrb[0].mxu0
  %4670 = vdwg.mxu0
  %v4671 = vpack.c.bf16 %v4583, %v4578
  %v4672 = vpack.c.bf16 %v4588, %v4588
  %v4673 = vpack.c.bf16 %v4663, %v4658
  %v4674 = vpack.c.bf16 %v4668, %v4668
  %v4676 = vsel %vm277, %v4673, 0
  %v4679 = vsel %vm277, %v4674, 0
  %4681 = vmatprep.subr.bf16.mxu0 0
  %4682 = vmatpush1.bf16.msra.mxu0 %v286
  %4683 = vmatprep.subr.bf16.mxu0 0
  %4684 = vmatpush1.bf16.msra.mxu0 0
  %4685 = vmatprep.subr.bf16.mxu0 0
  %4686 = vmatpush1.bf16.msra.mxu0 0
  %4687 = vmatprep.subr.bf16.mxu0 0
  %4688 = vmatpush1.bf16.msra.mxu0 0
  %4689 = vmatprep.subr.bf16.mxu0 0
  %4690 = vmatpush1.bf16.msra.mxu0 0
  %4691 = vmatprep.subr.bf16.mxu0 0
  %4692 = vmatpush1.bf16.msra.mxu0 0
  %4693 = vmatprep.subr.bf16.mxu0 0
  %4694 = vmatpush1.bf16.msra.mxu0 0
  %4695 = vmatprep.subr.bf16.mxu0 0
  %4696 = vmatpush1.bf16.msra.mxu0 0
  %4697 = vmatprep.subr.bf16.mxu0 0
  %4698 = vmatpush1.bf16.msra.mxu0 0
  %4699 = vmatprep.subr.bf16.mxu0 0
  %4700 = vmatpush1.bf16.msra.mxu0 0
  %4701 = vmatprep.subr.bf16.mxu0 0
  %4702 = vmatpush1.bf16.msra.mxu0 0
  %4703 = vmatprep.subr.bf16.mxu0 0
  %4704 = vmatpush1.bf16.msra.mxu0 0
  %4705 = vmatprep.subr.bf16.mxu0 0
  %4706 = vmatpush1.bf16.msra.mxu0 0
  %4707 = vmatprep.subr.bf16.mxu0 0
  %4708 = vmatpush1.bf16.msra.mxu0 0
  %4709 = vmatprep.subr.bf16.mxu0 0
  %4710 = vmatpush1.bf16.msra.mxu0 0
  %4711 = vmatprep.subr.bf16.mxu0 0
  %4712 = vmatpush1.bf16.msra.mxu0 0
  %4713 = vmatprep.mubr.bf16.mxu0 0
  %4714 = vmatmul.mubr.bf16.gmra.mrb[0].mxu0 %v4676
  %v4715 = vpop.f32.mrb[0].mxu0
  %v4716 = vadd.f32 0.0, %v4715
  %v4717 = vpop.f32.mrb[0].mxu0
  %v4718 = vpop.f32.mrb[0].mxu0
  %v4719 = vadd.f32 0.0, %v4718
  %v4720 = vpop.f32.mrb[0].mxu0
  %4721 = vmatprep.mubr.bf16.mxu0 0
  %4722 = vmatmul.mubr.bf16.gmra.mrb[0].mxu0 %v4679
  %v4723 = vpop.f32.mrb[0].mxu0
  %v4724 = vadd.f32 0.0, %v4723
  %v4725 = vpop.f32.mrb[0].mxu0
  %v4726 = vpop.f32.mrb[0].mxu0
  %v4727 = vpop.f32.mrb[0].mxu0
  %4728 = vdwg.mxu0
  %v4730 = vsel %vm277, %v4671, 0
  %v4733 = vsel %vm277, %v4672, 0
  %4735 = vmatprep.subr.bf16.mxu0 0
  %4736 = vmatpush1.bf16.msra.mxu0 %v343
  %4737 = vmatprep.subr.bf16.mxu0 0
  %4738 = vmatpush1.bf16.msra.mxu0 0
  %4739 = vmatprep.subr.bf16.mxu0 0
  %4740 = vmatpush1.bf16.msra.mxu0 0
  %4741 = vmatprep.subr.bf16.mxu0 0
  %4742 = vmatpush1.bf16.msra.mxu0 0
  %4743 = vmatprep.subr.bf16.mxu0 0
  %4744 = vmatpush1.bf16.msra.mxu0 0
  %4745 = vmatprep.subr.bf16.mxu0 0
  %4746 = vmatpush1.bf16.msra.mxu0 0
  %4747 = vmatprep.subr.bf16.mxu0 0
  %4748 = vmatpush1.bf16.msra.mxu0 0
  %4749 = vmatprep.subr.bf16.mxu0 0
  %4750 = vmatpush1.bf16.msra.mxu0 0
  %4751 = vmatprep.subr.bf16.mxu0 0
  %4752 = vmatpush1.bf16.msra.mxu0 0
  %4753 = vmatprep.subr.bf16.mxu0 0
  %4754 = vmatpush1.bf16.msra.mxu0 0
  %4755 = vmatprep.subr.bf16.mxu0 0
  %4756 = vmatpush1.bf16.msra.mxu0 0
  %4757 = vmatprep.subr.bf16.mxu0 0
  %4758 = vmatpush1.bf16.msra.mxu0 0
  %4759 = vmatprep.subr.bf16.mxu0 0
  %4760 = vmatpush1.bf16.msra.mxu0 0
  %4761 = vmatprep.subr.bf16.mxu0 0
  %4762 = vmatpush1.bf16.msra.mxu0 0
  %4763 = vmatprep.subr.bf16.mxu0 0
  %4764 = vmatpush1.bf16.msra.mxu0 0
  %4765 = vmatprep.subr.bf16.mxu0 0
  %4766 = vmatpush1.bf16.msra.mxu0 0
  %4767 = vmatprep.mubr.bf16.mxu0 0
  %4768 = vmatmul.mubr.bf16.gmra.mrb[0].mxu0 %v4730
  %v4769 = vpop.f32.mrb[0].mxu0
  %v4770 = vadd.f32 %v4716, %v4769
  %v4771 = vpop.f32.mrb[0].mxu0
  %v4772 = vpop.f32.mrb[0].mxu0
  %v4773 = vadd.f32 %v4719, %v4772
  %v4774 = vpop.f32.mrb[0].mxu0
  %4775 = vmatprep.mubr.bf16.mxu0 0
  %4776 = vmatmul.mubr.bf16.gmra.mrb[0].mxu0 %v4733
  %v4777 = vpop.f32.mrb[0].mxu0
  %v4778 = vadd.f32 %v4724, %v4777
  %v4779 = vpop.f32.mrb[0].mxu0
  %v4780 = vpop.f32.mrb[0].mxu0
  %v4781 = vpop.f32.mrb[0].mxu0
  %4782 = vdwg.mxu0
  %v4783 = vadd.f32 %v4770, %v397
  %v4784 = vadd.f32 %v4773, %v397
  %v4785 = vadd.f32 %v4778, %v397
  %v4786 = vmax.f32 %v4783, 0.0
  %v4787 = vmax.f32 %v4784, 0.0
  %v4788 = vmax.f32 %v4785, 0.0
  %v4789 = vpack.c.bf16 %v4787, %v4786
  %v4790 = vpack.c.bf16 %v4788, %v4788
  %v4792 = vsel %vm437, %v4789, 0
  %v4795 = vsel %vm437, %v4790, 0
  %4797 = vmatprep.subr.bf16.mxu0 0
  %4798 = vmatpush1.bf16.msra.mxu0 %v429
  %4799 = vmatprep.subr.bf16.mxu0 0
  %4800 = vmatpush1.bf16.msra.mxu0 %v430
  %4801 = vmatprep.subr.bf16.mxu0 0
  %4802 = vmatpush1.bf16.msra.mxu0 %v431
  %4803 = vmatprep.subr.bf16.mxu0 0
  %4804 = vmatpush1.bf16.msra.mxu0 %v432
  %4805 = vmatprep.subr.bf16.mxu0 0
  %4806 = vmatpush1.bf16.msra.mxu0 0
  %4807 = vmatprep.subr.bf16.mxu0 0
  %4808 = vmatpush1.bf16.msra.mxu0 0
  %4809 = vmatprep.subr.bf16.mxu0 0
  %4810 = vmatpush1.bf16.msra.mxu0 0
  %4811 = vmatprep.subr.bf16.mxu0 0
  %4812 = vmatpush1.bf16.msra.mxu0 0
  %4813 = vmatprep.subr.bf16.mxu0 0
  %4814 = vmatpush1.bf16.msra.mxu0 0
  %4815 = vmatprep.subr.bf16.mxu0 0
  %4816 = vmatpush1.bf16.msra.mxu0 0
  %4817 = vmatprep.subr.bf16.mxu0 0
  %4818 = vmatpush1.bf16.msra.mxu0 0
  %4819 = vmatprep.subr.bf16.mxu0 0
  %4820 = vmatpush1.bf16.msra.mxu0 0
  %4821 = vmatprep.subr.bf16.mxu0 0
  %4822 = vmatpush1.bf16.msra.mxu0 0
  %4823 = vmatprep.subr.bf16.mxu0 0
  %4824 = vmatpush1.bf16.msra.mxu0 0
  %4825 = vmatprep.subr.bf16.mxu0 0
  %4826 = vmatpush1.bf16.msra.mxu0 0
  %4827 = vmatprep.subr.bf16.mxu0 0
  %4828 = vmatpush1.bf16.msra.mxu0 0
  %4829 = vmatprep.mubr.bf16.mxu0 0
  %4830 = vmatmul.mubr.bf16.gmra.mrb[0].mxu0 %v4792
  %v4831 = vpop.f32.mrb[0].mxu0
  %v4832 = vadd.f32 %v411, %v4831
  %v4833 = vpop.f32.mrb[0].mxu0
  %v4834 = vpop.f32.mrb[0].mxu0
  %v4835 = vadd.f32 %v411, %v4834
  %v4836 = vpop.f32.mrb[0].mxu0
  %4837 = vmatprep.mubr.bf16.mxu0 0
  %4838 = vmatmul.mubr.bf16.gmra.mrb[0].mxu0 %v4795
  %v4839 = vpop.f32.mrb[0].mxu0
  %v4840 = vadd.f32 %v411, %v4839
  %v4841 = vpop.f32.mrb[0].mxu0
  %v4842 = vpop.f32.mrb[0].mxu0
  %v4843 = vpop.f32.mrb[0].mxu0
  %4844 = vdwg.mxu0
  %v4845 = vmax.f32 %v4832, 0.0
  %v4846 = vmax.f32 %v4835, 0.0
  %v4847 = vmax.f32 %v4840, 0.0
  %v4848 = vmul.f32 %v4845, %v498
  %v4849 = vmul.f32 %v4846, %v503
  %v4850 = vmul.f32 %v4847, %v508
  %v4851 = vmul.f32 %v4845, %v515
  %v4852 = vmul.f32 %v4846, %v519
  %v4853 = vmul.f32 %v4847, %v523
  %4857 = vrot.lane.b32.xlu0 %v4851, 112
  %v4858 = vpop.permute.xlu0 %4857
  %4859 = vrot.lane.b32.xlu0 %v4852, 112
  %v4860 = vpop.permute.xlu0 %4859
  %4861 = vrot.lane.b32.xlu0 %v4853, 112
  %v4862 = vpop.permute.xlu0 %4861
  %v4866 = vadd.f32 %v4848, %v4858
  %v4867 = vadd.f32 %v4849, %v4860
  %v4868 = vadd.f32 %v4850, %v4862
  %4869 = vmatprep.subr.mxu0 0.0
  %4870 = vmatpush1.msra.mxu0 %v4866
  %4871 = vmatprep.subr.mxu0 0.0
  %4872 = vmatpush1.msra.mxu0 %v4867
  %4873 = vmatprep.subr.mxu0 0.0
  %4874 = vmatpush1.msra.mxu0 %v4868
  %4875 = vmatprep.subr.mxu0 0.0
  %4876 = vmatpush1.msra.mxu0 0.0
  %4877 = vmatprep.subr.mxu0 0.0
  %4878 = vmatpush1.msra.mxu0 0.0
  %4879 = vmatprep.subr.mxu0 0.0
  %4880 = vmatpush1.msra.mxu0 0.0
  %4881 = vmatprep.subr.mxu0 0.0
  %4882 = vmatpush1.msra.mxu0 0.0
  %4883 = vmatprep.subr.mxu0 0.0
  %4884 = vmatpush1.msra.mxu0 0.0
  %4885 = vmatprep.subr.mxu0 0.0
  %4886 = vmatpush1.msra.mxu0 0.0
  %4887 = vmatprep.subr.mxu0 0.0
  %4888 = vmatpush1.msra.mxu0 0.0
  %4889 = vmatprep.subr.mxu0 0.0
  %4890 = vmatpush1.msra.mxu0 0.0
  %4891 = vmatprep.subr.mxu0 0.0
  %4892 = vmatpush1.msra.mxu0 0.0
  %4893 = vmatprep.subr.mxu0 0.0
  %4894 = vmatpush1.msra.mxu0 0.0
  %4895 = vmatprep.subr.mxu0 0.0
  %4896 = vmatpush1.msra.mxu0 0.0
  %4897 = vmatprep.subr.mxu0 0.0
  %4898 = vmatpush1.msra.mxu0 0.0
  %4899 = vmatprep.subr.mxu0 0.0
  %4900 = vmatpush1.msra.mxu0 0.0
  %4901 = vmatprep.subr.mxu0 0.0
  %4902 = vmatpush1.msra.mxu0 0.0
  %4903 = vmatprep.subr.mxu0 0.0
  %4904 = vmatpush1.msra.mxu0 0.0
  %4905 = vmatprep.subr.mxu0 0.0
  %4906 = vmatpush1.msra.mxu0 0.0
  %4907 = vmatprep.subr.mxu0 0.0
  %4908 = vmatpush1.msra.mxu0 0.0
  %4909 = vmatprep.subr.mxu0 0.0
  %4910 = vmatpush1.msra.mxu0 0.0
  %4911 = vmatprep.subr.mxu0 0.0
  %4912 = vmatpush1.msra.mxu0 0.0
  %4913 = vmatprep.subr.mxu0 0.0
  %4914 = vmatpush1.msra.mxu0 0.0
  %4915 = vmatprep.subr.mxu0 0.0
  %4916 = vmatpush1.msra.mxu0 0.0
  %4917 = vmatprep.subr.mxu0 0.0
  %4918 = vmatpush1.msra.mxu0 0.0
  %4919 = vmatprep.subr.mxu0 0.0
  %4920 = vmatpush1.msra.mxu0 0.0
  %4921 = vmatprep.subr.mxu0 0.0
  %4922 = vmatpush1.msra.mxu0 0.0
  %4923 = vmatprep.subr.mxu0 0.0
  %4924 = vmatpush1.msra.mxu0 0.0
  %4925 = vmatprep.subr.mxu0 0.0
  %4926 = vmatpush1.msra.mxu0 0.0
  %4927 = vmatprep.subr.mxu0 0.0
  %4928 = vmatpush1.msra.mxu0 0.0
  %4929 = vmatprep.subr.mxu0 0.0
  %4930 = vmatpush1.msra.mxu0 0.0
  %4931 = vmatprep.subr.mxu0 0.0
  %4932 = vmatpush1.msra.mxu0 0.0
  %4933 = vmatprep.mubr.f32.mxu0 0.0
  %4934 = vmatmul.mubr.f32.gmra.mrb[0].mxu0 %v545
  %v4935 = vpop.f32.mrb[0].mxu0
  %v4936 = vadd.f32 0.0, %v4935
  %v4937 = vpop.f32.mrb[0].mxu0
  %4938 = vdwg.mxu0
  %v4939 = vpack.c.bf16 %v4508, %v4508
  %v4940 = vpack.c.bf16 %v4936, %v4936
  %v4942 = vsel %vm625, %v4940, 0
  %4944 = vmatprep.subr.bf16.mxu0 0
  %4945 = vmatpush1.bf16.msra.mxu0 %v623
  %4946 = vmatprep.subr.bf16.mxu0 0
  %4947 = vmatpush1.bf16.msra.mxu0 0
  %4948 = vmatprep.subr.bf16.mxu0 0
  %4949 = vmatpush1.bf16.msra.mxu0 0
  %4950 = vmatprep.subr.bf16.mxu0 0
  %4951 = vmatpush1.bf16.msra.mxu0 0
  %4952 = vmatprep.subr.bf16.mxu0 0
  %4953 = vmatpush1.bf16.msra.mxu0 0
  %4954 = vmatprep.subr.bf16.mxu0 0
  %4955 = vmatpush1.bf16.msra.mxu0 0
  %4956 = vmatprep.subr.bf16.mxu0 0
  %4957 = vmatpush1.bf16.msra.mxu0 0
  %4958 = vmatprep.subr.bf16.mxu0 0
  %4959 = vmatpush1.bf16.msra.mxu0 0
  %4960 = vmatprep.subr.bf16.mxu0 0
  %4961 = vmatpush1.bf16.msra.mxu0 0
  %4962 = vmatprep.subr.bf16.mxu0 0
  %4963 = vmatpush1.bf16.msra.mxu0 0
  %4964 = vmatprep.subr.bf16.mxu0 0
  %4965 = vmatpush1.bf16.msra.mxu0 0
  %4966 = vmatprep.subr.bf16.mxu0 0
  %4967 = vmatpush1.bf16.msra.mxu0 0
  %4968 = vmatprep.subr.bf16.mxu0 0
  %4969 = vmatpush1.bf16.msra.mxu0 0
  %4970 = vmatprep.subr.bf16.mxu0 0
  %4971 = vmatpush1.bf16.msra.mxu0 0
  %4972 = vmatprep.subr.bf16.mxu0 0
  %4973 = vmatpush1.bf16.msra.mxu0 0
  %4974 = vmatprep.subr.bf16.mxu0 0
  %4975 = vmatpush1.bf16.msra.mxu0 0
  %4976 = vmatprep.mubr.bf16.mxu0 0
  %4977 = vmatmul.mubr.bf16.gmra.mrb[0].mxu0 %v4942
  %v4978 = vpop.f32.mrb[0].mxu0
  %v4979 = vadd.f32 0.0, %v4978
  %v4980 = vpop.f32.mrb[0].mxu0
  %v4981 = vpop.f32.mrb[0].mxu0
  %v4982 = vpop.f32.mrb[0].mxu0
  %4983 = vdwg.mxu0
  %v4985 = vsel %vm277, %v4939, 0
  %4987 = vmatprep.subr.bf16.mxu0 0
  %4988 = vmatpush1.bf16.msra.mxu0 %v673
  %4989 = vmatprep.subr.bf16.mxu0 0
  %4990 = vmatpush1.bf16.msra.mxu0 0
  %4991 = vmatprep.subr.bf16.mxu0 0
  %4992 = vmatpush1.bf16.msra.mxu0 0
  %4993 = vmatprep.subr.bf16.mxu0 0
  %4994 = vmatpush1.bf16.msra.mxu0 0
  %4995 = vmatprep.subr.bf16.mxu0 0
  %4996 = vmatpush1.bf16.msra.mxu0 0
  %4997 = vmatprep.subr.bf16.mxu0 0
  %4998 = vmatpush1.bf16.msra.mxu0 0
  %4999 = vmatprep.subr.bf16.mxu0 0
  %5000 = vmatpush1.bf16.msra.mxu0 0
  %5001 = vmatprep.subr.bf16.mxu0 0
  %5002 = vmatpush1.bf16.msra.mxu0 0
  %5003 = vmatprep.subr.bf16.mxu0 0
  %5004 = vmatpush1.bf16.msra.mxu0 0
  %5005 = vmatprep.subr.bf16.mxu0 0
  %5006 = vmatpush1.bf16.msra.mxu0 0
  %5007 = vmatprep.subr.bf16.mxu0 0
  %5008 = vmatpush1.bf16.msra.mxu0 0
  %5009 = vmatprep.subr.bf16.mxu0 0
  %5010 = vmatpush1.bf16.msra.mxu0 0
  %5011 = vmatprep.subr.bf16.mxu0 0
  %5012 = vmatpush1.bf16.msra.mxu0 0
  %5013 = vmatprep.subr.bf16.mxu0 0
  %5014 = vmatpush1.bf16.msra.mxu0 0
  %5015 = vmatprep.subr.bf16.mxu0 0
  %5016 = vmatpush1.bf16.msra.mxu0 0
  %5017 = vmatprep.subr.bf16.mxu0 0
  %5018 = vmatpush1.bf16.msra.mxu0 0
  %5019 = vmatprep.mubr.bf16.mxu0 0
  %5020 = vmatmul.mubr.bf16.gmra.mrb[0].mxu0 %v4985
  %v5021 = vpop.f32.mrb[0].mxu0
  %v5022 = vadd.f32 %v4979, %v5021
  %v5023 = vpop.f32.mrb[0].mxu0
  %v5024 = vpop.f32.mrb[0].mxu0
  %v5025 = vpop.f32.mrb[0].mxu0
  %5026 = vdwg.mxu0
  %v5027 = vadd.f32 %v5022, %v719
  %v5028 = vmax.f32 %v5027, 0.0
  %v5029 = vpack.c.bf16 %v5028, %v5028
  %v5031 = vsel %vm742, %v5029, 0
  %5033 = vmatprep.subr.bf16.mxu0 0
  %5034 = vmatpush1.bf16.msra.mxu0 %v738
  %5035 = vmatprep.subr.bf16.mxu0 0
  %5036 = vmatpush1.bf16.msra.mxu0 %v739
  %5037 = vmatprep.subr.bf16.mxu0 0
  %5038 = vmatpush1.bf16.msra.mxu0 0
  %5039 = vmatprep.subr.bf16.mxu0 0
  %5040 = vmatpush1.bf16.msra.mxu0 0
  %5041 = vmatprep.subr.bf16.mxu0 0
  %5042 = vmatpush1.bf16.msra.mxu0 0
  %5043 = vmatprep.subr.bf16.mxu0 0
  %5044 = vmatpush1.bf16.msra.mxu0 0
  %5045 = vmatprep.subr.bf16.mxu0 0
  %5046 = vmatpush1.bf16.msra.mxu0 0
  %5047 = vmatprep.subr.bf16.mxu0 0
  %5048 = vmatpush1.bf16.msra.mxu0 0
  %5049 = vmatprep.subr.bf16.mxu0 0
  %5050 = vmatpush1.bf16.msra.mxu0 0
  %5051 = vmatprep.subr.bf16.mxu0 0
  %5052 = vmatpush1.bf16.msra.mxu0 0
  %5053 = vmatprep.subr.bf16.mxu0 0
  %5054 = vmatpush1.bf16.msra.mxu0 0
  %5055 = vmatprep.subr.bf16.mxu0 0
  %5056 = vmatpush1.bf16.msra.mxu0 0
  %5057 = vmatprep.subr.bf16.mxu0 0
  %5058 = vmatpush1.bf16.msra.mxu0 0
  %5059 = vmatprep.subr.bf16.mxu0 0
  %5060 = vmatpush1.bf16.msra.mxu0 0
  %5061 = vmatprep.subr.bf16.mxu0 0
  %5062 = vmatpush1.bf16.msra.mxu0 0
  %5063 = vmatprep.subr.bf16.mxu0 0
  %5064 = vmatpush1.bf16.msra.mxu0 0
  %5065 = vmatprep.mubr.bf16.mxu0 0
  %5066 = vmatmul.mubr.bf16.gmra.mrb[0].mxu0 %v5031
  %v5067 = vpop.f32.mrb[0].mxu0
  %v5068 = vadd.f32 %v728, %v5067
  %v5069 = vpop.f32.mrb[0].mxu0
  %v5070 = vpop.f32.mrb[0].mxu0
  %v5071 = vpop.f32.mrb[0].mxu0
  %5072 = vdwg.mxu0
  %v5073 = vmax.f32 %v5068, 0.0
  %v5074 = vpack.c.bf16 %v5073, %v5073
  %v5076 = vsel %vm742, %v5074, 0
  %5078 = vmatprep.subr.bf16.mxu0 0
  %5079 = vmatpush1.bf16.msra.mxu0 %v802
  %5080 = vmatprep.subr.bf16.mxu0 0
  %5081 = vmatpush1.bf16.msra.mxu0 %v803
  %5082 = vmatprep.subr.bf16.mxu0 0
  %5083 = vmatpush1.bf16.msra.mxu0 0
  %5084 = vmatprep.subr.bf16.mxu0 0
  %5085 = vmatpush1.bf16.msra.mxu0 0
  %5086 = vmatprep.subr.bf16.mxu0 0
  %5087 = vmatpush1.bf16.msra.mxu0 0
  %5088 = vmatprep.subr.bf16.mxu0 0
  %5089 = vmatpush1.bf16.msra.mxu0 0
  %5090 = vmatprep.subr.bf16.mxu0 0
  %5091 = vmatpush1.bf16.msra.mxu0 0
  %5092 = vmatprep.subr.bf16.mxu0 0
  %5093 = vmatpush1.bf16.msra.mxu0 0
  %5094 = vmatprep.subr.bf16.mxu0 0
  %5095 = vmatpush1.bf16.msra.mxu0 0
  %5096 = vmatprep.subr.bf16.mxu0 0
  %5097 = vmatpush1.bf16.msra.mxu0 0
  %5098 = vmatprep.subr.bf16.mxu0 0
  %5099 = vmatpush1.bf16.msra.mxu0 0
  %5100 = vmatprep.subr.bf16.mxu0 0
  %5101 = vmatpush1.bf16.msra.mxu0 0
  %5102 = vmatprep.subr.bf16.mxu0 0
  %5103 = vmatpush1.bf16.msra.mxu0 0
  %5104 = vmatprep.subr.bf16.mxu0 0
  %5105 = vmatpush1.bf16.msra.mxu0 0
  %5106 = vmatprep.subr.bf16.mxu0 0
  %5107 = vmatpush1.bf16.msra.mxu0 0
  %5108 = vmatprep.subr.bf16.mxu0 0
  %5109 = vmatpush1.bf16.msra.mxu0 0
  %5110 = vmatprep.mubr.bf16.mxu0 0
  %5111 = vmatmul.mubr.bf16.gmra.mrb[0].mxu0 %v5076
  %v5112 = vpop.f32.mrb[0].mxu0
  %v5113 = vadd.f32 %v792, %v5112
  %v5114 = vpop.f32.mrb[0].mxu0
  %v5115 = vpop.f32.mrb[0].mxu0
  %v5116 = vpop.f32.mrb[0].mxu0
  %5117 = vdwg.mxu0
  %v5118 = vadd.f32 %v4508, %v5113
  %s5119 = scalar_lea.vmem %s17, 56
  %5120 = vst.msk [vmem:[%s5119] sm:$0xff] %vm277, %v5118
  // Predicated region
  $region70: #{nri_multi_forward.3} parent=0 // pred_check
    _
  $region71: #{nri_multi_forward.3} parent=0 // pred_check_branch
    %5122 = sbr.rel (0) target = $region73
  $region72: #{nri_multi_forward.3} parent=0 // pred_region
    _
  $region73: #{nri_multi_forward.3} parent=0 // pred_fallthru
    _
  // Predicated region
  $region74: #{nri_multi_forward.3} parent=0 // pred_check
    _
  $region75: #{nri_multi_forward.3} parent=0 // pred_check_branch
    %5124 = sbr.rel (0) target = $region77
  $region76: #{nri_multi_forward.3} parent=0 // pred_region
    _
  $region77: #{nri_multi_forward.3} parent=0 // pred_fallthru
    _

</llo_original>
